<compile_context>
chip_gen: v5e
topology: v5e:2x2
jax: 0.10.0
libtpu: 0.0.40
codegen_flags: <defaults>
</compile_context>

<pallas_src>
import numpy as np
import jax
import jax.numpy as jnp
from jax.experimental import pallas as pl
from jax.experimental.pallas import tpu as pltpu


# ----------------------------------------------------------------------------
# Host-side constant builders (turn conv into left/right matmuls).
# ----------------------------------------------------------------------------
def _conv_row_mats(w, Hi, Ho):
    """Left matrices with dy folded in; output rows are parity-major in y:
       M[dx, (y%2)*Cout*(Ho//2) + oc*(Ho//2) + y//2, c*Hi + y + dy] += w[oc,c,dy,dx]."""
    Cout, Cin, KH, KW = w.shape
    Hp = Ho // 2
    M = np.zeros((KW, Cout * Ho, Cin * Hi), np.float32)
    for dx in range(KW):
        for oc in range(Cout):
            for y in range(Ho):
                r = (y % 2) * (Cout * Hp) + oc * Hp + y // 2
                for dy in range(KH):
                    for c in range(Cin):
                        M[dx, r, c * Hi + y + dy] += w[oc, c, dy, dx]
    return M


def _conv_col_mats(B, Wi, Wo, KW, out_col):
    """Right matrices: block-diagonal column shift (per batch-slab of width Wi) with a
       built-in output-column permutation (x-parity-major) so 2x2 max-pool becomes
       elementwise max of contiguous lane slices."""
    S = np.zeros((KW, B * Wi, B * Wo), np.float32)
    for dx in range(KW):
        for b in range(B):
            for x in range(Wo):
                S[dx, b * Wi + x + dx, out_col(b, x)] = 1.0
    return S


def _bias_rows(bias, Cout, Ho):
    """Per-row bias matching the parity-major row layout of the conv output."""
    Hp = Ho // 2
    v = np.zeros((Cout * Ho, 1), np.float32)
    for oc in range(Cout):
        for y in range(Ho):
            r = (y % 2) * (Cout * Hp) + oc * Hp + y // 2
            v[r, 0] = bias[oc]
    return v


# ----------------------------------------------------------------------------
# Pallas kernel: forward pass for one block of B batch elements per grid step.
# ----------------------------------------------------------------------------
def _make_kernel(B):
    W24 = B * 24
    W12 = B * 12
    W8 = B * 8
    W4 = B * 4

    def kernel(x_ref, m1_ref, cs1_ref, b1_ref,
               m2_ref, cs2_ref, b2_ref,
               wl_ref, bl_ref,
               logits_ref, feat_ref):
        x = x_ref[0]                                            # (28, B*28), cols = b*28 + x

        # ---- conv1 (1 -> 10, k=5) + ReLU : (240, B*24), rows parity-major in y ----
        acc1 = jnp.zeros((240, W24), jnp.float32)
        for dx in range(5):
            t = jnp.dot(m1_ref[dx], x, preferred_element_type=jnp.float32)            # (240, B*28)
            acc1 = acc1 + jnp.dot(t, cs1_ref[dx], preferred_element_type=jnp.float32)  # (240, B*24)
        h1 = jnp.maximum(acc1 + b1_ref[...], 0.0)

        # ---- maxpool 2x2 on the VPU (parity-major rows/cols -> contiguous slices) ----
        rp = jnp.maximum(h1[:120, :], h1[120:, :])              # (120, B*24), rows = c*12 + i
        p1 = jnp.maximum(rp[:, :W12], rp[:, W12:])              # (120, B*12), cols = b*12 + u

        # ---- conv2 (10 -> 10, k=5) + ReLU : (80, B*8), rows parity-major in y ----
        acc2 = jnp.zeros((80, W8), jnp.float32)
        for dx in range(5):
            t = jnp.dot(m2_ref[dx], p1, preferred_element_type=jnp.float32)           # (80, B*12)
            acc2 = acc2 + jnp.dot(t, cs2_ref[dx], preferred_element_type=jnp.float32)  # (80, B*8)
        h2 = jnp.maximum(acc2 + b2_ref[...], 0.0)

        # ---- maxpool 2x2 on the VPU ----
        rp2 = jnp.maximum(h2[:40, :], h2[40:, :])               # (40, B*8), rows = c*4 + i
        p2 = jnp.maximum(rp2[:, :W4], rp2[:, W4:])              # (40, B*4), cols = j*B + b

        # ---- linear 160 -> 62, lane-batched: logits (62, B) ----
        acc3 = jnp.zeros((62, B), jnp.float32)
        for j in range(4):
            acc3 = acc3 + jnp.dot(wl_ref[j], p2[:, j * B:(j + 1) * B],
                                  preferred_element_type=jnp.float32)
        logits_ref[0] = acc3 + bl_ref[...]                      # (62, B)
        feat_ref[0] = p2                                        # (40, B*4)

    return kernel


# ----------------------------------------------------------------------------
# Wrapper
# ----------------------------------------------------------------------------
def cnn_forward(x_nchw, params, block_batch=8):
    w1, b1, w2, b2, wo, bo = params
    w1 = np.asarray(w1, np.float32); b1 = np.asarray(b1, np.float32)
    w2 = np.asarray(w2, np.float32); b2 = np.asarray(b2, np.float32)
    wo = np.asarray(wo, np.float32); bo = np.asarray(bo, np.float32)

    N = x_nchw.shape[0]
    B = int(block_batch)
    Nb = -(-N // B)
    Npad = Nb * B

    x = jnp.asarray(x_nchw, jnp.float32).reshape(N, 28, 28)
    if Npad != N:
        x = jnp.concatenate([x, jnp.zeros((Npad - N, 28, 28), jnp.float32)], axis=0)
    # (Nb, 28, B*28): per block, columns are b*28 + x (batch packed along lanes).
    x3 = x.reshape(Nb, B, 28, 28).transpose(0, 2, 1, 3).reshape(Nb, 28, B * 28)

    # conv1 constants
    M1 = jnp.asarray(_conv_row_mats(w1, 28, 24))                           # (5, 240, 28)
    CS1 = jnp.asarray(_conv_col_mats(
        B, 28, 24, 5, lambda b, xx: (xx % 2) * (B * 12) + b * 12 + xx // 2))  # (5, B*28, B*24)
    b1e = jnp.asarray(_bias_rows(b1, 10, 24))                              # (240, 1)

    # conv2 constants
    M2 = jnp.asarray(_conv_row_mats(w2, 12, 8))                            # (5, 80, 120)
    CS2 = jnp.asarray(_conv_col_mats(
        B, 12, 8, 5, lambda b, xx: (xx % 2) * (B * 4) + (xx // 2) * B + b))   # (5, B*12, B*8)
    b2e = jnp.asarray(_bias_rows(b2, 10, 8))                               # (80, 1)

    # linear constants: Wl[j, o, c*4+i] = wo[o, c*16 + i*4 + j]
    Wl = jnp.asarray(np.transpose(wo.reshape(62, 10, 4, 4), (3, 0, 1, 2)).reshape(4, 62, 40))
    bl = jnp.asarray(bo[:, None])                                          # (62, 1)

    def const_spec(shape):
        nd = len(shape)
        return pl.BlockSpec(shape, lambda i, _nd=nd: (0,) * _nd)

    flops_per_block = (2 * 5 * (240 * 28 * (B * 28) + 240 * (B * 28) * (B * 24)
                                + 80 * 120 * (B * 12) + 80 * (B * 12) * (B * 8))
                       + 2 * 4 * 62 * 40 * B)
    bytes_accessed = 4 * int(x3.size + M1.size + CS1.size + M2.size + CS2.size
                             + Wl.size + b1e.size + b2e.size + bl.size
                             + Npad * 62 + Npad * 160)

    logits_raw, feat_raw = pl.pallas_call(
        _make_kernel(B),
        grid=(Nb,),
        in_specs=[
            pl.BlockSpec((1, 28, B * 28), lambda i: (i, 0, 0)),
            const_spec((5, 240, 28)),
            const_spec((5, B * 28, B * 24)),
            const_spec((240, 1)),
            const_spec((5, 80, 120)),
            const_spec((5, B * 12, B * 8)),
            const_spec((80, 1)),
            const_spec((4, 62, 40)),
            const_spec((62, 1)),
        ],
        out_specs=[
            pl.BlockSpec((1, 62, B), lambda i: (i, 0, 0)),
            pl.BlockSpec((1, 40, B * 4), lambda i: (i, 0, 0)),
        ],
        out_shape=[
            jax.ShapeDtypeStruct((Nb, 62, B), jnp.float32),
            jax.ShapeDtypeStruct((Nb, 40, B * 4), jnp.float32),
        ],
        compiler_params=pltpu.CompilerParams(dimension_semantics=("parallel",)),
        cost_estimate=pl.CostEstimate(flops=Nb * flops_per_block,
                                      transcendentals=0,
                                      bytes_accessed=bytes_accessed),
    )(x3, M1, CS1, b1e, M2, CS2, b2e, Wl, bl)

    # logits_raw[blk, o, b] -> (N, 62)
    logits = jnp.transpose(logits_raw, (0, 2, 1)).reshape(Npad, 62)[:N]
    # feat_raw[blk, c*4+i, j*B+b] -> (N, 160) in PyTorch CHW-flatten order
    feat = jnp.transpose(feat_raw.reshape(Nb, 10, 4, 4, B),
                         (0, 4, 1, 2, 3)).reshape(Npad, 160)[:N]
    return logits, feat


# ----------------------------------------------------------------------------
# Pure-JAX reference (semantics of the PyTorch module) for verification.
# ----------------------------------------------------------------------------
def reference_forward(x_nchw, params):
    w1, b1, w2, b2, wo, bo = params
    dn = ('NCHW', 'OIHW', 'NCHW')
    y = jax.lax.conv_general_dilated(x_nchw, w1, (1, 1), 'VALID', dimension_numbers=dn)
    y = jnp.maximum(y + b1[None, :, None, None], 0.0)
    y = jax.lax.reduce_window(y, -jnp.inf, jax.lax.max, (1, 1, 2, 2), (1, 1, 2, 2), 'VALID')
    y = jax.lax.conv_general_dilated(y, w2, (1, 1), 'VALID', dimension_numbers=dn)
    y = jnp.maximum(y + b2[None, :, None, None], 0.0)
    y = jax.lax.reduce_window(y, -jnp.inf, jax.lax.max, (1, 1, 2, 2), (1, 1, 2, 2), 'VALID')
    feat = y.reshape(y.shape[0], -1)
    logits = feat @ wo.T + bo[None, :]
    return logits, feat


if __name__ == "__main__":
    key = jax.random.PRNGKey(0)
    kx, k1, k2, k3, k4, k5, k6 = jax.random.split(key, 7)

    # Deterministic synthetic parameters (same shapes as the PyTorch module).
    w1 = 0.1 * jax.random.normal(k1, (10, 1, 5, 5), jnp.float32)
    b1 = 0.1 * jax.random.normal(k2, (10,), jnp.float32)
    w2 = 0.1 * jax.random.normal(k3, (10, 10, 5, 5), jnp.float32)
    b2 = 0.1 * jax.random.normal(k4, (10,), jnp.float32)
    wo = 0.1 * jax.random.normal(k5, (62, 160), jnp.float32)
    bo = 0.1 * jax.random.normal(k6, (62,), jnp.float32)
    params = (w1, b1, w2, b2, wo, bo)

    # 28x28 spatial size is forced by Linear(10*4*4, 62).
    # Batch 16 -> 2 grid blocks of 8 (keeps both v7x TensorCores busy).
    x = jax.random.normal(kx, (16, 1, 28, 28), jnp.float32)

    logits, feat = cnn_forward(x, params)
    jax.block_until_ready((logits, feat))

    ref_logits, ref_feat = reference_forward(x, params)
    np.testing.assert_allclose(np.asarray(feat), np.asarray(ref_feat), rtol=1e-3, atol=1e-3)
    np.testing.assert_allclose(np.asarray(logits), np.asarray(ref_logits), rtol=1e-3, atol=1e-3)

    print("KERNEL_OK")
</pallas_src>

<mosaic_0001>
module attributes {stable_mosaic.version = 11 : i64} {
  func.func @kernel(%arg0: i32, %arg1: memref<1x28x224xf32, #tpu.memory_space<vmem>>, %arg2: memref<5x240x28xf32, #tpu.memory_space<vmem>>, %arg3: memref<5x224x192xf32, #tpu.memory_space<vmem>>, %arg4: memref<240x1xf32, #tpu.memory_space<vmem>>, %arg5: memref<5x80x120xf32, #tpu.memory_space<vmem>>, %arg6: memref<5x96x64xf32, #tpu.memory_space<vmem>>, %arg7: memref<80x1xf32, #tpu.memory_space<vmem>>, %arg8: memref<4x62x40xf32, #tpu.memory_space<vmem>>, %arg9: memref<62x1xf32, #tpu.memory_space<vmem>>, %arg10: memref<1x62x8xf32, #tpu.memory_space<vmem>>, %arg11: memref<1x40x32xf32, #tpu.memory_space<vmem>>) attributes {dimension_semantics = [#tpu.dimension_semantics<parallel>], iteration_bounds = array<i64: 2>, scalar_prefetch = 0 : i64, scratch_operands = 0 : i64, tpu.core_type = #tpu.core_type<tc>, window_params = [{transform_indices = @transform_0, window_bounds = array<i64: 1, 28, 224>}, {pipeline_mode = #tpu.pipeline_mode<synchronous>, transform_indices = @transform_1, window_bounds = array<i64: 5, 240, 28>}, {pipeline_mode = #tpu.pipeline_mode<synchronous>, transform_indices = @transform_2, window_bounds = array<i64: 5, 224, 192>}, {pipeline_mode = #tpu.pipeline_mode<synchronous>, transform_indices = @transform_3, window_bounds = array<i64: 240, 1>}, {pipeline_mode = #tpu.pipeline_mode<synchronous>, transform_indices = @transform_4, window_bounds = array<i64: 5, 80, 120>}, {pipeline_mode = #tpu.pipeline_mode<synchronous>, transform_indices = @transform_5, window_bounds = array<i64: 5, 96, 64>}, {pipeline_mode = #tpu.pipeline_mode<synchronous>, transform_indices = @transform_6, window_bounds = array<i64: 80, 1>}, {pipeline_mode = #tpu.pipeline_mode<synchronous>, transform_indices = @transform_7, window_bounds = array<i64: 4, 62, 40>}, {pipeline_mode = #tpu.pipeline_mode<synchronous>, transform_indices = @transform_8, window_bounds = array<i64: 62, 1>}, {transform_indices = @transform_9, window_bounds = array<i64: 1, 62, 8>}, {transform_indices = @transform_10, window_bounds = array<i64: 1, 40, 32>}]} {
    %c0 = arith.constant 0 : index
    %c0_0 = arith.constant 0 : index
    %c0_1 = arith.constant 0 : index
    %0 = vector.load %arg1[%c0, %c0_0, %c0_1] : memref<1x28x224xf32, #tpu.memory_space<vmem>>, vector<1x28x224xf32>
    %1 = vector.shape_cast %0 : vector<1x28x224xf32> to vector<28x224xf32>
    %cst = arith.constant 0.000000e+00 : f32
    %2 = vector.broadcast %cst : f32 to vector<240x192xf32>
    %c0_2 = arith.constant 0 : index
    %c0_3 = arith.constant 0 : index
    %c0_4 = arith.constant 0 : index
    %3 = vector.load %arg2[%c0_2, %c0_3, %c0_4] : memref<5x240x28xf32, #tpu.memory_space<vmem>>, vector<1x240x28xf32>
    %4 = vector.shape_cast %3 : vector<1x240x28xf32> to vector<240x28xf32>
    %cst_5 = arith.constant dense<0.000000e+00> : vector<240x224xf32>
    %5 = tpu.matmul %4, %1, %cst_5 {dimension_numbers = #tpu.dot_dimension_numbers<[1], [0], [0], [1], [0, 0, 1, 1], [], []>} : vector<240x28xf32>, vector<28x224xf32>, vector<240x224xf32> -> vector<240x224xf32>
    %c0_6 = arith.constant 0 : index
    %c0_7 = arith.constant 0 : index
    %c0_8 = arith.constant 0 : index
    %6 = vector.load %arg3[%c0_6, %c0_7, %c0_8] : memref<5x224x192xf32, #tpu.memory_space<vmem>>, vector<1x224x192xf32>
    %7 = vector.shape_cast %6 : vector<1x224x192xf32> to vector<224x192xf32>
    %cst_9 = arith.constant dense<0.000000e+00> : vector<240x192xf32>
    %8 = tpu.matmul %5, %7, %cst_9 {dimension_numbers = #tpu.dot_dimension_numbers<[1], [0], [0], [1], [0, 0, 1, 1], [], []>} : vector<240x224xf32>, vector<224x192xf32>, vector<240x192xf32> -> vector<240x192xf32>
    %9 = arith.addf %2, %8 : vector<240x192xf32>
    %c1 = arith.constant 1 : index
    %c0_10 = arith.constant 0 : index
    %c0_11 = arith.constant 0 : index
    %10 = vector.load %arg2[%c1, %c0_10, %c0_11] : memref<5x240x28xf32, #tpu.memory_space<vmem>>, vector<1x240x28xf32>
    %11 = vector.shape_cast %10 : vector<1x240x28xf32> to vector<240x28xf32>
    %cst_12 = arith.constant dense<0.000000e+00> : vector<240x224xf32>
    %12 = tpu.matmul %11, %1, %cst_12 {dimension_numbers = #tpu.dot_dimension_numbers<[1], [0], [0], [1], [0, 0, 1, 1], [], []>} : vector<240x28xf32>, vector<28x224xf32>, vector<240x224xf32> -> vector<240x224xf32>
    %c1_13 = arith.constant 1 : index
    %c0_14 = arith.constant 0 : index
    %c0_15 = arith.constant 0 : index
    %13 = vector.load %arg3[%c1_13, %c0_14, %c0_15] : memref<5x224x192xf32, #tpu.memory_space<vmem>>, vector<1x224x192xf32>
    %14 = vector.shape_cast %13 : vector<1x224x192xf32> to vector<224x192xf32>
    %cst_16 = arith.constant dense<0.000000e+00> : vector<240x192xf32>
    %15 = tpu.matmul %12, %14, %cst_16 {dimension_numbers = #tpu.dot_dimension_numbers<[1], [0], [0], [1], [0, 0, 1, 1], [], []>} : vector<240x224xf32>, vector<224x192xf32>, vector<240x192xf32> -> vector<240x192xf32>
    %16 = arith.addf %9, %15 : vector<240x192xf32>
    %c2 = arith.constant 2 : index
    %c0_17 = arith.constant 0 : index
    %c0_18 = arith.constant 0 : index
    %17 = vector.load %arg2[%c2, %c0_17, %c0_18] : memref<5x240x28xf32, #tpu.memory_space<vmem>>, vector<1x240x28xf32>
    %18 = vector.shape_cast %17 : vector<1x240x28xf32> to vector<240x28xf32>
    %cst_19 = arith.constant dense<0.000000e+00> : vector<240x224xf32>
    %19 = tpu.matmul %18, %1, %cst_19 {dimension_numbers = #tpu.dot_dimension_numbers<[1], [0], [0], [1], [0, 0, 1, 1], [], []>} : vector<240x28xf32>, vector<28x224xf32>, vector<240x224xf32> -> vector<240x224xf32>
    %c2_20 = arith.constant 2 : index
    %c0_21 = arith.constant 0 : index
    %c0_22 = arith.constant 0 : index
    %20 = vector.load %arg3[%c2_20, %c0_21, %c0_22] : memref<5x224x192xf32, #tpu.memory_space<vmem>>, vector<1x224x192xf32>
    %21 = vector.shape_cast %20 : vector<1x224x192xf32> to vector<224x192xf32>
    %cst_23 = arith.constant dense<0.000000e+00> : vector<240x192xf32>
    %22 = tpu.matmul %19, %21, %cst_23 {dimension_numbers = #tpu.dot_dimension_numbers<[1], [0], [0], [1], [0, 0, 1, 1], [], []>} : vector<240x224xf32>, vector<224x192xf32>, vector<240x192xf32> -> vector<240x192xf32>
    %23 = arith.addf %16, %22 : vector<240x192xf32>
    %c3 = arith.constant 3 : index
    %c0_24 = arith.constant 0 : index
    %c0_25 = arith.constant 0 : index
    %24 = vector.load %arg2[%c3, %c0_24, %c0_25] : memref<5x240x28xf32, #tpu.memory_space<vmem>>, vector<1x240x28xf32>
    %25 = vector.shape_cast %24 : vector<1x240x28xf32> to vector<240x28xf32>
    %cst_26 = arith.constant dense<0.000000e+00> : vector<240x224xf32>
    %26 = tpu.matmul %25, %1, %cst_26 {dimension_numbers = #tpu.dot_dimension_numbers<[1], [0], [0], [1], [0, 0, 1, 1], [], []>} : vector<240x28xf32>, vector<28x224xf32>, vector<240x224xf32> -> vector<240x224xf32>
    %c3_27 = arith.constant 3 : index
    %c0_28 = arith.constant 0 : index
    %c0_29 = arith.constant 0 : index
    %27 = vector.load %arg3[%c3_27, %c0_28, %c0_29] : memref<5x224x192xf32, #tpu.memory_space<vmem>>, vector<1x224x192xf32>
    %28 = vector.shape_cast %27 : vector<1x224x192xf32> to vector<224x192xf32>
    %cst_30 = arith.constant dense<0.000000e+00> : vector<240x192xf32>
    %29 = tpu.matmul %26, %28, %cst_30 {dimension_numbers = #tpu.dot_dimension_numbers<[1], [0], [0], [1], [0, 0, 1, 1], [], []>} : vector<240x224xf32>, vector<224x192xf32>, vector<240x192xf32> -> vector<240x192xf32>
    %30 = arith.addf %23, %29 : vector<240x192xf32>
    %c4 = arith.constant 4 : index
    %c0_31 = arith.constant 0 : index
    %c0_32 = arith.constant 0 : index
    %31 = vector.load %arg2[%c4, %c0_31, %c0_32] : memref<5x240x28xf32, #tpu.memory_space<vmem>>, vector<1x240x28xf32>
    %32 = vector.shape_cast %31 : vector<1x240x28xf32> to vector<240x28xf32>
    %cst_33 = arith.constant dense<0.000000e+00> : vector<240x224xf32>
    %33 = tpu.matmul %32, %1, %cst_33 {dimension_numbers = #tpu.dot_dimension_numbers<[1], [0], [0], [1], [0, 0, 1, 1], [], []>} : vector<240x28xf32>, vector<28x224xf32>, vector<240x224xf32> -> vector<240x224xf32>
    %c4_34 = arith.constant 4 : index
    %c0_35 = arith.constant 0 : index
    %c0_36 = arith.constant 0 : index
    %34 = vector.load %arg3[%c4_34, %c0_35, %c0_36] : memref<5x224x192xf32, #tpu.memory_space<vmem>>, vector<1x224x192xf32>
    %35 = vector.shape_cast %34 : vector<1x224x192xf32> to vector<224x192xf32>
    %cst_37 = arith.constant dense<0.000000e+00> : vector<240x192xf32>
    %36 = tpu.matmul %33, %35, %cst_37 {dimension_numbers = #tpu.dot_dimension_numbers<[1], [0], [0], [1], [0, 0, 1, 1], [], []>} : vector<240x224xf32>, vector<224x192xf32>, vector<240x192xf32> -> vector<240x192xf32>
    %37 = arith.addf %30, %36 : vector<240x192xf32>
    %c0_38 = arith.constant 0 : index
    %c0_39 = arith.constant 0 : index
    %38 = vector.load %arg4[%c0_38, %c0_39] : memref<240x1xf32, #tpu.memory_space<vmem>>, vector<240x1xf32>
    %39 = vector.broadcast %38 : vector<240x1xf32> to vector<240x192xf32>
    %40 = arith.addf %37, %39 : vector<240x192xf32>
    %cst_40 = arith.constant 0.000000e+00 : f32
    %41 = vector.broadcast %cst_40 : f32 to vector<240x192xf32>
    %42 = arith.maximumf %40, %41 : vector<240x192xf32>
    %43 = vector.extract_strided_slice %42 {offsets = [0, 0], sizes = [120, 192], strides = [1, 1]} : vector<240x192xf32> to vector<120x192xf32>
    %44 = vector.extract_strided_slice %42 {offsets = [120, 0], sizes = [120, 192], strides = [1, 1]} : vector<240x192xf32> to vector<120x192xf32>
    %45 = arith.maximumf %43, %44 : vector<120x192xf32>
    %46 = vector.extract_strided_slice %45 {offsets = [0, 0], sizes = [120, 96], strides = [1, 1]} : vector<120x192xf32> to vector<120x96xf32>
    %47 = vector.extract_strided_slice %45 {offsets = [0, 96], sizes = [120, 96], strides = [1, 1]} : vector<120x192xf32> to vector<120x96xf32>
    %48 = arith.maximumf %46, %47 : vector<120x96xf32>
    %cst_41 = arith.constant 0.000000e+00 : f32
    %49 = vector.broadcast %cst_41 : f32 to vector<80x64xf32>
    %c0_42 = arith.constant 0 : index
    %c0_43 = arith.constant 0 : index
    %c0_44 = arith.constant 0 : index
    %50 = vector.load %arg5[%c0_42, %c0_43, %c0_44] : memref<5x80x120xf32, #tpu.memory_space<vmem>>, vector<1x80x120xf32>
    %51 = vector.shape_cast %50 : vector<1x80x120xf32> to vector<80x120xf32>
    %cst_45 = arith.constant dense<0.000000e+00> : vector<80x96xf32>
    %52 = tpu.matmul %51, %48, %cst_45 {dimension_numbers = #tpu.dot_dimension_numbers<[1], [0], [0], [1], [0, 0, 1, 1], [], []>} : vector<80x120xf32>, vector<120x96xf32>, vector<80x96xf32> -> vector<80x96xf32>
    %c0_46 = arith.constant 0 : index
    %c0_47 = arith.constant 0 : index
    %c0_48 = arith.constant 0 : index
    %53 = vector.load %arg6[%c0_46, %c0_47, %c0_48] : memref<5x96x64xf32, #tpu.memory_space<vmem>>, vector<1x96x64xf32>
    %54 = vector.shape_cast %53 : vector<1x96x64xf32> to vector<96x64xf32>
    %cst_49 = arith.constant dense<0.000000e+00> : vector<80x64xf32>
    %55 = tpu.matmul %52, %54, %cst_49 {dimension_numbers = #tpu.dot_dimension_numbers<[1], [0], [0], [1], [0, 0, 1, 1], [], []>} : vector<80x96xf32>, vector<96x64xf32>, vector<80x64xf32> -> vector<80x64xf32>
    %56 = arith.addf %49, %55 : vector<80x64xf32>
    %c1_50 = arith.constant 1 : index
    %c0_51 = arith.constant 0 : index
    %c0_52 = arith.constant 0 : index
    %57 = vector.load %arg5[%c1_50, %c0_51, %c0_52] : memref<5x80x120xf32, #tpu.memory_space<vmem>>, vector<1x80x120xf32>
    %58 = vector.shape_cast %57 : vector<1x80x120xf32> to vector<80x120xf32>
    %cst_53 = arith.constant dense<0.000000e+00> : vector<80x96xf32>
    %59 = tpu.matmul %58, %48, %cst_53 {dimension_numbers = #tpu.dot_dimension_numbers<[1], [0], [0], [1], [0, 0, 1, 1], [], []>} : vector<80x120xf32>, vector<120x96xf32>, vector<80x96xf32> -> vector<80x96xf32>
    %c1_54 = arith.constant 1 : index
    %c0_55 = arith.constant 0 : index
    %c0_56 = arith.constant 0 : index
    %60 = vector.load %arg6[%c1_54, %c0_55, %c0_56] : memref<5x96x64xf32, #tpu.memory_space<vmem>>, vector<1x96x64xf32>
    %61 = vector.shape_cast %60 : vector<1x96x64xf32> to vector<96x64xf32>
    %cst_57 = arith.constant dense<0.000000e+00> : vector<80x64xf32>
    %62 = tpu.matmul %59, %61, %cst_57 {dimension_numbers = #tpu.dot_dimension_numbers<[1], [0], [0], [1], [0, 0, 1, 1], [], []>} : vector<80x96xf32>, vector<96x64xf32>, vector<80x64xf32> -> vector<80x64xf32>
    %63 = arith.addf %56, %62 : vector<80x64xf32>
    %c2_58 = arith.constant 2 : index
    %c0_59 = arith.constant 0 : index
    %c0_60 = arith.constant 0 : index
    %64 = vector.load %arg5[%c2_58, %c0_59, %c0_60] : memref<5x80x120xf32, #tpu.memory_space<vmem>>, vector<1x80x120xf32>
    %65 = vector.shape_cast %64 : vector<1x80x120xf32> to vector<80x120xf32>
    %cst_61 = arith.constant dense<0.000000e+00> : vector<80x96xf32>
    %66 = tpu.matmul %65, %48, %cst_61 {dimension_numbers = #tpu.dot_dimension_numbers<[1], [0], [0], [1], [0, 0, 1, 1], [], []>} : vector<80x120xf32>, vector<120x96xf32>, vector<80x96xf32> -> vector<80x96xf32>
    %c2_62 = arith.constant 2 : index
    %c0_63 = arith.constant 0 : index
    %c0_64 = arith.constant 0 : index
    %67 = vector.load %arg6[%c2_62, %c0_63, %c0_64] : memref<5x96x64xf32, #tpu.memory_space<vmem>>, vector<1x96x64xf32>
    %68 = vector.shape_cast %67 : vector<1x96x64xf32> to vector<96x64xf32>
    %cst_65 = arith.constant dense<0.000000e+00> : vector<80x64xf32>
    %69 = tpu.matmul %66, %68, %cst_65 {dimension_numbers = #tpu.dot_dimension_numbers<[1], [0], [0], [1], [0, 0, 1, 1], [], []>} : vector<80x96xf32>, vector<96x64xf32>, vector<80x64xf32> -> vector<80x64xf32>
    %70 = arith.addf %63, %69 : vector<80x64xf32>
    %c3_66 = arith.constant 3 : index
    %c0_67 = arith.constant 0 : index
    %c0_68 = arith.constant 0 : index
    %71 = vector.load %arg5[%c3_66, %c0_67, %c0_68] : memref<5x80x120xf32, #tpu.memory_space<vmem>>, vector<1x80x120xf32>
    %72 = vector.shape_cast %71 : vector<1x80x120xf32> to vector<80x120xf32>
    %cst_69 = arith.constant dense<0.000000e+00> : vector<80x96xf32>
    %73 = tpu.matmul %72, %48, %cst_69 {dimension_numbers = #tpu.dot_dimension_numbers<[1], [0], [0], [1], [0, 0, 1, 1], [], []>} : vector<80x120xf32>, vector<120x96xf32>, vector<80x96xf32> -> vector<80x96xf32>
    %c3_70 = arith.constant 3 : index
    %c0_71 = arith.constant 0 : index
    %c0_72 = arith.constant 0 : index
    %74 = vector.load %arg6[%c3_70, %c0_71, %c0_72] : memref<5x96x64xf32, #tpu.memory_space<vmem>>, vector<1x96x64xf32>
    %75 = vector.shape_cast %74 : vector<1x96x64xf32> to vector<96x64xf32>
    %cst_73 = arith.constant dense<0.000000e+00> : vector<80x64xf32>
    %76 = tpu.matmul %73, %75, %cst_73 {dimension_numbers = #tpu.dot_dimension_numbers<[1], [0], [0], [1], [0, 0, 1, 1], [], []>} : vector<80x96xf32>, vector<96x64xf32>, vector<80x64xf32> -> vector<80x64xf32>
    %77 = arith.addf %70, %76 : vector<80x64xf32>
    %c4_74 = arith.constant 4 : index
    %c0_75 = arith.constant 0 : index
    %c0_76 = arith.constant 0 : index
    %78 = vector.load %arg5[%c4_74, %c0_75, %c0_76] : memref<5x80x120xf32, #tpu.memory_space<vmem>>, vector<1x80x120xf32>
    %79 = vector.shape_cast %78 : vector<1x80x120xf32> to vector<80x120xf32>
    %cst_77 = arith.constant dense<0.000000e+00> : vector<80x96xf32>
    %80 = tpu.matmul %79, %48, %cst_77 {dimension_numbers = #tpu.dot_dimension_numbers<[1], [0], [0], [1], [0, 0, 1, 1], [], []>} : vector<80x120xf32>, vector<120x96xf32>, vector<80x96xf32> -> vector<80x96xf32>
    %c4_78 = arith.constant 4 : index
    %c0_79 = arith.constant 0 : index
    %c0_80 = arith.constant 0 : index
    %81 = vector.load %arg6[%c4_78, %c0_79, %c0_80] : memref<5x96x64xf32, #tpu.memory_space<vmem>>, vector<1x96x64xf32>
    %82 = vector.shape_cast %81 : vector<1x96x64xf32> to vector<96x64xf32>
    %cst_81 = arith.constant dense<0.000000e+00> : vector<80x64xf32>
    %83 = tpu.matmul %80, %82, %cst_81 {dimension_numbers = #tpu.dot_dimension_numbers<[1], [0], [0], [1], [0, 0, 1, 1], [], []>} : vector<80x96xf32>, vector<96x64xf32>, vector<80x64xf32> -> vector<80x64xf32>
    %84 = arith.addf %77, %83 : vector<80x64xf32>
    %c0_82 = arith.constant 0 : index
    %c0_83 = arith.constant 0 : index
    %85 = vector.load %arg7[%c0_82, %c0_83] : memref<80x1xf32, #tpu.memory_space<vmem>>, vector<80x1xf32>
    %86 = vector.broadcast %85 : vector<80x1xf32> to vector<80x64xf32>
    %87 = arith.addf %84, %86 : vector<80x64xf32>
    %cst_84 = arith.constant 0.000000e+00 : f32
    %88 = vector.broadcast %cst_84 : f32 to vector<80x64xf32>
    %89 = arith.maximumf %87, %88 : vector<80x64xf32>
    %90 = vector.extract_strided_slice %89 {offsets = [0, 0], sizes = [40, 64], strides = [1, 1]} : vector<80x64xf32> to vector<40x64xf32>
    %91 = vector.extract_strided_slice %89 {offsets = [40, 0], sizes = [40, 64], strides = [1, 1]} : vector<80x64xf32> to vector<40x64xf32>
    %92 = arith.maximumf %90, %91 : vector<40x64xf32>
    %93 = vector.extract_strided_slice %92 {offsets = [0, 0], sizes = [40, 32], strides = [1, 1]} : vector<40x64xf32> to vector<40x32xf32>
    %94 = vector.extract_strided_slice %92 {offsets = [0, 32], sizes = [40, 32], strides = [1, 1]} : vector<40x64xf32> to vector<40x32xf32>
    %95 = arith.maximumf %93, %94 : vector<40x32xf32>
    %cst_85 = arith.constant 0.000000e+00 : f32
    %96 = vector.broadcast %cst_85 : f32 to vector<62x8xf32>
    %c0_86 = arith.constant 0 : index
    %c0_87 = arith.constant 0 : index
    %c0_88 = arith.constant 0 : index
    %97 = vector.load %arg8[%c0_86, %c0_87, %c0_88] : memref<4x62x40xf32, #tpu.memory_space<vmem>>, vector<1x62x40xf32>
    %98 = vector.shape_cast %97 : vector<1x62x40xf32> to vector<62x40xf32>
    %99 = vector.extract_strided_slice %95 {offsets = [0, 0], sizes = [40, 8], strides = [1, 1]} : vector<40x32xf32> to vector<40x8xf32>
    %cst_89 = arith.constant dense<0.000000e+00> : vector<62x8xf32>
    %100 = tpu.matmul %98, %99, %cst_89 {dimension_numbers = #tpu.dot_dimension_numbers<[1], [0], [0], [1], [0, 0, 1, 1], [], []>} : vector<62x40xf32>, vector<40x8xf32>, vector<62x8xf32> -> vector<62x8xf32>
    %101 = arith.addf %96, %100 : vector<62x8xf32>
    %c1_90 = arith.constant 1 : index
    %c0_91 = arith.constant 0 : index
    %c0_92 = arith.constant 0 : index
    %102 = vector.load %arg8[%c1_90, %c0_91, %c0_92] : memref<4x62x40xf32, #tpu.memory_space<vmem>>, vector<1x62x40xf32>
    %103 = vector.shape_cast %102 : vector<1x62x40xf32> to vector<62x40xf32>
    %104 = vector.extract_strided_slice %95 {offsets = [0, 8], sizes = [40, 8], strides = [1, 1]} : vector<40x32xf32> to vector<40x8xf32>
    %cst_93 = arith.constant dense<0.000000e+00> : vector<62x8xf32>
    %105 = tpu.matmul %103, %104, %cst_93 {dimension_numbers = #tpu.dot_dimension_numbers<[1], [0], [0], [1], [0, 0, 1, 1], [], []>} : vector<62x40xf32>, vector<40x8xf32>, vector<62x8xf32> -> vector<62x8xf32>
    %106 = arith.addf %101, %105 : vector<62x8xf32>
    %c2_94 = arith.constant 2 : index
    %c0_95 = arith.constant 0 : index
    %c0_96 = arith.constant 0 : index
    %107 = vector.load %arg8[%c2_94, %c0_95, %c0_96] : memref<4x62x40xf32, #tpu.memory_space<vmem>>, vector<1x62x40xf32>
    %108 = vector.shape_cast %107 : vector<1x62x40xf32> to vector<62x40xf32>
    %109 = vector.extract_strided_slice %95 {offsets = [0, 16], sizes = [40, 8], strides = [1, 1]} : vector<40x32xf32> to vector<40x8xf32>
    %cst_97 = arith.constant dense<0.000000e+00> : vector<62x8xf32>
    %110 = tpu.matmul %108, %109, %cst_97 {dimension_numbers = #tpu.dot_dimension_numbers<[1], [0], [0], [1], [0, 0, 1, 1], [], []>} : vector<62x40xf32>, vector<40x8xf32>, vector<62x8xf32> -> vector<62x8xf32>
    %111 = arith.addf %106, %110 : vector<62x8xf32>
    %c3_98 = arith.constant 3 : index
    %c0_99 = arith.constant 0 : index
    %c0_100 = arith.constant 0 : index
    %112 = vector.load %arg8[%c3_98, %c0_99, %c0_100] : memref<4x62x40xf32, #tpu.memory_space<vmem>>, vector<1x62x40xf32>
    %113 = vector.shape_cast %112 : vector<1x62x40xf32> to vector<62x40xf32>
    %114 = vector.extract_strided_slice %95 {offsets = [0, 24], sizes = [40, 8], strides = [1, 1]} : vector<40x32xf32> to vector<40x8xf32>
    %cst_101 = arith.constant dense<0.000000e+00> : vector<62x8xf32>
    %115 = tpu.matmul %113, %114, %cst_101 {dimension_numbers = #tpu.dot_dimension_numbers<[1], [0], [0], [1], [0, 0, 1, 1], [], []>} : vector<62x40xf32>, vector<40x8xf32>, vector<62x8xf32> -> vector<62x8xf32>
    %116 = arith.addf %111, %115 : vector<62x8xf32>
    %c0_102 = arith.constant 0 : index
    %c0_103 = arith.constant 0 : index
    %117 = vector.load %arg9[%c0_102, %c0_103] : memref<62x1xf32, #tpu.memory_space<vmem>>, vector<62x1xf32>
    %118 = vector.broadcast %117 : vector<62x1xf32> to vector<62x8xf32>
    %119 = arith.addf %116, %118 : vector<62x8xf32>
    %c0_104 = arith.constant 0 : index
    %c0_105 = arith.constant 0 : index
    %c0_106 = arith.constant 0 : index
    %120 = vector.load %arg10[%c0_104, %c0_105, %c0_106] : memref<1x62x8xf32, #tpu.memory_space<vmem>>, vector<1x62x8xf32>
    %121 = vector.shape_cast %120 : vector<1x62x8xf32> to vector<62x8xf32>
    %122 = vector.shape_cast %119 : vector<62x8xf32> to vector<1x62x8xf32>
    tpu.vector_store %arg10[%c0_104, %c0_105, %c0_106], %122 {strides = array<i32>} : memref<1x62x8xf32, #tpu.memory_space<vmem>>, vector<1x62x8xf32>,
    %c0_107 = arith.constant 0 : index
    %c0_108 = arith.constant 0 : index
    %c0_109 = arith.constant 0 : index
    %123 = vector.load %arg11[%c0_107, %c0_108, %c0_109] : memref<1x40x32xf32, #tpu.memory_space<vmem>>, vector<1x40x32xf32>
    %124 = vector.shape_cast %123 : vector<1x40x32xf32> to vector<40x32xf32>
    %125 = vector.shape_cast %95 : vector<40x32xf32> to vector<1x40x32xf32>
    tpu.vector_store %arg11[%c0_107, %c0_108, %c0_109], %125 {strides = array<i32>} : memref<1x40x32xf32, #tpu.memory_space<vmem>>, vector<1x40x32xf32>,
    return
  }
  func.func @transform_0(%arg0: i32) -> (i32, i32, i32) {
    %c0_i32 = arith.constant 0 : i32
    %c0_i32_0 = arith.constant 0 : i32
    %c0_i32_1 = arith.constant 0 : i32
    return %arg0, %c0_i32, %c0_i32_0 : i32, i32, i32
  }
  func.func @transform_1(%arg0: i32) -> (i32, i32, i32) {
    %c0_i32 = arith.constant 0 : i32
    %c0_i32_0 = arith.constant 0 : i32
    %c0_i32_1 = arith.constant 0 : i32
    %c0_i32_2 = arith.constant 0 : i32
    return %c0_i32, %c0_i32_0, %c0_i32_1 : i32, i32, i32
  }
  func.func @transform_2(%arg0: i32) -> (i32, i32, i32) {
    %c0_i32 = arith.constant 0 : i32
    %c0_i32_0 = arith.constant 0 : i32
    %c0_i32_1 = arith.constant 0 : i32
    %c0_i32_2 = arith.constant 0 : i32
    return %c0_i32, %c0_i32_0, %c0_i32_1 : i32, i32, i32
  }
  func.func @transform_3(%arg0: i32) -> (i32, i32) {
    %c0_i32 = arith.constant 0 : i32
    %c0_i32_0 = arith.constant 0 : i32
    %c0_i32_1 = arith.constant 0 : i32
    return %c0_i32, %c0_i32_0 : i32, i32
  }
  func.func @transform_4(%arg0: i32) -> (i32, i32, i32) {
    %c0_i32 = arith.constant 0 : i32
    %c0_i32_0 = arith.constant 0 : i32
    %c0_i32_1 = arith.constant 0 : i32
    %c0_i32_2 = arith.constant 0 : i32
    return %c0_i32, %c0_i32_0, %c0_i32_1 : i32, i32, i32
  }
  func.func @transform_5(%arg0: i32) -> (i32, i32, i32) {
    %c0_i32 = arith.constant 0 : i32
    %c0_i32_0 = arith.constant 0 : i32
    %c0_i32_1 = arith.constant 0 : i32
    %c0_i32_2 = arith.constant 0 : i32
    return %c0_i32, %c0_i32_0, %c0_i32_1 : i32, i32, i32
  }
  func.func @transform_6(%arg0: i32) -> (i32, i32) {
    %c0_i32 = arith.constant 0 : i32
    %c0_i32_0 = arith.constant 0 : i32
    %c0_i32_1 = arith.constant 0 : i32
    return %c0_i32, %c0_i32_0 : i32, i32
  }
  func.func @transform_7(%arg0: i32) -> (i32, i32, i32) {
    %c0_i32 = arith.constant 0 : i32
    %c0_i32_0 = arith.constant 0 : i32
    %c0_i32_1 = arith.constant 0 : i32
    %c0_i32_2 = arith.constant 0 : i32
    return %c0_i32, %c0_i32_0, %c0_i32_1 : i32, i32, i32
  }
  func.func @transform_8(%arg0: i32) -> (i32, i32) {
    %c0_i32 = arith.constant 0 : i32
    %c0_i32_0 = arith.constant 0 : i32
    %c0_i32_1 = arith.constant 0 : i32
    return %c0_i32, %c0_i32_0 : i32, i32
  }
  func.func @transform_9(%arg0: i32) -> (i32, i32, i32) {
    %c0_i32 = arith.constant 0 : i32
    %c0_i32_0 = arith.constant 0 : i32
    %c0_i32_1 = arith.constant 0 : i32
    return %arg0, %c0_i32, %c0_i32_0 : i32, i32, i32
  }
  func.func @transform_10(%arg0: i32) -> (i32, i32, i32) {
    %c0_i32 = arith.constant 0 : i32
    %c0_i32_0 = arith.constant 0 : i32
    %c0_i32_1 = arith.constant 0 : i32
    return %arg0, %c0_i32, %c0_i32_0 : i32, i32, i32
  }
}

</mosaic_0001>

<llo_original>
// kernel: tpu_custom_call.1
$region0: #{tpu_custom_call.1}
  #allocation0 [shape = 'u32[]', space=smem, size = 0x4, offset = 0x4, fixed_abs, tag = 'smem constant byte address 0x4 - core index']
  #allocation1 [shape = 'u32[72,128]{1,0:T(1,128)}', space=vmem, size = 0x9000, scoped, tag = 'internal scratch']
  %s0 = inlined_call_operand.vmem [shape: f32[2,28,224], index: 0, kind: input, shape index: {}]
  %s1 = inlined_call_operand.vmem [shape: f32[5,240,28], index: 1, kind: input, shape index: {}]
  %s2 = inlined_call_operand.vmem [shape: f32[5,224,192], index: 2, kind: input, shape index: {}]
  %s3 = inlined_call_operand.vmem [shape: f32[240,1], index: 3, kind: input, shape index: {}]
  %s4 = inlined_call_operand.vmem [shape: f32[5,80,120], index: 4, kind: input, shape index: {}]
  %s5 = inlined_call_operand.vmem [shape: f32[5,96,64], index: 5, kind: input, shape index: {}]
  %s6 = inlined_call_operand.vmem [shape: f32[80,1], index: 6, kind: input, shape index: {}]
  %s7 = inlined_call_operand.vmem [shape: f32[4,62,40], index: 7, kind: input, shape index: {}]
  %s8 = inlined_call_operand.vmem [shape: f32[62,1], index: 8, kind: input, shape index: {}]
  %s9 = inlined_call_operand.vmem [shape: f32[2,62,8], index: 9, kind: output, shape index: {0}]
  %s10 = inlined_call_operand.vmem [shape: f32[2,40,32], index: 10, kind: output, shape index: {1}]
  %11 = xla_tuple %s9, %s10
  %s12 = sld [smem:[#allocation0]]
  $region77: #{tpu_custom_call.1} parent=0
    _
  %s14 = ssub.s32 1, %s12
  %s15 = scalar_select 0, %s14, %s12
  loop: start=0, step=1, limit=4
  $region2: #{tpu_custom_call.1} parent=0 // loop_pre_header
    _
  $region3: #{tpu_custom_call.1} parent=0 // loop_header
    %s17 = sphi 0, %s21
    %p18 = scmp.ge.s32.totalorder %s17, 4
    %s27 = sphi 0, %s29
    %s30 = sphi 0, %s27
    %s31 = sphi 0, %s30
    %s47 = sphi 0, %s31
    %s51 = sphi 0, %s51
    %s53 = sphi 0, %s51
    %s54 = sphi 0, %s53
    %s68 = sphi 0, %s54
    %s72 = sphi 0, %s72
    %s74 = sphi 0, %s72
    %s75 = sphi 0, %s74
    %s89 = sphi 0, %s75
    %s93 = sphi 0, %s93
    %s95 = sphi 0, %s93
    %s96 = sphi 0, %s95
    %s110 = sphi 0, %s96
    %s114 = sphi 0, %s114
    %s116 = sphi 0, %s114
    %s117 = sphi 0, %s116
    %s131 = sphi 0, %s117
    %s135 = sphi 0, %s135
    %s137 = sphi 0, %s135
    %s138 = sphi 0, %s137
    %s152 = sphi 0, %s138
    %s156 = sphi 0, %s156
    %s158 = sphi 0, %s156
    %s159 = sphi 0, %s158
    %s173 = sphi 0, %s159
    %s177 = sphi 0, %s177
    %s179 = sphi 0, %s177
    %s180 = sphi 0, %s179
    %s194 = sphi 0, %s180
    %s198 = sphi 0, %s198
    %s200 = sphi 0, %s198
    %s201 = sphi 0, %s200
    %s215 = sphi 0, %s201
    %s221 = sphi 0, %s223
    %s224 = sphi 0, %s221
    %s225 = sphi 0, %s224
    %s241 = sphi 0, %s225
    %s247 = sphi 0, %s249
    %s250 = sphi 0, %s247
    %s251 = sphi 0, %s250
    %s267 = sphi 0, %s251
  $region4: #{tpu_custom_call.1} parent=0 // loop_header_branch
    %20 = sbr.rel (%p18) target = $region8
  $region5: #{tpu_custom_call.1} parent=0 // loop_body
    %s22 = ssub.s32 %s17, 1
    %s23 = ssub.s32 %s17, 2
    %s24 = sadd.s32 %s17, 1
    %s25 = ssub.s32 %s17, %s24
    %p26 = scmp.eq.s32.totalorder %s25, 0
    %s28 = sadd.s32 %s27, 1
    %s29 = scalar_select %p26, %s27, %s28
    %p32 = pneg %p26
    %p33 = scmp.eq.s32.totalorder %s17, 1
    %p34 = por %p32, %p33
    %p35 = scmp.ne.s32.totalorder %s27, %s30
    %p36 = scmp.eq.s32.totalorder %s17, 0
    %p37 = por %p35, %p36
    %p38 = scmp.ne.s32.totalorder %s27, %s30
    %p39 = scmp.eq.s32.totalorder %s22, 1
    %p40 = por %p38, %p39
    %p41 = scmp.ne.s32.totalorder %s30, %s31
    %p42 = scmp.eq.s32.totalorder %s22, 0
    %p43 = por %p41, %p42
    %p44 = scmp.ne.s32.totalorder %s30, %s31
    %p45 = scmp.eq.s32.totalorder %s23, 1
    %p46 = por %p44, %p45
    %p48 = scmp.ne.s32.totalorder %s31, %s47
    %p49 = scmp.eq.s32.totalorder %s23, 0
    %p50 = por %p48, %p49
    %s52 = sadd.s32 %s51, 1
    %p55 = scmp.eq.s32.totalorder %s17, 1
    %p56 = scmp.ne.s32.totalorder %s51, %s53
    %p57 = scmp.eq.s32.totalorder %s17, 0
    %p58 = por %p56, %p57
    %p59 = scmp.ne.s32.totalorder %s51, %s53
    %p60 = scmp.eq.s32.totalorder %s22, 1
    %p61 = por %p59, %p60
    %p62 = scmp.ne.s32.totalorder %s53, %s54
    %p63 = scmp.eq.s32.totalorder %s22, 0
    %p64 = por %p62, %p63
    %p65 = scmp.ne.s32.totalorder %s53, %s54
    %p66 = scmp.eq.s32.totalorder %s23, 1
    %p67 = por %p65, %p66
    %p69 = scmp.ne.s32.totalorder %s54, %s68
    %p70 = scmp.eq.s32.totalorder %s23, 0
    %p71 = por %p69, %p70
    %s73 = sadd.s32 %s72, 1
    %p76 = scmp.eq.s32.totalorder %s17, 1
    %p77 = scmp.ne.s32.totalorder %s72, %s74
    %p78 = scmp.eq.s32.totalorder %s17, 0
    %p79 = por %p77, %p78
    %p80 = scmp.ne.s32.totalorder %s72, %s74
    %p81 = scmp.eq.s32.totalorder %s22, 1
    %p82 = por %p80, %p81
    %p83 = scmp.ne.s32.totalorder %s74, %s75
    %p84 = scmp.eq.s32.totalorder %s22, 0
    %p85 = por %p83, %p84
    %p86 = scmp.ne.s32.totalorder %s74, %s75
    %p87 = scmp.eq.s32.totalorder %s23, 1
    %p88 = por %p86, %p87
    %p90 = scmp.ne.s32.totalorder %s75, %s89
    %p91 = scmp.eq.s32.totalorder %s23, 0
    %p92 = por %p90, %p91
    %s94 = sadd.s32 %s93, 1
    %p97 = scmp.eq.s32.totalorder %s17, 1
    %p98 = scmp.ne.s32.totalorder %s93, %s95
    %p99 = scmp.eq.s32.totalorder %s17, 0
    %p100 = por %p98, %p99
    %p101 = scmp.ne.s32.totalorder %s93, %s95
    %p102 = scmp.eq.s32.totalorder %s22, 1
    %p103 = por %p101, %p102
    %p104 = scmp.ne.s32.totalorder %s95, %s96
    %p105 = scmp.eq.s32.totalorder %s22, 0
    %p106 = por %p104, %p105
    %p107 = scmp.ne.s32.totalorder %s95, %s96
    %p108 = scmp.eq.s32.totalorder %s23, 1
    %p109 = por %p107, %p108
    %p111 = scmp.ne.s32.totalorder %s96, %s110
    %p112 = scmp.eq.s32.totalorder %s23, 0
    %p113 = por %p111, %p112
    %s115 = sadd.s32 %s114, 1
    %p118 = scmp.eq.s32.totalorder %s17, 1
    %p119 = scmp.ne.s32.totalorder %s114, %s116
    %p120 = scmp.eq.s32.totalorder %s17, 0
    %p121 = por %p119, %p120
    %p122 = scmp.ne.s32.totalorder %s114, %s116
    %p123 = scmp.eq.s32.totalorder %s22, 1
    %p124 = por %p122, %p123
    %p125 = scmp.ne.s32.totalorder %s116, %s117
    %p126 = scmp.eq.s32.totalorder %s22, 0
    %p127 = por %p125, %p126
    %p128 = scmp.ne.s32.totalorder %s116, %s117
    %p129 = scmp.eq.s32.totalorder %s23, 1
    %p130 = por %p128, %p129
    %p132 = scmp.ne.s32.totalorder %s117, %s131
    %p133 = scmp.eq.s32.totalorder %s23, 0
    %p134 = por %p132, %p133
    %s136 = sadd.s32 %s135, 1
    %p139 = scmp.eq.s32.totalorder %s17, 1
    %p140 = scmp.ne.s32.totalorder %s135, %s137
    %p141 = scmp.eq.s32.totalorder %s17, 0
    %p142 = por %p140, %p141
    %p143 = scmp.ne.s32.totalorder %s135, %s137
    %p144 = scmp.eq.s32.totalorder %s22, 1
    %p145 = por %p143, %p144
    %p146 = scmp.ne.s32.totalorder %s137, %s138
    %p147 = scmp.eq.s32.totalorder %s22, 0
    %p148 = por %p146, %p147
    %p149 = scmp.ne.s32.totalorder %s137, %s138
    %p150 = scmp.eq.s32.totalorder %s23, 1
    %p151 = por %p149, %p150
    %p153 = scmp.ne.s32.totalorder %s138, %s152
    %p154 = scmp.eq.s32.totalorder %s23, 0
    %p155 = por %p153, %p154
    %s157 = sadd.s32 %s156, 1
    %p160 = scmp.eq.s32.totalorder %s17, 1
    %p161 = scmp.ne.s32.totalorder %s156, %s158
    %p162 = scmp.eq.s32.totalorder %s17, 0
    %p163 = por %p161, %p162
    %p164 = scmp.ne.s32.totalorder %s156, %s158
    %p165 = scmp.eq.s32.totalorder %s22, 1
    %p166 = por %p164, %p165
    %p167 = scmp.ne.s32.totalorder %s158, %s159
    %p168 = scmp.eq.s32.totalorder %s22, 0
    %p169 = por %p167, %p168
    %p170 = scmp.ne.s32.totalorder %s158, %s159
    %p171 = scmp.eq.s32.totalorder %s23, 1
    %p172 = por %p170, %p171
    %p174 = scmp.ne.s32.totalorder %s159, %s173
    %p175 = scmp.eq.s32.totalorder %s23, 0
    %p176 = por %p174, %p175
    %s178 = sadd.s32 %s177, 1
    %p181 = scmp.eq.s32.totalorder %s17, 1
    %p182 = scmp.ne.s32.totalorder %s177, %s179
    %p183 = scmp.eq.s32.totalorder %s17, 0
    %p184 = por %p182, %p183
    %p185 = scmp.ne.s32.totalorder %s177, %s179
    %p186 = scmp.eq.s32.totalorder %s22, 1
    %p187 = por %p185, %p186
    %p188 = scmp.ne.s32.totalorder %s179, %s180
    %p189 = scmp.eq.s32.totalorder %s22, 0
    %p190 = por %p188, %p189
    %p191 = scmp.ne.s32.totalorder %s179, %s180
    %p192 = scmp.eq.s32.totalorder %s23, 1
    %p193 = por %p191, %p192
    %p195 = scmp.ne.s32.totalorder %s180, %s194
    %p196 = scmp.eq.s32.totalorder %s23, 0
    %p197 = por %p195, %p196
    %s199 = sadd.s32 %s198, 1
    %p202 = scmp.eq.s32.totalorder %s17, 1
    %p203 = scmp.ne.s32.totalorder %s198, %s200
    %p204 = scmp.eq.s32.totalorder %s17, 0
    %p205 = por %p203, %p204
    %p206 = scmp.ne.s32.totalorder %s198, %s200
    %p207 = scmp.eq.s32.totalorder %s22, 1
    %p208 = por %p206, %p207
    %p209 = scmp.ne.s32.totalorder %s200, %s201
    %p210 = scmp.eq.s32.totalorder %s22, 0
    %p211 = por %p209, %p210
    %p212 = scmp.ne.s32.totalorder %s200, %s201
    %p213 = scmp.eq.s32.totalorder %s23, 1
    %p214 = por %p212, %p213
    %p216 = scmp.ne.s32.totalorder %s201, %s215
    %p217 = scmp.eq.s32.totalorder %s23, 0
    %p218 = por %p216, %p217
    %s219 = ssub.s32 %s17, %s24
    %p220 = scmp.eq.s32.totalorder %s219, 0
    %s222 = sadd.s32 %s221, 1
    %s223 = scalar_select %p220, %s221, %s222
    %p226 = pneg %p220
    %p227 = scmp.eq.s32.totalorder %s17, 1
    %p228 = por %p226, %p227
    %p229 = scmp.ne.s32.totalorder %s221, %s224
    %p230 = scmp.eq.s32.totalorder %s17, 0
    %p231 = por %p229, %p230
    %p232 = scmp.ne.s32.totalorder %s221, %s224
    %p233 = scmp.eq.s32.totalorder %s22, 1
    %p234 = por %p232, %p233
    %p235 = scmp.ne.s32.totalorder %s224, %s225
    %p236 = scmp.eq.s32.totalorder %s22, 0
    %p237 = por %p235, %p236
    %p238 = scmp.ne.s32.totalorder %s224, %s225
    %p239 = scmp.eq.s32.totalorder %s23, 1
    %p240 = por %p238, %p239
    %p242 = scmp.ne.s32.totalorder %s225, %s241
    %p243 = scmp.eq.s32.totalorder %s23, 0
    %p244 = por %p242, %p243
    %s245 = ssub.s32 %s17, %s24
    %p246 = scmp.eq.s32.totalorder %s245, 0
    %s248 = sadd.s32 %s247, 1
    %s249 = scalar_select %p246, %s247, %s248
    %p252 = pneg %p246
    %p253 = scmp.eq.s32.totalorder %s17, 1
    %p254 = por %p252, %p253
    %p255 = scmp.ne.s32.totalorder %s247, %s250
    %p256 = scmp.eq.s32.totalorder %s17, 0
    %p257 = por %p255, %p256
    %p258 = scmp.ne.s32.totalorder %s247, %s250
    %p259 = scmp.eq.s32.totalorder %s22, 1
    %p260 = por %p258, %p259
    %p261 = scmp.ne.s32.totalorder %s250, %s251
    %p262 = scmp.eq.s32.totalorder %s22, 0
    %p263 = por %p261, %p262
    %p264 = scmp.ne.s32.totalorder %s250, %s251
    %p265 = scmp.eq.s32.totalorder %s23, 1
    %p266 = por %p264, %p265
    %p268 = scmp.ne.s32.totalorder %s251, %s267
    %p269 = scmp.eq.s32.totalorder %s23, 0
    %p270 = por %p268, %p269
    %p271 = scmp.le.s32.totalorder 1, %s17
    %p272 = scmp.lt.s32.totalorder %s17, 3
    %p273 = pnand %p271, %p272
    %p274 = pneg %p273
    // Predicated region
    $region9: #{tpu_custom_call.1} parent=5 // pred_check
      _
    $region10: #{tpu_custom_call.1} parent=5 // pred_check_branch
      %276 = sbr.rel (%p273) target = $region12
    $region11: #{tpu_custom_call.1} parent=5 // pred_region
      %s277 = ssub.s32 %s17, 1
      // Predicated region
      $region13: #{tpu_custom_call.1} parent=11 // pred_check
        %p278 = pneg %p64
      $region14: #{tpu_custom_call.1} parent=11 // pred_check_branch
        %280 = sbr.rel (%p278) target = $region16
      $region15: #{tpu_custom_call.1} parent=11 // pred_region
        _
      $region16: #{tpu_custom_call.1} parent=11 // pred_fallthru
        _
      // Predicated region
      $region17: #{tpu_custom_call.1} parent=11 // pred_check
        %p281 = pneg %p85
      $region18: #{tpu_custom_call.1} parent=11 // pred_check_branch
        %283 = sbr.rel (%p281) target = $region20
      $region19: #{tpu_custom_call.1} parent=11 // pred_region
        _
      $region20: #{tpu_custom_call.1} parent=11 // pred_fallthru
        _
      // Predicated region
      $region21: #{tpu_custom_call.1} parent=11 // pred_check
        %p284 = pneg %p106
      $region22: #{tpu_custom_call.1} parent=11 // pred_check_branch
        %286 = sbr.rel (%p284) target = $region24
      $region23: #{tpu_custom_call.1} parent=11 // pred_region
        _
      $region24: #{tpu_custom_call.1} parent=11 // pred_fallthru
        _
      // Predicated region
      $region25: #{tpu_custom_call.1} parent=11 // pred_check
        %p287 = pneg %p127
      $region26: #{tpu_custom_call.1} parent=11 // pred_check_branch
        %289 = sbr.rel (%p287) target = $region28
      $region27: #{tpu_custom_call.1} parent=11 // pred_region
        _
      $region28: #{tpu_custom_call.1} parent=11 // pred_fallthru
        _
      // Predicated region
      $region29: #{tpu_custom_call.1} parent=11 // pred_check
        %p290 = pneg %p148
      $region30: #{tpu_custom_call.1} parent=11 // pred_check_branch
        %292 = sbr.rel (%p290) target = $region32
      $region31: #{tpu_custom_call.1} parent=11 // pred_region
        _
      $region32: #{tpu_custom_call.1} parent=11 // pred_fallthru
        _
      // Predicated region
      $region33: #{tpu_custom_call.1} parent=11 // pred_check
        %p293 = pneg %p169
      $region34: #{tpu_custom_call.1} parent=11 // pred_check_branch
        %295 = sbr.rel (%p293) target = $region36
      $region35: #{tpu_custom_call.1} parent=11 // pred_region
        _
      $region36: #{tpu_custom_call.1} parent=11 // pred_fallthru
        _
      // Predicated region
      $region37: #{tpu_custom_call.1} parent=11 // pred_check
        %p296 = pneg %p190
      $region38: #{tpu_custom_call.1} parent=11 // pred_check_branch
        %298 = sbr.rel (%p296) target = $region40
      $region39: #{tpu_custom_call.1} parent=11 // pred_region
        _
      $region40: #{tpu_custom_call.1} parent=11 // pred_fallthru
        _
      // Predicated region
      $region41: #{tpu_custom_call.1} parent=11 // pred_check
        %p299 = pneg %p211
      $region42: #{tpu_custom_call.1} parent=11 // pred_check_branch
        %301 = sbr.rel (%p299) target = $region44
      $region43: #{tpu_custom_call.1} parent=11 // pred_region
        _
      $region44: #{tpu_custom_call.1} parent=11 // pred_fallthru
        _
    $region12: #{tpu_custom_call.1} parent=5 // pred_fallthru
      _
    %p302 = scmp.lt.s32.totalorder %s17, 2
    // Predicated region
    $region45: #{tpu_custom_call.1} parent=5 // pred_check
      %p303 = pneg %p302
    $region46: #{tpu_custom_call.1} parent=5 // pred_check_branch
      %305 = sbr.rel (%p303) target = $region48
    $region47: #{tpu_custom_call.1} parent=5 // pred_region
      // Predicated region
      $region49: #{tpu_custom_call.1} parent=47 // pred_check
        %p306 = pneg %p37
      $region50: #{tpu_custom_call.1} parent=47 // pred_check_branch
        %308 = sbr.rel (%p306) target = $region52
      $region51: #{tpu_custom_call.1} parent=47 // pred_region
        %p309 = scmp.lt.s32.totalorder %s17, 1
        %s310 = scalar_select %p309, %s17, 1
        %s311 = smul.addr %s310, 8
        %s312 = smul.addr %s311, 8
        %s313 = scalar_lea.vmem %s0, %s312
      $region52: #{tpu_custom_call.1} parent=47 // pred_fallthru
        _
    $region48: #{tpu_custom_call.1} parent=5 // pred_fallthru
      _
    %p314 = scmp.le.s32.totalorder 1, %s17
    %p315 = scmp.lt.s32.totalorder %s17, 3
    %p316 = pnand %p314, %p315
    %p317 = pneg %p316
    // Predicated region
    $region53: #{tpu_custom_call.1} parent=5 // pred_check
      _
    $region54: #{tpu_custom_call.1} parent=5 // pred_check_branch
      %319 = sbr.rel (%p316) target = $region56
    $region55: #{tpu_custom_call.1} parent=5 // pred_region
      %s320 = ssub.s32 %s17, 1
      %p321 = scmp.lt.s32.totalorder %s22, 1
      %s322 = scalar_select %p321, %s22, 1
      %s323 = smul.addr %s322, 8
      %s324 = smul.addr %s323, 8
      %s325 = scalar_lea.vmem %s0, %s324
      %p326 = pneg %p43
      %p327 = pneg %p40
      %p328 = pneg %p64
      %p329 = pneg %p61
      %p330 = pneg %p85
      %p331 = pneg %p82
      %p332 = pneg %p106
      %p333 = pneg %p103
      %p334 = pneg %p127
      %p335 = pneg %p124
      %p336 = pneg %p148
      %p337 = pneg %p145
      %p338 = pneg %p169
      %p339 = pneg %p166
      %p340 = pneg %p190
      %p341 = pneg %p187
      %p342 = pneg %p211
      %p343 = pneg %p208
      %p344 = pneg %p237
      %p345 = pneg %p234
      %p346 = scmp.lt.s32.totalorder %s22, 1
      %s347 = scalar_select %p346, %s22, 1
      %s348 = smul.addr %s347, 8
      %s349 = smul.addr %s348, 8
      %s350 = scalar_lea.vmem %s9, %s349
      %p351 = pneg %p263
      %p352 = pneg %p260
      %p353 = scmp.lt.s32.totalorder %s22, 1
      %s354 = scalar_select %p353, %s22, 1
      %s355 = smul.addr %s354, 5
      %s356 = smul.addr %s355, 8
      %s357 = scalar_lea.vmem %s10, %s356
      %p358 = scmp.lt.s32.totalorder %s22, 1
      %s359 = scalar_select %p358, %s22, 1
      %s360 = smul.addr %s359, 8
      %s361 = smul.addr %s360, 8
      %s362 = scalar_lea.vmem %s0, %s361
      %p363 = scmp.lt.s32.totalorder %s22, 1
      %s364 = scalar_select %p363, %s22, 1
      %s365 = smul.addr %s364, 8
      %s366 = smul.addr %s365, 8
      %s367 = scalar_lea.vmem %s9, %s366
      %p368 = scmp.lt.s32.totalorder %s22, 1
      %s369 = scalar_select %p368, %s22, 1
      %s370 = smul.addr %s369, 5
      %s371 = smul.addr %s370, 8
      %s372 = scalar_lea.vmem %s10, %s371
      %v373 = vld [vmem:[%s362] sm:$0xff]
      %v374 = vld [vmem:[%s362 + $0x8] sm:$0xff]
      %v375 = vld [vmem:[%s362 + $0x10] sm:$0xff]
      %v376 = vld [vmem:[%s362 + $0x18] sm:$0xff]
      %v377 = vld [vmem:[%s362 + $0x20] sm:$0xff]
      %v378 = vld [vmem:[%s362 + $0x28] sm:$0xff]
      %v379 = vld [vmem:[%s362 + $0x30] sm:$0xf]
      %v380 = vld [vmem:[%s362 + $0x38] sm:$0xf]
      %v381 = vld [vmem:[%s1] sm:$0xff]
      %v382 = vld [vmem:[%s1 + $0x8] sm:$0xff]
      %v383 = vld [vmem:[%s1 + $0x10] sm:$0xff]
      %v384 = vld [vmem:[%s1 + $0x18] sm:$0xff]
      %v385 = vld [vmem:[%s1 + $0x20] sm:$0xff]
      %v386 = vld [vmem:[%s1 + $0x28] sm:$0xff]
      %v387 = vld [vmem:[%s1 + $0x30] sm:$0xff]
      %v388 = vld [vmem:[%s1 + $0x38] sm:$0xff]
      %v389 = vld [vmem:[%s1 + $0x40] sm:$0xff]
      %v390 = vld [vmem:[%s1 + $0x48] sm:$0xff]
      %v391 = vld [vmem:[%s1 + $0x50] sm:$0xff]
      %v392 = vld [vmem:[%s1 + $0x58] sm:$0xff]
      %v393 = vld [vmem:[%s1 + $0x60] sm:$0xff]
      %v394 = vld [vmem:[%s1 + $0x68] sm:$0xff]
      %v395 = vld [vmem:[%s1 + $0x70] sm:$0xff]
      %v396 = vld [vmem:[%s1 + $0x78] sm:$0xff]
      %v397 = vld [vmem:[%s1 + $0x80] sm:$0xff]
      %v398 = vld [vmem:[%s1 + $0x88] sm:$0xff]
      %v399 = vld [vmem:[%s1 + $0x90] sm:$0xff]
      %v400 = vld [vmem:[%s1 + $0x98] sm:$0xff]
      %v401 = vld [vmem:[%s1 + $0xa0] sm:$0xff]
      %v402 = vld [vmem:[%s1 + $0xa8] sm:$0xff]
      %v403 = vld [vmem:[%s1 + $0xb0] sm:$0xff]
      %v404 = vld [vmem:[%s1 + $0xb8] sm:$0xff]
      %v405 = vld [vmem:[%s1 + $0xc0] sm:$0xff]
      %v406 = vld [vmem:[%s1 + $0xc8] sm:$0xff]
      %v407 = vld [vmem:[%s1 + $0xd0] sm:$0xff]
      %v408 = vld [vmem:[%s1 + $0xd8] sm:$0xff]
      %v409 = vld [vmem:[%s1 + $0xe0] sm:$0xff]
      %v410 = vld [vmem:[%s1 + $0xe8] sm:$0xff]
      %vm411 = vcmask 228352
      %v413 = vsel %vm411, %v381, 0
      %v416 = vsel %vm411, %v382, 0
      %v419 = vsel %vm411, %v383, 0
      %v422 = vsel %vm411, %v384, 0
      %v425 = vsel %vm411, %v385, 0
      %v428 = vsel %vm411, %v386, 0
      %v431 = vsel %vm411, %v387, 0
      %v434 = vsel %vm411, %v388, 0
      %v437 = vsel %vm411, %v389, 0
      %v440 = vsel %vm411, %v390, 0
      %v443 = vsel %vm411, %v391, 0
      %v446 = vsel %vm411, %v392, 0
      %v449 = vsel %vm411, %v393, 0
      %v452 = vsel %vm411, %v394, 0
      %v455 = vsel %vm411, %v395, 0
      %v458 = vsel %vm411, %v396, 0
      %v461 = vsel %vm411, %v397, 0
      %v464 = vsel %vm411, %v398, 0
      %v467 = vsel %vm411, %v399, 0
      %v470 = vsel %vm411, %v400, 0
      %v473 = vsel %vm411, %v401, 0
      %v476 = vsel %vm411, %v402, 0
      %v479 = vsel %vm411, %v403, 0
      %v482 = vsel %vm411, %v404, 0
      %v485 = vsel %vm411, %v405, 0
      %v488 = vsel %vm411, %v406, 0
      %v491 = vsel %vm411, %v407, 0
      %v494 = vsel %vm411, %v408, 0
      %v497 = vsel %vm411, %v409, 0
      %v500 = vsel %vm411, %v410, 0
      %vm502 = vcmask 1043456
      %v504 = vsel %vm502, %v379, 0
      %v507 = vsel %vm502, %v380, 0
      %509 = vmatpush.msra.mxu0 0.0
      %510 = vmatpush.msra.mxu0 0.0
      %511 = vmatpush.msra.mxu0 0.0
      %512 = vmatpush.msra.mxu0 0.0
      %513 = vmatpush.msra.mxu0 0.0
      %514 = vmatpush.msra.mxu0 0.0
      %515 = vmatpush.msra.mxu0 0.0
      %516 = vmatpush.msra.mxu0 0.0
      %517 = vmatpush.msra.mxu0 0.0
      %518 = vmatpush.msra.mxu0 0.0
      %519 = vmatpush.msra.mxu0 0.0
      %520 = vmatpush.msra.mxu0 0.0
      %521 = vmatpush.msra.mxu0 %v504
      %522 = vmatpush.msra.mxu0 %v377
      %523 = vmatpush.msra.mxu0 %v375
      %524 = vmatpush.msra.mxu0 %v373
      %525 = vmatmul.f32.gmra.mxu0 %v413
      %v526 = vpop.f32.mrf.mxu0
      %v527 = vadd.f32 0.0, %v526
      %528 = vmatmul.f32.gmra.mxu0 %v416
      %v529 = vpop.f32.mrf.mxu0
      %v530 = vadd.f32 0.0, %v529
      %531 = vmatmul.f32.gmra.mxu0 %v419
      %v532 = vpop.f32.mrf.mxu0
      %v533 = vadd.f32 0.0, %v532
      %534 = vmatmul.f32.gmra.mxu0 %v422
      %v535 = vpop.f32.mrf.mxu0
      %v536 = vadd.f32 0.0, %v535
      %537 = vmatmul.f32.gmra.mxu0 %v425
      %v538 = vpop.f32.mrf.mxu0
      %v539 = vadd.f32 0.0, %v538
      %540 = vmatmul.f32.gmra.mxu0 %v428
      %v541 = vpop.f32.mrf.mxu0
      %v542 = vadd.f32 0.0, %v541
      %543 = vmatmul.f32.gmra.mxu0 %v431
      %v544 = vpop.f32.mrf.mxu0
      %v545 = vadd.f32 0.0, %v544
      %546 = vmatmul.f32.gmra.mxu0 %v434
      %v547 = vpop.f32.mrf.mxu0
      %v548 = vadd.f32 0.0, %v547
      %549 = vmatmul.f32.gmra.mxu0 %v437
      %v550 = vpop.f32.mrf.mxu0
      %v551 = vadd.f32 0.0, %v550
      %552 = vmatmul.f32.gmra.mxu0 %v440
      %v553 = vpop.f32.mrf.mxu0
      %v554 = vadd.f32 0.0, %v553
      %555 = vmatmul.f32.gmra.mxu0 %v443
      %v556 = vpop.f32.mrf.mxu0
      %v557 = vadd.f32 0.0, %v556
      %558 = vmatmul.f32.gmra.mxu0 %v446
      %v559 = vpop.f32.mrf.mxu0
      %v560 = vadd.f32 0.0, %v559
      %561 = vmatmul.f32.gmra.mxu0 %v449
      %v562 = vpop.f32.mrf.mxu0
      %v563 = vadd.f32 0.0, %v562
      %564 = vmatmul.f32.gmra.mxu0 %v452
      %v565 = vpop.f32.mrf.mxu0
      %v566 = vadd.f32 0.0, %v565
      %567 = vmatmul.f32.gmra.mxu0 %v455
      %v568 = vpop.f32.mrf.mxu0
      %v569 = vadd.f32 0.0, %v568
      %570 = vmatmul.f32.gmra.mxu0 %v458
      %v571 = vpop.f32.mrf.mxu0
      %v572 = vadd.f32 0.0, %v571
      %573 = vmatmul.f32.gmra.mxu0 %v461
      %v574 = vpop.f32.mrf.mxu0
      %v575 = vadd.f32 0.0, %v574
      %576 = vmatmul.f32.gmra.mxu0 %v464
      %v577 = vpop.f32.mrf.mxu0
      %v578 = vadd.f32 0.0, %v577
      %579 = vmatmul.f32.gmra.mxu0 %v467
      %v580 = vpop.f32.mrf.mxu0
      %v581 = vadd.f32 0.0, %v580
      %582 = vmatmul.f32.gmra.mxu0 %v470
      %v583 = vpop.f32.mrf.mxu0
      %v584 = vadd.f32 0.0, %v583
      %585 = vmatmul.f32.gmra.mxu0 %v473
      %v586 = vpop.f32.mrf.mxu0
      %v587 = vadd.f32 0.0, %v586
      %588 = vmatmul.f32.gmra.mxu0 %v476
      %v589 = vpop.f32.mrf.mxu0
      %v590 = vadd.f32 0.0, %v589
      %591 = vmatmul.f32.gmra.mxu0 %v479
      %v592 = vpop.f32.mrf.mxu0
      %v593 = vadd.f32 0.0, %v592
      %594 = vmatmul.f32.gmra.mxu0 %v482
      %v595 = vpop.f32.mrf.mxu0
      %v596 = vadd.f32 0.0, %v595
      %597 = vmatmul.f32.gmra.mxu0 %v485
      %v598 = vpop.f32.mrf.mxu0
      %v599 = vadd.f32 0.0, %v598
      %600 = vmatmul.f32.gmra.mxu0 %v488
      %v601 = vpop.f32.mrf.mxu0
      %v602 = vadd.f32 0.0, %v601
      %603 = vmatmul.f32.gmra.mxu0 %v491
      %v604 = vpop.f32.mrf.mxu0
      %v605 = vadd.f32 0.0, %v604
      %606 = vmatmul.f32.gmra.mxu0 %v494
      %v607 = vpop.f32.mrf.mxu0
      %v608 = vadd.f32 0.0, %v607
      %609 = vmatmul.f32.gmra.mxu0 %v497
      %v610 = vpop.f32.mrf.mxu0
      %v611 = vadd.f32 0.0, %v610
      %612 = vmatmul.f32.gmra.mxu0 %v500
      %v613 = vpop.f32.mrf.mxu0
      %v614 = vadd.f32 0.0, %v613
      %615 = vdwg.mxu0
      %616 = vmatpush.msra.mxu0 0.0
      %617 = vmatpush.msra.mxu0 0.0
      %618 = vmatpush.msra.mxu0 0.0
      %619 = vmatpush.msra.mxu0 0.0
      %620 = vmatpush.msra.mxu0 0.0
      %621 = vmatpush.msra.mxu0 0.0
      %622 = vmatpush.msra.mxu0 0.0
      %623 = vmatpush.msra.mxu0 0.0
      %624 = vmatpush.msra.mxu0 0.0
      %625 = vmatpush.msra.mxu0 0.0
      %626 = vmatpush.msra.mxu0 0.0
      %627 = vmatpush.msra.mxu0 0.0
      %628 = vmatpush.msra.mxu0 %v507
      %629 = vmatpush.msra.mxu0 %v378
      %630 = vmatpush.msra.mxu0 %v376
      %631 = vmatpush.msra.mxu0 %v374
      %632 = vmatmul.f32.gmra.mxu0 %v413
      %v633 = vpop.f32.mrf.mxu0
      %v634 = vadd.f32 0.0, %v633
      %635 = vmatmul.f32.gmra.mxu0 %v416
      %v636 = vpop.f32.mrf.mxu0
      %v637 = vadd.f32 0.0, %v636
      %638 = vmatmul.f32.gmra.mxu0 %v419
      %v639 = vpop.f32.mrf.mxu0
      %v640 = vadd.f32 0.0, %v639
      %641 = vmatmul.f32.gmra.mxu0 %v422
      %v642 = vpop.f32.mrf.mxu0
      %v643 = vadd.f32 0.0, %v642
      %644 = vmatmul.f32.gmra.mxu0 %v425
      %v645 = vpop.f32.mrf.mxu0
      %v646 = vadd.f32 0.0, %v645
      %647 = vmatmul.f32.gmra.mxu0 %v428
      %v648 = vpop.f32.mrf.mxu0
      %v649 = vadd.f32 0.0, %v648
      %650 = vmatmul.f32.gmra.mxu0 %v431
      %v651 = vpop.f32.mrf.mxu0
      %v652 = vadd.f32 0.0, %v651
      %653 = vmatmul.f32.gmra.mxu0 %v434
      %v654 = vpop.f32.mrf.mxu0
      %v655 = vadd.f32 0.0, %v654
      %656 = vmatmul.f32.gmra.mxu0 %v437
      %v657 = vpop.f32.mrf.mxu0
      %v658 = vadd.f32 0.0, %v657
      %659 = vmatmul.f32.gmra.mxu0 %v440
      %v660 = vpop.f32.mrf.mxu0
      %v661 = vadd.f32 0.0, %v660
      %662 = vmatmul.f32.gmra.mxu0 %v443
      %v663 = vpop.f32.mrf.mxu0
      %v664 = vadd.f32 0.0, %v663
      %665 = vmatmul.f32.gmra.mxu0 %v446
      %v666 = vpop.f32.mrf.mxu0
      %v667 = vadd.f32 0.0, %v666
      %668 = vmatmul.f32.gmra.mxu0 %v449
      %v669 = vpop.f32.mrf.mxu0
      %v670 = vadd.f32 0.0, %v669
      %671 = vmatmul.f32.gmra.mxu0 %v452
      %v672 = vpop.f32.mrf.mxu0
      %v673 = vadd.f32 0.0, %v672
      %674 = vmatmul.f32.gmra.mxu0 %v455
      %v675 = vpop.f32.mrf.mxu0
      %v676 = vadd.f32 0.0, %v675
      %677 = vmatmul.f32.gmra.mxu0 %v458
      %v678 = vpop.f32.mrf.mxu0
      %v679 = vadd.f32 0.0, %v678
      %680 = vmatmul.f32.gmra.mxu0 %v461
      %v681 = vpop.f32.mrf.mxu0
      %v682 = vadd.f32 0.0, %v681
      %683 = vmatmul.f32.gmra.mxu0 %v464
      %v684 = vpop.f32.mrf.mxu0
      %v685 = vadd.f32 0.0, %v684
      %686 = vmatmul.f32.gmra.mxu0 %v467
      %v687 = vpop.f32.mrf.mxu0
      %v688 = vadd.f32 0.0, %v687
      %689 = vmatmul.f32.gmra.mxu0 %v470
      %v690 = vpop.f32.mrf.mxu0
      %v691 = vadd.f32 0.0, %v690
      %692 = vmatmul.f32.gmra.mxu0 %v473
      %v693 = vpop.f32.mrf.mxu0
      %v694 = vadd.f32 0.0, %v693
      %695 = vmatmul.f32.gmra.mxu0 %v476
      %v696 = vpop.f32.mrf.mxu0
      %v697 = vadd.f32 0.0, %v696
      %698 = vmatmul.f32.gmra.mxu0 %v479
      %v699 = vpop.f32.mrf.mxu0
      %v700 = vadd.f32 0.0, %v699
      %701 = vmatmul.f32.gmra.mxu0 %v482
      %v702 = vpop.f32.mrf.mxu0
      %v703 = vadd.f32 0.0, %v702
      %704 = vmatmul.f32.gmra.mxu0 %v485
      %v705 = vpop.f32.mrf.mxu0
      %v706 = vadd.f32 0.0, %v705
      %707 = vmatmul.f32.gmra.mxu0 %v488
      %v708 = vpop.f32.mrf.mxu0
      %v709 = vadd.f32 0.0, %v708
      %710 = vmatmul.f32.gmra.mxu0 %v491
      %v711 = vpop.f32.mrf.mxu0
      %v712 = vadd.f32 0.0, %v711
      %713 = vmatmul.f32.gmra.mxu0 %v494
      %v714 = vpop.f32.mrf.mxu0
      %v715 = vadd.f32 0.0, %v714
      %716 = vmatmul.f32.gmra.mxu0 %v497
      %v717 = vpop.f32.mrf.mxu0
      %v718 = vadd.f32 0.0, %v717
      %719 = vmatmul.f32.gmra.mxu0 %v500
      %v720 = vpop.f32.mrf.mxu0
      %v721 = vadd.f32 0.0, %v720
      %722 = vdwg.mxu0
      %v723 = vld [vmem:[%s2] sm:$0xff]
      %v724 = vld [vmem:[%s2 + $0x8] sm:$0xff]
      %v725 = vld [vmem:[%s2 + $0x10] sm:$0xff]
      %v726 = vld [vmem:[%s2 + $0x18] sm:$0xff]
      %v727 = vld [vmem:[%s2 + $0x20] sm:$0xff]
      %v728 = vld [vmem:[%s2 + $0x28] sm:$0xff]
      %v729 = vld [vmem:[%s2 + $0x30] sm:$0xff]
      %v730 = vld [vmem:[%s2 + $0x38] sm:$0xff]
      %v731 = vld [vmem:[%s2 + $0x40] sm:$0xff]
      %v732 = vld [vmem:[%s2 + $0x48] sm:$0xff]
      %v733 = vld [vmem:[%s2 + $0x50] sm:$0xff]
      %v734 = vld [vmem:[%s2 + $0x58] sm:$0xff]
      %v735 = vld [vmem:[%s2 + $0x60] sm:$0xff]
      %v736 = vld [vmem:[%s2 + $0x68] sm:$0xff]
      %v737 = vld [vmem:[%s2 + $0x70] sm:$0xff]
      %v738 = vld [vmem:[%s2 + $0x78] sm:$0xff]
      %v739 = vld [vmem:[%s2 + $0x80] sm:$0xff]
      %v740 = vld [vmem:[%s2 + $0x88] sm:$0xff]
      %v741 = vld [vmem:[%s2 + $0x90] sm:$0xff]
      %v742 = vld [vmem:[%s2 + $0x98] sm:$0xff]
      %v743 = vld [vmem:[%s2 + $0xa0] sm:$0xff]
      %v744 = vld [vmem:[%s2 + $0xa8] sm:$0xff]
      %v745 = vld [vmem:[%s2 + $0xb0] sm:$0xff]
      %v746 = vld [vmem:[%s2 + $0xb8] sm:$0xff]
      %v747 = vld [vmem:[%s2 + $0xc0] sm:$0xff]
      %v748 = vld [vmem:[%s2 + $0xc8] sm:$0xff]
      %v749 = vld [vmem:[%s2 + $0xd0] sm:$0xff]
      %v750 = vld [vmem:[%s2 + $0xd8] sm:$0xff]
      %v751 = vld [vmem:[%s2 + $0xe0] sm:$0xff]
      %v752 = vld [vmem:[%s2 + $0xe8] sm:$0xff]
      %v753 = vld [vmem:[%s2 + $0xf0] sm:$0xff]
      %v754 = vld [vmem:[%s2 + $0xf8] sm:$0xff]
      %v755 = vld [vmem:[%s2 + $0x100] sm:$0xff]
      %v756 = vld [vmem:[%s2 + $0x108] sm:$0xff]
      %v757 = vld [vmem:[%s2 + $0x110] sm:$0xff]
      %v758 = vld [vmem:[%s2 + $0x118] sm:$0xff]
      %v759 = vld [vmem:[%s2 + $0x120] sm:$0xff]
      %v760 = vld [vmem:[%s2 + $0x128] sm:$0xff]
      %v761 = vld [vmem:[%s2 + $0x130] sm:$0xff]
      %v762 = vld [vmem:[%s2 + $0x138] sm:$0xff]
      %v763 = vld [vmem:[%s2 + $0x140] sm:$0xff]
      %v764 = vld [vmem:[%s2 + $0x148] sm:$0xff]
      %v765 = vld [vmem:[%s2 + $0x150] sm:$0xff]
      %v766 = vld [vmem:[%s2 + $0x158] sm:$0xff]
      %v767 = vld [vmem:[%s2 + $0x160] sm:$0xff]
      %v768 = vld [vmem:[%s2 + $0x168] sm:$0xff]
      %v769 = vld [vmem:[%s2 + $0x170] sm:$0xff]
      %v770 = vld [vmem:[%s2 + $0x178] sm:$0xff]
      %v771 = vld [vmem:[%s2 + $0x180] sm:$0xff]
      %v772 = vld [vmem:[%s2 + $0x188] sm:$0xff]
      %v773 = vld [vmem:[%s2 + $0x190] sm:$0xff]
      %v774 = vld [vmem:[%s2 + $0x198] sm:$0xff]
      %v775 = vld [vmem:[%s2 + $0x1a0] sm:$0xff]
      %v776 = vld [vmem:[%s2 + $0x1a8] sm:$0xff]
      %v777 = vld [vmem:[%s2 + $0x1b0] sm:$0xff]
      %v778 = vld [vmem:[%s2 + $0x1b8] sm:$0xff]
      %s779 = scalar_lea.vmem %s1, 240
      %v780 = vld [vmem:[%s779] sm:$0xff]
      %v781 = vld [vmem:[%s779 + $0x8] sm:$0xff]
      %v782 = vld [vmem:[%s779 + $0x10] sm:$0xff]
      %v783 = vld [vmem:[%s779 + $0x18] sm:$0xff]
      %v784 = vld [vmem:[%s779 + $0x20] sm:$0xff]
      %v785 = vld [vmem:[%s779 + $0x28] sm:$0xff]
      %v786 = vld [vmem:[%s779 + $0x30] sm:$0xff]
      %v787 = vld [vmem:[%s779 + $0x38] sm:$0xff]
      %v788 = vld [vmem:[%s779 + $0x40] sm:$0xff]
      %v789 = vld [vmem:[%s779 + $0x48] sm:$0xff]
      %v790 = vld [vmem:[%s779 + $0x50] sm:$0xff]
      %v791 = vld [vmem:[%s779 + $0x58] sm:$0xff]
      %v792 = vld [vmem:[%s779 + $0x60] sm:$0xff]
      %v793 = vld [vmem:[%s779 + $0x68] sm:$0xff]
      %v794 = vld [vmem:[%s779 + $0x70] sm:$0xff]
      %v795 = vld [vmem:[%s779 + $0x78] sm:$0xff]
      %v796 = vld [vmem:[%s779 + $0x80] sm:$0xff]
      %v797 = vld [vmem:[%s779 + $0x88] sm:$0xff]
      %v798 = vld [vmem:[%s779 + $0x90] sm:$0xff]
      %v799 = vld [vmem:[%s779 + $0x98] sm:$0xff]
      %v800 = vld [vmem:[%s779 + $0xa0] sm:$0xff]
      %v801 = vld [vmem:[%s779 + $0xa8] sm:$0xff]
      %v802 = vld [vmem:[%s779 + $0xb0] sm:$0xff]
      %v803 = vld [vmem:[%s779 + $0xb8] sm:$0xff]
      %v804 = vld [vmem:[%s779 + $0xc0] sm:$0xff]
      %v805 = vld [vmem:[%s779 + $0xc8] sm:$0xff]
      %v806 = vld [vmem:[%s779 + $0xd0] sm:$0xff]
      %v807 = vld [vmem:[%s779 + $0xd8] sm:$0xff]
      %v808 = vld [vmem:[%s779 + $0xe0] sm:$0xff]
      %v809 = vld [vmem:[%s779 + $0xe8] sm:$0xff]
      %v811 = vsel %vm411, %v780, 0
      %v814 = vsel %vm411, %v781, 0
      %v817 = vsel %vm411, %v782, 0
      %v820 = vsel %vm411, %v783, 0
      %v823 = vsel %vm411, %v784, 0
      %v826 = vsel %vm411, %v785, 0
      %v829 = vsel %vm411, %v786, 0
      %v832 = vsel %vm411, %v787, 0
      %v835 = vsel %vm411, %v788, 0
      %v838 = vsel %vm411, %v789, 0
      %v841 = vsel %vm411, %v790, 0
      %v844 = vsel %vm411, %v791, 0
      %v847 = vsel %vm411, %v792, 0
      %v850 = vsel %vm411, %v793, 0
      %v853 = vsel %vm411, %v794, 0
      %v856 = vsel %vm411, %v795, 0
      %v859 = vsel %vm411, %v796, 0
      %v862 = vsel %vm411, %v797, 0
      %v865 = vsel %vm411, %v798, 0
      %v868 = vsel %vm411, %v799, 0
      %v871 = vsel %vm411, %v800, 0
      %v874 = vsel %vm411, %v801, 0
      %v877 = vsel %vm411, %v802, 0
      %v880 = vsel %vm411, %v803, 0
      %v883 = vsel %vm411, %v804, 0
      %v886 = vsel %vm411, %v805, 0
      %v889 = vsel %vm411, %v806, 0
      %v892 = vsel %vm411, %v807, 0
      %v895 = vsel %vm411, %v808, 0
      %v898 = vsel %vm411, %v809, 0
      %900 = vmatpush.msra.mxu0 0.0
      %901 = vmatpush.msra.mxu0 0.0
      %902 = vmatpush.msra.mxu0 0.0
      %903 = vmatpush.msra.mxu0 0.0
      %904 = vmatpush.msra.mxu0 0.0
      %905 = vmatpush.msra.mxu0 0.0
      %906 = vmatpush.msra.mxu0 0.0
      %907 = vmatpush.msra.mxu0 0.0
      %908 = vmatpush.msra.mxu0 0.0
      %909 = vmatpush.msra.mxu0 0.0
      %910 = vmatpush.msra.mxu0 0.0
      %911 = vmatpush.msra.mxu0 0.0
      %912 = vmatpush.msra.mxu0 %v504
      %913 = vmatpush.msra.mxu0 %v377
      %914 = vmatpush.msra.mxu0 %v375
      %915 = vmatpush.msra.mxu0 %v373
      %916 = vmatmul.f32.gmra.mxu0 %v811
      %v917 = vpop.f32.mrf.mxu0
      %v918 = vadd.f32 0.0, %v917
      %919 = vmatmul.f32.gmra.mxu0 %v814
      %v920 = vpop.f32.mrf.mxu0
      %v921 = vadd.f32 0.0, %v920
      %922 = vmatmul.f32.gmra.mxu0 %v817
      %v923 = vpop.f32.mrf.mxu0
      %v924 = vadd.f32 0.0, %v923
      %925 = vmatmul.f32.gmra.mxu0 %v820
      %v926 = vpop.f32.mrf.mxu0
      %v927 = vadd.f32 0.0, %v926
      %928 = vmatmul.f32.gmra.mxu0 %v823
      %v929 = vpop.f32.mrf.mxu0
      %v930 = vadd.f32 0.0, %v929
      %931 = vmatmul.f32.gmra.mxu0 %v826
      %v932 = vpop.f32.mrf.mxu0
      %v933 = vadd.f32 0.0, %v932
      %934 = vmatmul.f32.gmra.mxu0 %v829
      %v935 = vpop.f32.mrf.mxu0
      %v936 = vadd.f32 0.0, %v935
      %937 = vmatmul.f32.gmra.mxu0 %v832
      %v938 = vpop.f32.mrf.mxu0
      %v939 = vadd.f32 0.0, %v938
      %940 = vmatmul.f32.gmra.mxu0 %v835
      %v941 = vpop.f32.mrf.mxu0
      %v942 = vadd.f32 0.0, %v941
      %943 = vmatmul.f32.gmra.mxu0 %v838
      %v944 = vpop.f32.mrf.mxu0
      %v945 = vadd.f32 0.0, %v944
      %946 = vmatmul.f32.gmra.mxu0 %v841
      %v947 = vpop.f32.mrf.mxu0
      %v948 = vadd.f32 0.0, %v947
      %949 = vmatmul.f32.gmra.mxu0 %v844
      %v950 = vpop.f32.mrf.mxu0
      %v951 = vadd.f32 0.0, %v950
      %952 = vmatmul.f32.gmra.mxu0 %v847
      %v953 = vpop.f32.mrf.mxu0
      %v954 = vadd.f32 0.0, %v953
      %955 = vmatmul.f32.gmra.mxu0 %v850
      %v956 = vpop.f32.mrf.mxu0
      %v957 = vadd.f32 0.0, %v956
      %958 = vmatmul.f32.gmra.mxu0 %v853
      %v959 = vpop.f32.mrf.mxu0
      %v960 = vadd.f32 0.0, %v959
      %961 = vmatmul.f32.gmra.mxu0 %v856
      %v962 = vpop.f32.mrf.mxu0
      %v963 = vadd.f32 0.0, %v962
      %964 = vmatmul.f32.gmra.mxu0 %v859
      %v965 = vpop.f32.mrf.mxu0
      %v966 = vadd.f32 0.0, %v965
      %967 = vmatmul.f32.gmra.mxu0 %v862
      %v968 = vpop.f32.mrf.mxu0
      %v969 = vadd.f32 0.0, %v968
      %970 = vmatmul.f32.gmra.mxu0 %v865
      %v971 = vpop.f32.mrf.mxu0
      %v972 = vadd.f32 0.0, %v971
      %973 = vmatmul.f32.gmra.mxu0 %v868
      %v974 = vpop.f32.mrf.mxu0
      %v975 = vadd.f32 0.0, %v974
      %976 = vmatmul.f32.gmra.mxu0 %v871
      %v977 = vpop.f32.mrf.mxu0
      %v978 = vadd.f32 0.0, %v977
      %979 = vmatmul.f32.gmra.mxu0 %v874
      %v980 = vpop.f32.mrf.mxu0
      %v981 = vadd.f32 0.0, %v980
      %982 = vmatmul.f32.gmra.mxu0 %v877
      %v983 = vpop.f32.mrf.mxu0
      %v984 = vadd.f32 0.0, %v983
      %985 = vmatmul.f32.gmra.mxu0 %v880
      %v986 = vpop.f32.mrf.mxu0
      %v987 = vadd.f32 0.0, %v986
      %988 = vmatmul.f32.gmra.mxu0 %v883
      %v989 = vpop.f32.mrf.mxu0
      %v990 = vadd.f32 0.0, %v989
      %991 = vmatmul.f32.gmra.mxu0 %v886
      %v992 = vpop.f32.mrf.mxu0
      %v993 = vadd.f32 0.0, %v992
      %994 = vmatmul.f32.gmra.mxu0 %v889
      %v995 = vpop.f32.mrf.mxu0
      %v996 = vadd.f32 0.0, %v995
      %997 = vmatmul.f32.gmra.mxu0 %v892
      %v998 = vpop.f32.mrf.mxu0
      %v999 = vadd.f32 0.0, %v998
      %1000 = vmatmul.f32.gmra.mxu0 %v895
      %v1001 = vpop.f32.mrf.mxu0
      %v1002 = vadd.f32 0.0, %v1001
      %1003 = vmatmul.f32.gmra.mxu0 %v898
      %v1004 = vpop.f32.mrf.mxu0
      %v1005 = vadd.f32 0.0, %v1004
      %1006 = vdwg.mxu0
      %1007 = vmatpush.msra.mxu0 0.0
      %1008 = vmatpush.msra.mxu0 0.0
      %1009 = vmatpush.msra.mxu0 0.0
      %1010 = vmatpush.msra.mxu0 0.0
      %1011 = vmatpush.msra.mxu0 0.0
      %1012 = vmatpush.msra.mxu0 0.0
      %1013 = vmatpush.msra.mxu0 0.0
      %1014 = vmatpush.msra.mxu0 0.0
      %1015 = vmatpush.msra.mxu0 0.0
      %1016 = vmatpush.msra.mxu0 0.0
      %1017 = vmatpush.msra.mxu0 0.0
      %1018 = vmatpush.msra.mxu0 0.0
      %1019 = vmatpush.msra.mxu0 %v507
      %1020 = vmatpush.msra.mxu0 %v378
      %1021 = vmatpush.msra.mxu0 %v376
      %1022 = vmatpush.msra.mxu0 %v374
      %1023 = vmatmul.f32.gmra.mxu0 %v811
      %v1024 = vpop.f32.mrf.mxu0
      %v1025 = vadd.f32 0.0, %v1024
      %1026 = vmatmul.f32.gmra.mxu0 %v814
      %v1027 = vpop.f32.mrf.mxu0
      %v1028 = vadd.f32 0.0, %v1027
      %1029 = vmatmul.f32.gmra.mxu0 %v817
      %v1030 = vpop.f32.mrf.mxu0
      %v1031 = vadd.f32 0.0, %v1030
      %1032 = vmatmul.f32.gmra.mxu0 %v820
      %v1033 = vpop.f32.mrf.mxu0
      %v1034 = vadd.f32 0.0, %v1033
      %1035 = vmatmul.f32.gmra.mxu0 %v823
      %v1036 = vpop.f32.mrf.mxu0
      %v1037 = vadd.f32 0.0, %v1036
      %1038 = vmatmul.f32.gmra.mxu0 %v826
      %v1039 = vpop.f32.mrf.mxu0
      %v1040 = vadd.f32 0.0, %v1039
      %1041 = vmatmul.f32.gmra.mxu0 %v829
      %v1042 = vpop.f32.mrf.mxu0
      %v1043 = vadd.f32 0.0, %v1042
      %1044 = vmatmul.f32.gmra.mxu0 %v832
      %v1045 = vpop.f32.mrf.mxu0
      %v1046 = vadd.f32 0.0, %v1045
      %1047 = vmatmul.f32.gmra.mxu0 %v835
      %v1048 = vpop.f32.mrf.mxu0
      %v1049 = vadd.f32 0.0, %v1048
      %1050 = vmatmul.f32.gmra.mxu0 %v838
      %v1051 = vpop.f32.mrf.mxu0
      %v1052 = vadd.f32 0.0, %v1051
      %1053 = vmatmul.f32.gmra.mxu0 %v841
      %v1054 = vpop.f32.mrf.mxu0
      %v1055 = vadd.f32 0.0, %v1054
      %1056 = vmatmul.f32.gmra.mxu0 %v844
      %v1057 = vpop.f32.mrf.mxu0
      %v1058 = vadd.f32 0.0, %v1057
      %1059 = vmatmul.f32.gmra.mxu0 %v847
      %v1060 = vpop.f32.mrf.mxu0
      %v1061 = vadd.f32 0.0, %v1060
      %1062 = vmatmul.f32.gmra.mxu0 %v850
      %v1063 = vpop.f32.mrf.mxu0
      %v1064 = vadd.f32 0.0, %v1063
      %1065 = vmatmul.f32.gmra.mxu0 %v853
      %v1066 = vpop.f32.mrf.mxu0
      %v1067 = vadd.f32 0.0, %v1066
      %1068 = vmatmul.f32.gmra.mxu0 %v856
      %v1069 = vpop.f32.mrf.mxu0
      %v1070 = vadd.f32 0.0, %v1069
      %1071 = vmatmul.f32.gmra.mxu0 %v859
      %v1072 = vpop.f32.mrf.mxu0
      %v1073 = vadd.f32 0.0, %v1072
      %1074 = vmatmul.f32.gmra.mxu0 %v862
      %v1075 = vpop.f32.mrf.mxu0
      %v1076 = vadd.f32 0.0, %v1075
      %1077 = vmatmul.f32.gmra.mxu0 %v865
      %v1078 = vpop.f32.mrf.mxu0
      %v1079 = vadd.f32 0.0, %v1078
      %1080 = vmatmul.f32.gmra.mxu0 %v868
      %v1081 = vpop.f32.mrf.mxu0
      %v1082 = vadd.f32 0.0, %v1081
      %1083 = vmatmul.f32.gmra.mxu0 %v871
      %v1084 = vpop.f32.mrf.mxu0
      %v1085 = vadd.f32 0.0, %v1084
      %1086 = vmatmul.f32.gmra.mxu0 %v874
      %v1087 = vpop.f32.mrf.mxu0
      %v1088 = vadd.f32 0.0, %v1087
      %1089 = vmatmul.f32.gmra.mxu0 %v877
      %v1090 = vpop.f32.mrf.mxu0
      %v1091 = vadd.f32 0.0, %v1090
      %1092 = vmatmul.f32.gmra.mxu0 %v880
      %v1093 = vpop.f32.mrf.mxu0
      %v1094 = vadd.f32 0.0, %v1093
      %1095 = vmatmul.f32.gmra.mxu0 %v883
      %v1096 = vpop.f32.mrf.mxu0
      %v1097 = vadd.f32 0.0, %v1096
      %1098 = vmatmul.f32.gmra.mxu0 %v886
      %v1099 = vpop.f32.mrf.mxu0
      %v1100 = vadd.f32 0.0, %v1099
      %1101 = vmatmul.f32.gmra.mxu0 %v889
      %v1102 = vpop.f32.mrf.mxu0
      %v1103 = vadd.f32 0.0, %v1102
      %1104 = vmatmul.f32.gmra.mxu0 %v892
      %v1105 = vpop.f32.mrf.mxu0
      %v1106 = vadd.f32 0.0, %v1105
      %1107 = vmatmul.f32.gmra.mxu0 %v895
      %v1108 = vpop.f32.mrf.mxu0
      %v1109 = vadd.f32 0.0, %v1108
      %1110 = vmatmul.f32.gmra.mxu0 %v898
      %v1111 = vpop.f32.mrf.mxu0
      %v1112 = vadd.f32 0.0, %v1111
      %1113 = vdwg.mxu0
      %s1114 = scalar_lea.vmem %s2, 448
      %v1115 = vld [vmem:[%s1114] sm:$0xff]
      %v1116 = vld [vmem:[%s1114 + $0x8] sm:$0xff]
      %v1117 = vld [vmem:[%s1114 + $0x10] sm:$0xff]
      %v1118 = vld [vmem:[%s1114 + $0x18] sm:$0xff]
      %v1119 = vld [vmem:[%s1114 + $0x20] sm:$0xff]
      %v1120 = vld [vmem:[%s1114 + $0x28] sm:$0xff]
      %v1121 = vld [vmem:[%s1114 + $0x30] sm:$0xff]
      %v1122 = vld [vmem:[%s1114 + $0x38] sm:$0xff]
      %v1123 = vld [vmem:[%s1114 + $0x40] sm:$0xff]
      %v1124 = vld [vmem:[%s1114 + $0x48] sm:$0xff]
      %v1125 = vld [vmem:[%s1114 + $0x50] sm:$0xff]
      %v1126 = vld [vmem:[%s1114 + $0x58] sm:$0xff]
      %v1127 = vld [vmem:[%s1114 + $0x60] sm:$0xff]
      %v1128 = vld [vmem:[%s1114 + $0x68] sm:$0xff]
      %v1129 = vld [vmem:[%s1114 + $0x70] sm:$0xff]
      %v1130 = vld [vmem:[%s1114 + $0x78] sm:$0xff]
      %v1131 = vld [vmem:[%s1114 + $0x80] sm:$0xff]
      %v1132 = vld [vmem:[%s1114 + $0x88] sm:$0xff]
      %v1133 = vld [vmem:[%s1114 + $0x90] sm:$0xff]
      %v1134 = vld [vmem:[%s1114 + $0x98] sm:$0xff]
      %v1135 = vld [vmem:[%s1114 + $0xa0] sm:$0xff]
      %v1136 = vld [vmem:[%s1114 + $0xa8] sm:$0xff]
      %v1137 = vld [vmem:[%s1114 + $0xb0] sm:$0xff]
      %v1138 = vld [vmem:[%s1114 + $0xb8] sm:$0xff]
      %v1139 = vld [vmem:[%s1114 + $0xc0] sm:$0xff]
      %v1140 = vld [vmem:[%s1114 + $0xc8] sm:$0xff]
      %v1141 = vld [vmem:[%s1114 + $0xd0] sm:$0xff]
      %v1142 = vld [vmem:[%s1114 + $0xd8] sm:$0xff]
      %v1143 = vld [vmem:[%s1114 + $0xe0] sm:$0xff]
      %v1144 = vld [vmem:[%s1114 + $0xe8] sm:$0xff]
      %v1145 = vld [vmem:[%s1114 + $0xf0] sm:$0xff]
      %v1146 = vld [vmem:[%s1114 + $0xf8] sm:$0xff]
      %v1147 = vld [vmem:[%s1114 + $0x100] sm:$0xff]
      %v1148 = vld [vmem:[%s1114 + $0x108] sm:$0xff]
      %v1149 = vld [vmem:[%s1114 + $0x110] sm:$0xff]
      %v1150 = vld [vmem:[%s1114 + $0x118] sm:$0xff]
      %v1151 = vld [vmem:[%s1114 + $0x120] sm:$0xff]
      %v1152 = vld [vmem:[%s1114 + $0x128] sm:$0xff]
      %v1153 = vld [vmem:[%s1114 + $0x130] sm:$0xff]
      %v1154 = vld [vmem:[%s1114 + $0x138] sm:$0xff]
      %v1155 = vld [vmem:[%s1114 + $0x140] sm:$0xff]
      %v1156 = vld [vmem:[%s1114 + $0x148] sm:$0xff]
      %v1157 = vld [vmem:[%s1114 + $0x150] sm:$0xff]
      %v1158 = vld [vmem:[%s1114 + $0x158] sm:$0xff]
      %v1159 = vld [vmem:[%s1114 + $0x160] sm:$0xff]
      %v1160 = vld [vmem:[%s1114 + $0x168] sm:$0xff]
      %v1161 = vld [vmem:[%s1114 + $0x170] sm:$0xff]
      %v1162 = vld [vmem:[%s1114 + $0x178] sm:$0xff]
      %v1163 = vld [vmem:[%s1114 + $0x180] sm:$0xff]
      %v1164 = vld [vmem:[%s1114 + $0x188] sm:$0xff]
      %v1165 = vld [vmem:[%s1114 + $0x190] sm:$0xff]
      %v1166 = vld [vmem:[%s1114 + $0x198] sm:$0xff]
      %v1167 = vld [vmem:[%s1114 + $0x1a0] sm:$0xff]
      %v1168 = vld [vmem:[%s1114 + $0x1a8] sm:$0xff]
      %v1169 = vld [vmem:[%s1114 + $0x1b0] sm:$0xff]
      %v1170 = vld [vmem:[%s1114 + $0x1b8] sm:$0xff]
      %vm1171 = vcmask 785408
      %v1173 = vsel %vm1171, %v1025, 0
      %v1176 = vsel %vm1171, %v1028, 0
      %v1179 = vsel %vm1171, %v1031, 0
      %v1182 = vsel %vm1171, %v1034, 0
      %v1185 = vsel %vm1171, %v1037, 0
      %v1188 = vsel %vm1171, %v1040, 0
      %v1191 = vsel %vm1171, %v1043, 0
      %v1194 = vsel %vm1171, %v1046, 0
      %v1197 = vsel %vm1171, %v1049, 0
      %v1200 = vsel %vm1171, %v1052, 0
      %v1203 = vsel %vm1171, %v1055, 0
      %v1206 = vsel %vm1171, %v1058, 0
      %v1209 = vsel %vm1171, %v1061, 0
      %v1212 = vsel %vm1171, %v1064, 0
      %v1215 = vsel %vm1171, %v1067, 0
      %v1218 = vsel %vm1171, %v1070, 0
      %v1221 = vsel %vm1171, %v1073, 0
      %v1224 = vsel %vm1171, %v1076, 0
      %v1227 = vsel %vm1171, %v1079, 0
      %v1230 = vsel %vm1171, %v1082, 0
      %v1233 = vsel %vm1171, %v1085, 0
      %v1236 = vsel %vm1171, %v1088, 0
      %v1239 = vsel %vm1171, %v1091, 0
      %v1242 = vsel %vm1171, %v1094, 0
      %v1245 = vsel %vm1171, %v1097, 0
      %v1248 = vsel %vm1171, %v1100, 0
      %v1251 = vsel %vm1171, %v1103, 0
      %v1254 = vsel %vm1171, %v1106, 0
      %v1257 = vsel %vm1171, %v1109, 0
      %v1260 = vsel %vm1171, %v1112, 0
      %1262 = vmatpush.msra.mxu0 %v1145
      %1263 = vmatpush.msra.mxu0 %v1143
      %1264 = vmatpush.msra.mxu0 %v1141
      %1265 = vmatpush.msra.mxu0 %v1139
      %1266 = vmatpush.msra.mxu0 %v1137
      %1267 = vmatpush.msra.mxu0 %v1135
      %1268 = vmatpush.msra.mxu0 %v1133
      %1269 = vmatpush.msra.mxu0 %v1131
      %1270 = vmatpush.msra.mxu0 %v1129
      %1271 = vmatpush.msra.mxu0 %v1127
      %1272 = vmatpush.msra.mxu0 %v1125
      %1273 = vmatpush.msra.mxu0 %v1123
      %1274 = vmatpush.msra.mxu0 %v1121
      %1275 = vmatpush.msra.mxu0 %v1119
      %1276 = vmatpush.msra.mxu0 %v1117
      %1277 = vmatpush.msra.mxu0 %v1115
      %1278 = vmatmul.f32.gmra.mxu0 %v918
      %v1279 = vpop.f32.mrf.mxu0
      %v1280 = vadd.f32 0.0, %v1279
      %1281 = vmatmul.f32.gmra.mxu0 %v921
      %v1282 = vpop.f32.mrf.mxu0
      %v1283 = vadd.f32 0.0, %v1282
      %1284 = vmatmul.f32.gmra.mxu0 %v924
      %v1285 = vpop.f32.mrf.mxu0
      %v1286 = vadd.f32 0.0, %v1285
      %1287 = vmatmul.f32.gmra.mxu0 %v927
      %v1288 = vpop.f32.mrf.mxu0
      %v1289 = vadd.f32 0.0, %v1288
      %1290 = vmatmul.f32.gmra.mxu0 %v930
      %v1291 = vpop.f32.mrf.mxu0
      %v1292 = vadd.f32 0.0, %v1291
      %1293 = vmatmul.f32.gmra.mxu0 %v933
      %v1294 = vpop.f32.mrf.mxu0
      %v1295 = vadd.f32 0.0, %v1294
      %1296 = vmatmul.f32.gmra.mxu0 %v936
      %v1297 = vpop.f32.mrf.mxu0
      %v1298 = vadd.f32 0.0, %v1297
      %1299 = vmatmul.f32.gmra.mxu0 %v939
      %v1300 = vpop.f32.mrf.mxu0
      %v1301 = vadd.f32 0.0, %v1300
      %1302 = vmatmul.f32.gmra.mxu0 %v942
      %v1303 = vpop.f32.mrf.mxu0
      %v1304 = vadd.f32 0.0, %v1303
      %1305 = vmatmul.f32.gmra.mxu0 %v945
      %v1306 = vpop.f32.mrf.mxu0
      %v1307 = vadd.f32 0.0, %v1306
      %1308 = vmatmul.f32.gmra.mxu0 %v948
      %v1309 = vpop.f32.mrf.mxu0
      %v1310 = vadd.f32 0.0, %v1309
      %1311 = vmatmul.f32.gmra.mxu0 %v951
      %v1312 = vpop.f32.mrf.mxu0
      %v1313 = vadd.f32 0.0, %v1312
      %1314 = vmatmul.f32.gmra.mxu0 %v954
      %v1315 = vpop.f32.mrf.mxu0
      %v1316 = vadd.f32 0.0, %v1315
      %1317 = vmatmul.f32.gmra.mxu0 %v957
      %v1318 = vpop.f32.mrf.mxu0
      %v1319 = vadd.f32 0.0, %v1318
      %1320 = vmatmul.f32.gmra.mxu0 %v960
      %v1321 = vpop.f32.mrf.mxu0
      %v1322 = vadd.f32 0.0, %v1321
      %1323 = vmatmul.f32.gmra.mxu0 %v963
      %v1324 = vpop.f32.mrf.mxu0
      %v1325 = vadd.f32 0.0, %v1324
      %1326 = vmatmul.f32.gmra.mxu0 %v966
      %v1327 = vpop.f32.mrf.mxu0
      %v1328 = vadd.f32 0.0, %v1327
      %1329 = vmatmul.f32.gmra.mxu0 %v969
      %v1330 = vpop.f32.mrf.mxu0
      %v1331 = vadd.f32 0.0, %v1330
      %1332 = vmatmul.f32.gmra.mxu0 %v972
      %v1333 = vpop.f32.mrf.mxu0
      %v1334 = vadd.f32 0.0, %v1333
      %1335 = vmatmul.f32.gmra.mxu0 %v975
      %v1336 = vpop.f32.mrf.mxu0
      %v1337 = vadd.f32 0.0, %v1336
      %1338 = vmatmul.f32.gmra.mxu0 %v978
      %v1339 = vpop.f32.mrf.mxu0
      %v1340 = vadd.f32 0.0, %v1339
      %1341 = vmatmul.f32.gmra.mxu0 %v981
      %v1342 = vpop.f32.mrf.mxu0
      %v1343 = vadd.f32 0.0, %v1342
      %1344 = vmatmul.f32.gmra.mxu0 %v984
      %v1345 = vpop.f32.mrf.mxu0
      %v1346 = vadd.f32 0.0, %v1345
      %1347 = vmatmul.f32.gmra.mxu0 %v987
      %v1348 = vpop.f32.mrf.mxu0
      %v1349 = vadd.f32 0.0, %v1348
      %1350 = vmatmul.f32.gmra.mxu0 %v990
      %v1351 = vpop.f32.mrf.mxu0
      %v1352 = vadd.f32 0.0, %v1351
      %1353 = vmatmul.f32.gmra.mxu0 %v993
      %v1354 = vpop.f32.mrf.mxu0
      %v1355 = vadd.f32 0.0, %v1354
      %1356 = vmatmul.f32.gmra.mxu0 %v996
      %v1357 = vpop.f32.mrf.mxu0
      %v1358 = vadd.f32 0.0, %v1357
      %1359 = vmatmul.f32.gmra.mxu0 %v999
      %v1360 = vpop.f32.mrf.mxu0
      %v1361 = vadd.f32 0.0, %v1360
      %1362 = vmatmul.f32.gmra.mxu0 %v1002
      %v1363 = vpop.f32.mrf.mxu0
      %v1364 = vadd.f32 0.0, %v1363
      %1365 = vmatmul.f32.gmra.mxu0 %v1005
      %v1366 = vpop.f32.mrf.mxu0
      %v1367 = vadd.f32 0.0, %v1366
      %1368 = vdwg.mxu0
      %1369 = vmatpush.msra.mxu0 0.0
      %1370 = vmatpush.msra.mxu0 0.0
      %1371 = vmatpush.msra.mxu0 0.0
      %1372 = vmatpush.msra.mxu0 0.0
      %1373 = vmatpush.msra.mxu0 %v1169
      %1374 = vmatpush.msra.mxu0 %v1167
      %1375 = vmatpush.msra.mxu0 %v1165
      %1376 = vmatpush.msra.mxu0 %v1163
      %1377 = vmatpush.msra.mxu0 %v1161
      %1378 = vmatpush.msra.mxu0 %v1159
      %1379 = vmatpush.msra.mxu0 %v1157
      %1380 = vmatpush.msra.mxu0 %v1155
      %1381 = vmatpush.msra.mxu0 %v1153
      %1382 = vmatpush.msra.mxu0 %v1151
      %1383 = vmatpush.msra.mxu0 %v1149
      %1384 = vmatpush.msra.mxu0 %v1147
      %1385 = vmatmul.f32.gmra.mxu0 %v1173
      %v1386 = vpop.f32.mrf.mxu0
      %v1387 = vadd.f32 %v1280, %v1386
      %1388 = vmatmul.f32.gmra.mxu0 %v1176
      %v1389 = vpop.f32.mrf.mxu0
      %v1390 = vadd.f32 %v1283, %v1389
      %1391 = vmatmul.f32.gmra.mxu0 %v1179
      %v1392 = vpop.f32.mrf.mxu0
      %v1393 = vadd.f32 %v1286, %v1392
      %1394 = vmatmul.f32.gmra.mxu0 %v1182
      %v1395 = vpop.f32.mrf.mxu0
      %v1396 = vadd.f32 %v1289, %v1395
      %1397 = vmatmul.f32.gmra.mxu0 %v1185
      %v1398 = vpop.f32.mrf.mxu0
      %v1399 = vadd.f32 %v1292, %v1398
      %1400 = vmatmul.f32.gmra.mxu0 %v1188
      %v1401 = vpop.f32.mrf.mxu0
      %v1402 = vadd.f32 %v1295, %v1401
      %1403 = vmatmul.f32.gmra.mxu0 %v1191
      %v1404 = vpop.f32.mrf.mxu0
      %v1405 = vadd.f32 %v1298, %v1404
      %1406 = vmatmul.f32.gmra.mxu0 %v1194
      %v1407 = vpop.f32.mrf.mxu0
      %v1408 = vadd.f32 %v1301, %v1407
      %1409 = vmatmul.f32.gmra.mxu0 %v1197
      %v1410 = vpop.f32.mrf.mxu0
      %v1411 = vadd.f32 %v1304, %v1410
      %1412 = vmatmul.f32.gmra.mxu0 %v1200
      %v1413 = vpop.f32.mrf.mxu0
      %v1414 = vadd.f32 %v1307, %v1413
      %1415 = vmatmul.f32.gmra.mxu0 %v1203
      %v1416 = vpop.f32.mrf.mxu0
      %v1417 = vadd.f32 %v1310, %v1416
      %1418 = vmatmul.f32.gmra.mxu0 %v1206
      %v1419 = vpop.f32.mrf.mxu0
      %v1420 = vadd.f32 %v1313, %v1419
      %1421 = vmatmul.f32.gmra.mxu0 %v1209
      %v1422 = vpop.f32.mrf.mxu0
      %v1423 = vadd.f32 %v1316, %v1422
      %1424 = vmatmul.f32.gmra.mxu0 %v1212
      %v1425 = vpop.f32.mrf.mxu0
      %v1426 = vadd.f32 %v1319, %v1425
      %1427 = vmatmul.f32.gmra.mxu0 %v1215
      %v1428 = vpop.f32.mrf.mxu0
      %v1429 = vadd.f32 %v1322, %v1428
      %1430 = vmatmul.f32.gmra.mxu0 %v1218
      %v1431 = vpop.f32.mrf.mxu0
      %v1432 = vadd.f32 %v1325, %v1431
      %1433 = vmatmul.f32.gmra.mxu0 %v1221
      %v1434 = vpop.f32.mrf.mxu0
      %v1435 = vadd.f32 %v1328, %v1434
      %1436 = vmatmul.f32.gmra.mxu0 %v1224
      %v1437 = vpop.f32.mrf.mxu0
      %v1438 = vadd.f32 %v1331, %v1437
      %1439 = vmatmul.f32.gmra.mxu0 %v1227
      %v1440 = vpop.f32.mrf.mxu0
      %v1441 = vadd.f32 %v1334, %v1440
      %1442 = vmatmul.f32.gmra.mxu0 %v1230
      %v1443 = vpop.f32.mrf.mxu0
      %v1444 = vadd.f32 %v1337, %v1443
      %1445 = vmatmul.f32.gmra.mxu0 %v1233
      %v1446 = vpop.f32.mrf.mxu0
      %v1447 = vadd.f32 %v1340, %v1446
      %1448 = vmatmul.f32.gmra.mxu0 %v1236
      %v1449 = vpop.f32.mrf.mxu0
      %v1450 = vadd.f32 %v1343, %v1449
      %1451 = vmatmul.f32.gmra.mxu0 %v1239
      %v1452 = vpop.f32.mrf.mxu0
      %v1453 = vadd.f32 %v1346, %v1452
      %1454 = vmatmul.f32.gmra.mxu0 %v1242
      %v1455 = vpop.f32.mrf.mxu0
      %v1456 = vadd.f32 %v1349, %v1455
      %1457 = vmatmul.f32.gmra.mxu0 %v1245
      %v1458 = vpop.f32.mrf.mxu0
      %v1459 = vadd.f32 %v1352, %v1458
      %1460 = vmatmul.f32.gmra.mxu0 %v1248
      %v1461 = vpop.f32.mrf.mxu0
      %v1462 = vadd.f32 %v1355, %v1461
      %1463 = vmatmul.f32.gmra.mxu0 %v1251
      %v1464 = vpop.f32.mrf.mxu0
      %v1465 = vadd.f32 %v1358, %v1464
      %1466 = vmatmul.f32.gmra.mxu0 %v1254
      %v1467 = vpop.f32.mrf.mxu0
      %v1468 = vadd.f32 %v1361, %v1467
      %1469 = vmatmul.f32.gmra.mxu0 %v1257
      %v1470 = vpop.f32.mrf.mxu0
      %v1471 = vadd.f32 %v1364, %v1470
      %1472 = vmatmul.f32.gmra.mxu0 %v1260
      %v1473 = vpop.f32.mrf.mxu0
      %v1474 = vadd.f32 %v1367, %v1473
      %1475 = vdwg.mxu0
      %1476 = vmatpush.msra.mxu0 %v1146
      %1477 = vmatpush.msra.mxu0 %v1144
      %1478 = vmatpush.msra.mxu0 %v1142
      %1479 = vmatpush.msra.mxu0 %v1140
      %1480 = vmatpush.msra.mxu0 %v1138
      %1481 = vmatpush.msra.mxu0 %v1136
      %1482 = vmatpush.msra.mxu0 %v1134
      %1483 = vmatpush.msra.mxu0 %v1132
      %1484 = vmatpush.msra.mxu0 %v1130
      %1485 = vmatpush.msra.mxu0 %v1128
      %1486 = vmatpush.msra.mxu0 %v1126
      %1487 = vmatpush.msra.mxu0 %v1124
      %1488 = vmatpush.msra.mxu0 %v1122
      %1489 = vmatpush.msra.mxu0 %v1120
      %1490 = vmatpush.msra.mxu0 %v1118
      %1491 = vmatpush.msra.mxu0 %v1116
      %1492 = vmatmul.f32.gmra.mxu0 %v918
      %v1493 = vpop.f32.mrf.mxu0
      %v1494 = vadd.f32 0.0, %v1493
      %1495 = vmatmul.f32.gmra.mxu0 %v921
      %v1496 = vpop.f32.mrf.mxu0
      %v1497 = vadd.f32 0.0, %v1496
      %1498 = vmatmul.f32.gmra.mxu0 %v924
      %v1499 = vpop.f32.mrf.mxu0
      %v1500 = vadd.f32 0.0, %v1499
      %1501 = vmatmul.f32.gmra.mxu0 %v927
      %v1502 = vpop.f32.mrf.mxu0
      %v1503 = vadd.f32 0.0, %v1502
      %1504 = vmatmul.f32.gmra.mxu0 %v930
      %v1505 = vpop.f32.mrf.mxu0
      %v1506 = vadd.f32 0.0, %v1505
      %1507 = vmatmul.f32.gmra.mxu0 %v933
      %v1508 = vpop.f32.mrf.mxu0
      %v1509 = vadd.f32 0.0, %v1508
      %1510 = vmatmul.f32.gmra.mxu0 %v936
      %v1511 = vpop.f32.mrf.mxu0
      %v1512 = vadd.f32 0.0, %v1511
      %1513 = vmatmul.f32.gmra.mxu0 %v939
      %v1514 = vpop.f32.mrf.mxu0
      %v1515 = vadd.f32 0.0, %v1514
      %1516 = vmatmul.f32.gmra.mxu0 %v942
      %v1517 = vpop.f32.mrf.mxu0
      %v1518 = vadd.f32 0.0, %v1517
      %1519 = vmatmul.f32.gmra.mxu0 %v945
      %v1520 = vpop.f32.mrf.mxu0
      %v1521 = vadd.f32 0.0, %v1520
      %1522 = vmatmul.f32.gmra.mxu0 %v948
      %v1523 = vpop.f32.mrf.mxu0
      %v1524 = vadd.f32 0.0, %v1523
      %1525 = vmatmul.f32.gmra.mxu0 %v951
      %v1526 = vpop.f32.mrf.mxu0
      %v1527 = vadd.f32 0.0, %v1526
      %1528 = vmatmul.f32.gmra.mxu0 %v954
      %v1529 = vpop.f32.mrf.mxu0
      %v1530 = vadd.f32 0.0, %v1529
      %1531 = vmatmul.f32.gmra.mxu0 %v957
      %v1532 = vpop.f32.mrf.mxu0
      %v1533 = vadd.f32 0.0, %v1532
      %1534 = vmatmul.f32.gmra.mxu0 %v960
      %v1535 = vpop.f32.mrf.mxu0
      %v1536 = vadd.f32 0.0, %v1535
      %1537 = vmatmul.f32.gmra.mxu0 %v963
      %v1538 = vpop.f32.mrf.mxu0
      %v1539 = vadd.f32 0.0, %v1538
      %1540 = vmatmul.f32.gmra.mxu0 %v966
      %v1541 = vpop.f32.mrf.mxu0
      %v1542 = vadd.f32 0.0, %v1541
      %1543 = vmatmul.f32.gmra.mxu0 %v969
      %v1544 = vpop.f32.mrf.mxu0
      %v1545 = vadd.f32 0.0, %v1544
      %1546 = vmatmul.f32.gmra.mxu0 %v972
      %v1547 = vpop.f32.mrf.mxu0
      %v1548 = vadd.f32 0.0, %v1547
      %1549 = vmatmul.f32.gmra.mxu0 %v975
      %v1550 = vpop.f32.mrf.mxu0
      %v1551 = vadd.f32 0.0, %v1550
      %1552 = vmatmul.f32.gmra.mxu0 %v978
      %v1553 = vpop.f32.mrf.mxu0
      %v1554 = vadd.f32 0.0, %v1553
      %1555 = vmatmul.f32.gmra.mxu0 %v981
      %v1556 = vpop.f32.mrf.mxu0
      %v1557 = vadd.f32 0.0, %v1556
      %1558 = vmatmul.f32.gmra.mxu0 %v984
      %v1559 = vpop.f32.mrf.mxu0
      %v1560 = vadd.f32 0.0, %v1559
      %1561 = vmatmul.f32.gmra.mxu0 %v987
      %v1562 = vpop.f32.mrf.mxu0
      %v1563 = vadd.f32 0.0, %v1562
      %1564 = vmatmul.f32.gmra.mxu0 %v990
      %v1565 = vpop.f32.mrf.mxu0
      %v1566 = vadd.f32 0.0, %v1565
      %1567 = vmatmul.f32.gmra.mxu0 %v993
      %v1568 = vpop.f32.mrf.mxu0
      %v1569 = vadd.f32 0.0, %v1568
      %1570 = vmatmul.f32.gmra.mxu0 %v996
      %v1571 = vpop.f32.mrf.mxu0
      %v1572 = vadd.f32 0.0, %v1571
      %1573 = vmatmul.f32.gmra.mxu0 %v999
      %v1574 = vpop.f32.mrf.mxu0
      %v1575 = vadd.f32 0.0, %v1574
      %1576 = vmatmul.f32.gmra.mxu0 %v1002
      %v1577 = vpop.f32.mrf.mxu0
      %v1578 = vadd.f32 0.0, %v1577
      %1579 = vmatmul.f32.gmra.mxu0 %v1005
      %v1580 = vpop.f32.mrf.mxu0
      %v1581 = vadd.f32 0.0, %v1580
      %1582 = vdwg.mxu0
      %1583 = vmatpush.msra.mxu0 0.0
      %1584 = vmatpush.msra.mxu0 0.0
      %1585 = vmatpush.msra.mxu0 0.0
      %1586 = vmatpush.msra.mxu0 0.0
      %1587 = vmatpush.msra.mxu0 %v1170
      %1588 = vmatpush.msra.mxu0 %v1168
      %1589 = vmatpush.msra.mxu0 %v1166
      %1590 = vmatpush.msra.mxu0 %v1164
      %1591 = vmatpush.msra.mxu0 %v1162
      %1592 = vmatpush.msra.mxu0 %v1160
      %1593 = vmatpush.msra.mxu0 %v1158
      %1594 = vmatpush.msra.mxu0 %v1156
      %1595 = vmatpush.msra.mxu0 %v1154
      %1596 = vmatpush.msra.mxu0 %v1152
      %1597 = vmatpush.msra.mxu0 %v1150
      %1598 = vmatpush.msra.mxu0 %v1148
      %1599 = vmatmul.f32.gmra.mxu0 %v1173
      %v1600 = vpop.f32.mrf.mxu0
      %v1601 = vadd.f32 %v1494, %v1600
      %1602 = vmatmul.f32.gmra.mxu0 %v1176
      %v1603 = vpop.f32.mrf.mxu0
      %v1604 = vadd.f32 %v1497, %v1603
      %1605 = vmatmul.f32.gmra.mxu0 %v1179
      %v1606 = vpop.f32.mrf.mxu0
      %v1607 = vadd.f32 %v1500, %v1606
      %1608 = vmatmul.f32.gmra.mxu0 %v1182
      %v1609 = vpop.f32.mrf.mxu0
      %v1610 = vadd.f32 %v1503, %v1609
      %1611 = vmatmul.f32.gmra.mxu0 %v1185
      %v1612 = vpop.f32.mrf.mxu0
      %v1613 = vadd.f32 %v1506, %v1612
      %1614 = vmatmul.f32.gmra.mxu0 %v1188
      %v1615 = vpop.f32.mrf.mxu0
      %v1616 = vadd.f32 %v1509, %v1615
      %1617 = vmatmul.f32.gmra.mxu0 %v1191
      %v1618 = vpop.f32.mrf.mxu0
      %v1619 = vadd.f32 %v1512, %v1618
      %1620 = vmatmul.f32.gmra.mxu0 %v1194
      %v1621 = vpop.f32.mrf.mxu0
      %v1622 = vadd.f32 %v1515, %v1621
      %1623 = vmatmul.f32.gmra.mxu0 %v1197
      %v1624 = vpop.f32.mrf.mxu0
      %v1625 = vadd.f32 %v1518, %v1624
      %1626 = vmatmul.f32.gmra.mxu0 %v1200
      %v1627 = vpop.f32.mrf.mxu0
      %v1628 = vadd.f32 %v1521, %v1627
      %1629 = vmatmul.f32.gmra.mxu0 %v1203
      %v1630 = vpop.f32.mrf.mxu0
      %v1631 = vadd.f32 %v1524, %v1630
      %1632 = vmatmul.f32.gmra.mxu0 %v1206
      %v1633 = vpop.f32.mrf.mxu0
      %v1634 = vadd.f32 %v1527, %v1633
      %1635 = vmatmul.f32.gmra.mxu0 %v1209
      %v1636 = vpop.f32.mrf.mxu0
      %v1637 = vadd.f32 %v1530, %v1636
      %1638 = vmatmul.f32.gmra.mxu0 %v1212
      %v1639 = vpop.f32.mrf.mxu0
      %v1640 = vadd.f32 %v1533, %v1639
      %1641 = vmatmul.f32.gmra.mxu0 %v1215
      %v1642 = vpop.f32.mrf.mxu0
      %v1643 = vadd.f32 %v1536, %v1642
      %1644 = vmatmul.f32.gmra.mxu0 %v1218
      %v1645 = vpop.f32.mrf.mxu0
      %v1646 = vadd.f32 %v1539, %v1645
      %1647 = vmatmul.f32.gmra.mxu0 %v1221
      %v1648 = vpop.f32.mrf.mxu0
      %v1649 = vadd.f32 %v1542, %v1648
      %1650 = vmatmul.f32.gmra.mxu0 %v1224
      %v1651 = vpop.f32.mrf.mxu0
      %v1652 = vadd.f32 %v1545, %v1651
      %1653 = vmatmul.f32.gmra.mxu0 %v1227
      %v1654 = vpop.f32.mrf.mxu0
      %v1655 = vadd.f32 %v1548, %v1654
      %1656 = vmatmul.f32.gmra.mxu0 %v1230
      %v1657 = vpop.f32.mrf.mxu0
      %v1658 = vadd.f32 %v1551, %v1657
      %1659 = vmatmul.f32.gmra.mxu0 %v1233
      %v1660 = vpop.f32.mrf.mxu0
      %v1661 = vadd.f32 %v1554, %v1660
      %1662 = vmatmul.f32.gmra.mxu0 %v1236
      %v1663 = vpop.f32.mrf.mxu0
      %v1664 = vadd.f32 %v1557, %v1663
      %1665 = vmatmul.f32.gmra.mxu0 %v1239
      %v1666 = vpop.f32.mrf.mxu0
      %v1667 = vadd.f32 %v1560, %v1666
      %1668 = vmatmul.f32.gmra.mxu0 %v1242
      %v1669 = vpop.f32.mrf.mxu0
      %v1670 = vadd.f32 %v1563, %v1669
      %1671 = vmatmul.f32.gmra.mxu0 %v1245
      %v1672 = vpop.f32.mrf.mxu0
      %v1673 = vadd.f32 %v1566, %v1672
      %1674 = vmatmul.f32.gmra.mxu0 %v1248
      %v1675 = vpop.f32.mrf.mxu0
      %v1676 = vadd.f32 %v1569, %v1675
      %1677 = vmatmul.f32.gmra.mxu0 %v1251
      %v1678 = vpop.f32.mrf.mxu0
      %v1679 = vadd.f32 %v1572, %v1678
      %1680 = vmatmul.f32.gmra.mxu0 %v1254
      %v1681 = vpop.f32.mrf.mxu0
      %v1682 = vadd.f32 %v1575, %v1681
      %1683 = vmatmul.f32.gmra.mxu0 %v1257
      %v1684 = vpop.f32.mrf.mxu0
      %v1685 = vadd.f32 %v1578, %v1684
      %1686 = vmatmul.f32.gmra.mxu0 %v1260
      %v1687 = vpop.f32.mrf.mxu0
      %v1688 = vadd.f32 %v1581, %v1687
      %1689 = vdwg.mxu0
      %v1691 = vsel %vm1171, %v634, 0
      %v1694 = vsel %vm1171, %v637, 0
      %v1697 = vsel %vm1171, %v640, 0
      %v1700 = vsel %vm1171, %v643, 0
      %v1703 = vsel %vm1171, %v646, 0
      %v1706 = vsel %vm1171, %v649, 0
      %v1709 = vsel %vm1171, %v652, 0
      %v1712 = vsel %vm1171, %v655, 0
      %v1715 = vsel %vm1171, %v658, 0
      %v1718 = vsel %vm1171, %v661, 0
      %v1721 = vsel %vm1171, %v664, 0
      %v1724 = vsel %vm1171, %v667, 0
      %v1727 = vsel %vm1171, %v670, 0
      %v1730 = vsel %vm1171, %v673, 0
      %v1733 = vsel %vm1171, %v676, 0
      %v1736 = vsel %vm1171, %v679, 0
      %v1739 = vsel %vm1171, %v682, 0
      %v1742 = vsel %vm1171, %v685, 0
      %v1745 = vsel %vm1171, %v688, 0
      %v1748 = vsel %vm1171, %v691, 0
      %v1751 = vsel %vm1171, %v694, 0
      %v1754 = vsel %vm1171, %v697, 0
      %v1757 = vsel %vm1171, %v700, 0
      %v1760 = vsel %vm1171, %v703, 0
      %v1763 = vsel %vm1171, %v706, 0
      %v1766 = vsel %vm1171, %v709, 0
      %v1769 = vsel %vm1171, %v712, 0
      %v1772 = vsel %vm1171, %v715, 0
      %v1775 = vsel %vm1171, %v718, 0
      %v1778 = vsel %vm1171, %v721, 0
      %1780 = vmatpush.msra.mxu0 %v753
      %1781 = vmatpush.msra.mxu0 %v751
      %1782 = vmatpush.msra.mxu0 %v749
      %1783 = vmatpush.msra.mxu0 %v747
      %1784 = vmatpush.msra.mxu0 %v745
      %1785 = vmatpush.msra.mxu0 %v743
      %1786 = vmatpush.msra.mxu0 %v741
      %1787 = vmatpush.msra.mxu0 %v739
      %1788 = vmatpush.msra.mxu0 %v737
      %1789 = vmatpush.msra.mxu0 %v735
      %1790 = vmatpush.msra.mxu0 %v733
      %1791 = vmatpush.msra.mxu0 %v731
      %1792 = vmatpush.msra.mxu0 %v729
      %1793 = vmatpush.msra.mxu0 %v727
      %1794 = vmatpush.msra.mxu0 %v725
      %1795 = vmatpush.msra.mxu0 %v723
      %1796 = vmatmul.f32.gmra.mxu0 %v527
      %v1797 = vpop.f32.mrf.mxu0
      %v1798 = vadd.f32 %v1387, %v1797
      %1799 = vmatmul.f32.gmra.mxu0 %v530
      %v1800 = vpop.f32.mrf.mxu0
      %v1801 = vadd.f32 %v1390, %v1800
      %1802 = vmatmul.f32.gmra.mxu0 %v533
      %v1803 = vpop.f32.mrf.mxu0
      %v1804 = vadd.f32 %v1393, %v1803
      %1805 = vmatmul.f32.gmra.mxu0 %v536
      %v1806 = vpop.f32.mrf.mxu0
      %v1807 = vadd.f32 %v1396, %v1806
      %1808 = vmatmul.f32.gmra.mxu0 %v539
      %v1809 = vpop.f32.mrf.mxu0
      %v1810 = vadd.f32 %v1399, %v1809
      %1811 = vmatmul.f32.gmra.mxu0 %v542
      %v1812 = vpop.f32.mrf.mxu0
      %v1813 = vadd.f32 %v1402, %v1812
      %1814 = vmatmul.f32.gmra.mxu0 %v545
      %v1815 = vpop.f32.mrf.mxu0
      %v1816 = vadd.f32 %v1405, %v1815
      %1817 = vmatmul.f32.gmra.mxu0 %v548
      %v1818 = vpop.f32.mrf.mxu0
      %v1819 = vadd.f32 %v1408, %v1818
      %1820 = vmatmul.f32.gmra.mxu0 %v551
      %v1821 = vpop.f32.mrf.mxu0
      %v1822 = vadd.f32 %v1411, %v1821
      %1823 = vmatmul.f32.gmra.mxu0 %v554
      %v1824 = vpop.f32.mrf.mxu0
      %v1825 = vadd.f32 %v1414, %v1824
      %1826 = vmatmul.f32.gmra.mxu0 %v557
      %v1827 = vpop.f32.mrf.mxu0
      %v1828 = vadd.f32 %v1417, %v1827
      %1829 = vmatmul.f32.gmra.mxu0 %v560
      %v1830 = vpop.f32.mrf.mxu0
      %v1831 = vadd.f32 %v1420, %v1830
      %1832 = vmatmul.f32.gmra.mxu0 %v563
      %v1833 = vpop.f32.mrf.mxu0
      %v1834 = vadd.f32 %v1423, %v1833
      %1835 = vmatmul.f32.gmra.mxu0 %v566
      %v1836 = vpop.f32.mrf.mxu0
      %v1837 = vadd.f32 %v1426, %v1836
      %1838 = vmatmul.f32.gmra.mxu0 %v569
      %v1839 = vpop.f32.mrf.mxu0
      %v1840 = vadd.f32 %v1429, %v1839
      %1841 = vmatmul.f32.gmra.mxu0 %v572
      %v1842 = vpop.f32.mrf.mxu0
      %v1843 = vadd.f32 %v1432, %v1842
      %1844 = vmatmul.f32.gmra.mxu0 %v575
      %v1845 = vpop.f32.mrf.mxu0
      %v1846 = vadd.f32 %v1435, %v1845
      %1847 = vmatmul.f32.gmra.mxu0 %v578
      %v1848 = vpop.f32.mrf.mxu0
      %v1849 = vadd.f32 %v1438, %v1848
      %1850 = vmatmul.f32.gmra.mxu0 %v581
      %v1851 = vpop.f32.mrf.mxu0
      %v1852 = vadd.f32 %v1441, %v1851
      %1853 = vmatmul.f32.gmra.mxu0 %v584
      %v1854 = vpop.f32.mrf.mxu0
      %v1855 = vadd.f32 %v1444, %v1854
      %1856 = vmatmul.f32.gmra.mxu0 %v587
      %v1857 = vpop.f32.mrf.mxu0
      %v1858 = vadd.f32 %v1447, %v1857
      %1859 = vmatmul.f32.gmra.mxu0 %v590
      %v1860 = vpop.f32.mrf.mxu0
      %v1861 = vadd.f32 %v1450, %v1860
      %1862 = vmatmul.f32.gmra.mxu0 %v593
      %v1863 = vpop.f32.mrf.mxu0
      %v1864 = vadd.f32 %v1453, %v1863
      %1865 = vmatmul.f32.gmra.mxu0 %v596
      %v1866 = vpop.f32.mrf.mxu0
      %v1867 = vadd.f32 %v1456, %v1866
      %1868 = vmatmul.f32.gmra.mxu0 %v599
      %v1869 = vpop.f32.mrf.mxu0
      %v1870 = vadd.f32 %v1459, %v1869
      %1871 = vmatmul.f32.gmra.mxu0 %v602
      %v1872 = vpop.f32.mrf.mxu0
      %v1873 = vadd.f32 %v1462, %v1872
      %1874 = vmatmul.f32.gmra.mxu0 %v605
      %v1875 = vpop.f32.mrf.mxu0
      %v1876 = vadd.f32 %v1465, %v1875
      %1877 = vmatmul.f32.gmra.mxu0 %v608
      %v1878 = vpop.f32.mrf.mxu0
      %v1879 = vadd.f32 %v1468, %v1878
      %1880 = vmatmul.f32.gmra.mxu0 %v611
      %v1881 = vpop.f32.mrf.mxu0
      %v1882 = vadd.f32 %v1471, %v1881
      %1883 = vmatmul.f32.gmra.mxu0 %v614
      %v1884 = vpop.f32.mrf.mxu0
      %v1885 = vadd.f32 %v1474, %v1884
      %1886 = vdwg.mxu0
      %1887 = vmatpush.msra.mxu0 0.0
      %1888 = vmatpush.msra.mxu0 0.0
      %1889 = vmatpush.msra.mxu0 0.0
      %1890 = vmatpush.msra.mxu0 0.0
      %1891 = vmatpush.msra.mxu0 %v777
      %1892 = vmatpush.msra.mxu0 %v775
      %1893 = vmatpush.msra.mxu0 %v773
      %1894 = vmatpush.msra.mxu0 %v771
      %1895 = vmatpush.msra.mxu0 %v769
      %1896 = vmatpush.msra.mxu0 %v767
      %1897 = vmatpush.msra.mxu0 %v765
      %1898 = vmatpush.msra.mxu0 %v763
      %1899 = vmatpush.msra.mxu0 %v761
      %1900 = vmatpush.msra.mxu0 %v759
      %1901 = vmatpush.msra.mxu0 %v757
      %1902 = vmatpush.msra.mxu0 %v755
      %1903 = vmatmul.f32.gmra.mxu0 %v1691
      %v1904 = vpop.f32.mrf.mxu0
      %v1905 = vadd.f32 %v1798, %v1904
      %1906 = vmatmul.f32.gmra.mxu0 %v1694
      %v1907 = vpop.f32.mrf.mxu0
      %v1908 = vadd.f32 %v1801, %v1907
      %1909 = vmatmul.f32.gmra.mxu0 %v1697
      %v1910 = vpop.f32.mrf.mxu0
      %v1911 = vadd.f32 %v1804, %v1910
      %1912 = vmatmul.f32.gmra.mxu0 %v1700
      %v1913 = vpop.f32.mrf.mxu0
      %v1914 = vadd.f32 %v1807, %v1913
      %1915 = vmatmul.f32.gmra.mxu0 %v1703
      %v1916 = vpop.f32.mrf.mxu0
      %v1917 = vadd.f32 %v1810, %v1916
      %1918 = vmatmul.f32.gmra.mxu0 %v1706
      %v1919 = vpop.f32.mrf.mxu0
      %v1920 = vadd.f32 %v1813, %v1919
      %1921 = vmatmul.f32.gmra.mxu0 %v1709
      %v1922 = vpop.f32.mrf.mxu0
      %v1923 = vadd.f32 %v1816, %v1922
      %1924 = vmatmul.f32.gmra.mxu0 %v1712
      %v1925 = vpop.f32.mrf.mxu0
      %v1926 = vadd.f32 %v1819, %v1925
      %1927 = vmatmul.f32.gmra.mxu0 %v1715
      %v1928 = vpop.f32.mrf.mxu0
      %v1929 = vadd.f32 %v1822, %v1928
      %1930 = vmatmul.f32.gmra.mxu0 %v1718
      %v1931 = vpop.f32.mrf.mxu0
      %v1932 = vadd.f32 %v1825, %v1931
      %1933 = vmatmul.f32.gmra.mxu0 %v1721
      %v1934 = vpop.f32.mrf.mxu0
      %v1935 = vadd.f32 %v1828, %v1934
      %1936 = vmatmul.f32.gmra.mxu0 %v1724
      %v1937 = vpop.f32.mrf.mxu0
      %v1938 = vadd.f32 %v1831, %v1937
      %1939 = vmatmul.f32.gmra.mxu0 %v1727
      %v1940 = vpop.f32.mrf.mxu0
      %v1941 = vadd.f32 %v1834, %v1940
      %1942 = vmatmul.f32.gmra.mxu0 %v1730
      %v1943 = vpop.f32.mrf.mxu0
      %v1944 = vadd.f32 %v1837, %v1943
      %1945 = vmatmul.f32.gmra.mxu0 %v1733
      %v1946 = vpop.f32.mrf.mxu0
      %v1947 = vadd.f32 %v1840, %v1946
      %1948 = vmatmul.f32.gmra.mxu0 %v1736
      %v1949 = vpop.f32.mrf.mxu0
      %v1950 = vadd.f32 %v1843, %v1949
      %1951 = vmatmul.f32.gmra.mxu0 %v1739
      %v1952 = vpop.f32.mrf.mxu0
      %v1953 = vadd.f32 %v1846, %v1952
      %1954 = vmatmul.f32.gmra.mxu0 %v1742
      %v1955 = vpop.f32.mrf.mxu0
      %v1956 = vadd.f32 %v1849, %v1955
      %1957 = vmatmul.f32.gmra.mxu0 %v1745
      %v1958 = vpop.f32.mrf.mxu0
      %v1959 = vadd.f32 %v1852, %v1958
      %1960 = vmatmul.f32.gmra.mxu0 %v1748
      %v1961 = vpop.f32.mrf.mxu0
      %v1962 = vadd.f32 %v1855, %v1961
      %1963 = vmatmul.f32.gmra.mxu0 %v1751
      %v1964 = vpop.f32.mrf.mxu0
      %v1965 = vadd.f32 %v1858, %v1964
      %1966 = vmatmul.f32.gmra.mxu0 %v1754
      %v1967 = vpop.f32.mrf.mxu0
      %v1968 = vadd.f32 %v1861, %v1967
      %1969 = vmatmul.f32.gmra.mxu0 %v1757
      %v1970 = vpop.f32.mrf.mxu0
      %v1971 = vadd.f32 %v1864, %v1970
      %1972 = vmatmul.f32.gmra.mxu0 %v1760
      %v1973 = vpop.f32.mrf.mxu0
      %v1974 = vadd.f32 %v1867, %v1973
      %1975 = vmatmul.f32.gmra.mxu0 %v1763
      %v1976 = vpop.f32.mrf.mxu0
      %v1977 = vadd.f32 %v1870, %v1976
      %1978 = vmatmul.f32.gmra.mxu0 %v1766
      %v1979 = vpop.f32.mrf.mxu0
      %v1980 = vadd.f32 %v1873, %v1979
      %1981 = vmatmul.f32.gmra.mxu0 %v1769
      %v1982 = vpop.f32.mrf.mxu0
      %v1983 = vadd.f32 %v1876, %v1982
      %1984 = vmatmul.f32.gmra.mxu0 %v1772
      %v1985 = vpop.f32.mrf.mxu0
      %v1986 = vadd.f32 %v1879, %v1985
      %1987 = vmatmul.f32.gmra.mxu0 %v1775
      %v1988 = vpop.f32.mrf.mxu0
      %v1989 = vadd.f32 %v1882, %v1988
      %1990 = vmatmul.f32.gmra.mxu0 %v1778
      %v1991 = vpop.f32.mrf.mxu0
      %v1992 = vadd.f32 %v1885, %v1991
      %1993 = vdwg.mxu0
      %1994 = vmatpush.msra.mxu0 %v754
      %1995 = vmatpush.msra.mxu0 %v752
      %1996 = vmatpush.msra.mxu0 %v750
      %1997 = vmatpush.msra.mxu0 %v748
      %1998 = vmatpush.msra.mxu0 %v746
      %1999 = vmatpush.msra.mxu0 %v744
      %2000 = vmatpush.msra.mxu0 %v742
      %2001 = vmatpush.msra.mxu0 %v740
      %2002 = vmatpush.msra.mxu0 %v738
      %2003 = vmatpush.msra.mxu0 %v736
      %2004 = vmatpush.msra.mxu0 %v734
      %2005 = vmatpush.msra.mxu0 %v732
      %2006 = vmatpush.msra.mxu0 %v730
      %2007 = vmatpush.msra.mxu0 %v728
      %2008 = vmatpush.msra.mxu0 %v726
      %2009 = vmatpush.msra.mxu0 %v724
      %2010 = vmatmul.f32.gmra.mxu0 %v527
      %v2011 = vpop.f32.mrf.mxu0
      %v2012 = vadd.f32 %v1601, %v2011
      %2013 = vmatmul.f32.gmra.mxu0 %v530
      %v2014 = vpop.f32.mrf.mxu0
      %v2015 = vadd.f32 %v1604, %v2014
      %2016 = vmatmul.f32.gmra.mxu0 %v533
      %v2017 = vpop.f32.mrf.mxu0
      %v2018 = vadd.f32 %v1607, %v2017
      %2019 = vmatmul.f32.gmra.mxu0 %v536
      %v2020 = vpop.f32.mrf.mxu0
      %v2021 = vadd.f32 %v1610, %v2020
      %2022 = vmatmul.f32.gmra.mxu0 %v539
      %v2023 = vpop.f32.mrf.mxu0
      %v2024 = vadd.f32 %v1613, %v2023
      %2025 = vmatmul.f32.gmra.mxu0 %v542
      %v2026 = vpop.f32.mrf.mxu0
      %v2027 = vadd.f32 %v1616, %v2026
      %2028 = vmatmul.f32.gmra.mxu0 %v545
      %v2029 = vpop.f32.mrf.mxu0
      %v2030 = vadd.f32 %v1619, %v2029
      %2031 = vmatmul.f32.gmra.mxu0 %v548
      %v2032 = vpop.f32.mrf.mxu0
      %v2033 = vadd.f32 %v1622, %v2032
      %2034 = vmatmul.f32.gmra.mxu0 %v551
      %v2035 = vpop.f32.mrf.mxu0
      %v2036 = vadd.f32 %v1625, %v2035
      %2037 = vmatmul.f32.gmra.mxu0 %v554
      %v2038 = vpop.f32.mrf.mxu0
      %v2039 = vadd.f32 %v1628, %v2038
      %2040 = vmatmul.f32.gmra.mxu0 %v557
      %v2041 = vpop.f32.mrf.mxu0
      %v2042 = vadd.f32 %v1631, %v2041
      %2043 = vmatmul.f32.gmra.mxu0 %v560
      %v2044 = vpop.f32.mrf.mxu0
      %v2045 = vadd.f32 %v1634, %v2044
      %2046 = vmatmul.f32.gmra.mxu0 %v563
      %v2047 = vpop.f32.mrf.mxu0
      %v2048 = vadd.f32 %v1637, %v2047
      %2049 = vmatmul.f32.gmra.mxu0 %v566
      %v2050 = vpop.f32.mrf.mxu0
      %v2051 = vadd.f32 %v1640, %v2050
      %2052 = vmatmul.f32.gmra.mxu0 %v569
      %v2053 = vpop.f32.mrf.mxu0
      %v2054 = vadd.f32 %v1643, %v2053
      %2055 = vmatmul.f32.gmra.mxu0 %v572
      %v2056 = vpop.f32.mrf.mxu0
      %v2057 = vadd.f32 %v1646, %v2056
      %2058 = vmatmul.f32.gmra.mxu0 %v575
      %v2059 = vpop.f32.mrf.mxu0
      %v2060 = vadd.f32 %v1649, %v2059
      %2061 = vmatmul.f32.gmra.mxu0 %v578
      %v2062 = vpop.f32.mrf.mxu0
      %v2063 = vadd.f32 %v1652, %v2062
      %2064 = vmatmul.f32.gmra.mxu0 %v581
      %v2065 = vpop.f32.mrf.mxu0
      %v2066 = vadd.f32 %v1655, %v2065
      %2067 = vmatmul.f32.gmra.mxu0 %v584
      %v2068 = vpop.f32.mrf.mxu0
      %v2069 = vadd.f32 %v1658, %v2068
      %2070 = vmatmul.f32.gmra.mxu0 %v587
      %v2071 = vpop.f32.mrf.mxu0
      %v2072 = vadd.f32 %v1661, %v2071
      %2073 = vmatmul.f32.gmra.mxu0 %v590
      %v2074 = vpop.f32.mrf.mxu0
      %v2075 = vadd.f32 %v1664, %v2074
      %2076 = vmatmul.f32.gmra.mxu0 %v593
      %v2077 = vpop.f32.mrf.mxu0
      %v2078 = vadd.f32 %v1667, %v2077
      %2079 = vmatmul.f32.gmra.mxu0 %v596
      %v2080 = vpop.f32.mrf.mxu0
      %v2081 = vadd.f32 %v1670, %v2080
      %2082 = vmatmul.f32.gmra.mxu0 %v599
      %v2083 = vpop.f32.mrf.mxu0
      %v2084 = vadd.f32 %v1673, %v2083
      %2085 = vmatmul.f32.gmra.mxu0 %v602
      %v2086 = vpop.f32.mrf.mxu0
      %v2087 = vadd.f32 %v1676, %v2086
      %2088 = vmatmul.f32.gmra.mxu0 %v605
      %v2089 = vpop.f32.mrf.mxu0
      %v2090 = vadd.f32 %v1679, %v2089
      %2091 = vmatmul.f32.gmra.mxu0 %v608
      %v2092 = vpop.f32.mrf.mxu0
      %v2093 = vadd.f32 %v1682, %v2092
      %2094 = vmatmul.f32.gmra.mxu0 %v611
      %v2095 = vpop.f32.mrf.mxu0
      %v2096 = vadd.f32 %v1685, %v2095
      %2097 = vmatmul.f32.gmra.mxu0 %v614
      %v2098 = vpop.f32.mrf.mxu0
      %v2099 = vadd.f32 %v1688, %v2098
      %2100 = vdwg.mxu0
      %2101 = vmatpush.msra.mxu0 0.0
      %2102 = vmatpush.msra.mxu0 0.0
      %2103 = vmatpush.msra.mxu0 0.0
      %2104 = vmatpush.msra.mxu0 0.0
      %2105 = vmatpush.msra.mxu0 %v778
      %2106 = vmatpush.msra.mxu0 %v776
      %2107 = vmatpush.msra.mxu0 %v774
      %2108 = vmatpush.msra.mxu0 %v772
      %2109 = vmatpush.msra.mxu0 %v770
      %2110 = vmatpush.msra.mxu0 %v768
      %2111 = vmatpush.msra.mxu0 %v766
      %2112 = vmatpush.msra.mxu0 %v764
      %2113 = vmatpush.msra.mxu0 %v762
      %2114 = vmatpush.msra.mxu0 %v760
      %2115 = vmatpush.msra.mxu0 %v758
      %2116 = vmatpush.msra.mxu0 %v756
      %2117 = vmatmul.f32.gmra.mxu0 %v1691
      %v2118 = vpop.f32.mrf.mxu0
      %v2119 = vadd.f32 %v2012, %v2118
      %2120 = vmatmul.f32.gmra.mxu0 %v1694
      %v2121 = vpop.f32.mrf.mxu0
      %v2122 = vadd.f32 %v2015, %v2121
      %2123 = vmatmul.f32.gmra.mxu0 %v1697
      %v2124 = vpop.f32.mrf.mxu0
      %v2125 = vadd.f32 %v2018, %v2124
      %2126 = vmatmul.f32.gmra.mxu0 %v1700
      %v2127 = vpop.f32.mrf.mxu0
      %v2128 = vadd.f32 %v2021, %v2127
      %2129 = vmatmul.f32.gmra.mxu0 %v1703
      %v2130 = vpop.f32.mrf.mxu0
      %v2131 = vadd.f32 %v2024, %v2130
      %2132 = vmatmul.f32.gmra.mxu0 %v1706
      %v2133 = vpop.f32.mrf.mxu0
      %v2134 = vadd.f32 %v2027, %v2133
      %2135 = vmatmul.f32.gmra.mxu0 %v1709
      %v2136 = vpop.f32.mrf.mxu0
      %v2137 = vadd.f32 %v2030, %v2136
      %2138 = vmatmul.f32.gmra.mxu0 %v1712
      %v2139 = vpop.f32.mrf.mxu0
      %v2140 = vadd.f32 %v2033, %v2139
      %2141 = vmatmul.f32.gmra.mxu0 %v1715
      %v2142 = vpop.f32.mrf.mxu0
      %v2143 = vadd.f32 %v2036, %v2142
      %2144 = vmatmul.f32.gmra.mxu0 %v1718
      %v2145 = vpop.f32.mrf.mxu0
      %v2146 = vadd.f32 %v2039, %v2145
      %2147 = vmatmul.f32.gmra.mxu0 %v1721
      %v2148 = vpop.f32.mrf.mxu0
      %v2149 = vadd.f32 %v2042, %v2148
      %2150 = vmatmul.f32.gmra.mxu0 %v1724
      %v2151 = vpop.f32.mrf.mxu0
      %v2152 = vadd.f32 %v2045, %v2151
      %2153 = vmatmul.f32.gmra.mxu0 %v1727
      %v2154 = vpop.f32.mrf.mxu0
      %v2155 = vadd.f32 %v2048, %v2154
      %2156 = vmatmul.f32.gmra.mxu0 %v1730
      %v2157 = vpop.f32.mrf.mxu0
      %v2158 = vadd.f32 %v2051, %v2157
      %2159 = vmatmul.f32.gmra.mxu0 %v1733
      %v2160 = vpop.f32.mrf.mxu0
      %v2161 = vadd.f32 %v2054, %v2160
      %2162 = vmatmul.f32.gmra.mxu0 %v1736
      %v2163 = vpop.f32.mrf.mxu0
      %v2164 = vadd.f32 %v2057, %v2163
      %2165 = vmatmul.f32.gmra.mxu0 %v1739
      %v2166 = vpop.f32.mrf.mxu0
      %v2167 = vadd.f32 %v2060, %v2166
      %2168 = vmatmul.f32.gmra.mxu0 %v1742
      %v2169 = vpop.f32.mrf.mxu0
      %v2170 = vadd.f32 %v2063, %v2169
      %2171 = vmatmul.f32.gmra.mxu0 %v1745
      %v2172 = vpop.f32.mrf.mxu0
      %v2173 = vadd.f32 %v2066, %v2172
      %2174 = vmatmul.f32.gmra.mxu0 %v1748
      %v2175 = vpop.f32.mrf.mxu0
      %v2176 = vadd.f32 %v2069, %v2175
      %2177 = vmatmul.f32.gmra.mxu0 %v1751
      %v2178 = vpop.f32.mrf.mxu0
      %v2179 = vadd.f32 %v2072, %v2178
      %2180 = vmatmul.f32.gmra.mxu0 %v1754
      %v2181 = vpop.f32.mrf.mxu0
      %v2182 = vadd.f32 %v2075, %v2181
      %2183 = vmatmul.f32.gmra.mxu0 %v1757
      %v2184 = vpop.f32.mrf.mxu0
      %v2185 = vadd.f32 %v2078, %v2184
      %2186 = vmatmul.f32.gmra.mxu0 %v1760
      %v2187 = vpop.f32.mrf.mxu0
      %v2188 = vadd.f32 %v2081, %v2187
      %2189 = vmatmul.f32.gmra.mxu0 %v1763
      %v2190 = vpop.f32.mrf.mxu0
      %v2191 = vadd.f32 %v2084, %v2190
      %2192 = vmatmul.f32.gmra.mxu0 %v1766
      %v2193 = vpop.f32.mrf.mxu0
      %v2194 = vadd.f32 %v2087, %v2193
      %2195 = vmatmul.f32.gmra.mxu0 %v1769
      %v2196 = vpop.f32.mrf.mxu0
      %v2197 = vadd.f32 %v2090, %v2196
      %2198 = vmatmul.f32.gmra.mxu0 %v1772
      %v2199 = vpop.f32.mrf.mxu0
      %v2200 = vadd.f32 %v2093, %v2199
      %2201 = vmatmul.f32.gmra.mxu0 %v1775
      %v2202 = vpop.f32.mrf.mxu0
      %v2203 = vadd.f32 %v2096, %v2202
      %2204 = vmatmul.f32.gmra.mxu0 %v1778
      %v2205 = vpop.f32.mrf.mxu0
      %v2206 = vadd.f32 %v2099, %v2205
      %2207 = vdwg.mxu0
      %s2208 = scalar_lea.vmem %s1, 480
      %v2209 = vld [vmem:[%s2208] sm:$0xff]
      %v2210 = vld [vmem:[%s2208 + $0x8] sm:$0xff]
      %v2211 = vld [vmem:[%s2208 + $0x10] sm:$0xff]
      %v2212 = vld [vmem:[%s2208 + $0x18] sm:$0xff]
      %v2213 = vld [vmem:[%s2208 + $0x20] sm:$0xff]
      %v2214 = vld [vmem:[%s2208 + $0x28] sm:$0xff]
      %v2215 = vld [vmem:[%s2208 + $0x30] sm:$0xff]
      %v2216 = vld [vmem:[%s2208 + $0x38] sm:$0xff]
      %v2217 = vld [vmem:[%s2208 + $0x40] sm:$0xff]
      %v2218 = vld [vmem:[%s2208 + $0x48] sm:$0xff]
      %v2219 = vld [vmem:[%s2208 + $0x50] sm:$0xff]
      %v2220 = vld [vmem:[%s2208 + $0x58] sm:$0xff]
      %v2221 = vld [vmem:[%s2208 + $0x60] sm:$0xff]
      %v2222 = vld [vmem:[%s2208 + $0x68] sm:$0xff]
      %v2223 = vld [vmem:[%s2208 + $0x70] sm:$0xff]
      %v2224 = vld [vmem:[%s2208 + $0x78] sm:$0xff]
      %v2225 = vld [vmem:[%s2208 + $0x80] sm:$0xff]
      %v2226 = vld [vmem:[%s2208 + $0x88] sm:$0xff]
      %v2227 = vld [vmem:[%s2208 + $0x90] sm:$0xff]
      %v2228 = vld [vmem:[%s2208 + $0x98] sm:$0xff]
      %v2229 = vld [vmem:[%s2208 + $0xa0] sm:$0xff]
      %v2230 = vld [vmem:[%s2208 + $0xa8] sm:$0xff]
      %v2231 = vld [vmem:[%s2208 + $0xb0] sm:$0xff]
      %v2232 = vld [vmem:[%s2208 + $0xb8] sm:$0xff]
      %v2233 = vld [vmem:[%s2208 + $0xc0] sm:$0xff]
      %v2234 = vld [vmem:[%s2208 + $0xc8] sm:$0xff]
      %v2235 = vld [vmem:[%s2208 + $0xd0] sm:$0xff]
      %v2236 = vld [vmem:[%s2208 + $0xd8] sm:$0xff]
      %v2237 = vld [vmem:[%s2208 + $0xe0] sm:$0xff]
      %v2238 = vld [vmem:[%s2208 + $0xe8] sm:$0xff]
      %v2240 = vsel %vm411, %v2209, 0
      %v2243 = vsel %vm411, %v2210, 0
      %v2246 = vsel %vm411, %v2211, 0
      %v2249 = vsel %vm411, %v2212, 0
      %v2252 = vsel %vm411, %v2213, 0
      %v2255 = vsel %vm411, %v2214, 0
      %v2258 = vsel %vm411, %v2215, 0
      %v2261 = vsel %vm411, %v2216, 0
      %v2264 = vsel %vm411, %v2217, 0
      %v2267 = vsel %vm411, %v2218, 0
      %v2270 = vsel %vm411, %v2219, 0
      %v2273 = vsel %vm411, %v2220, 0
      %v2276 = vsel %vm411, %v2221, 0
      %v2279 = vsel %vm411, %v2222, 0
      %v2282 = vsel %vm411, %v2223, 0
      %v2285 = vsel %vm411, %v2224, 0
      %v2288 = vsel %vm411, %v2225, 0
      %v2291 = vsel %vm411, %v2226, 0
      %v2294 = vsel %vm411, %v2227, 0
      %v2297 = vsel %vm411, %v2228, 0
      %v2300 = vsel %vm411, %v2229, 0
      %v2303 = vsel %vm411, %v2230, 0
      %v2306 = vsel %vm411, %v2231, 0
      %v2309 = vsel %vm411, %v2232, 0
      %v2312 = vsel %vm411, %v2233, 0
      %v2315 = vsel %vm411, %v2234, 0
      %v2318 = vsel %vm411, %v2235, 0
      %v2321 = vsel %vm411, %v2236, 0
      %v2324 = vsel %vm411, %v2237, 0
      %v2327 = vsel %vm411, %v2238, 0
      %2329 = vmatpush.msra.mxu0 0.0
      %2330 = vmatpush.msra.mxu0 0.0
      %2331 = vmatpush.msra.mxu0 0.0
      %2332 = vmatpush.msra.mxu0 0.0
      %2333 = vmatpush.msra.mxu0 0.0
      %2334 = vmatpush.msra.mxu0 0.0
      %2335 = vmatpush.msra.mxu0 0.0
      %2336 = vmatpush.msra.mxu0 0.0
      %2337 = vmatpush.msra.mxu0 0.0
      %2338 = vmatpush.msra.mxu0 0.0
      %2339 = vmatpush.msra.mxu0 0.0
      %2340 = vmatpush.msra.mxu0 0.0
      %2341 = vmatpush.msra.mxu0 %v504
      %2342 = vmatpush.msra.mxu0 %v377
      %2343 = vmatpush.msra.mxu0 %v375
      %2344 = vmatpush.msra.mxu0 %v373
      %2345 = vmatmul.f32.gmra.mxu0 %v2240
      %v2346 = vpop.f32.mrf.mxu0
      %v2347 = vadd.f32 0.0, %v2346
      %2348 = vmatmul.f32.gmra.mxu0 %v2243
      %v2349 = vpop.f32.mrf.mxu0
      %v2350 = vadd.f32 0.0, %v2349
      %2351 = vmatmul.f32.gmra.mxu0 %v2246
      %v2352 = vpop.f32.mrf.mxu0
      %v2353 = vadd.f32 0.0, %v2352
      %2354 = vmatmul.f32.gmra.mxu0 %v2249
      %v2355 = vpop.f32.mrf.mxu0
      %v2356 = vadd.f32 0.0, %v2355
      %2357 = vmatmul.f32.gmra.mxu0 %v2252
      %v2358 = vpop.f32.mrf.mxu0
      %v2359 = vadd.f32 0.0, %v2358
      %2360 = vmatmul.f32.gmra.mxu0 %v2255
      %v2361 = vpop.f32.mrf.mxu0
      %v2362 = vadd.f32 0.0, %v2361
      %2363 = vmatmul.f32.gmra.mxu0 %v2258
      %v2364 = vpop.f32.mrf.mxu0
      %v2365 = vadd.f32 0.0, %v2364
      %2366 = vmatmul.f32.gmra.mxu0 %v2261
      %v2367 = vpop.f32.mrf.mxu0
      %v2368 = vadd.f32 0.0, %v2367
      %2369 = vmatmul.f32.gmra.mxu0 %v2264
      %v2370 = vpop.f32.mrf.mxu0
      %v2371 = vadd.f32 0.0, %v2370
      %2372 = vmatmul.f32.gmra.mxu0 %v2267
      %v2373 = vpop.f32.mrf.mxu0
      %v2374 = vadd.f32 0.0, %v2373
      %2375 = vmatmul.f32.gmra.mxu0 %v2270
      %v2376 = vpop.f32.mrf.mxu0
      %v2377 = vadd.f32 0.0, %v2376
      %2378 = vmatmul.f32.gmra.mxu0 %v2273
      %v2379 = vpop.f32.mrf.mxu0
      %v2380 = vadd.f32 0.0, %v2379
      %2381 = vmatmul.f32.gmra.mxu0 %v2276
      %v2382 = vpop.f32.mrf.mxu0
      %v2383 = vadd.f32 0.0, %v2382
      %2384 = vmatmul.f32.gmra.mxu0 %v2279
      %v2385 = vpop.f32.mrf.mxu0
      %v2386 = vadd.f32 0.0, %v2385
      %2387 = vmatmul.f32.gmra.mxu0 %v2282
      %v2388 = vpop.f32.mrf.mxu0
      %v2389 = vadd.f32 0.0, %v2388
      %2390 = vmatmul.f32.gmra.mxu0 %v2285
      %v2391 = vpop.f32.mrf.mxu0
      %v2392 = vadd.f32 0.0, %v2391
      %2393 = vmatmul.f32.gmra.mxu0 %v2288
      %v2394 = vpop.f32.mrf.mxu0
      %v2395 = vadd.f32 0.0, %v2394
      %2396 = vmatmul.f32.gmra.mxu0 %v2291
      %v2397 = vpop.f32.mrf.mxu0
      %v2398 = vadd.f32 0.0, %v2397
      %2399 = vmatmul.f32.gmra.mxu0 %v2294
      %v2400 = vpop.f32.mrf.mxu0
      %v2401 = vadd.f32 0.0, %v2400
      %2402 = vmatmul.f32.gmra.mxu0 %v2297
      %v2403 = vpop.f32.mrf.mxu0
      %v2404 = vadd.f32 0.0, %v2403
      %2405 = vmatmul.f32.gmra.mxu0 %v2300
      %v2406 = vpop.f32.mrf.mxu0
      %v2407 = vadd.f32 0.0, %v2406
      %2408 = vmatmul.f32.gmra.mxu0 %v2303
      %v2409 = vpop.f32.mrf.mxu0
      %v2410 = vadd.f32 0.0, %v2409
      %2411 = vmatmul.f32.gmra.mxu0 %v2306
      %v2412 = vpop.f32.mrf.mxu0
      %v2413 = vadd.f32 0.0, %v2412
      %2414 = vmatmul.f32.gmra.mxu0 %v2309
      %v2415 = vpop.f32.mrf.mxu0
      %v2416 = vadd.f32 0.0, %v2415
      %2417 = vmatmul.f32.gmra.mxu0 %v2312
      %v2418 = vpop.f32.mrf.mxu0
      %v2419 = vadd.f32 0.0, %v2418
      %2420 = vmatmul.f32.gmra.mxu0 %v2315
      %v2421 = vpop.f32.mrf.mxu0
      %v2422 = vadd.f32 0.0, %v2421
      %2423 = vmatmul.f32.gmra.mxu0 %v2318
      %v2424 = vpop.f32.mrf.mxu0
      %v2425 = vadd.f32 0.0, %v2424
      %2426 = vmatmul.f32.gmra.mxu0 %v2321
      %v2427 = vpop.f32.mrf.mxu0
      %v2428 = vadd.f32 0.0, %v2427
      %2429 = vmatmul.f32.gmra.mxu0 %v2324
      %v2430 = vpop.f32.mrf.mxu0
      %v2431 = vadd.f32 0.0, %v2430
      %2432 = vmatmul.f32.gmra.mxu0 %v2327
      %v2433 = vpop.f32.mrf.mxu0
      %v2434 = vadd.f32 0.0, %v2433
      %2435 = vdwg.mxu0
      %2436 = vmatpush.msra.mxu0 0.0
      %2437 = vmatpush.msra.mxu0 0.0
      %2438 = vmatpush.msra.mxu0 0.0
      %2439 = vmatpush.msra.mxu0 0.0
      %2440 = vmatpush.msra.mxu0 0.0
      %2441 = vmatpush.msra.mxu0 0.0
      %2442 = vmatpush.msra.mxu0 0.0
      %2443 = vmatpush.msra.mxu0 0.0
      %2444 = vmatpush.msra.mxu0 0.0
      %2445 = vmatpush.msra.mxu0 0.0
      %2446 = vmatpush.msra.mxu0 0.0
      %2447 = vmatpush.msra.mxu0 0.0
      %2448 = vmatpush.msra.mxu0 %v507
      %2449 = vmatpush.msra.mxu0 %v378
      %2450 = vmatpush.msra.mxu0 %v376
      %2451 = vmatpush.msra.mxu0 %v374
      %2452 = vmatmul.f32.gmra.mxu0 %v2240
      %v2453 = vpop.f32.mrf.mxu0
      %v2454 = vadd.f32 0.0, %v2453
      %2455 = vmatmul.f32.gmra.mxu0 %v2243
      %v2456 = vpop.f32.mrf.mxu0
      %v2457 = vadd.f32 0.0, %v2456
      %2458 = vmatmul.f32.gmra.mxu0 %v2246
      %v2459 = vpop.f32.mrf.mxu0
      %v2460 = vadd.f32 0.0, %v2459
      %2461 = vmatmul.f32.gmra.mxu0 %v2249
      %v2462 = vpop.f32.mrf.mxu0
      %v2463 = vadd.f32 0.0, %v2462
      %2464 = vmatmul.f32.gmra.mxu0 %v2252
      %v2465 = vpop.f32.mrf.mxu0
      %v2466 = vadd.f32 0.0, %v2465
      %2467 = vmatmul.f32.gmra.mxu0 %v2255
      %v2468 = vpop.f32.mrf.mxu0
      %v2469 = vadd.f32 0.0, %v2468
      %2470 = vmatmul.f32.gmra.mxu0 %v2258
      %v2471 = vpop.f32.mrf.mxu0
      %v2472 = vadd.f32 0.0, %v2471
      %2473 = vmatmul.f32.gmra.mxu0 %v2261
      %v2474 = vpop.f32.mrf.mxu0
      %v2475 = vadd.f32 0.0, %v2474
      %2476 = vmatmul.f32.gmra.mxu0 %v2264
      %v2477 = vpop.f32.mrf.mxu0
      %v2478 = vadd.f32 0.0, %v2477
      %2479 = vmatmul.f32.gmra.mxu0 %v2267
      %v2480 = vpop.f32.mrf.mxu0
      %v2481 = vadd.f32 0.0, %v2480
      %2482 = vmatmul.f32.gmra.mxu0 %v2270
      %v2483 = vpop.f32.mrf.mxu0
      %v2484 = vadd.f32 0.0, %v2483
      %2485 = vmatmul.f32.gmra.mxu0 %v2273
      %v2486 = vpop.f32.mrf.mxu0
      %v2487 = vadd.f32 0.0, %v2486
      %2488 = vmatmul.f32.gmra.mxu0 %v2276
      %v2489 = vpop.f32.mrf.mxu0
      %v2490 = vadd.f32 0.0, %v2489
      %2491 = vmatmul.f32.gmra.mxu0 %v2279
      %v2492 = vpop.f32.mrf.mxu0
      %v2493 = vadd.f32 0.0, %v2492
      %2494 = vmatmul.f32.gmra.mxu0 %v2282
      %v2495 = vpop.f32.mrf.mxu0
      %v2496 = vadd.f32 0.0, %v2495
      %2497 = vmatmul.f32.gmra.mxu0 %v2285
      %v2498 = vpop.f32.mrf.mxu0
      %v2499 = vadd.f32 0.0, %v2498
      %2500 = vmatmul.f32.gmra.mxu0 %v2288
      %v2501 = vpop.f32.mrf.mxu0
      %v2502 = vadd.f32 0.0, %v2501
      %2503 = vmatmul.f32.gmra.mxu0 %v2291
      %v2504 = vpop.f32.mrf.mxu0
      %v2505 = vadd.f32 0.0, %v2504
      %2506 = vmatmul.f32.gmra.mxu0 %v2294
      %v2507 = vpop.f32.mrf.mxu0
      %v2508 = vadd.f32 0.0, %v2507
      %2509 = vmatmul.f32.gmra.mxu0 %v2297
      %v2510 = vpop.f32.mrf.mxu0
      %v2511 = vadd.f32 0.0, %v2510
      %2512 = vmatmul.f32.gmra.mxu0 %v2300
      %v2513 = vpop.f32.mrf.mxu0
      %v2514 = vadd.f32 0.0, %v2513
      %2515 = vmatmul.f32.gmra.mxu0 %v2303
      %v2516 = vpop.f32.mrf.mxu0
      %v2517 = vadd.f32 0.0, %v2516
      %2518 = vmatmul.f32.gmra.mxu0 %v2306
      %v2519 = vpop.f32.mrf.mxu0
      %v2520 = vadd.f32 0.0, %v2519
      %2521 = vmatmul.f32.gmra.mxu0 %v2309
      %v2522 = vpop.f32.mrf.mxu0
      %v2523 = vadd.f32 0.0, %v2522
      %2524 = vmatmul.f32.gmra.mxu0 %v2312
      %v2525 = vpop.f32.mrf.mxu0
      %v2526 = vadd.f32 0.0, %v2525
      %2527 = vmatmul.f32.gmra.mxu0 %v2315
      %v2528 = vpop.f32.mrf.mxu0
      %v2529 = vadd.f32 0.0, %v2528
      %2530 = vmatmul.f32.gmra.mxu0 %v2318
      %v2531 = vpop.f32.mrf.mxu0
      %v2532 = vadd.f32 0.0, %v2531
      %2533 = vmatmul.f32.gmra.mxu0 %v2321
      %v2534 = vpop.f32.mrf.mxu0
      %v2535 = vadd.f32 0.0, %v2534
      %2536 = vmatmul.f32.gmra.mxu0 %v2324
      %v2537 = vpop.f32.mrf.mxu0
      %v2538 = vadd.f32 0.0, %v2537
      %2539 = vmatmul.f32.gmra.mxu0 %v2327
      %v2540 = vpop.f32.mrf.mxu0
      %v2541 = vadd.f32 0.0, %v2540
      %2542 = vdwg.mxu0
      %s2543 = scalar_lea.vmem %s2, 896
      %v2544 = vld [vmem:[%s2543] sm:$0xff]
      %v2545 = vld [vmem:[%s2543 + $0x8] sm:$0xff]
      %v2546 = vld [vmem:[%s2543 + $0x10] sm:$0xff]
      %v2547 = vld [vmem:[%s2543 + $0x18] sm:$0xff]
      %v2548 = vld [vmem:[%s2543 + $0x20] sm:$0xff]
      %v2549 = vld [vmem:[%s2543 + $0x28] sm:$0xff]
      %v2550 = vld [vmem:[%s2543 + $0x30] sm:$0xff]
      %v2551 = vld [vmem:[%s2543 + $0x38] sm:$0xff]
      %v2552 = vld [vmem:[%s2543 + $0x40] sm:$0xff]
      %v2553 = vld [vmem:[%s2543 + $0x48] sm:$0xff]
      %v2554 = vld [vmem:[%s2543 + $0x50] sm:$0xff]
      %v2555 = vld [vmem:[%s2543 + $0x58] sm:$0xff]
      %v2556 = vld [vmem:[%s2543 + $0x60] sm:$0xff]
      %v2557 = vld [vmem:[%s2543 + $0x68] sm:$0xff]
      %v2558 = vld [vmem:[%s2543 + $0x70] sm:$0xff]
      %v2559 = vld [vmem:[%s2543 + $0x78] sm:$0xff]
      %v2560 = vld [vmem:[%s2543 + $0x80] sm:$0xff]
      %v2561 = vld [vmem:[%s2543 + $0x88] sm:$0xff]
      %v2562 = vld [vmem:[%s2543 + $0x90] sm:$0xff]
      %v2563 = vld [vmem:[%s2543 + $0x98] sm:$0xff]
      %v2564 = vld [vmem:[%s2543 + $0xa0] sm:$0xff]
      %v2565 = vld [vmem:[%s2543 + $0xa8] sm:$0xff]
      %v2566 = vld [vmem:[%s2543 + $0xb0] sm:$0xff]
      %v2567 = vld [vmem:[%s2543 + $0xb8] sm:$0xff]
      %v2568 = vld [vmem:[%s2543 + $0xc0] sm:$0xff]
      %v2569 = vld [vmem:[%s2543 + $0xc8] sm:$0xff]
      %v2570 = vld [vmem:[%s2543 + $0xd0] sm:$0xff]
      %v2571 = vld [vmem:[%s2543 + $0xd8] sm:$0xff]
      %v2572 = vld [vmem:[%s2543 + $0xe0] sm:$0xff]
      %v2573 = vld [vmem:[%s2543 + $0xe8] sm:$0xff]
      %v2574 = vld [vmem:[%s2543 + $0xf0] sm:$0xff]
      %v2575 = vld [vmem:[%s2543 + $0xf8] sm:$0xff]
      %v2576 = vld [vmem:[%s2543 + $0x100] sm:$0xff]
      %v2577 = vld [vmem:[%s2543 + $0x108] sm:$0xff]
      %v2578 = vld [vmem:[%s2543 + $0x110] sm:$0xff]
      %v2579 = vld [vmem:[%s2543 + $0x118] sm:$0xff]
      %v2580 = vld [vmem:[%s2543 + $0x120] sm:$0xff]
      %v2581 = vld [vmem:[%s2543 + $0x128] sm:$0xff]
      %v2582 = vld [vmem:[%s2543 + $0x130] sm:$0xff]
      %v2583 = vld [vmem:[%s2543 + $0x138] sm:$0xff]
      %v2584 = vld [vmem:[%s2543 + $0x140] sm:$0xff]
      %v2585 = vld [vmem:[%s2543 + $0x148] sm:$0xff]
      %v2586 = vld [vmem:[%s2543 + $0x150] sm:$0xff]
      %v2587 = vld [vmem:[%s2543 + $0x158] sm:$0xff]
      %v2588 = vld [vmem:[%s2543 + $0x160] sm:$0xff]
      %v2589 = vld [vmem:[%s2543 + $0x168] sm:$0xff]
      %v2590 = vld [vmem:[%s2543 + $0x170] sm:$0xff]
      %v2591 = vld [vmem:[%s2543 + $0x178] sm:$0xff]
      %v2592 = vld [vmem:[%s2543 + $0x180] sm:$0xff]
      %v2593 = vld [vmem:[%s2543 + $0x188] sm:$0xff]
      %v2594 = vld [vmem:[%s2543 + $0x190] sm:$0xff]
      %v2595 = vld [vmem:[%s2543 + $0x198] sm:$0xff]
      %v2596 = vld [vmem:[%s2543 + $0x1a0] sm:$0xff]
      %v2597 = vld [vmem:[%s2543 + $0x1a8] sm:$0xff]
      %v2598 = vld [vmem:[%s2543 + $0x1b0] sm:$0xff]
      %v2599 = vld [vmem:[%s2543 + $0x1b8] sm:$0xff]
      %v2601 = vsel %vm1171, %v2454, 0
      %v2604 = vsel %vm1171, %v2457, 0
      %v2607 = vsel %vm1171, %v2460, 0
      %v2610 = vsel %vm1171, %v2463, 0
      %v2613 = vsel %vm1171, %v2466, 0
      %v2616 = vsel %vm1171, %v2469, 0
      %v2619 = vsel %vm1171, %v2472, 0
      %v2622 = vsel %vm1171, %v2475, 0
      %v2625 = vsel %vm1171, %v2478, 0
      %v2628 = vsel %vm1171, %v2481, 0
      %v2631 = vsel %vm1171, %v2484, 0
      %v2634 = vsel %vm1171, %v2487, 0
      %v2637 = vsel %vm1171, %v2490, 0
      %v2640 = vsel %vm1171, %v2493, 0
      %v2643 = vsel %vm1171, %v2496, 0
      %v2646 = vsel %vm1171, %v2499, 0
      %v2649 = vsel %vm1171, %v2502, 0
      %v2652 = vsel %vm1171, %v2505, 0
      %v2655 = vsel %vm1171, %v2508, 0
      %v2658 = vsel %vm1171, %v2511, 0
      %v2661 = vsel %vm1171, %v2514, 0
      %v2664 = vsel %vm1171, %v2517, 0
      %v2667 = vsel %vm1171, %v2520, 0
      %v2670 = vsel %vm1171, %v2523, 0
      %v2673 = vsel %vm1171, %v2526, 0
      %v2676 = vsel %vm1171, %v2529, 0
      %v2679 = vsel %vm1171, %v2532, 0
      %v2682 = vsel %vm1171, %v2535, 0
      %v2685 = vsel %vm1171, %v2538, 0
      %v2688 = vsel %vm1171, %v2541, 0
      %2690 = vmatpush.msra.mxu0 %v2574
      %2691 = vmatpush.msra.mxu0 %v2572
      %2692 = vmatpush.msra.mxu0 %v2570
      %2693 = vmatpush.msra.mxu0 %v2568
      %2694 = vmatpush.msra.mxu0 %v2566
      %2695 = vmatpush.msra.mxu0 %v2564
      %2696 = vmatpush.msra.mxu0 %v2562
      %2697 = vmatpush.msra.mxu0 %v2560
      %2698 = vmatpush.msra.mxu0 %v2558
      %2699 = vmatpush.msra.mxu0 %v2556
      %2700 = vmatpush.msra.mxu0 %v2554
      %2701 = vmatpush.msra.mxu0 %v2552
      %2702 = vmatpush.msra.mxu0 %v2550
      %2703 = vmatpush.msra.mxu0 %v2548
      %2704 = vmatpush.msra.mxu0 %v2546
      %2705 = vmatpush.msra.mxu0 %v2544
      %2706 = vmatmul.f32.gmra.mxu0 %v2347
      %v2707 = vpop.f32.mrf.mxu0
      %v2708 = vadd.f32 0.0, %v2707
      %2709 = vmatmul.f32.gmra.mxu0 %v2350
      %v2710 = vpop.f32.mrf.mxu0
      %v2711 = vadd.f32 0.0, %v2710
      %2712 = vmatmul.f32.gmra.mxu0 %v2353
      %v2713 = vpop.f32.mrf.mxu0
      %v2714 = vadd.f32 0.0, %v2713
      %2715 = vmatmul.f32.gmra.mxu0 %v2356
      %v2716 = vpop.f32.mrf.mxu0
      %v2717 = vadd.f32 0.0, %v2716
      %2718 = vmatmul.f32.gmra.mxu0 %v2359
      %v2719 = vpop.f32.mrf.mxu0
      %v2720 = vadd.f32 0.0, %v2719
      %2721 = vmatmul.f32.gmra.mxu0 %v2362
      %v2722 = vpop.f32.mrf.mxu0
      %v2723 = vadd.f32 0.0, %v2722
      %2724 = vmatmul.f32.gmra.mxu0 %v2365
      %v2725 = vpop.f32.mrf.mxu0
      %v2726 = vadd.f32 0.0, %v2725
      %2727 = vmatmul.f32.gmra.mxu0 %v2368
      %v2728 = vpop.f32.mrf.mxu0
      %v2729 = vadd.f32 0.0, %v2728
      %2730 = vmatmul.f32.gmra.mxu0 %v2371
      %v2731 = vpop.f32.mrf.mxu0
      %v2732 = vadd.f32 0.0, %v2731
      %2733 = vmatmul.f32.gmra.mxu0 %v2374
      %v2734 = vpop.f32.mrf.mxu0
      %v2735 = vadd.f32 0.0, %v2734
      %2736 = vmatmul.f32.gmra.mxu0 %v2377
      %v2737 = vpop.f32.mrf.mxu0
      %v2738 = vadd.f32 0.0, %v2737
      %2739 = vmatmul.f32.gmra.mxu0 %v2380
      %v2740 = vpop.f32.mrf.mxu0
      %v2741 = vadd.f32 0.0, %v2740
      %2742 = vmatmul.f32.gmra.mxu0 %v2383
      %v2743 = vpop.f32.mrf.mxu0
      %v2744 = vadd.f32 0.0, %v2743
      %2745 = vmatmul.f32.gmra.mxu0 %v2386
      %v2746 = vpop.f32.mrf.mxu0
      %v2747 = vadd.f32 0.0, %v2746
      %2748 = vmatmul.f32.gmra.mxu0 %v2389
      %v2749 = vpop.f32.mrf.mxu0
      %v2750 = vadd.f32 0.0, %v2749
      %2751 = vmatmul.f32.gmra.mxu0 %v2392
      %v2752 = vpop.f32.mrf.mxu0
      %v2753 = vadd.f32 0.0, %v2752
      %2754 = vmatmul.f32.gmra.mxu0 %v2395
      %v2755 = vpop.f32.mrf.mxu0
      %v2756 = vadd.f32 0.0, %v2755
      %2757 = vmatmul.f32.gmra.mxu0 %v2398
      %v2758 = vpop.f32.mrf.mxu0
      %v2759 = vadd.f32 0.0, %v2758
      %2760 = vmatmul.f32.gmra.mxu0 %v2401
      %v2761 = vpop.f32.mrf.mxu0
      %v2762 = vadd.f32 0.0, %v2761
      %2763 = vmatmul.f32.gmra.mxu0 %v2404
      %v2764 = vpop.f32.mrf.mxu0
      %v2765 = vadd.f32 0.0, %v2764
      %2766 = vmatmul.f32.gmra.mxu0 %v2407
      %v2767 = vpop.f32.mrf.mxu0
      %v2768 = vadd.f32 0.0, %v2767
      %2769 = vmatmul.f32.gmra.mxu0 %v2410
      %v2770 = vpop.f32.mrf.mxu0
      %v2771 = vadd.f32 0.0, %v2770
      %2772 = vmatmul.f32.gmra.mxu0 %v2413
      %v2773 = vpop.f32.mrf.mxu0
      %v2774 = vadd.f32 0.0, %v2773
      %2775 = vmatmul.f32.gmra.mxu0 %v2416
      %v2776 = vpop.f32.mrf.mxu0
      %v2777 = vadd.f32 0.0, %v2776
      %2778 = vmatmul.f32.gmra.mxu0 %v2419
      %v2779 = vpop.f32.mrf.mxu0
      %v2780 = vadd.f32 0.0, %v2779
      %2781 = vmatmul.f32.gmra.mxu0 %v2422
      %v2782 = vpop.f32.mrf.mxu0
      %v2783 = vadd.f32 0.0, %v2782
      %2784 = vmatmul.f32.gmra.mxu0 %v2425
      %v2785 = vpop.f32.mrf.mxu0
      %v2786 = vadd.f32 0.0, %v2785
      %2787 = vmatmul.f32.gmra.mxu0 %v2428
      %v2788 = vpop.f32.mrf.mxu0
      %v2789 = vadd.f32 0.0, %v2788
      %2790 = vmatmul.f32.gmra.mxu0 %v2431
      %v2791 = vpop.f32.mrf.mxu0
      %v2792 = vadd.f32 0.0, %v2791
      %2793 = vmatmul.f32.gmra.mxu0 %v2434
      %v2794 = vpop.f32.mrf.mxu0
      %v2795 = vadd.f32 0.0, %v2794
      %2796 = vdwg.mxu0
      %2797 = vmatpush.msra.mxu0 0.0
      %2798 = vmatpush.msra.mxu0 0.0
      %2799 = vmatpush.msra.mxu0 0.0
      %2800 = vmatpush.msra.mxu0 0.0
      %2801 = vmatpush.msra.mxu0 %v2598
      %2802 = vmatpush.msra.mxu0 %v2596
      %2803 = vmatpush.msra.mxu0 %v2594
      %2804 = vmatpush.msra.mxu0 %v2592
      %2805 = vmatpush.msra.mxu0 %v2590
      %2806 = vmatpush.msra.mxu0 %v2588
      %2807 = vmatpush.msra.mxu0 %v2586
      %2808 = vmatpush.msra.mxu0 %v2584
      %2809 = vmatpush.msra.mxu0 %v2582
      %2810 = vmatpush.msra.mxu0 %v2580
      %2811 = vmatpush.msra.mxu0 %v2578
      %2812 = vmatpush.msra.mxu0 %v2576
      %2813 = vmatmul.f32.gmra.mxu0 %v2601
      %v2814 = vpop.f32.mrf.mxu0
      %v2815 = vadd.f32 %v2708, %v2814
      %2816 = vmatmul.f32.gmra.mxu0 %v2604
      %v2817 = vpop.f32.mrf.mxu0
      %v2818 = vadd.f32 %v2711, %v2817
      %2819 = vmatmul.f32.gmra.mxu0 %v2607
      %v2820 = vpop.f32.mrf.mxu0
      %v2821 = vadd.f32 %v2714, %v2820
      %2822 = vmatmul.f32.gmra.mxu0 %v2610
      %v2823 = vpop.f32.mrf.mxu0
      %v2824 = vadd.f32 %v2717, %v2823
      %2825 = vmatmul.f32.gmra.mxu0 %v2613
      %v2826 = vpop.f32.mrf.mxu0
      %v2827 = vadd.f32 %v2720, %v2826
      %2828 = vmatmul.f32.gmra.mxu0 %v2616
      %v2829 = vpop.f32.mrf.mxu0
      %v2830 = vadd.f32 %v2723, %v2829
      %2831 = vmatmul.f32.gmra.mxu0 %v2619
      %v2832 = vpop.f32.mrf.mxu0
      %v2833 = vadd.f32 %v2726, %v2832
      %2834 = vmatmul.f32.gmra.mxu0 %v2622
      %v2835 = vpop.f32.mrf.mxu0
      %v2836 = vadd.f32 %v2729, %v2835
      %2837 = vmatmul.f32.gmra.mxu0 %v2625
      %v2838 = vpop.f32.mrf.mxu0
      %v2839 = vadd.f32 %v2732, %v2838
      %2840 = vmatmul.f32.gmra.mxu0 %v2628
      %v2841 = vpop.f32.mrf.mxu0
      %v2842 = vadd.f32 %v2735, %v2841
      %2843 = vmatmul.f32.gmra.mxu0 %v2631
      %v2844 = vpop.f32.mrf.mxu0
      %v2845 = vadd.f32 %v2738, %v2844
      %2846 = vmatmul.f32.gmra.mxu0 %v2634
      %v2847 = vpop.f32.mrf.mxu0
      %v2848 = vadd.f32 %v2741, %v2847
      %2849 = vmatmul.f32.gmra.mxu0 %v2637
      %v2850 = vpop.f32.mrf.mxu0
      %v2851 = vadd.f32 %v2744, %v2850
      %2852 = vmatmul.f32.gmra.mxu0 %v2640
      %v2853 = vpop.f32.mrf.mxu0
      %v2854 = vadd.f32 %v2747, %v2853
      %2855 = vmatmul.f32.gmra.mxu0 %v2643
      %v2856 = vpop.f32.mrf.mxu0
      %v2857 = vadd.f32 %v2750, %v2856
      %2858 = vmatmul.f32.gmra.mxu0 %v2646
      %v2859 = vpop.f32.mrf.mxu0
      %v2860 = vadd.f32 %v2753, %v2859
      %2861 = vmatmul.f32.gmra.mxu0 %v2649
      %v2862 = vpop.f32.mrf.mxu0
      %v2863 = vadd.f32 %v2756, %v2862
      %2864 = vmatmul.f32.gmra.mxu0 %v2652
      %v2865 = vpop.f32.mrf.mxu0
      %v2866 = vadd.f32 %v2759, %v2865
      %2867 = vmatmul.f32.gmra.mxu0 %v2655
      %v2868 = vpop.f32.mrf.mxu0
      %v2869 = vadd.f32 %v2762, %v2868
      %2870 = vmatmul.f32.gmra.mxu0 %v2658
      %v2871 = vpop.f32.mrf.mxu0
      %v2872 = vadd.f32 %v2765, %v2871
      %2873 = vmatmul.f32.gmra.mxu0 %v2661
      %v2874 = vpop.f32.mrf.mxu0
      %v2875 = vadd.f32 %v2768, %v2874
      %2876 = vmatmul.f32.gmra.mxu0 %v2664
      %v2877 = vpop.f32.mrf.mxu0
      %v2878 = vadd.f32 %v2771, %v2877
      %2879 = vmatmul.f32.gmra.mxu0 %v2667
      %v2880 = vpop.f32.mrf.mxu0
      %v2881 = vadd.f32 %v2774, %v2880
      %2882 = vmatmul.f32.gmra.mxu0 %v2670
      %v2883 = vpop.f32.mrf.mxu0
      %v2884 = vadd.f32 %v2777, %v2883
      %2885 = vmatmul.f32.gmra.mxu0 %v2673
      %v2886 = vpop.f32.mrf.mxu0
      %v2887 = vadd.f32 %v2780, %v2886
      %2888 = vmatmul.f32.gmra.mxu0 %v2676
      %v2889 = vpop.f32.mrf.mxu0
      %v2890 = vadd.f32 %v2783, %v2889
      %2891 = vmatmul.f32.gmra.mxu0 %v2679
      %v2892 = vpop.f32.mrf.mxu0
      %v2893 = vadd.f32 %v2786, %v2892
      %2894 = vmatmul.f32.gmra.mxu0 %v2682
      %v2895 = vpop.f32.mrf.mxu0
      %v2896 = vadd.f32 %v2789, %v2895
      %2897 = vmatmul.f32.gmra.mxu0 %v2685
      %v2898 = vpop.f32.mrf.mxu0
      %v2899 = vadd.f32 %v2792, %v2898
      %2900 = vmatmul.f32.gmra.mxu0 %v2688
      %v2901 = vpop.f32.mrf.mxu0
      %v2902 = vadd.f32 %v2795, %v2901
      %2903 = vdwg.mxu0
      %2904 = vmatpush.msra.mxu0 %v2575
      %2905 = vmatpush.msra.mxu0 %v2573
      %2906 = vmatpush.msra.mxu0 %v2571
      %2907 = vmatpush.msra.mxu0 %v2569
      %2908 = vmatpush.msra.mxu0 %v2567
      %2909 = vmatpush.msra.mxu0 %v2565
      %2910 = vmatpush.msra.mxu0 %v2563
      %2911 = vmatpush.msra.mxu0 %v2561
      %2912 = vmatpush.msra.mxu0 %v2559
      %2913 = vmatpush.msra.mxu0 %v2557
      %2914 = vmatpush.msra.mxu0 %v2555
      %2915 = vmatpush.msra.mxu0 %v2553
      %2916 = vmatpush.msra.mxu0 %v2551
      %2917 = vmatpush.msra.mxu0 %v2549
      %2918 = vmatpush.msra.mxu0 %v2547
      %2919 = vmatpush.msra.mxu0 %v2545
      %2920 = vmatmul.f32.gmra.mxu0 %v2347
      %v2921 = vpop.f32.mrf.mxu0
      %v2922 = vadd.f32 0.0, %v2921
      %2923 = vmatmul.f32.gmra.mxu0 %v2350
      %v2924 = vpop.f32.mrf.mxu0
      %v2925 = vadd.f32 0.0, %v2924
      %2926 = vmatmul.f32.gmra.mxu0 %v2353
      %v2927 = vpop.f32.mrf.mxu0
      %v2928 = vadd.f32 0.0, %v2927
      %2929 = vmatmul.f32.gmra.mxu0 %v2356
      %v2930 = vpop.f32.mrf.mxu0
      %v2931 = vadd.f32 0.0, %v2930
      %2932 = vmatmul.f32.gmra.mxu0 %v2359
      %v2933 = vpop.f32.mrf.mxu0
      %v2934 = vadd.f32 0.0, %v2933
      %2935 = vmatmul.f32.gmra.mxu0 %v2362
      %v2936 = vpop.f32.mrf.mxu0
      %v2937 = vadd.f32 0.0, %v2936
      %2938 = vmatmul.f32.gmra.mxu0 %v2365
      %v2939 = vpop.f32.mrf.mxu0
      %v2940 = vadd.f32 0.0, %v2939
      %2941 = vmatmul.f32.gmra.mxu0 %v2368
      %v2942 = vpop.f32.mrf.mxu0
      %v2943 = vadd.f32 0.0, %v2942
      %2944 = vmatmul.f32.gmra.mxu0 %v2371
      %v2945 = vpop.f32.mrf.mxu0
      %v2946 = vadd.f32 0.0, %v2945
      %2947 = vmatmul.f32.gmra.mxu0 %v2374
      %v2948 = vpop.f32.mrf.mxu0
      %v2949 = vadd.f32 0.0, %v2948
      %2950 = vmatmul.f32.gmra.mxu0 %v2377
      %v2951 = vpop.f32.mrf.mxu0
      %v2952 = vadd.f32 0.0, %v2951
      %2953 = vmatmul.f32.gmra.mxu0 %v2380
      %v2954 = vpop.f32.mrf.mxu0
      %v2955 = vadd.f32 0.0, %v2954
      %2956 = vmatmul.f32.gmra.mxu0 %v2383
      %v2957 = vpop.f32.mrf.mxu0
      %v2958 = vadd.f32 0.0, %v2957
      %2959 = vmatmul.f32.gmra.mxu0 %v2386
      %v2960 = vpop.f32.mrf.mxu0
      %v2961 = vadd.f32 0.0, %v2960
      %2962 = vmatmul.f32.gmra.mxu0 %v2389
      %v2963 = vpop.f32.mrf.mxu0
      %v2964 = vadd.f32 0.0, %v2963
      %2965 = vmatmul.f32.gmra.mxu0 %v2392
      %v2966 = vpop.f32.mrf.mxu0
      %v2967 = vadd.f32 0.0, %v2966
      %2968 = vmatmul.f32.gmra.mxu0 %v2395
      %v2969 = vpop.f32.mrf.mxu0
      %v2970 = vadd.f32 0.0, %v2969
      %2971 = vmatmul.f32.gmra.mxu0 %v2398
      %v2972 = vpop.f32.mrf.mxu0
      %v2973 = vadd.f32 0.0, %v2972
      %2974 = vmatmul.f32.gmra.mxu0 %v2401
      %v2975 = vpop.f32.mrf.mxu0
      %v2976 = vadd.f32 0.0, %v2975
      %2977 = vmatmul.f32.gmra.mxu0 %v2404
      %v2978 = vpop.f32.mrf.mxu0
      %v2979 = vadd.f32 0.0, %v2978
      %2980 = vmatmul.f32.gmra.mxu0 %v2407
      %v2981 = vpop.f32.mrf.mxu0
      %v2982 = vadd.f32 0.0, %v2981
      %2983 = vmatmul.f32.gmra.mxu0 %v2410
      %v2984 = vpop.f32.mrf.mxu0
      %v2985 = vadd.f32 0.0, %v2984
      %2986 = vmatmul.f32.gmra.mxu0 %v2413
      %v2987 = vpop.f32.mrf.mxu0
      %v2988 = vadd.f32 0.0, %v2987
      %2989 = vmatmul.f32.gmra.mxu0 %v2416
      %v2990 = vpop.f32.mrf.mxu0
      %v2991 = vadd.f32 0.0, %v2990
      %2992 = vmatmul.f32.gmra.mxu0 %v2419
      %v2993 = vpop.f32.mrf.mxu0
      %v2994 = vadd.f32 0.0, %v2993
      %2995 = vmatmul.f32.gmra.mxu0 %v2422
      %v2996 = vpop.f32.mrf.mxu0
      %v2997 = vadd.f32 0.0, %v2996
      %2998 = vmatmul.f32.gmra.mxu0 %v2425
      %v2999 = vpop.f32.mrf.mxu0
      %v3000 = vadd.f32 0.0, %v2999
      %3001 = vmatmul.f32.gmra.mxu0 %v2428
      %v3002 = vpop.f32.mrf.mxu0
      %v3003 = vadd.f32 0.0, %v3002
      %3004 = vmatmul.f32.gmra.mxu0 %v2431
      %v3005 = vpop.f32.mrf.mxu0
      %v3006 = vadd.f32 0.0, %v3005
      %3007 = vmatmul.f32.gmra.mxu0 %v2434
      %v3008 = vpop.f32.mrf.mxu0
      %v3009 = vadd.f32 0.0, %v3008
      %3010 = vdwg.mxu0
      %3011 = vmatpush.msra.mxu0 0.0
      %3012 = vmatpush.msra.mxu0 0.0
      %3013 = vmatpush.msra.mxu0 0.0
      %3014 = vmatpush.msra.mxu0 0.0
      %3015 = vmatpush.msra.mxu0 %v2599
      %3016 = vmatpush.msra.mxu0 %v2597
      %3017 = vmatpush.msra.mxu0 %v2595
      %3018 = vmatpush.msra.mxu0 %v2593
      %3019 = vmatpush.msra.mxu0 %v2591
      %3020 = vmatpush.msra.mxu0 %v2589
      %3021 = vmatpush.msra.mxu0 %v2587
      %3022 = vmatpush.msra.mxu0 %v2585
      %3023 = vmatpush.msra.mxu0 %v2583
      %3024 = vmatpush.msra.mxu0 %v2581
      %3025 = vmatpush.msra.mxu0 %v2579
      %3026 = vmatpush.msra.mxu0 %v2577
      %3027 = vmatmul.f32.gmra.mxu0 %v2601
      %v3028 = vpop.f32.mrf.mxu0
      %v3029 = vadd.f32 %v2922, %v3028
      %3030 = vmatmul.f32.gmra.mxu0 %v2604
      %v3031 = vpop.f32.mrf.mxu0
      %v3032 = vadd.f32 %v2925, %v3031
      %3033 = vmatmul.f32.gmra.mxu0 %v2607
      %v3034 = vpop.f32.mrf.mxu0
      %v3035 = vadd.f32 %v2928, %v3034
      %3036 = vmatmul.f32.gmra.mxu0 %v2610
      %v3037 = vpop.f32.mrf.mxu0
      %v3038 = vadd.f32 %v2931, %v3037
      %3039 = vmatmul.f32.gmra.mxu0 %v2613
      %v3040 = vpop.f32.mrf.mxu0
      %v3041 = vadd.f32 %v2934, %v3040
      %3042 = vmatmul.f32.gmra.mxu0 %v2616
      %v3043 = vpop.f32.mrf.mxu0
      %v3044 = vadd.f32 %v2937, %v3043
      %3045 = vmatmul.f32.gmra.mxu0 %v2619
      %v3046 = vpop.f32.mrf.mxu0
      %v3047 = vadd.f32 %v2940, %v3046
      %3048 = vmatmul.f32.gmra.mxu0 %v2622
      %v3049 = vpop.f32.mrf.mxu0
      %v3050 = vadd.f32 %v2943, %v3049
      %3051 = vmatmul.f32.gmra.mxu0 %v2625
      %v3052 = vpop.f32.mrf.mxu0
      %v3053 = vadd.f32 %v2946, %v3052
      %3054 = vmatmul.f32.gmra.mxu0 %v2628
      %v3055 = vpop.f32.mrf.mxu0
      %v3056 = vadd.f32 %v2949, %v3055
      %3057 = vmatmul.f32.gmra.mxu0 %v2631
      %v3058 = vpop.f32.mrf.mxu0
      %v3059 = vadd.f32 %v2952, %v3058
      %3060 = vmatmul.f32.gmra.mxu0 %v2634
      %v3061 = vpop.f32.mrf.mxu0
      %v3062 = vadd.f32 %v2955, %v3061
      %3063 = vmatmul.f32.gmra.mxu0 %v2637
      %v3064 = vpop.f32.mrf.mxu0
      %v3065 = vadd.f32 %v2958, %v3064
      %3066 = vmatmul.f32.gmra.mxu0 %v2640
      %v3067 = vpop.f32.mrf.mxu0
      %v3068 = vadd.f32 %v2961, %v3067
      %3069 = vmatmul.f32.gmra.mxu0 %v2643
      %v3070 = vpop.f32.mrf.mxu0
      %v3071 = vadd.f32 %v2964, %v3070
      %3072 = vmatmul.f32.gmra.mxu0 %v2646
      %v3073 = vpop.f32.mrf.mxu0
      %v3074 = vadd.f32 %v2967, %v3073
      %3075 = vmatmul.f32.gmra.mxu0 %v2649
      %v3076 = vpop.f32.mrf.mxu0
      %v3077 = vadd.f32 %v2970, %v3076
      %3078 = vmatmul.f32.gmra.mxu0 %v2652
      %v3079 = vpop.f32.mrf.mxu0
      %v3080 = vadd.f32 %v2973, %v3079
      %3081 = vmatmul.f32.gmra.mxu0 %v2655
      %v3082 = vpop.f32.mrf.mxu0
      %v3083 = vadd.f32 %v2976, %v3082
      %3084 = vmatmul.f32.gmra.mxu0 %v2658
      %v3085 = vpop.f32.mrf.mxu0
      %v3086 = vadd.f32 %v2979, %v3085
      %3087 = vmatmul.f32.gmra.mxu0 %v2661
      %v3088 = vpop.f32.mrf.mxu0
      %v3089 = vadd.f32 %v2982, %v3088
      %3090 = vmatmul.f32.gmra.mxu0 %v2664
      %v3091 = vpop.f32.mrf.mxu0
      %v3092 = vadd.f32 %v2985, %v3091
      %3093 = vmatmul.f32.gmra.mxu0 %v2667
      %v3094 = vpop.f32.mrf.mxu0
      %v3095 = vadd.f32 %v2988, %v3094
      %3096 = vmatmul.f32.gmra.mxu0 %v2670
      %v3097 = vpop.f32.mrf.mxu0
      %v3098 = vadd.f32 %v2991, %v3097
      %3099 = vmatmul.f32.gmra.mxu0 %v2673
      %v3100 = vpop.f32.mrf.mxu0
      %v3101 = vadd.f32 %v2994, %v3100
      %3102 = vmatmul.f32.gmra.mxu0 %v2676
      %v3103 = vpop.f32.mrf.mxu0
      %v3104 = vadd.f32 %v2997, %v3103
      %3105 = vmatmul.f32.gmra.mxu0 %v2679
      %v3106 = vpop.f32.mrf.mxu0
      %v3107 = vadd.f32 %v3000, %v3106
      %3108 = vmatmul.f32.gmra.mxu0 %v2682
      %v3109 = vpop.f32.mrf.mxu0
      %v3110 = vadd.f32 %v3003, %v3109
      %3111 = vmatmul.f32.gmra.mxu0 %v2685
      %v3112 = vpop.f32.mrf.mxu0
      %v3113 = vadd.f32 %v3006, %v3112
      %3114 = vmatmul.f32.gmra.mxu0 %v2688
      %v3115 = vpop.f32.mrf.mxu0
      %v3116 = vadd.f32 %v3009, %v3115
      %3117 = vdwg.mxu0
      %v3118 = vadd.f32 %v1905, %v2815
      %v3119 = vadd.f32 %v2119, %v3029
      %v3120 = vadd.f32 %v1908, %v2818
      %v3121 = vadd.f32 %v2122, %v3032
      %v3122 = vadd.f32 %v1911, %v2821
      %v3123 = vadd.f32 %v2125, %v3035
      %v3124 = vadd.f32 %v1914, %v2824
      %v3125 = vadd.f32 %v2128, %v3038
      %v3126 = vadd.f32 %v1917, %v2827
      %v3127 = vadd.f32 %v2131, %v3041
      %v3128 = vadd.f32 %v1920, %v2830
      %v3129 = vadd.f32 %v2134, %v3044
      %v3130 = vadd.f32 %v1923, %v2833
      %v3131 = vadd.f32 %v2137, %v3047
      %v3132 = vadd.f32 %v1926, %v2836
      %v3133 = vadd.f32 %v2140, %v3050
      %v3134 = vadd.f32 %v1929, %v2839
      %v3135 = vadd.f32 %v2143, %v3053
      %v3136 = vadd.f32 %v1932, %v2842
      %v3137 = vadd.f32 %v2146, %v3056
      %v3138 = vadd.f32 %v1935, %v2845
      %v3139 = vadd.f32 %v2149, %v3059
      %v3140 = vadd.f32 %v1938, %v2848
      %v3141 = vadd.f32 %v2152, %v3062
      %v3142 = vadd.f32 %v1941, %v2851
      %v3143 = vadd.f32 %v2155, %v3065
      %v3144 = vadd.f32 %v1944, %v2854
      %v3145 = vadd.f32 %v2158, %v3068
      %v3146 = vadd.f32 %v1947, %v2857
      %v3147 = vadd.f32 %v2161, %v3071
      %v3148 = vadd.f32 %v1950, %v2860
      %v3149 = vadd.f32 %v2164, %v3074
      %v3150 = vadd.f32 %v1953, %v2863
      %v3151 = vadd.f32 %v2167, %v3077
      %v3152 = vadd.f32 %v1956, %v2866
      %v3153 = vadd.f32 %v2170, %v3080
      %v3154 = vadd.f32 %v1959, %v2869
      %v3155 = vadd.f32 %v2173, %v3083
      %v3156 = vadd.f32 %v1962, %v2872
      %v3157 = vadd.f32 %v2176, %v3086
      %v3158 = vadd.f32 %v1965, %v2875
      %v3159 = vadd.f32 %v2179, %v3089
      %v3160 = vadd.f32 %v1968, %v2878
      %v3161 = vadd.f32 %v2182, %v3092
      %v3162 = vadd.f32 %v1971, %v2881
      %v3163 = vadd.f32 %v2185, %v3095
      %v3164 = vadd.f32 %v1974, %v2884
      %v3165 = vadd.f32 %v2188, %v3098
      %v3166 = vadd.f32 %v1977, %v2887
      %v3167 = vadd.f32 %v2191, %v3101
      %v3168 = vadd.f32 %v1980, %v2890
      %v3169 = vadd.f32 %v2194, %v3104
      %v3170 = vadd.f32 %v1983, %v2893
      %v3171 = vadd.f32 %v2197, %v3107
      %v3172 = vadd.f32 %v1986, %v2896
      %v3173 = vadd.f32 %v2200, %v3110
      %v3174 = vadd.f32 %v1989, %v2899
      %v3175 = vadd.f32 %v2203, %v3113
      %v3176 = vadd.f32 %v1992, %v2902
      %v3177 = vadd.f32 %v2206, %v3116
      %s3178 = scalar_lea.vmem %s1, 720
      %v3179 = vld [vmem:[%s3178] sm:$0xff]
      %v3180 = vld [vmem:[%s3178 + $0x8] sm:$0xff]
      %v3181 = vld [vmem:[%s3178 + $0x10] sm:$0xff]
      %v3182 = vld [vmem:[%s3178 + $0x18] sm:$0xff]
      %v3183 = vld [vmem:[%s3178 + $0x20] sm:$0xff]
      %v3184 = vld [vmem:[%s3178 + $0x28] sm:$0xff]
      %v3185 = vld [vmem:[%s3178 + $0x30] sm:$0xff]
      %v3186 = vld [vmem:[%s3178 + $0x38] sm:$0xff]
      %v3187 = vld [vmem:[%s3178 + $0x40] sm:$0xff]
      %v3188 = vld [vmem:[%s3178 + $0x48] sm:$0xff]
      %v3189 = vld [vmem:[%s3178 + $0x50] sm:$0xff]
      %v3190 = vld [vmem:[%s3178 + $0x58] sm:$0xff]
      %v3191 = vld [vmem:[%s3178 + $0x60] sm:$0xff]
      %v3192 = vld [vmem:[%s3178 + $0x68] sm:$0xff]
      %v3193 = vld [vmem:[%s3178 + $0x70] sm:$0xff]
      %v3194 = vld [vmem:[%s3178 + $0x78] sm:$0xff]
      %v3195 = vld [vmem:[%s3178 + $0x80] sm:$0xff]
      %v3196 = vld [vmem:[%s3178 + $0x88] sm:$0xff]
      %v3197 = vld [vmem:[%s3178 + $0x90] sm:$0xff]
      %v3198 = vld [vmem:[%s3178 + $0x98] sm:$0xff]
      %v3199 = vld [vmem:[%s3178 + $0xa0] sm:$0xff]
      %v3200 = vld [vmem:[%s3178 + $0xa8] sm:$0xff]
      %v3201 = vld [vmem:[%s3178 + $0xb0] sm:$0xff]
      %v3202 = vld [vmem:[%s3178 + $0xb8] sm:$0xff]
      %v3203 = vld [vmem:[%s3178 + $0xc0] sm:$0xff]
      %v3204 = vld [vmem:[%s3178 + $0xc8] sm:$0xff]
      %v3205 = vld [vmem:[%s3178 + $0xd0] sm:$0xff]
      %v3206 = vld [vmem:[%s3178 + $0xd8] sm:$0xff]
      %v3207 = vld [vmem:[%s3178 + $0xe0] sm:$0xff]
      %v3208 = vld [vmem:[%s3178 + $0xe8] sm:$0xff]
      %v3210 = vsel %vm411, %v3179, 0
      %v3213 = vsel %vm411, %v3180, 0
      %v3216 = vsel %vm411, %v3181, 0
      %v3219 = vsel %vm411, %v3182, 0
      %v3222 = vsel %vm411, %v3183, 0
      %v3225 = vsel %vm411, %v3184, 0
      %v3228 = vsel %vm411, %v3185, 0
      %v3231 = vsel %vm411, %v3186, 0
      %v3234 = vsel %vm411, %v3187, 0
      %v3237 = vsel %vm411, %v3188, 0
      %v3240 = vsel %vm411, %v3189, 0
      %v3243 = vsel %vm411, %v3190, 0
      %v3246 = vsel %vm411, %v3191, 0
      %v3249 = vsel %vm411, %v3192, 0
      %v3252 = vsel %vm411, %v3193, 0
      %v3255 = vsel %vm411, %v3194, 0
      %v3258 = vsel %vm411, %v3195, 0
      %v3261 = vsel %vm411, %v3196, 0
      %v3264 = vsel %vm411, %v3197, 0
      %v3267 = vsel %vm411, %v3198, 0
      %v3270 = vsel %vm411, %v3199, 0
      %v3273 = vsel %vm411, %v3200, 0
      %v3276 = vsel %vm411, %v3201, 0
      %v3279 = vsel %vm411, %v3202, 0
      %v3282 = vsel %vm411, %v3203, 0
      %v3285 = vsel %vm411, %v3204, 0
      %v3288 = vsel %vm411, %v3205, 0
      %v3291 = vsel %vm411, %v3206, 0
      %v3294 = vsel %vm411, %v3207, 0
      %v3297 = vsel %vm411, %v3208, 0
      %3299 = vmatpush.msra.mxu0 0.0
      %3300 = vmatpush.msra.mxu0 0.0
      %3301 = vmatpush.msra.mxu0 0.0
      %3302 = vmatpush.msra.mxu0 0.0
      %3303 = vmatpush.msra.mxu0 0.0
      %3304 = vmatpush.msra.mxu0 0.0
      %3305 = vmatpush.msra.mxu0 0.0
      %3306 = vmatpush.msra.mxu0 0.0
      %3307 = vmatpush.msra.mxu0 0.0
      %3308 = vmatpush.msra.mxu0 0.0
      %3309 = vmatpush.msra.mxu0 0.0
      %3310 = vmatpush.msra.mxu0 0.0
      %3311 = vmatpush.msra.mxu0 %v504
      %3312 = vmatpush.msra.mxu0 %v377
      %3313 = vmatpush.msra.mxu0 %v375
      %3314 = vmatpush.msra.mxu0 %v373
      %3315 = vmatmul.f32.gmra.mxu0 %v3210
      %v3316 = vpop.f32.mrf.mxu0
      %v3317 = vadd.f32 0.0, %v3316
      %3318 = vmatmul.f32.gmra.mxu0 %v3213
      %v3319 = vpop.f32.mrf.mxu0
      %v3320 = vadd.f32 0.0, %v3319
      %3321 = vmatmul.f32.gmra.mxu0 %v3216
      %v3322 = vpop.f32.mrf.mxu0
      %v3323 = vadd.f32 0.0, %v3322
      %3324 = vmatmul.f32.gmra.mxu0 %v3219
      %v3325 = vpop.f32.mrf.mxu0
      %v3326 = vadd.f32 0.0, %v3325
      %3327 = vmatmul.f32.gmra.mxu0 %v3222
      %v3328 = vpop.f32.mrf.mxu0
      %v3329 = vadd.f32 0.0, %v3328
      %3330 = vmatmul.f32.gmra.mxu0 %v3225
      %v3331 = vpop.f32.mrf.mxu0
      %v3332 = vadd.f32 0.0, %v3331
      %3333 = vmatmul.f32.gmra.mxu0 %v3228
      %v3334 = vpop.f32.mrf.mxu0
      %v3335 = vadd.f32 0.0, %v3334
      %3336 = vmatmul.f32.gmra.mxu0 %v3231
      %v3337 = vpop.f32.mrf.mxu0
      %v3338 = vadd.f32 0.0, %v3337
      %3339 = vmatmul.f32.gmra.mxu0 %v3234
      %v3340 = vpop.f32.mrf.mxu0
      %v3341 = vadd.f32 0.0, %v3340
      %3342 = vmatmul.f32.gmra.mxu0 %v3237
      %v3343 = vpop.f32.mrf.mxu0
      %v3344 = vadd.f32 0.0, %v3343
      %3345 = vmatmul.f32.gmra.mxu0 %v3240
      %v3346 = vpop.f32.mrf.mxu0
      %v3347 = vadd.f32 0.0, %v3346
      %3348 = vmatmul.f32.gmra.mxu0 %v3243
      %v3349 = vpop.f32.mrf.mxu0
      %v3350 = vadd.f32 0.0, %v3349
      %3351 = vmatmul.f32.gmra.mxu0 %v3246
      %v3352 = vpop.f32.mrf.mxu0
      %v3353 = vadd.f32 0.0, %v3352
      %3354 = vmatmul.f32.gmra.mxu0 %v3249
      %v3355 = vpop.f32.mrf.mxu0
      %v3356 = vadd.f32 0.0, %v3355
      %3357 = vmatmul.f32.gmra.mxu0 %v3252
      %v3358 = vpop.f32.mrf.mxu0
      %v3359 = vadd.f32 0.0, %v3358
      %3360 = vmatmul.f32.gmra.mxu0 %v3255
      %v3361 = vpop.f32.mrf.mxu0
      %v3362 = vadd.f32 0.0, %v3361
      %3363 = vmatmul.f32.gmra.mxu0 %v3258
      %v3364 = vpop.f32.mrf.mxu0
      %v3365 = vadd.f32 0.0, %v3364
      %3366 = vmatmul.f32.gmra.mxu0 %v3261
      %v3367 = vpop.f32.mrf.mxu0
      %v3368 = vadd.f32 0.0, %v3367
      %3369 = vmatmul.f32.gmra.mxu0 %v3264
      %v3370 = vpop.f32.mrf.mxu0
      %v3371 = vadd.f32 0.0, %v3370
      %3372 = vmatmul.f32.gmra.mxu0 %v3267
      %v3373 = vpop.f32.mrf.mxu0
      %v3374 = vadd.f32 0.0, %v3373
      %3375 = vmatmul.f32.gmra.mxu0 %v3270
      %v3376 = vpop.f32.mrf.mxu0
      %v3377 = vadd.f32 0.0, %v3376
      %3378 = vmatmul.f32.gmra.mxu0 %v3273
      %v3379 = vpop.f32.mrf.mxu0
      %v3380 = vadd.f32 0.0, %v3379
      %3381 = vmatmul.f32.gmra.mxu0 %v3276
      %v3382 = vpop.f32.mrf.mxu0
      %v3383 = vadd.f32 0.0, %v3382
      %3384 = vmatmul.f32.gmra.mxu0 %v3279
      %v3385 = vpop.f32.mrf.mxu0
      %v3386 = vadd.f32 0.0, %v3385
      %3387 = vmatmul.f32.gmra.mxu0 %v3282
      %v3388 = vpop.f32.mrf.mxu0
      %v3389 = vadd.f32 0.0, %v3388
      %3390 = vmatmul.f32.gmra.mxu0 %v3285
      %v3391 = vpop.f32.mrf.mxu0
      %v3392 = vadd.f32 0.0, %v3391
      %3393 = vmatmul.f32.gmra.mxu0 %v3288
      %v3394 = vpop.f32.mrf.mxu0
      %v3395 = vadd.f32 0.0, %v3394
      %3396 = vmatmul.f32.gmra.mxu0 %v3291
      %v3397 = vpop.f32.mrf.mxu0
      %v3398 = vadd.f32 0.0, %v3397
      %3399 = vmatmul.f32.gmra.mxu0 %v3294
      %v3400 = vpop.f32.mrf.mxu0
      %v3401 = vadd.f32 0.0, %v3400
      %3402 = vmatmul.f32.gmra.mxu0 %v3297
      %v3403 = vpop.f32.mrf.mxu0
      %v3404 = vadd.f32 0.0, %v3403
      %3405 = vdwg.mxu0
      %3406 = vmatpush.msra.mxu0 0.0
      %3407 = vmatpush.msra.mxu0 0.0
      %3408 = vmatpush.msra.mxu0 0.0
      %3409 = vmatpush.msra.mxu0 0.0
      %3410 = vmatpush.msra.mxu0 0.0
      %3411 = vmatpush.msra.mxu0 0.0
      %3412 = vmatpush.msra.mxu0 0.0
      %3413 = vmatpush.msra.mxu0 0.0
      %3414 = vmatpush.msra.mxu0 0.0
      %3415 = vmatpush.msra.mxu0 0.0
      %3416 = vmatpush.msra.mxu0 0.0
      %3417 = vmatpush.msra.mxu0 0.0
      %3418 = vmatpush.msra.mxu0 %v507
      %3419 = vmatpush.msra.mxu0 %v378
      %3420 = vmatpush.msra.mxu0 %v376
      %3421 = vmatpush.msra.mxu0 %v374
      %3422 = vmatmul.f32.gmra.mxu0 %v3210
      %v3423 = vpop.f32.mrf.mxu0
      %v3424 = vadd.f32 0.0, %v3423
      %3425 = vmatmul.f32.gmra.mxu0 %v3213
      %v3426 = vpop.f32.mrf.mxu0
      %v3427 = vadd.f32 0.0, %v3426
      %3428 = vmatmul.f32.gmra.mxu0 %v3216
      %v3429 = vpop.f32.mrf.mxu0
      %v3430 = vadd.f32 0.0, %v3429
      %3431 = vmatmul.f32.gmra.mxu0 %v3219
      %v3432 = vpop.f32.mrf.mxu0
      %v3433 = vadd.f32 0.0, %v3432
      %3434 = vmatmul.f32.gmra.mxu0 %v3222
      %v3435 = vpop.f32.mrf.mxu0
      %v3436 = vadd.f32 0.0, %v3435
      %3437 = vmatmul.f32.gmra.mxu0 %v3225
      %v3438 = vpop.f32.mrf.mxu0
      %v3439 = vadd.f32 0.0, %v3438
      %3440 = vmatmul.f32.gmra.mxu0 %v3228
      %v3441 = vpop.f32.mrf.mxu0
      %v3442 = vadd.f32 0.0, %v3441
      %3443 = vmatmul.f32.gmra.mxu0 %v3231
      %v3444 = vpop.f32.mrf.mxu0
      %v3445 = vadd.f32 0.0, %v3444
      %3446 = vmatmul.f32.gmra.mxu0 %v3234
      %v3447 = vpop.f32.mrf.mxu0
      %v3448 = vadd.f32 0.0, %v3447
      %3449 = vmatmul.f32.gmra.mxu0 %v3237
      %v3450 = vpop.f32.mrf.mxu0
      %v3451 = vadd.f32 0.0, %v3450
      %3452 = vmatmul.f32.gmra.mxu0 %v3240
      %v3453 = vpop.f32.mrf.mxu0
      %v3454 = vadd.f32 0.0, %v3453
      %3455 = vmatmul.f32.gmra.mxu0 %v3243
      %v3456 = vpop.f32.mrf.mxu0
      %v3457 = vadd.f32 0.0, %v3456
      %3458 = vmatmul.f32.gmra.mxu0 %v3246
      %v3459 = vpop.f32.mrf.mxu0
      %v3460 = vadd.f32 0.0, %v3459
      %3461 = vmatmul.f32.gmra.mxu0 %v3249
      %v3462 = vpop.f32.mrf.mxu0
      %v3463 = vadd.f32 0.0, %v3462
      %3464 = vmatmul.f32.gmra.mxu0 %v3252
      %v3465 = vpop.f32.mrf.mxu0
      %v3466 = vadd.f32 0.0, %v3465
      %3467 = vmatmul.f32.gmra.mxu0 %v3255
      %v3468 = vpop.f32.mrf.mxu0
      %v3469 = vadd.f32 0.0, %v3468
      %3470 = vmatmul.f32.gmra.mxu0 %v3258
      %v3471 = vpop.f32.mrf.mxu0
      %v3472 = vadd.f32 0.0, %v3471
      %3473 = vmatmul.f32.gmra.mxu0 %v3261
      %v3474 = vpop.f32.mrf.mxu0
      %v3475 = vadd.f32 0.0, %v3474
      %3476 = vmatmul.f32.gmra.mxu0 %v3264
      %v3477 = vpop.f32.mrf.mxu0
      %v3478 = vadd.f32 0.0, %v3477
      %3479 = vmatmul.f32.gmra.mxu0 %v3267
      %v3480 = vpop.f32.mrf.mxu0
      %v3481 = vadd.f32 0.0, %v3480
      %3482 = vmatmul.f32.gmra.mxu0 %v3270
      %v3483 = vpop.f32.mrf.mxu0
      %v3484 = vadd.f32 0.0, %v3483
      %3485 = vmatmul.f32.gmra.mxu0 %v3273
      %v3486 = vpop.f32.mrf.mxu0
      %v3487 = vadd.f32 0.0, %v3486
      %3488 = vmatmul.f32.gmra.mxu0 %v3276
      %v3489 = vpop.f32.mrf.mxu0
      %v3490 = vadd.f32 0.0, %v3489
      %3491 = vmatmul.f32.gmra.mxu0 %v3279
      %v3492 = vpop.f32.mrf.mxu0
      %v3493 = vadd.f32 0.0, %v3492
      %3494 = vmatmul.f32.gmra.mxu0 %v3282
      %v3495 = vpop.f32.mrf.mxu0
      %v3496 = vadd.f32 0.0, %v3495
      %3497 = vmatmul.f32.gmra.mxu0 %v3285
      %v3498 = vpop.f32.mrf.mxu0
      %v3499 = vadd.f32 0.0, %v3498
      %3500 = vmatmul.f32.gmra.mxu0 %v3288
      %v3501 = vpop.f32.mrf.mxu0
      %v3502 = vadd.f32 0.0, %v3501
      %3503 = vmatmul.f32.gmra.mxu0 %v3291
      %v3504 = vpop.f32.mrf.mxu0
      %v3505 = vadd.f32 0.0, %v3504
      %3506 = vmatmul.f32.gmra.mxu0 %v3294
      %v3507 = vpop.f32.mrf.mxu0
      %v3508 = vadd.f32 0.0, %v3507
      %3509 = vmatmul.f32.gmra.mxu0 %v3297
      %v3510 = vpop.f32.mrf.mxu0
      %v3511 = vadd.f32 0.0, %v3510
      %3512 = vdwg.mxu0
      %s3513 = scalar_lea.vmem %s2, 1344
      %v3514 = vld [vmem:[%s3513] sm:$0xff]
      %v3515 = vld [vmem:[%s3513 + $0x8] sm:$0xff]
      %v3516 = vld [vmem:[%s3513 + $0x10] sm:$0xff]
      %v3517 = vld [vmem:[%s3513 + $0x18] sm:$0xff]
      %v3518 = vld [vmem:[%s3513 + $0x20] sm:$0xff]
      %v3519 = vld [vmem:[%s3513 + $0x28] sm:$0xff]
      %v3520 = vld [vmem:[%s3513 + $0x30] sm:$0xff]
      %v3521 = vld [vmem:[%s3513 + $0x38] sm:$0xff]
      %v3522 = vld [vmem:[%s3513 + $0x40] sm:$0xff]
      %v3523 = vld [vmem:[%s3513 + $0x48] sm:$0xff]
      %v3524 = vld [vmem:[%s3513 + $0x50] sm:$0xff]
      %v3525 = vld [vmem:[%s3513 + $0x58] sm:$0xff]
      %v3526 = vld [vmem:[%s3513 + $0x60] sm:$0xff]
      %v3527 = vld [vmem:[%s3513 + $0x68] sm:$0xff]
      %v3528 = vld [vmem:[%s3513 + $0x70] sm:$0xff]
      %v3529 = vld [vmem:[%s3513 + $0x78] sm:$0xff]
      %v3530 = vld [vmem:[%s3513 + $0x80] sm:$0xff]
      %v3531 = vld [vmem:[%s3513 + $0x88] sm:$0xff]
      %v3532 = vld [vmem:[%s3513 + $0x90] sm:$0xff]
      %v3533 = vld [vmem:[%s3513 + $0x98] sm:$0xff]
      %v3534 = vld [vmem:[%s3513 + $0xa0] sm:$0xff]
      %v3535 = vld [vmem:[%s3513 + $0xa8] sm:$0xff]
      %v3536 = vld [vmem:[%s3513 + $0xb0] sm:$0xff]
      %v3537 = vld [vmem:[%s3513 + $0xb8] sm:$0xff]
      %v3538 = vld [vmem:[%s3513 + $0xc0] sm:$0xff]
      %v3539 = vld [vmem:[%s3513 + $0xc8] sm:$0xff]
      %v3540 = vld [vmem:[%s3513 + $0xd0] sm:$0xff]
      %v3541 = vld [vmem:[%s3513 + $0xd8] sm:$0xff]
      %v3542 = vld [vmem:[%s3513 + $0xe0] sm:$0xff]
      %v3543 = vld [vmem:[%s3513 + $0xe8] sm:$0xff]
      %v3544 = vld [vmem:[%s3513 + $0xf0] sm:$0xff]
      %v3545 = vld [vmem:[%s3513 + $0xf8] sm:$0xff]
      %v3546 = vld [vmem:[%s3513 + $0x100] sm:$0xff]
      %v3547 = vld [vmem:[%s3513 + $0x108] sm:$0xff]
      %v3548 = vld [vmem:[%s3513 + $0x110] sm:$0xff]
      %v3549 = vld [vmem:[%s3513 + $0x118] sm:$0xff]
      %v3550 = vld [vmem:[%s3513 + $0x120] sm:$0xff]
      %v3551 = vld [vmem:[%s3513 + $0x128] sm:$0xff]
      %v3552 = vld [vmem:[%s3513 + $0x130] sm:$0xff]
      %v3553 = vld [vmem:[%s3513 + $0x138] sm:$0xff]
      %v3554 = vld [vmem:[%s3513 + $0x140] sm:$0xff]
      %v3555 = vld [vmem:[%s3513 + $0x148] sm:$0xff]
      %v3556 = vld [vmem:[%s3513 + $0x150] sm:$0xff]
      %v3557 = vld [vmem:[%s3513 + $0x158] sm:$0xff]
      %v3558 = vld [vmem:[%s3513 + $0x160] sm:$0xff]
      %v3559 = vld [vmem:[%s3513 + $0x168] sm:$0xff]
      %v3560 = vld [vmem:[%s3513 + $0x170] sm:$0xff]
      %v3561 = vld [vmem:[%s3513 + $0x178] sm:$0xff]
      %v3562 = vld [vmem:[%s3513 + $0x180] sm:$0xff]
      %v3563 = vld [vmem:[%s3513 + $0x188] sm:$0xff]
      %v3564 = vld [vmem:[%s3513 + $0x190] sm:$0xff]
      %v3565 = vld [vmem:[%s3513 + $0x198] sm:$0xff]
      %v3566 = vld [vmem:[%s3513 + $0x1a0] sm:$0xff]
      %v3567 = vld [vmem:[%s3513 + $0x1a8] sm:$0xff]
      %v3568 = vld [vmem:[%s3513 + $0x1b0] sm:$0xff]
      %v3569 = vld [vmem:[%s3513 + $0x1b8] sm:$0xff]
      %v3571 = vsel %vm1171, %v3424, 0
      %v3574 = vsel %vm1171, %v3427, 0
      %v3577 = vsel %vm1171, %v3430, 0
      %v3580 = vsel %vm1171, %v3433, 0
      %v3583 = vsel %vm1171, %v3436, 0
      %v3586 = vsel %vm1171, %v3439, 0
      %v3589 = vsel %vm1171, %v3442, 0
      %v3592 = vsel %vm1171, %v3445, 0
      %v3595 = vsel %vm1171, %v3448, 0
      %v3598 = vsel %vm1171, %v3451, 0
      %v3601 = vsel %vm1171, %v3454, 0
      %v3604 = vsel %vm1171, %v3457, 0
      %v3607 = vsel %vm1171, %v3460, 0
      %v3610 = vsel %vm1171, %v3463, 0
      %v3613 = vsel %vm1171, %v3466, 0
      %v3616 = vsel %vm1171, %v3469, 0
      %v3619 = vsel %vm1171, %v3472, 0
      %v3622 = vsel %vm1171, %v3475, 0
      %v3625 = vsel %vm1171, %v3478, 0
      %v3628 = vsel %vm1171, %v3481, 0
      %v3631 = vsel %vm1171, %v3484, 0
      %v3634 = vsel %vm1171, %v3487, 0
      %v3637 = vsel %vm1171, %v3490, 0
      %v3640 = vsel %vm1171, %v3493, 0
      %v3643 = vsel %vm1171, %v3496, 0
      %v3646 = vsel %vm1171, %v3499, 0
      %v3649 = vsel %vm1171, %v3502, 0
      %v3652 = vsel %vm1171, %v3505, 0
      %v3655 = vsel %vm1171, %v3508, 0
      %v3658 = vsel %vm1171, %v3511, 0
      %3660 = vmatpush.msra.mxu0 %v3544
      %3661 = vmatpush.msra.mxu0 %v3542
      %3662 = vmatpush.msra.mxu0 %v3540
      %3663 = vmatpush.msra.mxu0 %v3538
      %3664 = vmatpush.msra.mxu0 %v3536
      %3665 = vmatpush.msra.mxu0 %v3534
      %3666 = vmatpush.msra.mxu0 %v3532
      %3667 = vmatpush.msra.mxu0 %v3530
      %3668 = vmatpush.msra.mxu0 %v3528
      %3669 = vmatpush.msra.mxu0 %v3526
      %3670 = vmatpush.msra.mxu0 %v3524
      %3671 = vmatpush.msra.mxu0 %v3522
      %3672 = vmatpush.msra.mxu0 %v3520
      %3673 = vmatpush.msra.mxu0 %v3518
      %3674 = vmatpush.msra.mxu0 %v3516
      %3675 = vmatpush.msra.mxu0 %v3514
      %3676 = vmatmul.f32.gmra.mxu0 %v3317
      %v3677 = vpop.f32.mrf.mxu0
      %v3678 = vadd.f32 0.0, %v3677
      %3679 = vmatmul.f32.gmra.mxu0 %v3320
      %v3680 = vpop.f32.mrf.mxu0
      %v3681 = vadd.f32 0.0, %v3680
      %3682 = vmatmul.f32.gmra.mxu0 %v3323
      %v3683 = vpop.f32.mrf.mxu0
      %v3684 = vadd.f32 0.0, %v3683
      %3685 = vmatmul.f32.gmra.mxu0 %v3326
      %v3686 = vpop.f32.mrf.mxu0
      %v3687 = vadd.f32 0.0, %v3686
      %3688 = vmatmul.f32.gmra.mxu0 %v3329
      %v3689 = vpop.f32.mrf.mxu0
      %v3690 = vadd.f32 0.0, %v3689
      %3691 = vmatmul.f32.gmra.mxu0 %v3332
      %v3692 = vpop.f32.mrf.mxu0
      %v3693 = vadd.f32 0.0, %v3692
      %3694 = vmatmul.f32.gmra.mxu0 %v3335
      %v3695 = vpop.f32.mrf.mxu0
      %v3696 = vadd.f32 0.0, %v3695
      %3697 = vmatmul.f32.gmra.mxu0 %v3338
      %v3698 = vpop.f32.mrf.mxu0
      %v3699 = vadd.f32 0.0, %v3698
      %3700 = vmatmul.f32.gmra.mxu0 %v3341
      %v3701 = vpop.f32.mrf.mxu0
      %v3702 = vadd.f32 0.0, %v3701
      %3703 = vmatmul.f32.gmra.mxu0 %v3344
      %v3704 = vpop.f32.mrf.mxu0
      %v3705 = vadd.f32 0.0, %v3704
      %3706 = vmatmul.f32.gmra.mxu0 %v3347
      %v3707 = vpop.f32.mrf.mxu0
      %v3708 = vadd.f32 0.0, %v3707
      %3709 = vmatmul.f32.gmra.mxu0 %v3350
      %v3710 = vpop.f32.mrf.mxu0
      %v3711 = vadd.f32 0.0, %v3710
      %3712 = vmatmul.f32.gmra.mxu0 %v3353
      %v3713 = vpop.f32.mrf.mxu0
      %v3714 = vadd.f32 0.0, %v3713
      %3715 = vmatmul.f32.gmra.mxu0 %v3356
      %v3716 = vpop.f32.mrf.mxu0
      %v3717 = vadd.f32 0.0, %v3716
      %3718 = vmatmul.f32.gmra.mxu0 %v3359
      %v3719 = vpop.f32.mrf.mxu0
      %v3720 = vadd.f32 0.0, %v3719
      %3721 = vmatmul.f32.gmra.mxu0 %v3362
      %v3722 = vpop.f32.mrf.mxu0
      %v3723 = vadd.f32 0.0, %v3722
      %3724 = vmatmul.f32.gmra.mxu0 %v3365
      %v3725 = vpop.f32.mrf.mxu0
      %v3726 = vadd.f32 0.0, %v3725
      %3727 = vmatmul.f32.gmra.mxu0 %v3368
      %v3728 = vpop.f32.mrf.mxu0
      %v3729 = vadd.f32 0.0, %v3728
      %3730 = vmatmul.f32.gmra.mxu0 %v3371
      %v3731 = vpop.f32.mrf.mxu0
      %v3732 = vadd.f32 0.0, %v3731
      %3733 = vmatmul.f32.gmra.mxu0 %v3374
      %v3734 = vpop.f32.mrf.mxu0
      %v3735 = vadd.f32 0.0, %v3734
      %3736 = vmatmul.f32.gmra.mxu0 %v3377
      %v3737 = vpop.f32.mrf.mxu0
      %v3738 = vadd.f32 0.0, %v3737
      %3739 = vmatmul.f32.gmra.mxu0 %v3380
      %v3740 = vpop.f32.mrf.mxu0
      %v3741 = vadd.f32 0.0, %v3740
      %3742 = vmatmul.f32.gmra.mxu0 %v3383
      %v3743 = vpop.f32.mrf.mxu0
      %v3744 = vadd.f32 0.0, %v3743
      %3745 = vmatmul.f32.gmra.mxu0 %v3386
      %v3746 = vpop.f32.mrf.mxu0
      %v3747 = vadd.f32 0.0, %v3746
      %3748 = vmatmul.f32.gmra.mxu0 %v3389
      %v3749 = vpop.f32.mrf.mxu0
      %v3750 = vadd.f32 0.0, %v3749
      %3751 = vmatmul.f32.gmra.mxu0 %v3392
      %v3752 = vpop.f32.mrf.mxu0
      %v3753 = vadd.f32 0.0, %v3752
      %3754 = vmatmul.f32.gmra.mxu0 %v3395
      %v3755 = vpop.f32.mrf.mxu0
      %v3756 = vadd.f32 0.0, %v3755
      %3757 = vmatmul.f32.gmra.mxu0 %v3398
      %v3758 = vpop.f32.mrf.mxu0
      %v3759 = vadd.f32 0.0, %v3758
      %3760 = vmatmul.f32.gmra.mxu0 %v3401
      %v3761 = vpop.f32.mrf.mxu0
      %v3762 = vadd.f32 0.0, %v3761
      %3763 = vmatmul.f32.gmra.mxu0 %v3404
      %v3764 = vpop.f32.mrf.mxu0
      %v3765 = vadd.f32 0.0, %v3764
      %3766 = vdwg.mxu0
      %3767 = vmatpush.msra.mxu0 0.0
      %3768 = vmatpush.msra.mxu0 0.0
      %3769 = vmatpush.msra.mxu0 0.0
      %3770 = vmatpush.msra.mxu0 0.0
      %3771 = vmatpush.msra.mxu0 %v3568
      %3772 = vmatpush.msra.mxu0 %v3566
      %3773 = vmatpush.msra.mxu0 %v3564
      %3774 = vmatpush.msra.mxu0 %v3562
      %3775 = vmatpush.msra.mxu0 %v3560
      %3776 = vmatpush.msra.mxu0 %v3558
      %3777 = vmatpush.msra.mxu0 %v3556
      %3778 = vmatpush.msra.mxu0 %v3554
      %3779 = vmatpush.msra.mxu0 %v3552
      %3780 = vmatpush.msra.mxu0 %v3550
      %3781 = vmatpush.msra.mxu0 %v3548
      %3782 = vmatpush.msra.mxu0 %v3546
      %3783 = vmatmul.f32.gmra.mxu0 %v3571
      %v3784 = vpop.f32.mrf.mxu0
      %v3785 = vadd.f32 %v3678, %v3784
      %3786 = vmatmul.f32.gmra.mxu0 %v3574
      %v3787 = vpop.f32.mrf.mxu0
      %v3788 = vadd.f32 %v3681, %v3787
      %3789 = vmatmul.f32.gmra.mxu0 %v3577
      %v3790 = vpop.f32.mrf.mxu0
      %v3791 = vadd.f32 %v3684, %v3790
      %3792 = vmatmul.f32.gmra.mxu0 %v3580
      %v3793 = vpop.f32.mrf.mxu0
      %v3794 = vadd.f32 %v3687, %v3793
      %3795 = vmatmul.f32.gmra.mxu0 %v3583
      %v3796 = vpop.f32.mrf.mxu0
      %v3797 = vadd.f32 %v3690, %v3796
      %3798 = vmatmul.f32.gmra.mxu0 %v3586
      %v3799 = vpop.f32.mrf.mxu0
      %v3800 = vadd.f32 %v3693, %v3799
      %3801 = vmatmul.f32.gmra.mxu0 %v3589
      %v3802 = vpop.f32.mrf.mxu0
      %v3803 = vadd.f32 %v3696, %v3802
      %3804 = vmatmul.f32.gmra.mxu0 %v3592
      %v3805 = vpop.f32.mrf.mxu0
      %v3806 = vadd.f32 %v3699, %v3805
      %3807 = vmatmul.f32.gmra.mxu0 %v3595
      %v3808 = vpop.f32.mrf.mxu0
      %v3809 = vadd.f32 %v3702, %v3808
      %3810 = vmatmul.f32.gmra.mxu0 %v3598
      %v3811 = vpop.f32.mrf.mxu0
      %v3812 = vadd.f32 %v3705, %v3811
      %3813 = vmatmul.f32.gmra.mxu0 %v3601
      %v3814 = vpop.f32.mrf.mxu0
      %v3815 = vadd.f32 %v3708, %v3814
      %3816 = vmatmul.f32.gmra.mxu0 %v3604
      %v3817 = vpop.f32.mrf.mxu0
      %v3818 = vadd.f32 %v3711, %v3817
      %3819 = vmatmul.f32.gmra.mxu0 %v3607
      %v3820 = vpop.f32.mrf.mxu0
      %v3821 = vadd.f32 %v3714, %v3820
      %3822 = vmatmul.f32.gmra.mxu0 %v3610
      %v3823 = vpop.f32.mrf.mxu0
      %v3824 = vadd.f32 %v3717, %v3823
      %3825 = vmatmul.f32.gmra.mxu0 %v3613
      %v3826 = vpop.f32.mrf.mxu0
      %v3827 = vadd.f32 %v3720, %v3826
      %3828 = vmatmul.f32.gmra.mxu0 %v3616
      %v3829 = vpop.f32.mrf.mxu0
      %v3830 = vadd.f32 %v3723, %v3829
      %3831 = vmatmul.f32.gmra.mxu0 %v3619
      %v3832 = vpop.f32.mrf.mxu0
      %v3833 = vadd.f32 %v3726, %v3832
      %3834 = vmatmul.f32.gmra.mxu0 %v3622
      %v3835 = vpop.f32.mrf.mxu0
      %v3836 = vadd.f32 %v3729, %v3835
      %3837 = vmatmul.f32.gmra.mxu0 %v3625
      %v3838 = vpop.f32.mrf.mxu0
      %v3839 = vadd.f32 %v3732, %v3838
      %3840 = vmatmul.f32.gmra.mxu0 %v3628
      %v3841 = vpop.f32.mrf.mxu0
      %v3842 = vadd.f32 %v3735, %v3841
      %3843 = vmatmul.f32.gmra.mxu0 %v3631
      %v3844 = vpop.f32.mrf.mxu0
      %v3845 = vadd.f32 %v3738, %v3844
      %3846 = vmatmul.f32.gmra.mxu0 %v3634
      %v3847 = vpop.f32.mrf.mxu0
      %v3848 = vadd.f32 %v3741, %v3847
      %3849 = vmatmul.f32.gmra.mxu0 %v3637
      %v3850 = vpop.f32.mrf.mxu0
      %v3851 = vadd.f32 %v3744, %v3850
      %3852 = vmatmul.f32.gmra.mxu0 %v3640
      %v3853 = vpop.f32.mrf.mxu0
      %v3854 = vadd.f32 %v3747, %v3853
      %3855 = vmatmul.f32.gmra.mxu0 %v3643
      %v3856 = vpop.f32.mrf.mxu0
      %v3857 = vadd.f32 %v3750, %v3856
      %3858 = vmatmul.f32.gmra.mxu0 %v3646
      %v3859 = vpop.f32.mrf.mxu0
      %v3860 = vadd.f32 %v3753, %v3859
      %3861 = vmatmul.f32.gmra.mxu0 %v3649
      %v3862 = vpop.f32.mrf.mxu0
      %v3863 = vadd.f32 %v3756, %v3862
      %3864 = vmatmul.f32.gmra.mxu0 %v3652
      %v3865 = vpop.f32.mrf.mxu0
      %v3866 = vadd.f32 %v3759, %v3865
      %3867 = vmatmul.f32.gmra.mxu0 %v3655
      %v3868 = vpop.f32.mrf.mxu0
      %v3869 = vadd.f32 %v3762, %v3868
      %3870 = vmatmul.f32.gmra.mxu0 %v3658
      %v3871 = vpop.f32.mrf.mxu0
      %v3872 = vadd.f32 %v3765, %v3871
      %3873 = vdwg.mxu0
      %3874 = vmatpush.msra.mxu0 %v3545
      %3875 = vmatpush.msra.mxu0 %v3543
      %3876 = vmatpush.msra.mxu0 %v3541
      %3877 = vmatpush.msra.mxu0 %v3539
      %3878 = vmatpush.msra.mxu0 %v3537
      %3879 = vmatpush.msra.mxu0 %v3535
      %3880 = vmatpush.msra.mxu0 %v3533
      %3881 = vmatpush.msra.mxu0 %v3531
      %3882 = vmatpush.msra.mxu0 %v3529
      %3883 = vmatpush.msra.mxu0 %v3527
      %3884 = vmatpush.msra.mxu0 %v3525
      %3885 = vmatpush.msra.mxu0 %v3523
      %3886 = vmatpush.msra.mxu0 %v3521
      %3887 = vmatpush.msra.mxu0 %v3519
      %3888 = vmatpush.msra.mxu0 %v3517
      %3889 = vmatpush.msra.mxu0 %v3515
      %3890 = vmatmul.f32.gmra.mxu0 %v3317
      %v3891 = vpop.f32.mrf.mxu0
      %v3892 = vadd.f32 0.0, %v3891
      %3893 = vmatmul.f32.gmra.mxu0 %v3320
      %v3894 = vpop.f32.mrf.mxu0
      %v3895 = vadd.f32 0.0, %v3894
      %3896 = vmatmul.f32.gmra.mxu0 %v3323
      %v3897 = vpop.f32.mrf.mxu0
      %v3898 = vadd.f32 0.0, %v3897
      %3899 = vmatmul.f32.gmra.mxu0 %v3326
      %v3900 = vpop.f32.mrf.mxu0
      %v3901 = vadd.f32 0.0, %v3900
      %3902 = vmatmul.f32.gmra.mxu0 %v3329
      %v3903 = vpop.f32.mrf.mxu0
      %v3904 = vadd.f32 0.0, %v3903
      %3905 = vmatmul.f32.gmra.mxu0 %v3332
      %v3906 = vpop.f32.mrf.mxu0
      %v3907 = vadd.f32 0.0, %v3906
      %3908 = vmatmul.f32.gmra.mxu0 %v3335
      %v3909 = vpop.f32.mrf.mxu0
      %v3910 = vadd.f32 0.0, %v3909
      %3911 = vmatmul.f32.gmra.mxu0 %v3338
      %v3912 = vpop.f32.mrf.mxu0
      %v3913 = vadd.f32 0.0, %v3912
      %3914 = vmatmul.f32.gmra.mxu0 %v3341
      %v3915 = vpop.f32.mrf.mxu0
      %v3916 = vadd.f32 0.0, %v3915
      %3917 = vmatmul.f32.gmra.mxu0 %v3344
      %v3918 = vpop.f32.mrf.mxu0
      %v3919 = vadd.f32 0.0, %v3918
      %3920 = vmatmul.f32.gmra.mxu0 %v3347
      %v3921 = vpop.f32.mrf.mxu0
      %v3922 = vadd.f32 0.0, %v3921
      %3923 = vmatmul.f32.gmra.mxu0 %v3350
      %v3924 = vpop.f32.mrf.mxu0
      %v3925 = vadd.f32 0.0, %v3924
      %3926 = vmatmul.f32.gmra.mxu0 %v3353
      %v3927 = vpop.f32.mrf.mxu0
      %v3928 = vadd.f32 0.0, %v3927
      %3929 = vmatmul.f32.gmra.mxu0 %v3356
      %v3930 = vpop.f32.mrf.mxu0
      %v3931 = vadd.f32 0.0, %v3930
      %3932 = vmatmul.f32.gmra.mxu0 %v3359
      %v3933 = vpop.f32.mrf.mxu0
      %v3934 = vadd.f32 0.0, %v3933
      %3935 = vmatmul.f32.gmra.mxu0 %v3362
      %v3936 = vpop.f32.mrf.mxu0
      %v3937 = vadd.f32 0.0, %v3936
      %3938 = vmatmul.f32.gmra.mxu0 %v3365
      %v3939 = vpop.f32.mrf.mxu0
      %v3940 = vadd.f32 0.0, %v3939
      %3941 = vmatmul.f32.gmra.mxu0 %v3368
      %v3942 = vpop.f32.mrf.mxu0
      %v3943 = vadd.f32 0.0, %v3942
      %3944 = vmatmul.f32.gmra.mxu0 %v3371
      %v3945 = vpop.f32.mrf.mxu0
      %v3946 = vadd.f32 0.0, %v3945
      %3947 = vmatmul.f32.gmra.mxu0 %v3374
      %v3948 = vpop.f32.mrf.mxu0
      %v3949 = vadd.f32 0.0, %v3948
      %3950 = vmatmul.f32.gmra.mxu0 %v3377
      %v3951 = vpop.f32.mrf.mxu0
      %v3952 = vadd.f32 0.0, %v3951
      %3953 = vmatmul.f32.gmra.mxu0 %v3380
      %v3954 = vpop.f32.mrf.mxu0
      %v3955 = vadd.f32 0.0, %v3954
      %3956 = vmatmul.f32.gmra.mxu0 %v3383
      %v3957 = vpop.f32.mrf.mxu0
      %v3958 = vadd.f32 0.0, %v3957
      %3959 = vmatmul.f32.gmra.mxu0 %v3386
      %v3960 = vpop.f32.mrf.mxu0
      %v3961 = vadd.f32 0.0, %v3960
      %3962 = vmatmul.f32.gmra.mxu0 %v3389
      %v3963 = vpop.f32.mrf.mxu0
      %v3964 = vadd.f32 0.0, %v3963
      %3965 = vmatmul.f32.gmra.mxu0 %v3392
      %v3966 = vpop.f32.mrf.mxu0
      %v3967 = vadd.f32 0.0, %v3966
      %3968 = vmatmul.f32.gmra.mxu0 %v3395
      %v3969 = vpop.f32.mrf.mxu0
      %v3970 = vadd.f32 0.0, %v3969
      %3971 = vmatmul.f32.gmra.mxu0 %v3398
      %v3972 = vpop.f32.mrf.mxu0
      %v3973 = vadd.f32 0.0, %v3972
      %3974 = vmatmul.f32.gmra.mxu0 %v3401
      %v3975 = vpop.f32.mrf.mxu0
      %v3976 = vadd.f32 0.0, %v3975
      %3977 = vmatmul.f32.gmra.mxu0 %v3404
      %v3978 = vpop.f32.mrf.mxu0
      %v3979 = vadd.f32 0.0, %v3978
      %3980 = vdwg.mxu0
      %3981 = vmatpush.msra.mxu0 0.0
      %3982 = vmatpush.msra.mxu0 0.0
      %3983 = vmatpush.msra.mxu0 0.0
      %3984 = vmatpush.msra.mxu0 0.0
      %3985 = vmatpush.msra.mxu0 %v3569
      %3986 = vmatpush.msra.mxu0 %v3567
      %3987 = vmatpush.msra.mxu0 %v3565
      %3988 = vmatpush.msra.mxu0 %v3563
      %3989 = vmatpush.msra.mxu0 %v3561
      %3990 = vmatpush.msra.mxu0 %v3559
      %3991 = vmatpush.msra.mxu0 %v3557
      %3992 = vmatpush.msra.mxu0 %v3555
      %3993 = vmatpush.msra.mxu0 %v3553
      %3994 = vmatpush.msra.mxu0 %v3551
      %3995 = vmatpush.msra.mxu0 %v3549
      %3996 = vmatpush.msra.mxu0 %v3547
      %3997 = vmatmul.f32.gmra.mxu0 %v3571
      %v3998 = vpop.f32.mrf.mxu0
      %v3999 = vadd.f32 %v3892, %v3998
      %4000 = vmatmul.f32.gmra.mxu0 %v3574
      %v4001 = vpop.f32.mrf.mxu0
      %v4002 = vadd.f32 %v3895, %v4001
      %4003 = vmatmul.f32.gmra.mxu0 %v3577
      %v4004 = vpop.f32.mrf.mxu0
      %v4005 = vadd.f32 %v3898, %v4004
      %4006 = vmatmul.f32.gmra.mxu0 %v3580
      %v4007 = vpop.f32.mrf.mxu0
      %v4008 = vadd.f32 %v3901, %v4007
      %4009 = vmatmul.f32.gmra.mxu0 %v3583
      %v4010 = vpop.f32.mrf.mxu0
      %v4011 = vadd.f32 %v3904, %v4010
      %4012 = vmatmul.f32.gmra.mxu0 %v3586
      %v4013 = vpop.f32.mrf.mxu0
      %v4014 = vadd.f32 %v3907, %v4013
      %4015 = vmatmul.f32.gmra.mxu0 %v3589
      %v4016 = vpop.f32.mrf.mxu0
      %v4017 = vadd.f32 %v3910, %v4016
      %4018 = vmatmul.f32.gmra.mxu0 %v3592
      %v4019 = vpop.f32.mrf.mxu0
      %v4020 = vadd.f32 %v3913, %v4019
      %4021 = vmatmul.f32.gmra.mxu0 %v3595
      %v4022 = vpop.f32.mrf.mxu0
      %v4023 = vadd.f32 %v3916, %v4022
      %4024 = vmatmul.f32.gmra.mxu0 %v3598
      %v4025 = vpop.f32.mrf.mxu0
      %v4026 = vadd.f32 %v3919, %v4025
      %4027 = vmatmul.f32.gmra.mxu0 %v3601
      %v4028 = vpop.f32.mrf.mxu0
      %v4029 = vadd.f32 %v3922, %v4028
      %4030 = vmatmul.f32.gmra.mxu0 %v3604
      %v4031 = vpop.f32.mrf.mxu0
      %v4032 = vadd.f32 %v3925, %v4031
      %4033 = vmatmul.f32.gmra.mxu0 %v3607
      %v4034 = vpop.f32.mrf.mxu0
      %v4035 = vadd.f32 %v3928, %v4034
      %4036 = vmatmul.f32.gmra.mxu0 %v3610
      %v4037 = vpop.f32.mrf.mxu0
      %v4038 = vadd.f32 %v3931, %v4037
      %4039 = vmatmul.f32.gmra.mxu0 %v3613
      %v4040 = vpop.f32.mrf.mxu0
      %v4041 = vadd.f32 %v3934, %v4040
      %4042 = vmatmul.f32.gmra.mxu0 %v3616
      %v4043 = vpop.f32.mrf.mxu0
      %v4044 = vadd.f32 %v3937, %v4043
      %4045 = vmatmul.f32.gmra.mxu0 %v3619
      %v4046 = vpop.f32.mrf.mxu0
      %v4047 = vadd.f32 %v3940, %v4046
      %4048 = vmatmul.f32.gmra.mxu0 %v3622
      %v4049 = vpop.f32.mrf.mxu0
      %v4050 = vadd.f32 %v3943, %v4049
      %4051 = vmatmul.f32.gmra.mxu0 %v3625
      %v4052 = vpop.f32.mrf.mxu0
      %v4053 = vadd.f32 %v3946, %v4052
      %4054 = vmatmul.f32.gmra.mxu0 %v3628
      %v4055 = vpop.f32.mrf.mxu0
      %v4056 = vadd.f32 %v3949, %v4055
      %4057 = vmatmul.f32.gmra.mxu0 %v3631
      %v4058 = vpop.f32.mrf.mxu0
      %v4059 = vadd.f32 %v3952, %v4058
      %4060 = vmatmul.f32.gmra.mxu0 %v3634
      %v4061 = vpop.f32.mrf.mxu0
      %v4062 = vadd.f32 %v3955, %v4061
      %4063 = vmatmul.f32.gmra.mxu0 %v3637
      %v4064 = vpop.f32.mrf.mxu0
      %v4065 = vadd.f32 %v3958, %v4064
      %4066 = vmatmul.f32.gmra.mxu0 %v3640
      %v4067 = vpop.f32.mrf.mxu0
      %v4068 = vadd.f32 %v3961, %v4067
      %4069 = vmatmul.f32.gmra.mxu0 %v3643
      %v4070 = vpop.f32.mrf.mxu0
      %v4071 = vadd.f32 %v3964, %v4070
      %4072 = vmatmul.f32.gmra.mxu0 %v3646
      %v4073 = vpop.f32.mrf.mxu0
      %v4074 = vadd.f32 %v3967, %v4073
      %4075 = vmatmul.f32.gmra.mxu0 %v3649
      %v4076 = vpop.f32.mrf.mxu0
      %v4077 = vadd.f32 %v3970, %v4076
      %4078 = vmatmul.f32.gmra.mxu0 %v3652
      %v4079 = vpop.f32.mrf.mxu0
      %v4080 = vadd.f32 %v3973, %v4079
      %4081 = vmatmul.f32.gmra.mxu0 %v3655
      %v4082 = vpop.f32.mrf.mxu0
      %v4083 = vadd.f32 %v3976, %v4082
      %4084 = vmatmul.f32.gmra.mxu0 %v3658
      %v4085 = vpop.f32.mrf.mxu0
      %v4086 = vadd.f32 %v3979, %v4085
      %4087 = vdwg.mxu0
      %v4088 = vadd.f32 %v3118, %v3785
      %v4089 = vadd.f32 %v3119, %v3999
      %v4090 = vadd.f32 %v3120, %v3788
      %v4091 = vadd.f32 %v3121, %v4002
      %v4092 = vadd.f32 %v3122, %v3791
      %v4093 = vadd.f32 %v3123, %v4005
      %v4094 = vadd.f32 %v3124, %v3794
      %v4095 = vadd.f32 %v3125, %v4008
      %v4096 = vadd.f32 %v3126, %v3797
      %v4097 = vadd.f32 %v3127, %v4011
      %v4098 = vadd.f32 %v3128, %v3800
      %v4099 = vadd.f32 %v3129, %v4014
      %v4100 = vadd.f32 %v3130, %v3803
      %v4101 = vadd.f32 %v3131, %v4017
      %v4102 = vadd.f32 %v3132, %v3806
      %v4103 = vadd.f32 %v3133, %v4020
      %v4104 = vadd.f32 %v3134, %v3809
      %v4105 = vadd.f32 %v3135, %v4023
      %v4106 = vadd.f32 %v3136, %v3812
      %v4107 = vadd.f32 %v3137, %v4026
      %v4108 = vadd.f32 %v3138, %v3815
      %v4109 = vadd.f32 %v3139, %v4029
      %v4110 = vadd.f32 %v3140, %v3818
      %v4111 = vadd.f32 %v3141, %v4032
      %v4112 = vadd.f32 %v3142, %v3821
      %v4113 = vadd.f32 %v3143, %v4035
      %v4114 = vadd.f32 %v3144, %v3824
      %v4115 = vadd.f32 %v3145, %v4038
      %v4116 = vadd.f32 %v3146, %v3827
      %v4117 = vadd.f32 %v3147, %v4041
      %v4118 = vadd.f32 %v3148, %v3830
      %v4119 = vadd.f32 %v3149, %v4044
      %v4120 = vadd.f32 %v3150, %v3833
      %v4121 = vadd.f32 %v3151, %v4047
      %v4122 = vadd.f32 %v3152, %v3836
      %v4123 = vadd.f32 %v3153, %v4050
      %v4124 = vadd.f32 %v3154, %v3839
      %v4125 = vadd.f32 %v3155, %v4053
      %v4126 = vadd.f32 %v3156, %v3842
      %v4127 = vadd.f32 %v3157, %v4056
      %v4128 = vadd.f32 %v3158, %v3845
      %v4129 = vadd.f32 %v3159, %v4059
      %v4130 = vadd.f32 %v3160, %v3848
      %v4131 = vadd.f32 %v3161, %v4062
      %v4132 = vadd.f32 %v3162, %v3851
      %v4133 = vadd.f32 %v3163, %v4065
      %v4134 = vadd.f32 %v3164, %v3854
      %v4135 = vadd.f32 %v3165, %v4068
      %v4136 = vadd.f32 %v3166, %v3857
      %v4137 = vadd.f32 %v3167, %v4071
      %v4138 = vadd.f32 %v3168, %v3860
      %v4139 = vadd.f32 %v3169, %v4074
      %v4140 = vadd.f32 %v3170, %v3863
      %v4141 = vadd.f32 %v3171, %v4077
      %v4142 = vadd.f32 %v3172, %v3866
      %v4143 = vadd.f32 %v3173, %v4080
      %v4144 = vadd.f32 %v3174, %v3869
      %v4145 = vadd.f32 %v3175, %v4083
      %v4146 = vadd.f32 %v3176, %v3872
      %v4147 = vadd.f32 %v3177, %v4086
      %s4148 = scalar_lea.vmem %s1, 960
      %v4149 = vld [vmem:[%s4148] sm:$0xff]
      %v4150 = vld [vmem:[%s4148 + $0x8] sm:$0xff]
      %v4151 = vld [vmem:[%s4148 + $0x10] sm:$0xff]
      %v4152 = vld [vmem:[%s4148 + $0x18] sm:$0xff]
      %v4153 = vld [vmem:[%s4148 + $0x20] sm:$0xff]
      %v4154 = vld [vmem:[%s4148 + $0x28] sm:$0xff]
      %v4155 = vld [vmem:[%s4148 + $0x30] sm:$0xff]
      %v4156 = vld [vmem:[%s4148 + $0x38] sm:$0xff]
      %v4157 = vld [vmem:[%s4148 + $0x40] sm:$0xff]
      %v4158 = vld [vmem:[%s4148 + $0x48] sm:$0xff]
      %v4159 = vld [vmem:[%s4148 + $0x50] sm:$0xff]
      %v4160 = vld [vmem:[%s4148 + $0x58] sm:$0xff]
      %v4161 = vld [vmem:[%s4148 + $0x60] sm:$0xff]
      %v4162 = vld [vmem:[%s4148 + $0x68] sm:$0xff]
      %v4163 = vld [vmem:[%s4148 + $0x70] sm:$0xff]
      %v4164 = vld [vmem:[%s4148 + $0x78] sm:$0xff]
      %v4165 = vld [vmem:[%s4148 + $0x80] sm:$0xff]
      %v4166 = vld [vmem:[%s4148 + $0x88] sm:$0xff]
      %v4167 = vld [vmem:[%s4148 + $0x90] sm:$0xff]
      %v4168 = vld [vmem:[%s4148 + $0x98] sm:$0xff]
      %v4169 = vld [vmem:[%s4148 + $0xa0] sm:$0xff]
      %v4170 = vld [vmem:[%s4148 + $0xa8] sm:$0xff]
      %v4171 = vld [vmem:[%s4148 + $0xb0] sm:$0xff]
      %v4172 = vld [vmem:[%s4148 + $0xb8] sm:$0xff]
      %v4173 = vld [vmem:[%s4148 + $0xc0] sm:$0xff]
      %v4174 = vld [vmem:[%s4148 + $0xc8] sm:$0xff]
      %v4175 = vld [vmem:[%s4148 + $0xd0] sm:$0xff]
      %v4176 = vld [vmem:[%s4148 + $0xd8] sm:$0xff]
      %v4177 = vld [vmem:[%s4148 + $0xe0] sm:$0xff]
      %v4178 = vld [vmem:[%s4148 + $0xe8] sm:$0xff]
      %v4180 = vsel %vm411, %v4149, 0
      %v4183 = vsel %vm411, %v4150, 0
      %v4186 = vsel %vm411, %v4151, 0
      %v4189 = vsel %vm411, %v4152, 0
      %v4192 = vsel %vm411, %v4153, 0
      %v4195 = vsel %vm411, %v4154, 0
      %v4198 = vsel %vm411, %v4155, 0
      %v4201 = vsel %vm411, %v4156, 0
      %v4204 = vsel %vm411, %v4157, 0
      %v4207 = vsel %vm411, %v4158, 0
      %v4210 = vsel %vm411, %v4159, 0
      %v4213 = vsel %vm411, %v4160, 0
      %v4216 = vsel %vm411, %v4161, 0
      %v4219 = vsel %vm411, %v4162, 0
      %v4222 = vsel %vm411, %v4163, 0
      %v4225 = vsel %vm411, %v4164, 0
      %v4228 = vsel %vm411, %v4165, 0
      %v4231 = vsel %vm411, %v4166, 0
      %v4234 = vsel %vm411, %v4167, 0
      %v4237 = vsel %vm411, %v4168, 0
      %v4240 = vsel %vm411, %v4169, 0
      %v4243 = vsel %vm411, %v4170, 0
      %v4246 = vsel %vm411, %v4171, 0
      %v4249 = vsel %vm411, %v4172, 0
      %v4252 = vsel %vm411, %v4173, 0
      %v4255 = vsel %vm411, %v4174, 0
      %v4258 = vsel %vm411, %v4175, 0
      %v4261 = vsel %vm411, %v4176, 0
      %v4264 = vsel %vm411, %v4177, 0
      %v4267 = vsel %vm411, %v4178, 0
      %4269 = vmatpush.msra.mxu0 0.0
      %4270 = vmatpush.msra.mxu0 0.0
      %4271 = vmatpush.msra.mxu0 0.0
      %4272 = vmatpush.msra.mxu0 0.0
      %4273 = vmatpush.msra.mxu0 0.0
      %4274 = vmatpush.msra.mxu0 0.0
      %4275 = vmatpush.msra.mxu0 0.0
      %4276 = vmatpush.msra.mxu0 0.0
      %4277 = vmatpush.msra.mxu0 0.0
      %4278 = vmatpush.msra.mxu0 0.0
      %4279 = vmatpush.msra.mxu0 0.0
      %4280 = vmatpush.msra.mxu0 0.0
      %4281 = vmatpush.msra.mxu0 %v504
      %4282 = vmatpush.msra.mxu0 %v377
      %4283 = vmatpush.msra.mxu0 %v375
      %4284 = vmatpush.msra.mxu0 %v373
      %4285 = vmatmul.f32.gmra.mxu0 %v4180
      %v4286 = vpop.f32.mrf.mxu0
      %v4287 = vadd.f32 0.0, %v4286
      %4288 = vmatmul.f32.gmra.mxu0 %v4183
      %v4289 = vpop.f32.mrf.mxu0
      %v4290 = vadd.f32 0.0, %v4289
      %4291 = vmatmul.f32.gmra.mxu0 %v4186
      %v4292 = vpop.f32.mrf.mxu0
      %v4293 = vadd.f32 0.0, %v4292
      %4294 = vmatmul.f32.gmra.mxu0 %v4189
      %v4295 = vpop.f32.mrf.mxu0
      %v4296 = vadd.f32 0.0, %v4295
      %4297 = vmatmul.f32.gmra.mxu0 %v4192
      %v4298 = vpop.f32.mrf.mxu0
      %v4299 = vadd.f32 0.0, %v4298
      %4300 = vmatmul.f32.gmra.mxu0 %v4195
      %v4301 = vpop.f32.mrf.mxu0
      %v4302 = vadd.f32 0.0, %v4301
      %4303 = vmatmul.f32.gmra.mxu0 %v4198
      %v4304 = vpop.f32.mrf.mxu0
      %v4305 = vadd.f32 0.0, %v4304
      %4306 = vmatmul.f32.gmra.mxu0 %v4201
      %v4307 = vpop.f32.mrf.mxu0
      %v4308 = vadd.f32 0.0, %v4307
      %4309 = vmatmul.f32.gmra.mxu0 %v4204
      %v4310 = vpop.f32.mrf.mxu0
      %v4311 = vadd.f32 0.0, %v4310
      %4312 = vmatmul.f32.gmra.mxu0 %v4207
      %v4313 = vpop.f32.mrf.mxu0
      %v4314 = vadd.f32 0.0, %v4313
      %4315 = vmatmul.f32.gmra.mxu0 %v4210
      %v4316 = vpop.f32.mrf.mxu0
      %v4317 = vadd.f32 0.0, %v4316
      %4318 = vmatmul.f32.gmra.mxu0 %v4213
      %v4319 = vpop.f32.mrf.mxu0
      %v4320 = vadd.f32 0.0, %v4319
      %4321 = vmatmul.f32.gmra.mxu0 %v4216
      %v4322 = vpop.f32.mrf.mxu0
      %v4323 = vadd.f32 0.0, %v4322
      %4324 = vmatmul.f32.gmra.mxu0 %v4219
      %v4325 = vpop.f32.mrf.mxu0
      %v4326 = vadd.f32 0.0, %v4325
      %4327 = vmatmul.f32.gmra.mxu0 %v4222
      %v4328 = vpop.f32.mrf.mxu0
      %v4329 = vadd.f32 0.0, %v4328
      %4330 = vmatmul.f32.gmra.mxu0 %v4225
      %v4331 = vpop.f32.mrf.mxu0
      %v4332 = vadd.f32 0.0, %v4331
      %4333 = vmatmul.f32.gmra.mxu0 %v4228
      %v4334 = vpop.f32.mrf.mxu0
      %v4335 = vadd.f32 0.0, %v4334
      %4336 = vmatmul.f32.gmra.mxu0 %v4231
      %v4337 = vpop.f32.mrf.mxu0
      %v4338 = vadd.f32 0.0, %v4337
      %4339 = vmatmul.f32.gmra.mxu0 %v4234
      %v4340 = vpop.f32.mrf.mxu0
      %v4341 = vadd.f32 0.0, %v4340
      %4342 = vmatmul.f32.gmra.mxu0 %v4237
      %v4343 = vpop.f32.mrf.mxu0
      %v4344 = vadd.f32 0.0, %v4343
      %4345 = vmatmul.f32.gmra.mxu0 %v4240
      %v4346 = vpop.f32.mrf.mxu0
      %v4347 = vadd.f32 0.0, %v4346
      %4348 = vmatmul.f32.gmra.mxu0 %v4243
      %v4349 = vpop.f32.mrf.mxu0
      %v4350 = vadd.f32 0.0, %v4349
      %4351 = vmatmul.f32.gmra.mxu0 %v4246
      %v4352 = vpop.f32.mrf.mxu0
      %v4353 = vadd.f32 0.0, %v4352
      %4354 = vmatmul.f32.gmra.mxu0 %v4249
      %v4355 = vpop.f32.mrf.mxu0
      %v4356 = vadd.f32 0.0, %v4355
      %4357 = vmatmul.f32.gmra.mxu0 %v4252
      %v4358 = vpop.f32.mrf.mxu0
      %v4359 = vadd.f32 0.0, %v4358
      %4360 = vmatmul.f32.gmra.mxu0 %v4255
      %v4361 = vpop.f32.mrf.mxu0
      %v4362 = vadd.f32 0.0, %v4361
      %4363 = vmatmul.f32.gmra.mxu0 %v4258
      %v4364 = vpop.f32.mrf.mxu0
      %v4365 = vadd.f32 0.0, %v4364
      %4366 = vmatmul.f32.gmra.mxu0 %v4261
      %v4367 = vpop.f32.mrf.mxu0
      %v4368 = vadd.f32 0.0, %v4367
      %4369 = vmatmul.f32.gmra.mxu0 %v4264
      %v4370 = vpop.f32.mrf.mxu0
      %v4371 = vadd.f32 0.0, %v4370
      %4372 = vmatmul.f32.gmra.mxu0 %v4267
      %v4373 = vpop.f32.mrf.mxu0
      %v4374 = vadd.f32 0.0, %v4373
      %4375 = vdwg.mxu0
      %4376 = vmatpush.msra.mxu0 0.0
      %4377 = vmatpush.msra.mxu0 0.0
      %4378 = vmatpush.msra.mxu0 0.0
      %4379 = vmatpush.msra.mxu0 0.0
      %4380 = vmatpush.msra.mxu0 0.0
      %4381 = vmatpush.msra.mxu0 0.0
      %4382 = vmatpush.msra.mxu0 0.0
      %4383 = vmatpush.msra.mxu0 0.0
      %4384 = vmatpush.msra.mxu0 0.0
      %4385 = vmatpush.msra.mxu0 0.0
      %4386 = vmatpush.msra.mxu0 0.0
      %4387 = vmatpush.msra.mxu0 0.0
      %4388 = vmatpush.msra.mxu0 %v507
      %4389 = vmatpush.msra.mxu0 %v378
      %4390 = vmatpush.msra.mxu0 %v376
      %4391 = vmatpush.msra.mxu0 %v374
      %4392 = vmatmul.f32.gmra.mxu0 %v4180
      %v4393 = vpop.f32.mrf.mxu0
      %v4394 = vadd.f32 0.0, %v4393
      %4395 = vmatmul.f32.gmra.mxu0 %v4183
      %v4396 = vpop.f32.mrf.mxu0
      %v4397 = vadd.f32 0.0, %v4396
      %4398 = vmatmul.f32.gmra.mxu0 %v4186
      %v4399 = vpop.f32.mrf.mxu0
      %v4400 = vadd.f32 0.0, %v4399
      %4401 = vmatmul.f32.gmra.mxu0 %v4189
      %v4402 = vpop.f32.mrf.mxu0
      %v4403 = vadd.f32 0.0, %v4402
      %4404 = vmatmul.f32.gmra.mxu0 %v4192
      %v4405 = vpop.f32.mrf.mxu0
      %v4406 = vadd.f32 0.0, %v4405
      %4407 = vmatmul.f32.gmra.mxu0 %v4195
      %v4408 = vpop.f32.mrf.mxu0
      %v4409 = vadd.f32 0.0, %v4408
      %4410 = vmatmul.f32.gmra.mxu0 %v4198
      %v4411 = vpop.f32.mrf.mxu0
      %v4412 = vadd.f32 0.0, %v4411
      %4413 = vmatmul.f32.gmra.mxu0 %v4201
      %v4414 = vpop.f32.mrf.mxu0
      %v4415 = vadd.f32 0.0, %v4414
      %4416 = vmatmul.f32.gmra.mxu0 %v4204
      %v4417 = vpop.f32.mrf.mxu0
      %v4418 = vadd.f32 0.0, %v4417
      %4419 = vmatmul.f32.gmra.mxu0 %v4207
      %v4420 = vpop.f32.mrf.mxu0
      %v4421 = vadd.f32 0.0, %v4420
      %4422 = vmatmul.f32.gmra.mxu0 %v4210
      %v4423 = vpop.f32.mrf.mxu0
      %v4424 = vadd.f32 0.0, %v4423
      %4425 = vmatmul.f32.gmra.mxu0 %v4213
      %v4426 = vpop.f32.mrf.mxu0
      %v4427 = vadd.f32 0.0, %v4426
      %4428 = vmatmul.f32.gmra.mxu0 %v4216
      %v4429 = vpop.f32.mrf.mxu0
      %v4430 = vadd.f32 0.0, %v4429
      %4431 = vmatmul.f32.gmra.mxu0 %v4219
      %v4432 = vpop.f32.mrf.mxu0
      %v4433 = vadd.f32 0.0, %v4432
      %4434 = vmatmul.f32.gmra.mxu0 %v4222
      %v4435 = vpop.f32.mrf.mxu0
      %v4436 = vadd.f32 0.0, %v4435
      %4437 = vmatmul.f32.gmra.mxu0 %v4225
      %v4438 = vpop.f32.mrf.mxu0
      %v4439 = vadd.f32 0.0, %v4438
      %4440 = vmatmul.f32.gmra.mxu0 %v4228
      %v4441 = vpop.f32.mrf.mxu0
      %v4442 = vadd.f32 0.0, %v4441
      %4443 = vmatmul.f32.gmra.mxu0 %v4231
      %v4444 = vpop.f32.mrf.mxu0
      %v4445 = vadd.f32 0.0, %v4444
      %4446 = vmatmul.f32.gmra.mxu0 %v4234
      %v4447 = vpop.f32.mrf.mxu0
      %v4448 = vadd.f32 0.0, %v4447
      %4449 = vmatmul.f32.gmra.mxu0 %v4237
      %v4450 = vpop.f32.mrf.mxu0
      %v4451 = vadd.f32 0.0, %v4450
      %4452 = vmatmul.f32.gmra.mxu0 %v4240
      %v4453 = vpop.f32.mrf.mxu0
      %v4454 = vadd.f32 0.0, %v4453
      %4455 = vmatmul.f32.gmra.mxu0 %v4243
      %v4456 = vpop.f32.mrf.mxu0
      %v4457 = vadd.f32 0.0, %v4456
      %4458 = vmatmul.f32.gmra.mxu0 %v4246
      %v4459 = vpop.f32.mrf.mxu0
      %v4460 = vadd.f32 0.0, %v4459
      %4461 = vmatmul.f32.gmra.mxu0 %v4249
      %v4462 = vpop.f32.mrf.mxu0
      %v4463 = vadd.f32 0.0, %v4462
      %4464 = vmatmul.f32.gmra.mxu0 %v4252
      %v4465 = vpop.f32.mrf.mxu0
      %v4466 = vadd.f32 0.0, %v4465
      %4467 = vmatmul.f32.gmra.mxu0 %v4255
      %v4468 = vpop.f32.mrf.mxu0
      %v4469 = vadd.f32 0.0, %v4468
      %4470 = vmatmul.f32.gmra.mxu0 %v4258
      %v4471 = vpop.f32.mrf.mxu0
      %v4472 = vadd.f32 0.0, %v4471
      %4473 = vmatmul.f32.gmra.mxu0 %v4261
      %v4474 = vpop.f32.mrf.mxu0
      %v4475 = vadd.f32 0.0, %v4474
      %4476 = vmatmul.f32.gmra.mxu0 %v4264
      %v4477 = vpop.f32.mrf.mxu0
      %v4478 = vadd.f32 0.0, %v4477
      %4479 = vmatmul.f32.gmra.mxu0 %v4267
      %v4480 = vpop.f32.mrf.mxu0
      %v4481 = vadd.f32 0.0, %v4480
      %4482 = vdwg.mxu0
      %s4483 = scalar_lea.vmem %s2, 1792
      %v4484 = vld [vmem:[%s4483] sm:$0xff]
      %v4485 = vld [vmem:[%s4483 + $0x8] sm:$0xff]
      %v4486 = vld [vmem:[%s4483 + $0x10] sm:$0xff]
      %v4487 = vld [vmem:[%s4483 + $0x18] sm:$0xff]
      %v4488 = vld [vmem:[%s4483 + $0x20] sm:$0xff]
      %v4489 = vld [vmem:[%s4483 + $0x28] sm:$0xff]
      %v4490 = vld [vmem:[%s4483 + $0x30] sm:$0xff]
      %v4491 = vld [vmem:[%s4483 + $0x38] sm:$0xff]
      %v4492 = vld [vmem:[%s4483 + $0x40] sm:$0xff]
      %v4493 = vld [vmem:[%s4483 + $0x48] sm:$0xff]
      %v4494 = vld [vmem:[%s4483 + $0x50] sm:$0xff]
      %v4495 = vld [vmem:[%s4483 + $0x58] sm:$0xff]
      %v4496 = vld [vmem:[%s4483 + $0x60] sm:$0xff]
      %v4497 = vld [vmem:[%s4483 + $0x68] sm:$0xff]
      %v4498 = vld [vmem:[%s4483 + $0x70] sm:$0xff]
      %v4499 = vld [vmem:[%s4483 + $0x78] sm:$0xff]
      %v4500 = vld [vmem:[%s4483 + $0x80] sm:$0xff]
      %v4501 = vld [vmem:[%s4483 + $0x88] sm:$0xff]
      %v4502 = vld [vmem:[%s4483 + $0x90] sm:$0xff]
      %v4503 = vld [vmem:[%s4483 + $0x98] sm:$0xff]
      %v4504 = vld [vmem:[%s4483 + $0xa0] sm:$0xff]
      %v4505 = vld [vmem:[%s4483 + $0xa8] sm:$0xff]
      %v4506 = vld [vmem:[%s4483 + $0xb0] sm:$0xff]
      %v4507 = vld [vmem:[%s4483 + $0xb8] sm:$0xff]
      %v4508 = vld [vmem:[%s4483 + $0xc0] sm:$0xff]
      %v4509 = vld [vmem:[%s4483 + $0xc8] sm:$0xff]
      %v4510 = vld [vmem:[%s4483 + $0xd0] sm:$0xff]
      %v4511 = vld [vmem:[%s4483 + $0xd8] sm:$0xff]
      %v4512 = vld [vmem:[%s4483 + $0xe0] sm:$0xff]
      %v4513 = vld [vmem:[%s4483 + $0xe8] sm:$0xff]
      %v4514 = vld [vmem:[%s4483 + $0xf0] sm:$0xff]
      %v4515 = vld [vmem:[%s4483 + $0xf8] sm:$0xff]
      %v4516 = vld [vmem:[%s4483 + $0x100] sm:$0xff]
      %v4517 = vld [vmem:[%s4483 + $0x108] sm:$0xff]
      %v4518 = vld [vmem:[%s4483 + $0x110] sm:$0xff]
      %v4519 = vld [vmem:[%s4483 + $0x118] sm:$0xff]
      %v4520 = vld [vmem:[%s4483 + $0x120] sm:$0xff]
      %v4521 = vld [vmem:[%s4483 + $0x128] sm:$0xff]
      %v4522 = vld [vmem:[%s4483 + $0x130] sm:$0xff]
      %v4523 = vld [vmem:[%s4483 + $0x138] sm:$0xff]
      %v4524 = vld [vmem:[%s4483 + $0x140] sm:$0xff]
      %v4525 = vld [vmem:[%s4483 + $0x148] sm:$0xff]
      %v4526 = vld [vmem:[%s4483 + $0x150] sm:$0xff]
      %v4527 = vld [vmem:[%s4483 + $0x158] sm:$0xff]
      %v4528 = vld [vmem:[%s4483 + $0x160] sm:$0xff]
      %v4529 = vld [vmem:[%s4483 + $0x168] sm:$0xff]
      %v4530 = vld [vmem:[%s4483 + $0x170] sm:$0xff]
      %v4531 = vld [vmem:[%s4483 + $0x178] sm:$0xff]
      %v4532 = vld [vmem:[%s4483 + $0x180] sm:$0xff]
      %v4533 = vld [vmem:[%s4483 + $0x188] sm:$0xff]
      %v4534 = vld [vmem:[%s4483 + $0x190] sm:$0xff]
      %v4535 = vld [vmem:[%s4483 + $0x198] sm:$0xff]
      %v4536 = vld [vmem:[%s4483 + $0x1a0] sm:$0xff]
      %v4537 = vld [vmem:[%s4483 + $0x1a8] sm:$0xff]
      %v4538 = vld [vmem:[%s4483 + $0x1b0] sm:$0xff]
      %v4539 = vld [vmem:[%s4483 + $0x1b8] sm:$0xff]
      %v4541 = vsel %vm1171, %v4394, 0
      %v4544 = vsel %vm1171, %v4397, 0
      %v4547 = vsel %vm1171, %v4400, 0
      %v4550 = vsel %vm1171, %v4403, 0
      %v4553 = vsel %vm1171, %v4406, 0
      %v4556 = vsel %vm1171, %v4409, 0
      %v4559 = vsel %vm1171, %v4412, 0
      %v4562 = vsel %vm1171, %v4415, 0
      %v4565 = vsel %vm1171, %v4418, 0
      %v4568 = vsel %vm1171, %v4421, 0
      %v4571 = vsel %vm1171, %v4424, 0
      %v4574 = vsel %vm1171, %v4427, 0
      %v4577 = vsel %vm1171, %v4430, 0
      %v4580 = vsel %vm1171, %v4433, 0
      %v4583 = vsel %vm1171, %v4436, 0
      %v4586 = vsel %vm1171, %v4439, 0
      %v4589 = vsel %vm1171, %v4442, 0
      %v4592 = vsel %vm1171, %v4445, 0
      %v4595 = vsel %vm1171, %v4448, 0
      %v4598 = vsel %vm1171, %v4451, 0
      %v4601 = vsel %vm1171, %v4454, 0
      %v4604 = vsel %vm1171, %v4457, 0
      %v4607 = vsel %vm1171, %v4460, 0
      %v4610 = vsel %vm1171, %v4463, 0
      %v4613 = vsel %vm1171, %v4466, 0
      %v4616 = vsel %vm1171, %v4469, 0
      %v4619 = vsel %vm1171, %v4472, 0
      %v4622 = vsel %vm1171, %v4475, 0
      %v4625 = vsel %vm1171, %v4478, 0
      %v4628 = vsel %vm1171, %v4481, 0
      %4630 = vmatpush.msra.mxu0 %v4514
      %4631 = vmatpush.msra.mxu0 %v4512
      %4632 = vmatpush.msra.mxu0 %v4510
      %4633 = vmatpush.msra.mxu0 %v4508
      %4634 = vmatpush.msra.mxu0 %v4506
      %4635 = vmatpush.msra.mxu0 %v4504
      %4636 = vmatpush.msra.mxu0 %v4502
      %4637 = vmatpush.msra.mxu0 %v4500
      %4638 = vmatpush.msra.mxu0 %v4498
      %4639 = vmatpush.msra.mxu0 %v4496
      %4640 = vmatpush.msra.mxu0 %v4494
      %4641 = vmatpush.msra.mxu0 %v4492
      %4642 = vmatpush.msra.mxu0 %v4490
      %4643 = vmatpush.msra.mxu0 %v4488
      %4644 = vmatpush.msra.mxu0 %v4486
      %4645 = vmatpush.msra.mxu0 %v4484
      %4646 = vmatmul.f32.gmra.mxu0 %v4287
      %v4647 = vpop.f32.mrf.mxu0
      %v4648 = vadd.f32 0.0, %v4647
      %4649 = vmatmul.f32.gmra.mxu0 %v4290
      %v4650 = vpop.f32.mrf.mxu0
      %v4651 = vadd.f32 0.0, %v4650
      %4652 = vmatmul.f32.gmra.mxu0 %v4293
      %v4653 = vpop.f32.mrf.mxu0
      %v4654 = vadd.f32 0.0, %v4653
      %4655 = vmatmul.f32.gmra.mxu0 %v4296
      %v4656 = vpop.f32.mrf.mxu0
      %v4657 = vadd.f32 0.0, %v4656
      %4658 = vmatmul.f32.gmra.mxu0 %v4299
      %v4659 = vpop.f32.mrf.mxu0
      %v4660 = vadd.f32 0.0, %v4659
      %4661 = vmatmul.f32.gmra.mxu0 %v4302
      %v4662 = vpop.f32.mrf.mxu0
      %v4663 = vadd.f32 0.0, %v4662
      %4664 = vmatmul.f32.gmra.mxu0 %v4305
      %v4665 = vpop.f32.mrf.mxu0
      %v4666 = vadd.f32 0.0, %v4665
      %4667 = vmatmul.f32.gmra.mxu0 %v4308
      %v4668 = vpop.f32.mrf.mxu0
      %v4669 = vadd.f32 0.0, %v4668
      %4670 = vmatmul.f32.gmra.mxu0 %v4311
      %v4671 = vpop.f32.mrf.mxu0
      %v4672 = vadd.f32 0.0, %v4671
      %4673 = vmatmul.f32.gmra.mxu0 %v4314
      %v4674 = vpop.f32.mrf.mxu0
      %v4675 = vadd.f32 0.0, %v4674
      %4676 = vmatmul.f32.gmra.mxu0 %v4317
      %v4677 = vpop.f32.mrf.mxu0
      %v4678 = vadd.f32 0.0, %v4677
      %4679 = vmatmul.f32.gmra.mxu0 %v4320
      %v4680 = vpop.f32.mrf.mxu0
      %v4681 = vadd.f32 0.0, %v4680
      %4682 = vmatmul.f32.gmra.mxu0 %v4323
      %v4683 = vpop.f32.mrf.mxu0
      %v4684 = vadd.f32 0.0, %v4683
      %4685 = vmatmul.f32.gmra.mxu0 %v4326
      %v4686 = vpop.f32.mrf.mxu0
      %v4687 = vadd.f32 0.0, %v4686
      %4688 = vmatmul.f32.gmra.mxu0 %v4329
      %v4689 = vpop.f32.mrf.mxu0
      %v4690 = vadd.f32 0.0, %v4689
      %4691 = vmatmul.f32.gmra.mxu0 %v4332
      %v4692 = vpop.f32.mrf.mxu0
      %v4693 = vadd.f32 0.0, %v4692
      %4694 = vmatmul.f32.gmra.mxu0 %v4335
      %v4695 = vpop.f32.mrf.mxu0
      %v4696 = vadd.f32 0.0, %v4695
      %4697 = vmatmul.f32.gmra.mxu0 %v4338
      %v4698 = vpop.f32.mrf.mxu0
      %v4699 = vadd.f32 0.0, %v4698
      %4700 = vmatmul.f32.gmra.mxu0 %v4341
      %v4701 = vpop.f32.mrf.mxu0
      %v4702 = vadd.f32 0.0, %v4701
      %4703 = vmatmul.f32.gmra.mxu0 %v4344
      %v4704 = vpop.f32.mrf.mxu0
      %v4705 = vadd.f32 0.0, %v4704
      %4706 = vmatmul.f32.gmra.mxu0 %v4347
      %v4707 = vpop.f32.mrf.mxu0
      %v4708 = vadd.f32 0.0, %v4707
      %4709 = vmatmul.f32.gmra.mxu0 %v4350
      %v4710 = vpop.f32.mrf.mxu0
      %v4711 = vadd.f32 0.0, %v4710
      %4712 = vmatmul.f32.gmra.mxu0 %v4353
      %v4713 = vpop.f32.mrf.mxu0
      %v4714 = vadd.f32 0.0, %v4713
      %4715 = vmatmul.f32.gmra.mxu0 %v4356
      %v4716 = vpop.f32.mrf.mxu0
      %v4717 = vadd.f32 0.0, %v4716
      %4718 = vmatmul.f32.gmra.mxu0 %v4359
      %v4719 = vpop.f32.mrf.mxu0
      %v4720 = vadd.f32 0.0, %v4719
      %4721 = vmatmul.f32.gmra.mxu0 %v4362
      %v4722 = vpop.f32.mrf.mxu0
      %v4723 = vadd.f32 0.0, %v4722
      %4724 = vmatmul.f32.gmra.mxu0 %v4365
      %v4725 = vpop.f32.mrf.mxu0
      %v4726 = vadd.f32 0.0, %v4725
      %4727 = vmatmul.f32.gmra.mxu0 %v4368
      %v4728 = vpop.f32.mrf.mxu0
      %v4729 = vadd.f32 0.0, %v4728
      %4730 = vmatmul.f32.gmra.mxu0 %v4371
      %v4731 = vpop.f32.mrf.mxu0
      %v4732 = vadd.f32 0.0, %v4731
      %4733 = vmatmul.f32.gmra.mxu0 %v4374
      %v4734 = vpop.f32.mrf.mxu0
      %v4735 = vadd.f32 0.0, %v4734
      %4736 = vdwg.mxu0
      %4737 = vmatpush.msra.mxu0 0.0
      %4738 = vmatpush.msra.mxu0 0.0
      %4739 = vmatpush.msra.mxu0 0.0
      %4740 = vmatpush.msra.mxu0 0.0
      %4741 = vmatpush.msra.mxu0 %v4538
      %4742 = vmatpush.msra.mxu0 %v4536
      %4743 = vmatpush.msra.mxu0 %v4534
      %4744 = vmatpush.msra.mxu0 %v4532
      %4745 = vmatpush.msra.mxu0 %v4530
      %4746 = vmatpush.msra.mxu0 %v4528
      %4747 = vmatpush.msra.mxu0 %v4526
      %4748 = vmatpush.msra.mxu0 %v4524
      %4749 = vmatpush.msra.mxu0 %v4522
      %4750 = vmatpush.msra.mxu0 %v4520
      %4751 = vmatpush.msra.mxu0 %v4518
      %4752 = vmatpush.msra.mxu0 %v4516
      %4753 = vmatmul.f32.gmra.mxu0 %v4541
      %v4754 = vpop.f32.mrf.mxu0
      %v4755 = vadd.f32 %v4648, %v4754
      %4756 = vmatmul.f32.gmra.mxu0 %v4544
      %v4757 = vpop.f32.mrf.mxu0
      %v4758 = vadd.f32 %v4651, %v4757
      %4759 = vmatmul.f32.gmra.mxu0 %v4547
      %v4760 = vpop.f32.mrf.mxu0
      %v4761 = vadd.f32 %v4654, %v4760
      %4762 = vmatmul.f32.gmra.mxu0 %v4550
      %v4763 = vpop.f32.mrf.mxu0
      %v4764 = vadd.f32 %v4657, %v4763
      %4765 = vmatmul.f32.gmra.mxu0 %v4553
      %v4766 = vpop.f32.mrf.mxu0
      %v4767 = vadd.f32 %v4660, %v4766
      %4768 = vmatmul.f32.gmra.mxu0 %v4556
      %v4769 = vpop.f32.mrf.mxu0
      %v4770 = vadd.f32 %v4663, %v4769
      %4771 = vmatmul.f32.gmra.mxu0 %v4559
      %v4772 = vpop.f32.mrf.mxu0
      %v4773 = vadd.f32 %v4666, %v4772
      %4774 = vmatmul.f32.gmra.mxu0 %v4562
      %v4775 = vpop.f32.mrf.mxu0
      %v4776 = vadd.f32 %v4669, %v4775
      %4777 = vmatmul.f32.gmra.mxu0 %v4565
      %v4778 = vpop.f32.mrf.mxu0
      %v4779 = vadd.f32 %v4672, %v4778
      %4780 = vmatmul.f32.gmra.mxu0 %v4568
      %v4781 = vpop.f32.mrf.mxu0
      %v4782 = vadd.f32 %v4675, %v4781
      %4783 = vmatmul.f32.gmra.mxu0 %v4571
      %v4784 = vpop.f32.mrf.mxu0
      %v4785 = vadd.f32 %v4678, %v4784
      %4786 = vmatmul.f32.gmra.mxu0 %v4574
      %v4787 = vpop.f32.mrf.mxu0
      %v4788 = vadd.f32 %v4681, %v4787
      %4789 = vmatmul.f32.gmra.mxu0 %v4577
      %v4790 = vpop.f32.mrf.mxu0
      %v4791 = vadd.f32 %v4684, %v4790
      %4792 = vmatmul.f32.gmra.mxu0 %v4580
      %v4793 = vpop.f32.mrf.mxu0
      %v4794 = vadd.f32 %v4687, %v4793
      %4795 = vmatmul.f32.gmra.mxu0 %v4583
      %v4796 = vpop.f32.mrf.mxu0
      %v4797 = vadd.f32 %v4690, %v4796
      %4798 = vmatmul.f32.gmra.mxu0 %v4586
      %v4799 = vpop.f32.mrf.mxu0
      %v4800 = vadd.f32 %v4693, %v4799
      %4801 = vmatmul.f32.gmra.mxu0 %v4589
      %v4802 = vpop.f32.mrf.mxu0
      %v4803 = vadd.f32 %v4696, %v4802
      %4804 = vmatmul.f32.gmra.mxu0 %v4592
      %v4805 = vpop.f32.mrf.mxu0
      %v4806 = vadd.f32 %v4699, %v4805
      %4807 = vmatmul.f32.gmra.mxu0 %v4595
      %v4808 = vpop.f32.mrf.mxu0
      %v4809 = vadd.f32 %v4702, %v4808
      %4810 = vmatmul.f32.gmra.mxu0 %v4598
      %v4811 = vpop.f32.mrf.mxu0
      %v4812 = vadd.f32 %v4705, %v4811
      %4813 = vmatmul.f32.gmra.mxu0 %v4601
      %v4814 = vpop.f32.mrf.mxu0
      %v4815 = vadd.f32 %v4708, %v4814
      %4816 = vmatmul.f32.gmra.mxu0 %v4604
      %v4817 = vpop.f32.mrf.mxu0
      %v4818 = vadd.f32 %v4711, %v4817
      %4819 = vmatmul.f32.gmra.mxu0 %v4607
      %v4820 = vpop.f32.mrf.mxu0
      %v4821 = vadd.f32 %v4714, %v4820
      %4822 = vmatmul.f32.gmra.mxu0 %v4610
      %v4823 = vpop.f32.mrf.mxu0
      %v4824 = vadd.f32 %v4717, %v4823
      %4825 = vmatmul.f32.gmra.mxu0 %v4613
      %v4826 = vpop.f32.mrf.mxu0
      %v4827 = vadd.f32 %v4720, %v4826
      %4828 = vmatmul.f32.gmra.mxu0 %v4616
      %v4829 = vpop.f32.mrf.mxu0
      %v4830 = vadd.f32 %v4723, %v4829
      %4831 = vmatmul.f32.gmra.mxu0 %v4619
      %v4832 = vpop.f32.mrf.mxu0
      %v4833 = vadd.f32 %v4726, %v4832
      %4834 = vmatmul.f32.gmra.mxu0 %v4622
      %v4835 = vpop.f32.mrf.mxu0
      %v4836 = vadd.f32 %v4729, %v4835
      %4837 = vmatmul.f32.gmra.mxu0 %v4625
      %v4838 = vpop.f32.mrf.mxu0
      %v4839 = vadd.f32 %v4732, %v4838
      %4840 = vmatmul.f32.gmra.mxu0 %v4628
      %v4841 = vpop.f32.mrf.mxu0
      %v4842 = vadd.f32 %v4735, %v4841
      %4843 = vdwg.mxu0
      %4844 = vmatpush.msra.mxu0 %v4515
      %4845 = vmatpush.msra.mxu0 %v4513
      %4846 = vmatpush.msra.mxu0 %v4511
      %4847 = vmatpush.msra.mxu0 %v4509
      %4848 = vmatpush.msra.mxu0 %v4507
      %4849 = vmatpush.msra.mxu0 %v4505
      %4850 = vmatpush.msra.mxu0 %v4503
      %4851 = vmatpush.msra.mxu0 %v4501
      %4852 = vmatpush.msra.mxu0 %v4499
      %4853 = vmatpush.msra.mxu0 %v4497
      %4854 = vmatpush.msra.mxu0 %v4495
      %4855 = vmatpush.msra.mxu0 %v4493
      %4856 = vmatpush.msra.mxu0 %v4491
      %4857 = vmatpush.msra.mxu0 %v4489
      %4858 = vmatpush.msra.mxu0 %v4487
      %4859 = vmatpush.msra.mxu0 %v4485
      %4860 = vmatmul.f32.gmra.mxu0 %v4287
      %v4861 = vpop.f32.mrf.mxu0
      %v4862 = vadd.f32 0.0, %v4861
      %4863 = vmatmul.f32.gmra.mxu0 %v4290
      %v4864 = vpop.f32.mrf.mxu0
      %v4865 = vadd.f32 0.0, %v4864
      %4866 = vmatmul.f32.gmra.mxu0 %v4293
      %v4867 = vpop.f32.mrf.mxu0
      %v4868 = vadd.f32 0.0, %v4867
      %4869 = vmatmul.f32.gmra.mxu0 %v4296
      %v4870 = vpop.f32.mrf.mxu0
      %v4871 = vadd.f32 0.0, %v4870
      %4872 = vmatmul.f32.gmra.mxu0 %v4299
      %v4873 = vpop.f32.mrf.mxu0
      %v4874 = vadd.f32 0.0, %v4873
      %4875 = vmatmul.f32.gmra.mxu0 %v4302
      %v4876 = vpop.f32.mrf.mxu0
      %v4877 = vadd.f32 0.0, %v4876
      %4878 = vmatmul.f32.gmra.mxu0 %v4305
      %v4879 = vpop.f32.mrf.mxu0
      %v4880 = vadd.f32 0.0, %v4879
      %4881 = vmatmul.f32.gmra.mxu0 %v4308
      %v4882 = vpop.f32.mrf.mxu0
      %v4883 = vadd.f32 0.0, %v4882
      %4884 = vmatmul.f32.gmra.mxu0 %v4311
      %v4885 = vpop.f32.mrf.mxu0
      %v4886 = vadd.f32 0.0, %v4885
      %4887 = vmatmul.f32.gmra.mxu0 %v4314
      %v4888 = vpop.f32.mrf.mxu0
      %v4889 = vadd.f32 0.0, %v4888
      %4890 = vmatmul.f32.gmra.mxu0 %v4317
      %v4891 = vpop.f32.mrf.mxu0
      %v4892 = vadd.f32 0.0, %v4891
      %4893 = vmatmul.f32.gmra.mxu0 %v4320
      %v4894 = vpop.f32.mrf.mxu0
      %v4895 = vadd.f32 0.0, %v4894
      %4896 = vmatmul.f32.gmra.mxu0 %v4323
      %v4897 = vpop.f32.mrf.mxu0
      %v4898 = vadd.f32 0.0, %v4897
      %4899 = vmatmul.f32.gmra.mxu0 %v4326
      %v4900 = vpop.f32.mrf.mxu0
      %v4901 = vadd.f32 0.0, %v4900
      %4902 = vmatmul.f32.gmra.mxu0 %v4329
      %v4903 = vpop.f32.mrf.mxu0
      %v4904 = vadd.f32 0.0, %v4903
      %4905 = vmatmul.f32.gmra.mxu0 %v4332
      %v4906 = vpop.f32.mrf.mxu0
      %v4907 = vadd.f32 0.0, %v4906
      %4908 = vmatmul.f32.gmra.mxu0 %v4335
      %v4909 = vpop.f32.mrf.mxu0
      %v4910 = vadd.f32 0.0, %v4909
      %4911 = vmatmul.f32.gmra.mxu0 %v4338
      %v4912 = vpop.f32.mrf.mxu0
      %v4913 = vadd.f32 0.0, %v4912
      %4914 = vmatmul.f32.gmra.mxu0 %v4341
      %v4915 = vpop.f32.mrf.mxu0
      %v4916 = vadd.f32 0.0, %v4915
      %4917 = vmatmul.f32.gmra.mxu0 %v4344
      %v4918 = vpop.f32.mrf.mxu0
      %v4919 = vadd.f32 0.0, %v4918
      %4920 = vmatmul.f32.gmra.mxu0 %v4347
      %v4921 = vpop.f32.mrf.mxu0
      %v4922 = vadd.f32 0.0, %v4921
      %4923 = vmatmul.f32.gmra.mxu0 %v4350
      %v4924 = vpop.f32.mrf.mxu0
      %v4925 = vadd.f32 0.0, %v4924
      %4926 = vmatmul.f32.gmra.mxu0 %v4353
      %v4927 = vpop.f32.mrf.mxu0
      %v4928 = vadd.f32 0.0, %v4927
      %4929 = vmatmul.f32.gmra.mxu0 %v4356
      %v4930 = vpop.f32.mrf.mxu0
      %v4931 = vadd.f32 0.0, %v4930
      %4932 = vmatmul.f32.gmra.mxu0 %v4359
      %v4933 = vpop.f32.mrf.mxu0
      %v4934 = vadd.f32 0.0, %v4933
      %4935 = vmatmul.f32.gmra.mxu0 %v4362
      %v4936 = vpop.f32.mrf.mxu0
      %v4937 = vadd.f32 0.0, %v4936
      %4938 = vmatmul.f32.gmra.mxu0 %v4365
      %v4939 = vpop.f32.mrf.mxu0
      %v4940 = vadd.f32 0.0, %v4939
      %4941 = vmatmul.f32.gmra.mxu0 %v4368
      %v4942 = vpop.f32.mrf.mxu0
      %v4943 = vadd.f32 0.0, %v4942
      %4944 = vmatmul.f32.gmra.mxu0 %v4371
      %v4945 = vpop.f32.mrf.mxu0
      %v4946 = vadd.f32 0.0, %v4945
      %4947 = vmatmul.f32.gmra.mxu0 %v4374
      %v4948 = vpop.f32.mrf.mxu0
      %v4949 = vadd.f32 0.0, %v4948
      %4950 = vdwg.mxu0
      %4951 = vmatpush.msra.mxu0 0.0
      %4952 = vmatpush.msra.mxu0 0.0
      %4953 = vmatpush.msra.mxu0 0.0
      %4954 = vmatpush.msra.mxu0 0.0
      %4955 = vmatpush.msra.mxu0 %v4539
      %4956 = vmatpush.msra.mxu0 %v4537
      %4957 = vmatpush.msra.mxu0 %v4535
      %4958 = vmatpush.msra.mxu0 %v4533
      %4959 = vmatpush.msra.mxu0 %v4531
      %4960 = vmatpush.msra.mxu0 %v4529
      %4961 = vmatpush.msra.mxu0 %v4527
      %4962 = vmatpush.msra.mxu0 %v4525
      %4963 = vmatpush.msra.mxu0 %v4523
      %4964 = vmatpush.msra.mxu0 %v4521
      %4965 = vmatpush.msra.mxu0 %v4519
      %4966 = vmatpush.msra.mxu0 %v4517
      %4967 = vmatmul.f32.gmra.mxu0 %v4541
      %v4968 = vpop.f32.mrf.mxu0
      %v4969 = vadd.f32 %v4862, %v4968
      %4970 = vmatmul.f32.gmra.mxu0 %v4544
      %v4971 = vpop.f32.mrf.mxu0
      %v4972 = vadd.f32 %v4865, %v4971
      %4973 = vmatmul.f32.gmra.mxu0 %v4547
      %v4974 = vpop.f32.mrf.mxu0
      %v4975 = vadd.f32 %v4868, %v4974
      %4976 = vmatmul.f32.gmra.mxu0 %v4550
      %v4977 = vpop.f32.mrf.mxu0
      %v4978 = vadd.f32 %v4871, %v4977
      %4979 = vmatmul.f32.gmra.mxu0 %v4553
      %v4980 = vpop.f32.mrf.mxu0
      %v4981 = vadd.f32 %v4874, %v4980
      %4982 = vmatmul.f32.gmra.mxu0 %v4556
      %v4983 = vpop.f32.mrf.mxu0
      %v4984 = vadd.f32 %v4877, %v4983
      %4985 = vmatmul.f32.gmra.mxu0 %v4559
      %v4986 = vpop.f32.mrf.mxu0
      %v4987 = vadd.f32 %v4880, %v4986
      %4988 = vmatmul.f32.gmra.mxu0 %v4562
      %v4989 = vpop.f32.mrf.mxu0
      %v4990 = vadd.f32 %v4883, %v4989
      %4991 = vmatmul.f32.gmra.mxu0 %v4565
      %v4992 = vpop.f32.mrf.mxu0
      %v4993 = vadd.f32 %v4886, %v4992
      %4994 = vmatmul.f32.gmra.mxu0 %v4568
      %v4995 = vpop.f32.mrf.mxu0
      %v4996 = vadd.f32 %v4889, %v4995
      %4997 = vmatmul.f32.gmra.mxu0 %v4571
      %v4998 = vpop.f32.mrf.mxu0
      %v4999 = vadd.f32 %v4892, %v4998
      %5000 = vmatmul.f32.gmra.mxu0 %v4574
      %v5001 = vpop.f32.mrf.mxu0
      %v5002 = vadd.f32 %v4895, %v5001
      %5003 = vmatmul.f32.gmra.mxu0 %v4577
      %v5004 = vpop.f32.mrf.mxu0
      %v5005 = vadd.f32 %v4898, %v5004
      %5006 = vmatmul.f32.gmra.mxu0 %v4580
      %v5007 = vpop.f32.mrf.mxu0
      %v5008 = vadd.f32 %v4901, %v5007
      %5009 = vmatmul.f32.gmra.mxu0 %v4583
      %v5010 = vpop.f32.mrf.mxu0
      %v5011 = vadd.f32 %v4904, %v5010
      %5012 = vmatmul.f32.gmra.mxu0 %v4586
      %v5013 = vpop.f32.mrf.mxu0
      %v5014 = vadd.f32 %v4907, %v5013
      %5015 = vmatmul.f32.gmra.mxu0 %v4589
      %v5016 = vpop.f32.mrf.mxu0
      %v5017 = vadd.f32 %v4910, %v5016
      %5018 = vmatmul.f32.gmra.mxu0 %v4592
      %v5019 = vpop.f32.mrf.mxu0
      %v5020 = vadd.f32 %v4913, %v5019
      %5021 = vmatmul.f32.gmra.mxu0 %v4595
      %v5022 = vpop.f32.mrf.mxu0
      %v5023 = vadd.f32 %v4916, %v5022
      %5024 = vmatmul.f32.gmra.mxu0 %v4598
      %v5025 = vpop.f32.mrf.mxu0
      %v5026 = vadd.f32 %v4919, %v5025
      %5027 = vmatmul.f32.gmra.mxu0 %v4601
      %v5028 = vpop.f32.mrf.mxu0
      %v5029 = vadd.f32 %v4922, %v5028
      %5030 = vmatmul.f32.gmra.mxu0 %v4604
      %v5031 = vpop.f32.mrf.mxu0
      %v5032 = vadd.f32 %v4925, %v5031
      %5033 = vmatmul.f32.gmra.mxu0 %v4607
      %v5034 = vpop.f32.mrf.mxu0
      %v5035 = vadd.f32 %v4928, %v5034
      %5036 = vmatmul.f32.gmra.mxu0 %v4610
      %v5037 = vpop.f32.mrf.mxu0
      %v5038 = vadd.f32 %v4931, %v5037
      %5039 = vmatmul.f32.gmra.mxu0 %v4613
      %v5040 = vpop.f32.mrf.mxu0
      %v5041 = vadd.f32 %v4934, %v5040
      %5042 = vmatmul.f32.gmra.mxu0 %v4616
      %v5043 = vpop.f32.mrf.mxu0
      %v5044 = vadd.f32 %v4937, %v5043
      %5045 = vmatmul.f32.gmra.mxu0 %v4619
      %v5046 = vpop.f32.mrf.mxu0
      %v5047 = vadd.f32 %v4940, %v5046
      %5048 = vmatmul.f32.gmra.mxu0 %v4622
      %v5049 = vpop.f32.mrf.mxu0
      %v5050 = vadd.f32 %v4943, %v5049
      %5051 = vmatmul.f32.gmra.mxu0 %v4625
      %v5052 = vpop.f32.mrf.mxu0
      %v5053 = vadd.f32 %v4946, %v5052
      %5054 = vmatmul.f32.gmra.mxu0 %v4628
      %v5055 = vpop.f32.mrf.mxu0
      %v5056 = vadd.f32 %v4949, %v5055
      %5057 = vdwg.mxu0
      %v5058 = vadd.f32 %v4088, %v4755
      %v5059 = vadd.f32 %v4089, %v4969
      %v5060 = vadd.f32 %v4090, %v4758
      %v5061 = vadd.f32 %v4091, %v4972
      %v5062 = vadd.f32 %v4092, %v4761
      %v5063 = vadd.f32 %v4093, %v4975
      %v5064 = vadd.f32 %v4094, %v4764
      %v5065 = vadd.f32 %v4095, %v4978
      %v5066 = vadd.f32 %v4096, %v4767
      %v5067 = vadd.f32 %v4097, %v4981
      %v5068 = vadd.f32 %v4098, %v4770
      %v5069 = vadd.f32 %v4099, %v4984
      %v5070 = vadd.f32 %v4100, %v4773
      %v5071 = vadd.f32 %v4101, %v4987
      %v5072 = vadd.f32 %v4102, %v4776
      %v5073 = vadd.f32 %v4103, %v4990
      %v5074 = vadd.f32 %v4104, %v4779
      %v5075 = vadd.f32 %v4105, %v4993
      %v5076 = vadd.f32 %v4106, %v4782
      %v5077 = vadd.f32 %v4107, %v4996
      %v5078 = vadd.f32 %v4108, %v4785
      %v5079 = vadd.f32 %v4109, %v4999
      %v5080 = vadd.f32 %v4110, %v4788
      %v5081 = vadd.f32 %v4111, %v5002
      %v5082 = vadd.f32 %v4112, %v4791
      %v5083 = vadd.f32 %v4113, %v5005
      %v5084 = vadd.f32 %v4114, %v4794
      %v5085 = vadd.f32 %v4115, %v5008
      %v5086 = vadd.f32 %v4116, %v4797
      %v5087 = vadd.f32 %v4117, %v5011
      %v5088 = vadd.f32 %v4118, %v4800
      %v5089 = vadd.f32 %v4119, %v5014
      %v5090 = vadd.f32 %v4120, %v4803
      %v5091 = vadd.f32 %v4121, %v5017
      %v5092 = vadd.f32 %v4122, %v4806
      %v5093 = vadd.f32 %v4123, %v5020
      %v5094 = vadd.f32 %v4124, %v4809
      %v5095 = vadd.f32 %v4125, %v5023
      %v5096 = vadd.f32 %v4126, %v4812
      %v5097 = vadd.f32 %v4127, %v5026
      %v5098 = vadd.f32 %v4128, %v4815
      %v5099 = vadd.f32 %v4129, %v5029
      %v5100 = vadd.f32 %v4130, %v4818
      %v5101 = vadd.f32 %v4131, %v5032
      %v5102 = vadd.f32 %v4132, %v4821
      %v5103 = vadd.f32 %v4133, %v5035
      %v5104 = vadd.f32 %v4134, %v4824
      %v5105 = vadd.f32 %v4135, %v5038
      %v5106 = vadd.f32 %v4136, %v4827
      %v5107 = vadd.f32 %v4137, %v5041
      %v5108 = vadd.f32 %v4138, %v4830
      %v5109 = vadd.f32 %v4139, %v5044
      %v5110 = vadd.f32 %v4140, %v4833
      %v5111 = vadd.f32 %v4141, %v5047
      %v5112 = vadd.f32 %v4142, %v4836
      %v5113 = vadd.f32 %v4143, %v5050
      %v5114 = vadd.f32 %v4144, %v4839
      %v5115 = vadd.f32 %v4145, %v5053
      %v5116 = vadd.f32 %v4146, %v4842
      %v5117 = vadd.f32 %v4147, %v5056
      %v5118 = vld [vmem:[%s3] sm:$0xff]
      %v5119 = vld [vmem:[%s3 + $0x8] sm:$0xff]
      %v5120 = vld [vmem:[%s3 + $0x10] sm:$0xff]
      %v5121 = vld [vmem:[%s3 + $0x18] sm:$0xff]
      %v5122 = vld [vmem:[%s3 + $0x20] sm:$0xff]
      %v5123 = vld [vmem:[%s3 + $0x28] sm:$0xff]
      %v5124 = vld [vmem:[%s3 + $0x30] sm:$0xff]
      %v5125 = vld [vmem:[%s3 + $0x38] sm:$0xff]
      %v5126 = vld [vmem:[%s3 + $0x40] sm:$0xff]
      %v5127 = vld [vmem:[%s3 + $0x48] sm:$0xff]
      %v5128 = vld [vmem:[%s3 + $0x50] sm:$0xff]
      %v5129 = vld [vmem:[%s3 + $0x58] sm:$0xff]
      %v5130 = vld [vmem:[%s3 + $0x60] sm:$0xff]
      %v5131 = vld [vmem:[%s3 + $0x68] sm:$0xff]
      %v5132 = vld [vmem:[%s3 + $0x70] sm:$0xff]
      %v5133 = vld [vmem:[%s3 + $0x78] sm:$0xff]
      %v5134 = vld [vmem:[%s3 + $0x80] sm:$0xff]
      %v5135 = vld [vmem:[%s3 + $0x88] sm:$0xff]
      %v5136 = vld [vmem:[%s3 + $0x90] sm:$0xff]
      %v5137 = vld [vmem:[%s3 + $0x98] sm:$0xff]
      %v5138 = vld [vmem:[%s3 + $0xa0] sm:$0xff]
      %v5139 = vld [vmem:[%s3 + $0xa8] sm:$0xff]
      %v5140 = vld [vmem:[%s3 + $0xb0] sm:$0xff]
      %v5141 = vld [vmem:[%s3 + $0xb8] sm:$0xff]
      %v5142 = vld [vmem:[%s3 + $0xc0] sm:$0xff]
      %v5143 = vld [vmem:[%s3 + $0xc8] sm:$0xff]
      %v5144 = vld [vmem:[%s3 + $0xd0] sm:$0xff]
      %v5145 = vld [vmem:[%s3 + $0xd8] sm:$0xff]
      %v5146 = vld [vmem:[%s3 + $0xe0] sm:$0xff]
      %v5147 = vld [vmem:[%s3 + $0xe8] sm:$0xff]
      %5149 = vset.pattern.permute.xlu0 0
      %5150 = vperm.xlu0 %5149, %v5118
      %v5151 = vpop.permute.xlu0 %5150
      %5154 = vset.pattern.permute.xlu0 0
      %5155 = vperm.xlu0 %5154, %v5119
      %v5156 = vpop.permute.xlu0 %5155
      %5159 = vset.pattern.permute.xlu0 0
      %5160 = vperm.xlu0 %5159, %v5120
      %v5161 = vpop.permute.xlu0 %5160
      %5164 = vset.pattern.permute.xlu0 0
      %5165 = vperm.xlu0 %5164, %v5121
      %v5166 = vpop.permute.xlu0 %5165
      %5169 = vset.pattern.permute.xlu0 0
      %5170 = vperm.xlu0 %5169, %v5122
      %v5171 = vpop.permute.xlu0 %5170
      %5174 = vset.pattern.permute.xlu0 0
      %5175 = vperm.xlu0 %5174, %v5123
      %v5176 = vpop.permute.xlu0 %5175
      %5179 = vset.pattern.permute.xlu0 0
      %5180 = vperm.xlu0 %5179, %v5124
      %v5181 = vpop.permute.xlu0 %5180
      %5184 = vset.pattern.permute.xlu0 0
      %5185 = vperm.xlu0 %5184, %v5125
      %v5186 = vpop.permute.xlu0 %5185
      %5189 = vset.pattern.permute.xlu0 0
      %5190 = vperm.xlu0 %5189, %v5126
      %v5191 = vpop.permute.xlu0 %5190
      %5194 = vset.pattern.permute.xlu0 0
      %5195 = vperm.xlu0 %5194, %v5127
      %v5196 = vpop.permute.xlu0 %5195
      %5199 = vset.pattern.permute.xlu0 0
      %5200 = vperm.xlu0 %5199, %v5128
      %v5201 = vpop.permute.xlu0 %5200
      %5204 = vset.pattern.permute.xlu0 0
      %5205 = vperm.xlu0 %5204, %v5129
      %v5206 = vpop.permute.xlu0 %5205
      %5209 = vset.pattern.permute.xlu0 0
      %5210 = vperm.xlu0 %5209, %v5130
      %v5211 = vpop.permute.xlu0 %5210
      %5214 = vset.pattern.permute.xlu0 0
      %5215 = vperm.xlu0 %5214, %v5131
      %v5216 = vpop.permute.xlu0 %5215
      %5219 = vset.pattern.permute.xlu0 0
      %5220 = vperm.xlu0 %5219, %v5132
      %v5221 = vpop.permute.xlu0 %5220
      %5224 = vset.pattern.permute.xlu0 0
      %5225 = vperm.xlu0 %5224, %v5133
      %v5226 = vpop.permute.xlu0 %5225
      %5229 = vset.pattern.permute.xlu0 0
      %5230 = vperm.xlu0 %5229, %v5134
      %v5231 = vpop.permute.xlu0 %5230
      %5234 = vset.pattern.permute.xlu0 0
      %5235 = vperm.xlu0 %5234, %v5135
      %v5236 = vpop.permute.xlu0 %5235
      %5239 = vset.pattern.permute.xlu0 0
      %5240 = vperm.xlu0 %5239, %v5136
      %v5241 = vpop.permute.xlu0 %5240
      %5244 = vset.pattern.permute.xlu0 0
      %5245 = vperm.xlu0 %5244, %v5137
      %v5246 = vpop.permute.xlu0 %5245
      %5249 = vset.pattern.permute.xlu0 0
      %5250 = vperm.xlu0 %5249, %v5138
      %v5251 = vpop.permute.xlu0 %5250
      %5254 = vset.pattern.permute.xlu0 0
      %5255 = vperm.xlu0 %5254, %v5139
      %v5256 = vpop.permute.xlu0 %5255
      %5259 = vset.pattern.permute.xlu0 0
      %5260 = vperm.xlu0 %5259, %v5140
      %v5261 = vpop.permute.xlu0 %5260
      %5264 = vset.pattern.permute.xlu0 0
      %5265 = vperm.xlu0 %5264, %v5141
      %v5266 = vpop.permute.xlu0 %5265
      %5269 = vset.pattern.permute.xlu0 0
      %5270 = vperm.xlu0 %5269, %v5142
      %v5271 = vpop.permute.xlu0 %5270
      %5274 = vset.pattern.permute.xlu0 0
      %5275 = vperm.xlu0 %5274, %v5143
      %v5276 = vpop.permute.xlu0 %5275
      %5279 = vset.pattern.permute.xlu0 0
      %5280 = vperm.xlu0 %5279, %v5144
      %v5281 = vpop.permute.xlu0 %5280
      %5284 = vset.pattern.permute.xlu0 0
      %5285 = vperm.xlu0 %5284, %v5145
      %v5286 = vpop.permute.xlu0 %5285
      %5289 = vset.pattern.permute.xlu0 0
      %5290 = vperm.xlu0 %5289, %v5146
      %v5291 = vpop.permute.xlu0 %5290
      %5294 = vset.pattern.permute.xlu0 0
      %5295 = vperm.xlu0 %5294, %v5147
      %v5296 = vpop.permute.xlu0 %5295
      %v5298 = vadd.f32 %v5058, %v5151
      %v5299 = vadd.f32 %v5059, %v5151
      %v5300 = vadd.f32 %v5060, %v5156
      %v5301 = vadd.f32 %v5061, %v5156
      %v5302 = vadd.f32 %v5062, %v5161
      %v5303 = vadd.f32 %v5063, %v5161
      %v5304 = vadd.f32 %v5064, %v5166
      %v5305 = vadd.f32 %v5065, %v5166
      %v5306 = vadd.f32 %v5066, %v5171
      %v5307 = vadd.f32 %v5067, %v5171
      %v5308 = vadd.f32 %v5068, %v5176
      %v5309 = vadd.f32 %v5069, %v5176
      %v5310 = vadd.f32 %v5070, %v5181
      %v5311 = vadd.f32 %v5071, %v5181
      %v5312 = vadd.f32 %v5072, %v5186
      %v5313 = vadd.f32 %v5073, %v5186
      %v5314 = vadd.f32 %v5074, %v5191
      %v5315 = vadd.f32 %v5075, %v5191
      %v5316 = vadd.f32 %v5076, %v5196
      %v5317 = vadd.f32 %v5077, %v5196
      %v5318 = vadd.f32 %v5078, %v5201
      %v5319 = vadd.f32 %v5079, %v5201
      %v5320 = vadd.f32 %v5080, %v5206
      %v5321 = vadd.f32 %v5081, %v5206
      %v5322 = vadd.f32 %v5082, %v5211
      %v5323 = vadd.f32 %v5083, %v5211
      %v5324 = vadd.f32 %v5084, %v5216
      %v5325 = vadd.f32 %v5085, %v5216
      %v5326 = vadd.f32 %v5086, %v5221
      %v5327 = vadd.f32 %v5087, %v5221
      %v5328 = vadd.f32 %v5088, %v5226
      %v5329 = vadd.f32 %v5089, %v5226
      %v5330 = vadd.f32 %v5090, %v5231
      %v5331 = vadd.f32 %v5091, %v5231
      %v5332 = vadd.f32 %v5092, %v5236
      %v5333 = vadd.f32 %v5093, %v5236
      %v5334 = vadd.f32 %v5094, %v5241
      %v5335 = vadd.f32 %v5095, %v5241
      %v5336 = vadd.f32 %v5096, %v5246
      %v5337 = vadd.f32 %v5097, %v5246
      %v5338 = vadd.f32 %v5098, %v5251
      %v5339 = vadd.f32 %v5099, %v5251
      %v5340 = vadd.f32 %v5100, %v5256
      %v5341 = vadd.f32 %v5101, %v5256
      %v5342 = vadd.f32 %v5102, %v5261
      %v5343 = vadd.f32 %v5103, %v5261
      %v5344 = vadd.f32 %v5104, %v5266
      %v5345 = vadd.f32 %v5105, %v5266
      %v5346 = vadd.f32 %v5106, %v5271
      %v5347 = vadd.f32 %v5107, %v5271
      %v5348 = vadd.f32 %v5108, %v5276
      %v5349 = vadd.f32 %v5109, %v5276
      %v5350 = vadd.f32 %v5110, %v5281
      %v5351 = vadd.f32 %v5111, %v5281
      %v5352 = vadd.f32 %v5112, %v5286
      %v5353 = vadd.f32 %v5113, %v5286
      %v5354 = vadd.f32 %v5114, %v5291
      %v5355 = vadd.f32 %v5115, %v5291
      %v5356 = vadd.f32 %v5116, %v5296
      %v5357 = vadd.f32 %v5117, %v5296
      %v5358 = vmax.f32 %v5298, 0.0
      %v5359 = vmax.f32 %v5299, 0.0
      %v5360 = vmax.f32 %v5300, 0.0
      %v5361 = vmax.f32 %v5301, 0.0
      %v5362 = vmax.f32 %v5302, 0.0
      %v5363 = vmax.f32 %v5303, 0.0
      %v5364 = vmax.f32 %v5304, 0.0
      %v5365 = vmax.f32 %v5305, 0.0
      %v5366 = vmax.f32 %v5306, 0.0
      %v5367 = vmax.f32 %v5307, 0.0
      %v5368 = vmax.f32 %v5308, 0.0
      %v5369 = vmax.f32 %v5309, 0.0
      %v5370 = vmax.f32 %v5310, 0.0
      %v5371 = vmax.f32 %v5311, 0.0
      %v5372 = vmax.f32 %v5312, 0.0
      %v5373 = vmax.f32 %v5313, 0.0
      %v5374 = vmax.f32 %v5314, 0.0
      %v5375 = vmax.f32 %v5315, 0.0
      %v5376 = vmax.f32 %v5316, 0.0
      %v5377 = vmax.f32 %v5317, 0.0
      %v5378 = vmax.f32 %v5318, 0.0
      %v5379 = vmax.f32 %v5319, 0.0
      %v5380 = vmax.f32 %v5320, 0.0
      %v5381 = vmax.f32 %v5321, 0.0
      %v5382 = vmax.f32 %v5322, 0.0
      %v5383 = vmax.f32 %v5323, 0.0
      %v5384 = vmax.f32 %v5324, 0.0
      %v5385 = vmax.f32 %v5325, 0.0
      %v5386 = vmax.f32 %v5326, 0.0
      %v5387 = vmax.f32 %v5327, 0.0
      %v5388 = vmax.f32 %v5328, 0.0
      %v5389 = vmax.f32 %v5329, 0.0
      %v5390 = vmax.f32 %v5330, 0.0
      %v5391 = vmax.f32 %v5331, 0.0
      %v5392 = vmax.f32 %v5332, 0.0
      %v5393 = vmax.f32 %v5333, 0.0
      %v5394 = vmax.f32 %v5334, 0.0
      %v5395 = vmax.f32 %v5335, 0.0
      %v5396 = vmax.f32 %v5336, 0.0
      %v5397 = vmax.f32 %v5337, 0.0
      %v5398 = vmax.f32 %v5338, 0.0
      %v5399 = vmax.f32 %v5339, 0.0
      %v5400 = vmax.f32 %v5340, 0.0
      %v5401 = vmax.f32 %v5341, 0.0
      %v5402 = vmax.f32 %v5342, 0.0
      %v5403 = vmax.f32 %v5343, 0.0
      %v5404 = vmax.f32 %v5344, 0.0
      %v5405 = vmax.f32 %v5345, 0.0
      %v5406 = vmax.f32 %v5346, 0.0
      %v5407 = vmax.f32 %v5347, 0.0
      %v5408 = vmax.f32 %v5348, 0.0
      %v5409 = vmax.f32 %v5349, 0.0
      %v5410 = vmax.f32 %v5350, 0.0
      %v5411 = vmax.f32 %v5351, 0.0
      %v5412 = vmax.f32 %v5352, 0.0
      %v5413 = vmax.f32 %v5353, 0.0
      %v5414 = vmax.f32 %v5354, 0.0
      %v5415 = vmax.f32 %v5355, 0.0
      %v5416 = vmax.f32 %v5356, 0.0
      %v5417 = vmax.f32 %v5357, 0.0
      %v5418 = vmax.f32 %v5358, %v5388
      %v5419 = vmax.f32 %v5359, %v5389
      %v5420 = vmax.f32 %v5360, %v5390
      %v5421 = vmax.f32 %v5361, %v5391
      %v5422 = vmax.f32 %v5362, %v5392
      %v5423 = vmax.f32 %v5363, %v5393
      %v5424 = vmax.f32 %v5364, %v5394
      %v5425 = vmax.f32 %v5365, %v5395
      %v5426 = vmax.f32 %v5366, %v5396
      %v5427 = vmax.f32 %v5367, %v5397
      %v5428 = vmax.f32 %v5368, %v5398
      %v5429 = vmax.f32 %v5369, %v5399
      %v5430 = vmax.f32 %v5370, %v5400
      %v5431 = vmax.f32 %v5371, %v5401
      %v5432 = vmax.f32 %v5372, %v5402
      %v5433 = vmax.f32 %v5373, %v5403
      %v5434 = vmax.f32 %v5374, %v5404
      %v5435 = vmax.f32 %v5375, %v5405
      %v5436 = vmax.f32 %v5376, %v5406
      %v5437 = vmax.f32 %v5377, %v5407
      %v5438 = vmax.f32 %v5378, %v5408
      %v5439 = vmax.f32 %v5379, %v5409
      %v5440 = vmax.f32 %v5380, %v5410
      %v5441 = vmax.f32 %v5381, %v5411
      %v5442 = vmax.f32 %v5382, %v5412
      %v5443 = vmax.f32 %v5383, %v5413
      %v5444 = vmax.f32 %v5384, %v5414
      %v5445 = vmax.f32 %v5385, %v5415
      %v5446 = vmax.f32 %v5386, %v5416
      %v5447 = vmax.f32 %v5387, %v5417
      %5478 = vrot.lane.b32.xlu0 %v5418, 32
      %v5479 = vpop.permute.xlu0 %5478
      %5480 = vrot.lane.b32.xlu0 %v5419, 32
      %v5481 = vpop.permute.xlu0 %5480
      %5482 = vrot.lane.b32.xlu0 %v5420, 32
      %v5483 = vpop.permute.xlu0 %5482
      %5484 = vrot.lane.b32.xlu0 %v5421, 32
      %v5485 = vpop.permute.xlu0 %5484
      %5486 = vrot.lane.b32.xlu0 %v5422, 32
      %v5487 = vpop.permute.xlu0 %5486
      %5488 = vrot.lane.b32.xlu0 %v5423, 32
      %v5489 = vpop.permute.xlu0 %5488
      %5490 = vrot.lane.b32.xlu0 %v5424, 32
      %v5491 = vpop.permute.xlu0 %5490
      %5492 = vrot.lane.b32.xlu0 %v5425, 32
      %v5493 = vpop.permute.xlu0 %5492
      %5494 = vrot.lane.b32.xlu0 %v5426, 32
      %v5495 = vpop.permute.xlu0 %5494
      %5496 = vrot.lane.b32.xlu0 %v5427, 32
      %v5497 = vpop.permute.xlu0 %5496
      %5498 = vrot.lane.b32.xlu0 %v5428, 32
      %v5499 = vpop.permute.xlu0 %5498
      %5500 = vrot.lane.b32.xlu0 %v5429, 32
      %v5501 = vpop.permute.xlu0 %5500
      %5502 = vrot.lane.b32.xlu0 %v5430, 32
      %v5503 = vpop.permute.xlu0 %5502
      %5504 = vrot.lane.b32.xlu0 %v5431, 32
      %v5505 = vpop.permute.xlu0 %5504
      %5506 = vrot.lane.b32.xlu0 %v5432, 32
      %v5507 = vpop.permute.xlu0 %5506
      %5508 = vrot.lane.b32.xlu0 %v5433, 32
      %v5509 = vpop.permute.xlu0 %5508
      %5510 = vrot.lane.b32.xlu0 %v5434, 32
      %v5511 = vpop.permute.xlu0 %5510
      %5512 = vrot.lane.b32.xlu0 %v5435, 32
      %v5513 = vpop.permute.xlu0 %5512
      %5514 = vrot.lane.b32.xlu0 %v5436, 32
      %v5515 = vpop.permute.xlu0 %5514
      %5516 = vrot.lane.b32.xlu0 %v5437, 32
      %v5517 = vpop.permute.xlu0 %5516
      %5518 = vrot.lane.b32.xlu0 %v5438, 32
      %v5519 = vpop.permute.xlu0 %5518
      %5520 = vrot.lane.b32.xlu0 %v5439, 32
      %v5521 = vpop.permute.xlu0 %5520
      %5522 = vrot.lane.b32.xlu0 %v5440, 32
      %v5523 = vpop.permute.xlu0 %5522
      %5524 = vrot.lane.b32.xlu0 %v5441, 32
      %v5525 = vpop.permute.xlu0 %5524
      %5526 = vrot.lane.b32.xlu0 %v5442, 32
      %v5527 = vpop.permute.xlu0 %5526
      %5528 = vrot.lane.b32.xlu0 %v5443, 32
      %v5529 = vpop.permute.xlu0 %5528
      %5530 = vrot.lane.b32.xlu0 %v5444, 32
      %v5531 = vpop.permute.xlu0 %5530
      %5532 = vrot.lane.b32.xlu0 %v5445, 32
      %v5533 = vpop.permute.xlu0 %5532
      %5534 = vrot.lane.b32.xlu0 %v5446, 32
      %v5535 = vpop.permute.xlu0 %5534
      %5536 = vrot.lane.b32.xlu0 %v5447, 32
      %v5537 = vpop.permute.xlu0 %5536
      %vm5538 = vcmask 261120
      %v5539 = vsel %vm5538, %v5479, %v5481
      %v5540 = vsel %vm5538, %v5483, %v5485
      %v5541 = vsel %vm5538, %v5487, %v5489
      %v5542 = vsel %vm5538, %v5491, %v5493
      %v5543 = vsel %vm5538, %v5495, %v5497
      %v5544 = vsel %vm5538, %v5499, %v5501
      %v5545 = vsel %vm5538, %v5503, %v5505
      %v5546 = vsel %vm5538, %v5507, %v5509
      %v5547 = vsel %vm5538, %v5511, %v5513
      %v5548 = vsel %vm5538, %v5515, %v5517
      %v5549 = vsel %vm5538, %v5519, %v5521
      %v5550 = vsel %vm5538, %v5523, %v5525
      %v5551 = vsel %vm5538, %v5527, %v5529
      %v5552 = vsel %vm5538, %v5531, %v5533
      %v5553 = vsel %vm5538, %v5535, %v5537
      %v5569 = vmax.f32 %v5418, %v5539
      %v5570 = vmax.f32 %v5420, %v5540
      %v5571 = vmax.f32 %v5422, %v5541
      %v5572 = vmax.f32 %v5424, %v5542
      %v5573 = vmax.f32 %v5426, %v5543
      %v5574 = vmax.f32 %v5428, %v5544
      %v5575 = vmax.f32 %v5430, %v5545
      %v5576 = vmax.f32 %v5432, %v5546
      %v5577 = vmax.f32 %v5434, %v5547
      %v5578 = vmax.f32 %v5436, %v5548
      %v5579 = vmax.f32 %v5438, %v5549
      %v5580 = vmax.f32 %v5440, %v5550
      %v5581 = vmax.f32 %v5442, %v5551
      %v5582 = vmax.f32 %v5444, %v5552
      %v5583 = vmax.f32 %v5446, %v5553
      %v5584 = vld [vmem:[%s4] sm:$0xff]
      %v5585 = vld [vmem:[%s4 + $0x8] sm:$0xff]
      %v5586 = vld [vmem:[%s4 + $0x10] sm:$0xff]
      %v5587 = vld [vmem:[%s4 + $0x18] sm:$0xff]
      %v5588 = vld [vmem:[%s4 + $0x20] sm:$0xff]
      %v5589 = vld [vmem:[%s4 + $0x28] sm:$0xff]
      %v5590 = vld [vmem:[%s4 + $0x30] sm:$0xff]
      %v5591 = vld [vmem:[%s4 + $0x38] sm:$0xff]
      %v5592 = vld [vmem:[%s4 + $0x40] sm:$0xff]
      %v5593 = vld [vmem:[%s4 + $0x48] sm:$0xff]
      %vm5594 = vcmask 982016
      %v5596 = vsel %vm5594, %v5584, 0
      %v5599 = vsel %vm5594, %v5585, 0
      %v5602 = vsel %vm5594, %v5586, 0
      %v5605 = vsel %vm5594, %v5587, 0
      %v5608 = vsel %vm5594, %v5588, 0
      %v5611 = vsel %vm5594, %v5589, 0
      %v5614 = vsel %vm5594, %v5590, 0
      %v5617 = vsel %vm5594, %v5591, 0
      %v5620 = vsel %vm5594, %v5592, 0
      %v5623 = vsel %vm5594, %v5593, 0
      %5625 = vmatpush.msra.mxu0 0.0
      %5626 = vmatpush.msra.mxu0 %v5583
      %5627 = vmatpush.msra.mxu0 %v5582
      %5628 = vmatpush.msra.mxu0 %v5581
      %5629 = vmatpush.msra.mxu0 %v5580
      %5630 = vmatpush.msra.mxu0 %v5579
      %5631 = vmatpush.msra.mxu0 %v5578
      %5632 = vmatpush.msra.mxu0 %v5577
      %5633 = vmatpush.msra.mxu0 %v5576
      %5634 = vmatpush.msra.mxu0 %v5575
      %5635 = vmatpush.msra.mxu0 %v5574
      %5636 = vmatpush.msra.mxu0 %v5573
      %5637 = vmatpush.msra.mxu0 %v5572
      %5638 = vmatpush.msra.mxu0 %v5571
      %5639 = vmatpush.msra.mxu0 %v5570
      %5640 = vmatpush.msra.mxu0 %v5569
      %5641 = vmatmul.f32.gmra.mxu0 %v5596
      %v5642 = vpop.f32.mrf.mxu0
      %v5643 = vadd.f32 0.0, %v5642
      %5644 = vmatmul.f32.gmra.mxu0 %v5599
      %v5645 = vpop.f32.mrf.mxu0
      %v5646 = vadd.f32 0.0, %v5645
      %5647 = vmatmul.f32.gmra.mxu0 %v5602
      %v5648 = vpop.f32.mrf.mxu0
      %v5649 = vadd.f32 0.0, %v5648
      %5650 = vmatmul.f32.gmra.mxu0 %v5605
      %v5651 = vpop.f32.mrf.mxu0
      %v5652 = vadd.f32 0.0, %v5651
      %5653 = vmatmul.f32.gmra.mxu0 %v5608
      %v5654 = vpop.f32.mrf.mxu0
      %v5655 = vadd.f32 0.0, %v5654
      %5656 = vmatmul.f32.gmra.mxu0 %v5611
      %v5657 = vpop.f32.mrf.mxu0
      %v5658 = vadd.f32 0.0, %v5657
      %5659 = vmatmul.f32.gmra.mxu0 %v5614
      %v5660 = vpop.f32.mrf.mxu0
      %v5661 = vadd.f32 0.0, %v5660
      %5662 = vmatmul.f32.gmra.mxu0 %v5617
      %v5663 = vpop.f32.mrf.mxu0
      %v5664 = vadd.f32 0.0, %v5663
      %5665 = vmatmul.f32.gmra.mxu0 %v5620
      %v5666 = vpop.f32.mrf.mxu0
      %v5667 = vadd.f32 0.0, %v5666
      %5668 = vmatmul.f32.gmra.mxu0 %v5623
      %v5669 = vpop.f32.mrf.mxu0
      %v5670 = vadd.f32 0.0, %v5669
      %5671 = vdwg.mxu0
      %v5672 = vld [vmem:[%s5] sm:$0xff]
      %v5673 = vld [vmem:[%s5 + $0x8] sm:$0xff]
      %v5674 = vld [vmem:[%s5 + $0x10] sm:$0xff]
      %v5675 = vld [vmem:[%s5 + $0x18] sm:$0xff]
      %v5676 = vld [vmem:[%s5 + $0x20] sm:$0xff]
      %v5677 = vld [vmem:[%s5 + $0x28] sm:$0xff]
      %v5678 = vld [vmem:[%s5 + $0x30] sm:$0xff]
      %v5679 = vld [vmem:[%s5 + $0x38] sm:$0xff]
      %v5680 = vld [vmem:[%s5 + $0x40] sm:$0xff]
      %v5681 = vld [vmem:[%s5 + $0x48] sm:$0xff]
      %v5682 = vld [vmem:[%s5 + $0x50] sm:$0xff]
      %v5683 = vld [vmem:[%s5 + $0x58] sm:$0xff]
      %s5684 = scalar_lea.vmem %s4, 80
      %v5685 = vld [vmem:[%s5684] sm:$0xff]
      %v5686 = vld [vmem:[%s5684 + $0x8] sm:$0xff]
      %v5687 = vld [vmem:[%s5684 + $0x10] sm:$0xff]
      %v5688 = vld [vmem:[%s5684 + $0x18] sm:$0xff]
      %v5689 = vld [vmem:[%s5684 + $0x20] sm:$0xff]
      %v5690 = vld [vmem:[%s5684 + $0x28] sm:$0xff]
      %v5691 = vld [vmem:[%s5684 + $0x30] sm:$0xff]
      %v5692 = vld [vmem:[%s5684 + $0x38] sm:$0xff]
      %v5693 = vld [vmem:[%s5684 + $0x40] sm:$0xff]
      %v5694 = vld [vmem:[%s5684 + $0x48] sm:$0xff]
      %v5696 = vsel %vm5594, %v5685, 0
      %v5699 = vsel %vm5594, %v5686, 0
      %v5702 = vsel %vm5594, %v5687, 0
      %v5705 = vsel %vm5594, %v5688, 0
      %v5708 = vsel %vm5594, %v5689, 0
      %v5711 = vsel %vm5594, %v5690, 0
      %v5714 = vsel %vm5594, %v5691, 0
      %v5717 = vsel %vm5594, %v5692, 0
      %v5720 = vsel %vm5594, %v5693, 0
      %v5723 = vsel %vm5594, %v5694, 0
      %5725 = vmatpush.msra.mxu0 0.0
      %5726 = vmatpush.msra.mxu0 %v5583
      %5727 = vmatpush.msra.mxu0 %v5582
      %5728 = vmatpush.msra.mxu0 %v5581
      %5729 = vmatpush.msra.mxu0 %v5580
      %5730 = vmatpush.msra.mxu0 %v5579
      %5731 = vmatpush.msra.mxu0 %v5578
      %5732 = vmatpush.msra.mxu0 %v5577
      %5733 = vmatpush.msra.mxu0 %v5576
      %5734 = vmatpush.msra.mxu0 %v5575
      %5735 = vmatpush.msra.mxu0 %v5574
      %5736 = vmatpush.msra.mxu0 %v5573
      %5737 = vmatpush.msra.mxu0 %v5572
      %5738 = vmatpush.msra.mxu0 %v5571
      %5739 = vmatpush.msra.mxu0 %v5570
      %5740 = vmatpush.msra.mxu0 %v5569
      %5741 = vmatmul.f32.gmra.mxu0 %v5696
      %v5742 = vpop.f32.mrf.mxu0
      %v5743 = vadd.f32 0.0, %v5742
      %5744 = vmatmul.f32.gmra.mxu0 %v5699
      %v5745 = vpop.f32.mrf.mxu0
      %v5746 = vadd.f32 0.0, %v5745
      %5747 = vmatmul.f32.gmra.mxu0 %v5702
      %v5748 = vpop.f32.mrf.mxu0
      %v5749 = vadd.f32 0.0, %v5748
      %5750 = vmatmul.f32.gmra.mxu0 %v5705
      %v5751 = vpop.f32.mrf.mxu0
      %v5752 = vadd.f32 0.0, %v5751
      %5753 = vmatmul.f32.gmra.mxu0 %v5708
      %v5754 = vpop.f32.mrf.mxu0
      %v5755 = vadd.f32 0.0, %v5754
      %5756 = vmatmul.f32.gmra.mxu0 %v5711
      %v5757 = vpop.f32.mrf.mxu0
      %v5758 = vadd.f32 0.0, %v5757
      %5759 = vmatmul.f32.gmra.mxu0 %v5714
      %v5760 = vpop.f32.mrf.mxu0
      %v5761 = vadd.f32 0.0, %v5760
      %5762 = vmatmul.f32.gmra.mxu0 %v5717
      %v5763 = vpop.f32.mrf.mxu0
      %v5764 = vadd.f32 0.0, %v5763
      %5765 = vmatmul.f32.gmra.mxu0 %v5720
      %v5766 = vpop.f32.mrf.mxu0
      %v5767 = vadd.f32 0.0, %v5766
      %5768 = vmatmul.f32.gmra.mxu0 %v5723
      %v5769 = vpop.f32.mrf.mxu0
      %v5770 = vadd.f32 0.0, %v5769
      %5771 = vdwg.mxu0
      %s5772 = scalar_lea.vmem %s5, 96
      %v5773 = vld [vmem:[%s5772] sm:$0xff]
      %v5774 = vld [vmem:[%s5772 + $0x8] sm:$0xff]
      %v5775 = vld [vmem:[%s5772 + $0x10] sm:$0xff]
      %v5776 = vld [vmem:[%s5772 + $0x18] sm:$0xff]
      %v5777 = vld [vmem:[%s5772 + $0x20] sm:$0xff]
      %v5778 = vld [vmem:[%s5772 + $0x28] sm:$0xff]
      %v5779 = vld [vmem:[%s5772 + $0x30] sm:$0xff]
      %v5780 = vld [vmem:[%s5772 + $0x38] sm:$0xff]
      %v5781 = vld [vmem:[%s5772 + $0x40] sm:$0xff]
      %v5782 = vld [vmem:[%s5772 + $0x48] sm:$0xff]
      %v5783 = vld [vmem:[%s5772 + $0x50] sm:$0xff]
      %v5784 = vld [vmem:[%s5772 + $0x58] sm:$0xff]
      %v5786 = vsel %vm1171, %v5743, 0
      %v5789 = vsel %vm1171, %v5746, 0
      %v5792 = vsel %vm1171, %v5749, 0
      %v5795 = vsel %vm1171, %v5752, 0
      %v5798 = vsel %vm1171, %v5755, 0
      %v5801 = vsel %vm1171, %v5758, 0
      %v5804 = vsel %vm1171, %v5761, 0
      %v5807 = vsel %vm1171, %v5764, 0
      %v5810 = vsel %vm1171, %v5767, 0
      %v5813 = vsel %vm1171, %v5770, 0
      %5815 = vmatpush.msra.mxu0 0.0
      %5816 = vmatpush.msra.mxu0 0.0
      %5817 = vmatpush.msra.mxu0 0.0
      %5818 = vmatpush.msra.mxu0 0.0
      %5819 = vmatpush.msra.mxu0 %v5784
      %5820 = vmatpush.msra.mxu0 %v5783
      %5821 = vmatpush.msra.mxu0 %v5782
      %5822 = vmatpush.msra.mxu0 %v5781
      %5823 = vmatpush.msra.mxu0 %v5780
      %5824 = vmatpush.msra.mxu0 %v5779
      %5825 = vmatpush.msra.mxu0 %v5778
      %5826 = vmatpush.msra.mxu0 %v5777
      %5827 = vmatpush.msra.mxu0 %v5776
      %5828 = vmatpush.msra.mxu0 %v5775
      %5829 = vmatpush.msra.mxu0 %v5774
      %5830 = vmatpush.msra.mxu0 %v5773
      %5831 = vmatmul.f32.gmra.mxu0 %v5786
      %v5832 = vpop.f32.mrf.mxu0
      %v5833 = vadd.f32 0.0, %v5832
      %5834 = vmatmul.f32.gmra.mxu0 %v5789
      %v5835 = vpop.f32.mrf.mxu0
      %v5836 = vadd.f32 0.0, %v5835
      %5837 = vmatmul.f32.gmra.mxu0 %v5792
      %v5838 = vpop.f32.mrf.mxu0
      %v5839 = vadd.f32 0.0, %v5838
      %5840 = vmatmul.f32.gmra.mxu0 %v5795
      %v5841 = vpop.f32.mrf.mxu0
      %v5842 = vadd.f32 0.0, %v5841
      %5843 = vmatmul.f32.gmra.mxu0 %v5798
      %v5844 = vpop.f32.mrf.mxu0
      %v5845 = vadd.f32 0.0, %v5844
      %5846 = vmatmul.f32.gmra.mxu0 %v5801
      %v5847 = vpop.f32.mrf.mxu0
      %v5848 = vadd.f32 0.0, %v5847
      %5849 = vmatmul.f32.gmra.mxu0 %v5804
      %v5850 = vpop.f32.mrf.mxu0
      %v5851 = vadd.f32 0.0, %v5850
      %5852 = vmatmul.f32.gmra.mxu0 %v5807
      %v5853 = vpop.f32.mrf.mxu0
      %v5854 = vadd.f32 0.0, %v5853
      %5855 = vmatmul.f32.gmra.mxu0 %v5810
      %v5856 = vpop.f32.mrf.mxu0
      %v5857 = vadd.f32 0.0, %v5856
      %5858 = vmatmul.f32.gmra.mxu0 %v5813
      %v5859 = vpop.f32.mrf.mxu0
      %v5860 = vadd.f32 0.0, %v5859
      %5861 = vdwg.mxu0
      %v5863 = vsel %vm1171, %v5643, 0
      %v5866 = vsel %vm1171, %v5646, 0
      %v5869 = vsel %vm1171, %v5649, 0
      %v5872 = vsel %vm1171, %v5652, 0
      %v5875 = vsel %vm1171, %v5655, 0
      %v5878 = vsel %vm1171, %v5658, 0
      %v5881 = vsel %vm1171, %v5661, 0
      %v5884 = vsel %vm1171, %v5664, 0
      %v5887 = vsel %vm1171, %v5667, 0
      %v5890 = vsel %vm1171, %v5670, 0
      %5892 = vmatpush.msra.mxu0 0.0
      %5893 = vmatpush.msra.mxu0 0.0
      %5894 = vmatpush.msra.mxu0 0.0
      %5895 = vmatpush.msra.mxu0 0.0
      %5896 = vmatpush.msra.mxu0 %v5683
      %5897 = vmatpush.msra.mxu0 %v5682
      %5898 = vmatpush.msra.mxu0 %v5681
      %5899 = vmatpush.msra.mxu0 %v5680
      %5900 = vmatpush.msra.mxu0 %v5679
      %5901 = vmatpush.msra.mxu0 %v5678
      %5902 = vmatpush.msra.mxu0 %v5677
      %5903 = vmatpush.msra.mxu0 %v5676
      %5904 = vmatpush.msra.mxu0 %v5675
      %5905 = vmatpush.msra.mxu0 %v5674
      %5906 = vmatpush.msra.mxu0 %v5673
      %5907 = vmatpush.msra.mxu0 %v5672
      %5908 = vmatmul.f32.gmra.mxu0 %v5863
      %v5909 = vpop.f32.mrf.mxu0
      %v5910 = vadd.f32 %v5833, %v5909
      %5911 = vmatmul.f32.gmra.mxu0 %v5866
      %v5912 = vpop.f32.mrf.mxu0
      %v5913 = vadd.f32 %v5836, %v5912
      %5914 = vmatmul.f32.gmra.mxu0 %v5869
      %v5915 = vpop.f32.mrf.mxu0
      %v5916 = vadd.f32 %v5839, %v5915
      %5917 = vmatmul.f32.gmra.mxu0 %v5872
      %v5918 = vpop.f32.mrf.mxu0
      %v5919 = vadd.f32 %v5842, %v5918
      %5920 = vmatmul.f32.gmra.mxu0 %v5875
      %v5921 = vpop.f32.mrf.mxu0
      %v5922 = vadd.f32 %v5845, %v5921
      %5923 = vmatmul.f32.gmra.mxu0 %v5878
      %v5924 = vpop.f32.mrf.mxu0
      %v5925 = vadd.f32 %v5848, %v5924
      %5926 = vmatmul.f32.gmra.mxu0 %v5881
      %v5927 = vpop.f32.mrf.mxu0
      %v5928 = vadd.f32 %v5851, %v5927
      %5929 = vmatmul.f32.gmra.mxu0 %v5884
      %v5930 = vpop.f32.mrf.mxu0
      %v5931 = vadd.f32 %v5854, %v5930
      %5932 = vmatmul.f32.gmra.mxu0 %v5887
      %v5933 = vpop.f32.mrf.mxu0
      %v5934 = vadd.f32 %v5857, %v5933
      %5935 = vmatmul.f32.gmra.mxu0 %v5890
      %v5936 = vpop.f32.mrf.mxu0
      %v5937 = vadd.f32 %v5860, %v5936
      %5938 = vdwg.mxu0
      %s5939 = scalar_lea.vmem %s4, 160
      %v5940 = vld [vmem:[%s5939] sm:$0xff]
      %v5941 = vld [vmem:[%s5939 + $0x8] sm:$0xff]
      %v5942 = vld [vmem:[%s5939 + $0x10] sm:$0xff]
      %v5943 = vld [vmem:[%s5939 + $0x18] sm:$0xff]
      %v5944 = vld [vmem:[%s5939 + $0x20] sm:$0xff]
      %v5945 = vld [vmem:[%s5939 + $0x28] sm:$0xff]
      %v5946 = vld [vmem:[%s5939 + $0x30] sm:$0xff]
      %v5947 = vld [vmem:[%s5939 + $0x38] sm:$0xff]
      %v5948 = vld [vmem:[%s5939 + $0x40] sm:$0xff]
      %v5949 = vld [vmem:[%s5939 + $0x48] sm:$0xff]
      %v5951 = vsel %vm5594, %v5940, 0
      %v5954 = vsel %vm5594, %v5941, 0
      %v5957 = vsel %vm5594, %v5942, 0
      %v5960 = vsel %vm5594, %v5943, 0
      %v5963 = vsel %vm5594, %v5944, 0
      %v5966 = vsel %vm5594, %v5945, 0
      %v5969 = vsel %vm5594, %v5946, 0
      %v5972 = vsel %vm5594, %v5947, 0
      %v5975 = vsel %vm5594, %v5948, 0
      %v5978 = vsel %vm5594, %v5949, 0
      %5980 = vmatpush.msra.mxu0 0.0
      %5981 = vmatpush.msra.mxu0 %v5583
      %5982 = vmatpush.msra.mxu0 %v5582
      %5983 = vmatpush.msra.mxu0 %v5581
      %5984 = vmatpush.msra.mxu0 %v5580
      %5985 = vmatpush.msra.mxu0 %v5579
      %5986 = vmatpush.msra.mxu0 %v5578
      %5987 = vmatpush.msra.mxu0 %v5577
      %5988 = vmatpush.msra.mxu0 %v5576
      %5989 = vmatpush.msra.mxu0 %v5575
      %5990 = vmatpush.msra.mxu0 %v5574
      %5991 = vmatpush.msra.mxu0 %v5573
      %5992 = vmatpush.msra.mxu0 %v5572
      %5993 = vmatpush.msra.mxu0 %v5571
      %5994 = vmatpush.msra.mxu0 %v5570
      %5995 = vmatpush.msra.mxu0 %v5569
      %5996 = vmatmul.f32.gmra.mxu0 %v5951
      %v5997 = vpop.f32.mrf.mxu0
      %v5998 = vadd.f32 0.0, %v5997
      %5999 = vmatmul.f32.gmra.mxu0 %v5954
      %v6000 = vpop.f32.mrf.mxu0
      %v6001 = vadd.f32 0.0, %v6000
      %6002 = vmatmul.f32.gmra.mxu0 %v5957
      %v6003 = vpop.f32.mrf.mxu0
      %v6004 = vadd.f32 0.0, %v6003
      %6005 = vmatmul.f32.gmra.mxu0 %v5960
      %v6006 = vpop.f32.mrf.mxu0
      %v6007 = vadd.f32 0.0, %v6006
      %6008 = vmatmul.f32.gmra.mxu0 %v5963
      %v6009 = vpop.f32.mrf.mxu0
      %v6010 = vadd.f32 0.0, %v6009
      %6011 = vmatmul.f32.gmra.mxu0 %v5966
      %v6012 = vpop.f32.mrf.mxu0
      %v6013 = vadd.f32 0.0, %v6012
      %6014 = vmatmul.f32.gmra.mxu0 %v5969
      %v6015 = vpop.f32.mrf.mxu0
      %v6016 = vadd.f32 0.0, %v6015
      %6017 = vmatmul.f32.gmra.mxu0 %v5972
      %v6018 = vpop.f32.mrf.mxu0
      %v6019 = vadd.f32 0.0, %v6018
      %6020 = vmatmul.f32.gmra.mxu0 %v5975
      %v6021 = vpop.f32.mrf.mxu0
      %v6022 = vadd.f32 0.0, %v6021
      %6023 = vmatmul.f32.gmra.mxu0 %v5978
      %v6024 = vpop.f32.mrf.mxu0
      %v6025 = vadd.f32 0.0, %v6024
      %6026 = vdwg.mxu0
      %s6027 = scalar_lea.vmem %s5, 192
      %v6028 = vld [vmem:[%s6027] sm:$0xff]
      %v6029 = vld [vmem:[%s6027 + $0x8] sm:$0xff]
      %v6030 = vld [vmem:[%s6027 + $0x10] sm:$0xff]
      %v6031 = vld [vmem:[%s6027 + $0x18] sm:$0xff]
      %v6032 = vld [vmem:[%s6027 + $0x20] sm:$0xff]
      %v6033 = vld [vmem:[%s6027 + $0x28] sm:$0xff]
      %v6034 = vld [vmem:[%s6027 + $0x30] sm:$0xff]
      %v6035 = vld [vmem:[%s6027 + $0x38] sm:$0xff]
      %v6036 = vld [vmem:[%s6027 + $0x40] sm:$0xff]
      %v6037 = vld [vmem:[%s6027 + $0x48] sm:$0xff]
      %v6038 = vld [vmem:[%s6027 + $0x50] sm:$0xff]
      %v6039 = vld [vmem:[%s6027 + $0x58] sm:$0xff]
      %v6041 = vsel %vm1171, %v5998, 0
      %v6044 = vsel %vm1171, %v6001, 0
      %v6047 = vsel %vm1171, %v6004, 0
      %v6050 = vsel %vm1171, %v6007, 0
      %v6053 = vsel %vm1171, %v6010, 0
      %v6056 = vsel %vm1171, %v6013, 0
      %v6059 = vsel %vm1171, %v6016, 0
      %v6062 = vsel %vm1171, %v6019, 0
      %v6065 = vsel %vm1171, %v6022, 0
      %v6068 = vsel %vm1171, %v6025, 0
      %6070 = vmatpush.msra.mxu0 0.0
      %6071 = vmatpush.msra.mxu0 0.0
      %6072 = vmatpush.msra.mxu0 0.0
      %6073 = vmatpush.msra.mxu0 0.0
      %6074 = vmatpush.msra.mxu0 %v6039
      %6075 = vmatpush.msra.mxu0 %v6038
      %6076 = vmatpush.msra.mxu0 %v6037
      %6077 = vmatpush.msra.mxu0 %v6036
      %6078 = vmatpush.msra.mxu0 %v6035
      %6079 = vmatpush.msra.mxu0 %v6034
      %6080 = vmatpush.msra.mxu0 %v6033
      %6081 = vmatpush.msra.mxu0 %v6032
      %6082 = vmatpush.msra.mxu0 %v6031
      %6083 = vmatpush.msra.mxu0 %v6030
      %6084 = vmatpush.msra.mxu0 %v6029
      %6085 = vmatpush.msra.mxu0 %v6028
      %6086 = vmatmul.f32.gmra.mxu0 %v6041
      %v6087 = vpop.f32.mrf.mxu0
      %v6088 = vadd.f32 0.0, %v6087
      %6089 = vmatmul.f32.gmra.mxu0 %v6044
      %v6090 = vpop.f32.mrf.mxu0
      %v6091 = vadd.f32 0.0, %v6090
      %6092 = vmatmul.f32.gmra.mxu0 %v6047
      %v6093 = vpop.f32.mrf.mxu0
      %v6094 = vadd.f32 0.0, %v6093
      %6095 = vmatmul.f32.gmra.mxu0 %v6050
      %v6096 = vpop.f32.mrf.mxu0
      %v6097 = vadd.f32 0.0, %v6096
      %6098 = vmatmul.f32.gmra.mxu0 %v6053
      %v6099 = vpop.f32.mrf.mxu0
      %v6100 = vadd.f32 0.0, %v6099
      %6101 = vmatmul.f32.gmra.mxu0 %v6056
      %v6102 = vpop.f32.mrf.mxu0
      %v6103 = vadd.f32 0.0, %v6102
      %6104 = vmatmul.f32.gmra.mxu0 %v6059
      %v6105 = vpop.f32.mrf.mxu0
      %v6106 = vadd.f32 0.0, %v6105
      %6107 = vmatmul.f32.gmra.mxu0 %v6062
      %v6108 = vpop.f32.mrf.mxu0
      %v6109 = vadd.f32 0.0, %v6108
      %6110 = vmatmul.f32.gmra.mxu0 %v6065
      %v6111 = vpop.f32.mrf.mxu0
      %v6112 = vadd.f32 0.0, %v6111
      %6113 = vmatmul.f32.gmra.mxu0 %v6068
      %v6114 = vpop.f32.mrf.mxu0
      %v6115 = vadd.f32 0.0, %v6114
      %6116 = vdwg.mxu0
      %v6117 = vadd.f32 %v5910, %v6088
      %v6118 = vadd.f32 %v5913, %v6091
      %v6119 = vadd.f32 %v5916, %v6094
      %v6120 = vadd.f32 %v5919, %v6097
      %v6121 = vadd.f32 %v5922, %v6100
      %v6122 = vadd.f32 %v5925, %v6103
      %v6123 = vadd.f32 %v5928, %v6106
      %v6124 = vadd.f32 %v5931, %v6109
      %v6125 = vadd.f32 %v5934, %v6112
      %v6126 = vadd.f32 %v5937, %v6115
      %s6127 = scalar_lea.vmem %s4, 240
      %v6128 = vld [vmem:[%s6127] sm:$0xff]
      %v6129 = vld [vmem:[%s6127 + $0x8] sm:$0xff]
      %v6130 = vld [vmem:[%s6127 + $0x10] sm:$0xff]
      %v6131 = vld [vmem:[%s6127 + $0x18] sm:$0xff]
      %v6132 = vld [vmem:[%s6127 + $0x20] sm:$0xff]
      %v6133 = vld [vmem:[%s6127 + $0x28] sm:$0xff]
      %v6134 = vld [vmem:[%s6127 + $0x30] sm:$0xff]
      %v6135 = vld [vmem:[%s6127 + $0x38] sm:$0xff]
      %v6136 = vld [vmem:[%s6127 + $0x40] sm:$0xff]
      %v6137 = vld [vmem:[%s6127 + $0x48] sm:$0xff]
      %v6139 = vsel %vm5594, %v6128, 0
      %v6142 = vsel %vm5594, %v6129, 0
      %v6145 = vsel %vm5594, %v6130, 0
      %v6148 = vsel %vm5594, %v6131, 0
      %v6151 = vsel %vm5594, %v6132, 0
      %v6154 = vsel %vm5594, %v6133, 0
      %v6157 = vsel %vm5594, %v6134, 0
      %v6160 = vsel %vm5594, %v6135, 0
      %v6163 = vsel %vm5594, %v6136, 0
      %v6166 = vsel %vm5594, %v6137, 0
      %6168 = vmatpush.msra.mxu0 0.0
      %6169 = vmatpush.msra.mxu0 %v5583
      %6170 = vmatpush.msra.mxu0 %v5582
      %6171 = vmatpush.msra.mxu0 %v5581
      %6172 = vmatpush.msra.mxu0 %v5580
      %6173 = vmatpush.msra.mxu0 %v5579
      %6174 = vmatpush.msra.mxu0 %v5578
      %6175 = vmatpush.msra.mxu0 %v5577
      %6176 = vmatpush.msra.mxu0 %v5576
      %6177 = vmatpush.msra.mxu0 %v5575
      %6178 = vmatpush.msra.mxu0 %v5574
      %6179 = vmatpush.msra.mxu0 %v5573
      %6180 = vmatpush.msra.mxu0 %v5572
      %6181 = vmatpush.msra.mxu0 %v5571
      %6182 = vmatpush.msra.mxu0 %v5570
      %6183 = vmatpush.msra.mxu0 %v5569
      %6184 = vmatmul.f32.gmra.mxu0 %v6139
      %v6185 = vpop.f32.mrf.mxu0
      %v6186 = vadd.f32 0.0, %v6185
      %6187 = vmatmul.f32.gmra.mxu0 %v6142
      %v6188 = vpop.f32.mrf.mxu0
      %v6189 = vadd.f32 0.0, %v6188
      %6190 = vmatmul.f32.gmra.mxu0 %v6145
      %v6191 = vpop.f32.mrf.mxu0
      %v6192 = vadd.f32 0.0, %v6191
      %6193 = vmatmul.f32.gmra.mxu0 %v6148
      %v6194 = vpop.f32.mrf.mxu0
      %v6195 = vadd.f32 0.0, %v6194
      %6196 = vmatmul.f32.gmra.mxu0 %v6151
      %v6197 = vpop.f32.mrf.mxu0
      %v6198 = vadd.f32 0.0, %v6197
      %6199 = vmatmul.f32.gmra.mxu0 %v6154
      %v6200 = vpop.f32.mrf.mxu0
      %v6201 = vadd.f32 0.0, %v6200
      %6202 = vmatmul.f32.gmra.mxu0 %v6157
      %v6203 = vpop.f32.mrf.mxu0
      %v6204 = vadd.f32 0.0, %v6203
      %6205 = vmatmul.f32.gmra.mxu0 %v6160
      %v6206 = vpop.f32.mrf.mxu0
      %v6207 = vadd.f32 0.0, %v6206
      %6208 = vmatmul.f32.gmra.mxu0 %v6163
      %v6209 = vpop.f32.mrf.mxu0
      %v6210 = vadd.f32 0.0, %v6209
      %6211 = vmatmul.f32.gmra.mxu0 %v6166
      %v6212 = vpop.f32.mrf.mxu0
      %v6213 = vadd.f32 0.0, %v6212
      %6214 = vdwg.mxu0
      %s6215 = scalar_lea.vmem %s5, 288
      %v6216 = vld [vmem:[%s6215] sm:$0xff]
      %v6217 = vld [vmem:[%s6215 + $0x8] sm:$0xff]
      %v6218 = vld [vmem:[%s6215 + $0x10] sm:$0xff]
      %v6219 = vld [vmem:[%s6215 + $0x18] sm:$0xff]
      %v6220 = vld [vmem:[%s6215 + $0x20] sm:$0xff]
      %v6221 = vld [vmem:[%s6215 + $0x28] sm:$0xff]
      %v6222 = vld [vmem:[%s6215 + $0x30] sm:$0xff]
      %v6223 = vld [vmem:[%s6215 + $0x38] sm:$0xff]
      %v6224 = vld [vmem:[%s6215 + $0x40] sm:$0xff]
      %v6225 = vld [vmem:[%s6215 + $0x48] sm:$0xff]
      %v6226 = vld [vmem:[%s6215 + $0x50] sm:$0xff]
      %v6227 = vld [vmem:[%s6215 + $0x58] sm:$0xff]
      %v6229 = vsel %vm1171, %v6186, 0
      %v6232 = vsel %vm1171, %v6189, 0
      %v6235 = vsel %vm1171, %v6192, 0
      %v6238 = vsel %vm1171, %v6195, 0
      %v6241 = vsel %vm1171, %v6198, 0
      %v6244 = vsel %vm1171, %v6201, 0
      %v6247 = vsel %vm1171, %v6204, 0
      %v6250 = vsel %vm1171, %v6207, 0
      %v6253 = vsel %vm1171, %v6210, 0
      %v6256 = vsel %vm1171, %v6213, 0
      %6258 = vmatpush.msra.mxu0 0.0
      %6259 = vmatpush.msra.mxu0 0.0
      %6260 = vmatpush.msra.mxu0 0.0
      %6261 = vmatpush.msra.mxu0 0.0
      %6262 = vmatpush.msra.mxu0 %v6227
      %6263 = vmatpush.msra.mxu0 %v6226
      %6264 = vmatpush.msra.mxu0 %v6225
      %6265 = vmatpush.msra.mxu0 %v6224
      %6266 = vmatpush.msra.mxu0 %v6223
      %6267 = vmatpush.msra.mxu0 %v6222
      %6268 = vmatpush.msra.mxu0 %v6221
      %6269 = vmatpush.msra.mxu0 %v6220
      %6270 = vmatpush.msra.mxu0 %v6219
      %6271 = vmatpush.msra.mxu0 %v6218
      %6272 = vmatpush.msra.mxu0 %v6217
      %6273 = vmatpush.msra.mxu0 %v6216
      %6274 = vmatmul.f32.gmra.mxu0 %v6229
      %v6275 = vpop.f32.mrf.mxu0
      %v6276 = vadd.f32 0.0, %v6275
      %6277 = vmatmul.f32.gmra.mxu0 %v6232
      %v6278 = vpop.f32.mrf.mxu0
      %v6279 = vadd.f32 0.0, %v6278
      %6280 = vmatmul.f32.gmra.mxu0 %v6235
      %v6281 = vpop.f32.mrf.mxu0
      %v6282 = vadd.f32 0.0, %v6281
      %6283 = vmatmul.f32.gmra.mxu0 %v6238
      %v6284 = vpop.f32.mrf.mxu0
      %v6285 = vadd.f32 0.0, %v6284
      %6286 = vmatmul.f32.gmra.mxu0 %v6241
      %v6287 = vpop.f32.mrf.mxu0
      %v6288 = vadd.f32 0.0, %v6287
      %6289 = vmatmul.f32.gmra.mxu0 %v6244
      %v6290 = vpop.f32.mrf.mxu0
      %v6291 = vadd.f32 0.0, %v6290
      %6292 = vmatmul.f32.gmra.mxu0 %v6247
      %v6293 = vpop.f32.mrf.mxu0
      %v6294 = vadd.f32 0.0, %v6293
      %6295 = vmatmul.f32.gmra.mxu0 %v6250
      %v6296 = vpop.f32.mrf.mxu0
      %v6297 = vadd.f32 0.0, %v6296
      %6298 = vmatmul.f32.gmra.mxu0 %v6253
      %v6299 = vpop.f32.mrf.mxu0
      %v6300 = vadd.f32 0.0, %v6299
      %6301 = vmatmul.f32.gmra.mxu0 %v6256
      %v6302 = vpop.f32.mrf.mxu0
      %v6303 = vadd.f32 0.0, %v6302
      %6304 = vdwg.mxu0
      %v6305 = vadd.f32 %v6117, %v6276
      %v6306 = vadd.f32 %v6118, %v6279
      %v6307 = vadd.f32 %v6119, %v6282
      %v6308 = vadd.f32 %v6120, %v6285
      %v6309 = vadd.f32 %v6121, %v6288
      %v6310 = vadd.f32 %v6122, %v6291
      %v6311 = vadd.f32 %v6123, %v6294
      %v6312 = vadd.f32 %v6124, %v6297
      %v6313 = vadd.f32 %v6125, %v6300
      %v6314 = vadd.f32 %v6126, %v6303
      %s6315 = scalar_lea.vmem %s4, 320
      %v6316 = vld [vmem:[%s6315] sm:$0xff]
      %v6317 = vld [vmem:[%s6315 + $0x8] sm:$0xff]
      %v6318 = vld [vmem:[%s6315 + $0x10] sm:$0xff]
      %v6319 = vld [vmem:[%s6315 + $0x18] sm:$0xff]
      %v6320 = vld [vmem:[%s6315 + $0x20] sm:$0xff]
      %v6321 = vld [vmem:[%s6315 + $0x28] sm:$0xff]
      %v6322 = vld [vmem:[%s6315 + $0x30] sm:$0xff]
      %v6323 = vld [vmem:[%s6315 + $0x38] sm:$0xff]
      %v6324 = vld [vmem:[%s6315 + $0x40] sm:$0xff]
      %v6325 = vld [vmem:[%s6315 + $0x48] sm:$0xff]
      %v6327 = vsel %vm5594, %v6316, 0
      %v6330 = vsel %vm5594, %v6317, 0
      %v6333 = vsel %vm5594, %v6318, 0
      %v6336 = vsel %vm5594, %v6319, 0
      %v6339 = vsel %vm5594, %v6320, 0
      %v6342 = vsel %vm5594, %v6321, 0
      %v6345 = vsel %vm5594, %v6322, 0
      %v6348 = vsel %vm5594, %v6323, 0
      %v6351 = vsel %vm5594, %v6324, 0
      %v6354 = vsel %vm5594, %v6325, 0
      %6356 = vmatpush.msra.mxu0 0.0
      %6357 = vmatpush.msra.mxu0 %v5583
      %6358 = vmatpush.msra.mxu0 %v5582
      %6359 = vmatpush.msra.mxu0 %v5581
      %6360 = vmatpush.msra.mxu0 %v5580
      %6361 = vmatpush.msra.mxu0 %v5579
      %6362 = vmatpush.msra.mxu0 %v5578
      %6363 = vmatpush.msra.mxu0 %v5577
      %6364 = vmatpush.msra.mxu0 %v5576
      %6365 = vmatpush.msra.mxu0 %v5575
      %6366 = vmatpush.msra.mxu0 %v5574
      %6367 = vmatpush.msra.mxu0 %v5573
      %6368 = vmatpush.msra.mxu0 %v5572
      %6369 = vmatpush.msra.mxu0 %v5571
      %6370 = vmatpush.msra.mxu0 %v5570
      %6371 = vmatpush.msra.mxu0 %v5569
      %6372 = vmatmul.f32.gmra.mxu0 %v6327
      %v6373 = vpop.f32.mrf.mxu0
      %v6374 = vadd.f32 0.0, %v6373
      %6375 = vmatmul.f32.gmra.mxu0 %v6330
      %v6376 = vpop.f32.mrf.mxu0
      %v6377 = vadd.f32 0.0, %v6376
      %6378 = vmatmul.f32.gmra.mxu0 %v6333
      %v6379 = vpop.f32.mrf.mxu0
      %v6380 = vadd.f32 0.0, %v6379
      %6381 = vmatmul.f32.gmra.mxu0 %v6336
      %v6382 = vpop.f32.mrf.mxu0
      %v6383 = vadd.f32 0.0, %v6382
      %6384 = vmatmul.f32.gmra.mxu0 %v6339
      %v6385 = vpop.f32.mrf.mxu0
      %v6386 = vadd.f32 0.0, %v6385
      %6387 = vmatmul.f32.gmra.mxu0 %v6342
      %v6388 = vpop.f32.mrf.mxu0
      %v6389 = vadd.f32 0.0, %v6388
      %6390 = vmatmul.f32.gmra.mxu0 %v6345
      %v6391 = vpop.f32.mrf.mxu0
      %v6392 = vadd.f32 0.0, %v6391
      %6393 = vmatmul.f32.gmra.mxu0 %v6348
      %v6394 = vpop.f32.mrf.mxu0
      %v6395 = vadd.f32 0.0, %v6394
      %6396 = vmatmul.f32.gmra.mxu0 %v6351
      %v6397 = vpop.f32.mrf.mxu0
      %v6398 = vadd.f32 0.0, %v6397
      %6399 = vmatmul.f32.gmra.mxu0 %v6354
      %v6400 = vpop.f32.mrf.mxu0
      %v6401 = vadd.f32 0.0, %v6400
      %6402 = vdwg.mxu0
      %s6403 = scalar_lea.vmem %s5, 384
      %v6404 = vld [vmem:[%s6403] sm:$0xff]
      %v6405 = vld [vmem:[%s6403 + $0x8] sm:$0xff]
      %v6406 = vld [vmem:[%s6403 + $0x10] sm:$0xff]
      %v6407 = vld [vmem:[%s6403 + $0x18] sm:$0xff]
      %v6408 = vld [vmem:[%s6403 + $0x20] sm:$0xff]
      %v6409 = vld [vmem:[%s6403 + $0x28] sm:$0xff]
      %v6410 = vld [vmem:[%s6403 + $0x30] sm:$0xff]
      %v6411 = vld [vmem:[%s6403 + $0x38] sm:$0xff]
      %v6412 = vld [vmem:[%s6403 + $0x40] sm:$0xff]
      %v6413 = vld [vmem:[%s6403 + $0x48] sm:$0xff]
      %v6414 = vld [vmem:[%s6403 + $0x50] sm:$0xff]
      %v6415 = vld [vmem:[%s6403 + $0x58] sm:$0xff]
      %v6417 = vsel %vm1171, %v6374, 0
      %v6420 = vsel %vm1171, %v6377, 0
      %v6423 = vsel %vm1171, %v6380, 0
      %v6426 = vsel %vm1171, %v6383, 0
      %v6429 = vsel %vm1171, %v6386, 0
      %v6432 = vsel %vm1171, %v6389, 0
      %v6435 = vsel %vm1171, %v6392, 0
      %v6438 = vsel %vm1171, %v6395, 0
      %v6441 = vsel %vm1171, %v6398, 0
      %v6444 = vsel %vm1171, %v6401, 0
      %6446 = vmatpush.msra.mxu0 0.0
      %6447 = vmatpush.msra.mxu0 0.0
      %6448 = vmatpush.msra.mxu0 0.0
      %6449 = vmatpush.msra.mxu0 0.0
      %6450 = vmatpush.msra.mxu0 %v6415
      %6451 = vmatpush.msra.mxu0 %v6414
      %6452 = vmatpush.msra.mxu0 %v6413
      %6453 = vmatpush.msra.mxu0 %v6412
      %6454 = vmatpush.msra.mxu0 %v6411
      %6455 = vmatpush.msra.mxu0 %v6410
      %6456 = vmatpush.msra.mxu0 %v6409
      %6457 = vmatpush.msra.mxu0 %v6408
      %6458 = vmatpush.msra.mxu0 %v6407
      %6459 = vmatpush.msra.mxu0 %v6406
      %6460 = vmatpush.msra.mxu0 %v6405
      %6461 = vmatpush.msra.mxu0 %v6404
      %6462 = vmatmul.f32.gmra.mxu0 %v6417
      %v6463 = vpop.f32.mrf.mxu0
      %v6464 = vadd.f32 0.0, %v6463
      %6465 = vmatmul.f32.gmra.mxu0 %v6420
      %v6466 = vpop.f32.mrf.mxu0
      %v6467 = vadd.f32 0.0, %v6466
      %6468 = vmatmul.f32.gmra.mxu0 %v6423
      %v6469 = vpop.f32.mrf.mxu0
      %v6470 = vadd.f32 0.0, %v6469
      %6471 = vmatmul.f32.gmra.mxu0 %v6426
      %v6472 = vpop.f32.mrf.mxu0
      %v6473 = vadd.f32 0.0, %v6472
      %6474 = vmatmul.f32.gmra.mxu0 %v6429
      %v6475 = vpop.f32.mrf.mxu0
      %v6476 = vadd.f32 0.0, %v6475
      %6477 = vmatmul.f32.gmra.mxu0 %v6432
      %v6478 = vpop.f32.mrf.mxu0
      %v6479 = vadd.f32 0.0, %v6478
      %6480 = vmatmul.f32.gmra.mxu0 %v6435
      %v6481 = vpop.f32.mrf.mxu0
      %v6482 = vadd.f32 0.0, %v6481
      %6483 = vmatmul.f32.gmra.mxu0 %v6438
      %v6484 = vpop.f32.mrf.mxu0
      %v6485 = vadd.f32 0.0, %v6484
      %6486 = vmatmul.f32.gmra.mxu0 %v6441
      %v6487 = vpop.f32.mrf.mxu0
      %v6488 = vadd.f32 0.0, %v6487
      %6489 = vmatmul.f32.gmra.mxu0 %v6444
      %v6490 = vpop.f32.mrf.mxu0
      %v6491 = vadd.f32 0.0, %v6490
      %6492 = vdwg.mxu0
      %v6493 = vadd.f32 %v6305, %v6464
      %v6494 = vadd.f32 %v6306, %v6467
      %v6495 = vadd.f32 %v6307, %v6470
      %v6496 = vadd.f32 %v6308, %v6473
      %v6497 = vadd.f32 %v6309, %v6476
      %v6498 = vadd.f32 %v6310, %v6479
      %v6499 = vadd.f32 %v6311, %v6482
      %v6500 = vadd.f32 %v6312, %v6485
      %v6501 = vadd.f32 %v6313, %v6488
      %v6502 = vadd.f32 %v6314, %v6491
      %v6503 = vld [vmem:[%s6] sm:$0xff]
      %v6504 = vld [vmem:[%s6 + $0x8] sm:$0xff]
      %v6505 = vld [vmem:[%s6 + $0x10] sm:$0xff]
      %v6506 = vld [vmem:[%s6 + $0x18] sm:$0xff]
      %v6507 = vld [vmem:[%s6 + $0x20] sm:$0xff]
      %v6508 = vld [vmem:[%s6 + $0x28] sm:$0xff]
      %v6509 = vld [vmem:[%s6 + $0x30] sm:$0xff]
      %v6510 = vld [vmem:[%s6 + $0x38] sm:$0xff]
      %v6511 = vld [vmem:[%s6 + $0x40] sm:$0xff]
      %v6512 = vld [vmem:[%s6 + $0x48] sm:$0xff]
      %6514 = vset.pattern.permute.xlu0 0
      %6515 = vperm.xlu0 %6514, %v6503
      %v6516 = vpop.permute.xlu0 %6515
      %6519 = vset.pattern.permute.xlu0 0
      %6520 = vperm.xlu0 %6519, %v6504
      %v6521 = vpop.permute.xlu0 %6520
      %6524 = vset.pattern.permute.xlu0 0
      %6525 = vperm.xlu0 %6524, %v6505
      %v6526 = vpop.permute.xlu0 %6525
      %6529 = vset.pattern.permute.xlu0 0
      %6530 = vperm.xlu0 %6529, %v6506
      %v6531 = vpop.permute.xlu0 %6530
      %6534 = vset.pattern.permute.xlu0 0
      %6535 = vperm.xlu0 %6534, %v6507
      %v6536 = vpop.permute.xlu0 %6535
      %6539 = vset.pattern.permute.xlu0 0
      %6540 = vperm.xlu0 %6539, %v6508
      %v6541 = vpop.permute.xlu0 %6540
      %6544 = vset.pattern.permute.xlu0 0
      %6545 = vperm.xlu0 %6544, %v6509
      %v6546 = vpop.permute.xlu0 %6545
      %6549 = vset.pattern.permute.xlu0 0
      %6550 = vperm.xlu0 %6549, %v6510
      %v6551 = vpop.permute.xlu0 %6550
      %6554 = vset.pattern.permute.xlu0 0
      %6555 = vperm.xlu0 %6554, %v6511
      %v6556 = vpop.permute.xlu0 %6555
      %6559 = vset.pattern.permute.xlu0 0
      %6560 = vperm.xlu0 %6559, %v6512
      %v6561 = vpop.permute.xlu0 %6560
      %v6563 = vadd.f32 %v6493, %v6516
      %v6564 = vadd.f32 %v6494, %v6521
      %v6565 = vadd.f32 %v6495, %v6526
      %v6566 = vadd.f32 %v6496, %v6531
      %v6567 = vadd.f32 %v6497, %v6536
      %v6568 = vadd.f32 %v6498, %v6541
      %v6569 = vadd.f32 %v6499, %v6546
      %v6570 = vadd.f32 %v6500, %v6551
      %v6571 = vadd.f32 %v6501, %v6556
      %v6572 = vadd.f32 %v6502, %v6561
      %v6573 = vmax.f32 %v6563, 0.0
      %v6574 = vmax.f32 %v6564, 0.0
      %v6575 = vmax.f32 %v6565, 0.0
      %v6576 = vmax.f32 %v6566, 0.0
      %v6577 = vmax.f32 %v6567, 0.0
      %v6578 = vmax.f32 %v6568, 0.0
      %v6579 = vmax.f32 %v6569, 0.0
      %v6580 = vmax.f32 %v6570, 0.0
      %v6581 = vmax.f32 %v6571, 0.0
      %v6582 = vmax.f32 %v6572, 0.0
      %v6583 = vmax.f32 %v6573, %v6578
      %v6584 = vmax.f32 %v6574, %v6579
      %v6585 = vmax.f32 %v6575, %v6580
      %v6586 = vmax.f32 %v6576, %v6581
      %v6587 = vmax.f32 %v6577, %v6582
      %6593 = vrot.lane.b32.xlu0 %v6583, 96
      %v6594 = vpop.permute.xlu0 %6593
      %6595 = vrot.lane.b32.xlu0 %v6584, 96
      %v6596 = vpop.permute.xlu0 %6595
      %6597 = vrot.lane.b32.xlu0 %v6585, 96
      %v6598 = vpop.permute.xlu0 %6597
      %6599 = vrot.lane.b32.xlu0 %v6586, 96
      %v6600 = vpop.permute.xlu0 %6599
      %6601 = vrot.lane.b32.xlu0 %v6587, 96
      %v6602 = vpop.permute.xlu0 %6601
      %v6608 = vmax.f32 %v6583, %v6594
      %v6609 = vmax.f32 %v6584, %v6596
      %v6610 = vmax.f32 %v6585, %v6598
      %v6611 = vmax.f32 %v6586, %v6600
      %v6612 = vmax.f32 %v6587, %v6602
      %v6613 = vld [vmem:[%s7] sm:$0xff]
      %v6614 = vld [vmem:[%s7 + $0x8] sm:$0xff]
      %v6615 = vld [vmem:[%s7 + $0x10] sm:$0xff]
      %v6616 = vld [vmem:[%s7 + $0x18] sm:$0xff]
      %v6617 = vld [vmem:[%s7 + $0x20] sm:$0xff]
      %v6618 = vld [vmem:[%s7 + $0x28] sm:$0xff]
      %v6619 = vld [vmem:[%s7 + $0x30] sm:$0xff]
      %v6620 = vld [vmem:[%s7 + $0x38] sm:$0x3f]
      %s6621 = scalar_lea.vmem %s7, 64
      %v6622 = vld [vmem:[%s6621] sm:$0xff]
      %v6623 = vld [vmem:[%s6621 + $0x8] sm:$0xff]
      %v6624 = vld [vmem:[%s6621 + $0x10] sm:$0xff]
      %v6625 = vld [vmem:[%s6621 + $0x18] sm:$0xff]
      %v6626 = vld [vmem:[%s6621 + $0x20] sm:$0xff]
      %v6627 = vld [vmem:[%s6621 + $0x28] sm:$0xff]
      %v6628 = vld [vmem:[%s6621 + $0x30] sm:$0xff]
      %v6629 = vld [vmem:[%s6621 + $0x38] sm:$0x3f]
      %6635 = vrot.lane.b32.xlu0 %v6608, 120
      %v6636 = vpop.permute.xlu0 %6635
      %6637 = vrot.lane.b32.xlu0 %v6609, 120
      %v6638 = vpop.permute.xlu0 %6637
      %6639 = vrot.lane.b32.xlu0 %v6610, 120
      %v6640 = vpop.permute.xlu0 %6639
      %6641 = vrot.lane.b32.xlu0 %v6611, 120
      %v6642 = vpop.permute.xlu0 %6641
      %6643 = vrot.lane.b32.xlu0 %v6612, 120
      %v6644 = vpop.permute.xlu0 %6643
      %vm6650 = vcmask 326656
      %v6652 = vsel %vm6650, %v6622, 0
      %v6655 = vsel %vm6650, %v6623, 0
      %v6658 = vsel %vm6650, %v6624, 0
      %v6661 = vsel %vm6650, %v6625, 0
      %v6664 = vsel %vm6650, %v6626, 0
      %v6667 = vsel %vm6650, %v6627, 0
      %v6670 = vsel %vm6650, %v6628, 0
      %v6673 = vsel %vm6650, %v6629, 0
      %6675 = vmatpush.msra.mxu0 0.0
      %6676 = vmatpush.msra.mxu0 0.0
      %6677 = vmatpush.msra.mxu0 0.0
      %6678 = vmatpush.msra.mxu0 0.0
      %6679 = vmatpush.msra.mxu0 0.0
      %6680 = vmatpush.msra.mxu0 0.0
      %6681 = vmatpush.msra.mxu0 0.0
      %6682 = vmatpush.msra.mxu0 0.0
      %6683 = vmatpush.msra.mxu0 0.0
      %6684 = vmatpush.msra.mxu0 0.0
      %6685 = vmatpush.msra.mxu0 0.0
      %6686 = vmatpush.msra.mxu0 %v6644
      %6687 = vmatpush.msra.mxu0 %v6642
      %6688 = vmatpush.msra.mxu0 %v6640
      %6689 = vmatpush.msra.mxu0 %v6638
      %6690 = vmatpush.msra.mxu0 %v6636
      %6691 = vmatmul.f32.gmra.mxu0 %v6652
      %v6692 = vpop.f32.mrf.mxu0
      %v6693 = vadd.f32 0.0, %v6692
      %6694 = vmatmul.f32.gmra.mxu0 %v6655
      %v6695 = vpop.f32.mrf.mxu0
      %v6696 = vadd.f32 0.0, %v6695
      %6697 = vmatmul.f32.gmra.mxu0 %v6658
      %v6698 = vpop.f32.mrf.mxu0
      %v6699 = vadd.f32 0.0, %v6698
      %6700 = vmatmul.f32.gmra.mxu0 %v6661
      %v6701 = vpop.f32.mrf.mxu0
      %v6702 = vadd.f32 0.0, %v6701
      %6703 = vmatmul.f32.gmra.mxu0 %v6664
      %v6704 = vpop.f32.mrf.mxu0
      %v6705 = vadd.f32 0.0, %v6704
      %6706 = vmatmul.f32.gmra.mxu0 %v6667
      %v6707 = vpop.f32.mrf.mxu0
      %v6708 = vadd.f32 0.0, %v6707
      %6709 = vmatmul.f32.gmra.mxu0 %v6670
      %v6710 = vpop.f32.mrf.mxu0
      %v6711 = vadd.f32 0.0, %v6710
      %6712 = vmatmul.f32.gmra.mxu0 %v6673
      %v6713 = vpop.f32.mrf.mxu0
      %v6714 = vadd.f32 0.0, %v6713
      %6715 = vdwg.mxu0
      %v6717 = vsel %vm6650, %v6613, 0
      %v6720 = vsel %vm6650, %v6614, 0
      %v6723 = vsel %vm6650, %v6615, 0
      %v6726 = vsel %vm6650, %v6616, 0
      %v6729 = vsel %vm6650, %v6617, 0
      %v6732 = vsel %vm6650, %v6618, 0
      %v6735 = vsel %vm6650, %v6619, 0
      %v6738 = vsel %vm6650, %v6620, 0
      %6740 = vmatpush.msra.mxu0 0.0
      %6741 = vmatpush.msra.mxu0 0.0
      %6742 = vmatpush.msra.mxu0 0.0
      %6743 = vmatpush.msra.mxu0 0.0
      %6744 = vmatpush.msra.mxu0 0.0
      %6745 = vmatpush.msra.mxu0 0.0
      %6746 = vmatpush.msra.mxu0 0.0
      %6747 = vmatpush.msra.mxu0 0.0
      %6748 = vmatpush.msra.mxu0 0.0
      %6749 = vmatpush.msra.mxu0 0.0
      %6750 = vmatpush.msra.mxu0 0.0
      %6751 = vmatpush.msra.mxu0 %v6612
      %6752 = vmatpush.msra.mxu0 %v6611
      %6753 = vmatpush.msra.mxu0 %v6610
      %6754 = vmatpush.msra.mxu0 %v6609
      %6755 = vmatpush.msra.mxu0 %v6608
      %6756 = vmatmul.f32.gmra.mxu0 %v6717
      %v6757 = vpop.f32.mrf.mxu0
      %v6758 = vadd.f32 %v6693, %v6757
      %6759 = vmatmul.f32.gmra.mxu0 %v6720
      %v6760 = vpop.f32.mrf.mxu0
      %v6761 = vadd.f32 %v6696, %v6760
      %6762 = vmatmul.f32.gmra.mxu0 %v6723
      %v6763 = vpop.f32.mrf.mxu0
      %v6764 = vadd.f32 %v6699, %v6763
      %6765 = vmatmul.f32.gmra.mxu0 %v6726
      %v6766 = vpop.f32.mrf.mxu0
      %v6767 = vadd.f32 %v6702, %v6766
      %6768 = vmatmul.f32.gmra.mxu0 %v6729
      %v6769 = vpop.f32.mrf.mxu0
      %v6770 = vadd.f32 %v6705, %v6769
      %6771 = vmatmul.f32.gmra.mxu0 %v6732
      %v6772 = vpop.f32.mrf.mxu0
      %v6773 = vadd.f32 %v6708, %v6772
      %6774 = vmatmul.f32.gmra.mxu0 %v6735
      %v6775 = vpop.f32.mrf.mxu0
      %v6776 = vadd.f32 %v6711, %v6775
      %6777 = vmatmul.f32.gmra.mxu0 %v6738
      %v6778 = vpop.f32.mrf.mxu0
      %v6779 = vadd.f32 %v6714, %v6778
      %6780 = vdwg.mxu0
      %s6781 = scalar_lea.vmem %s7, 128
      %v6782 = vld [vmem:[%s6781] sm:$0xff]
      %v6783 = vld [vmem:[%s6781 + $0x8] sm:$0xff]
      %v6784 = vld [vmem:[%s6781 + $0x10] sm:$0xff]
      %v6785 = vld [vmem:[%s6781 + $0x18] sm:$0xff]
      %v6786 = vld [vmem:[%s6781 + $0x20] sm:$0xff]
      %v6787 = vld [vmem:[%s6781 + $0x28] sm:$0xff]
      %v6788 = vld [vmem:[%s6781 + $0x30] sm:$0xff]
      %v6789 = vld [vmem:[%s6781 + $0x38] sm:$0x3f]
      %6790 = vrot.lane.b32.xlu0 %v6608, 112
      %v6791 = vpop.permute.xlu0 %6790
      %6792 = vrot.lane.b32.xlu0 %v6609, 112
      %v6793 = vpop.permute.xlu0 %6792
      %6794 = vrot.lane.b32.xlu0 %v6610, 112
      %v6795 = vpop.permute.xlu0 %6794
      %6796 = vrot.lane.b32.xlu0 %v6611, 112
      %v6797 = vpop.permute.xlu0 %6796
      %6798 = vrot.lane.b32.xlu0 %v6612, 112
      %v6799 = vpop.permute.xlu0 %6798
      %v6806 = vsel %vm6650, %v6782, 0
      %v6809 = vsel %vm6650, %v6783, 0
      %v6812 = vsel %vm6650, %v6784, 0
      %v6815 = vsel %vm6650, %v6785, 0
      %v6818 = vsel %vm6650, %v6786, 0
      %v6821 = vsel %vm6650, %v6787, 0
      %v6824 = vsel %vm6650, %v6788, 0
      %v6827 = vsel %vm6650, %v6789, 0
      %6829 = vmatpush.msra.mxu0 0.0
      %6830 = vmatpush.msra.mxu0 0.0
      %6831 = vmatpush.msra.mxu0 0.0
      %6832 = vmatpush.msra.mxu0 0.0
      %6833 = vmatpush.msra.mxu0 0.0
      %6834 = vmatpush.msra.mxu0 0.0
      %6835 = vmatpush.msra.mxu0 0.0
      %6836 = vmatpush.msra.mxu0 0.0
      %6837 = vmatpush.msra.mxu0 0.0
      %6838 = vmatpush.msra.mxu0 0.0
      %6839 = vmatpush.msra.mxu0 0.0
      %6840 = vmatpush.msra.mxu0 %v6799
      %6841 = vmatpush.msra.mxu0 %v6797
      %6842 = vmatpush.msra.mxu0 %v6795
      %6843 = vmatpush.msra.mxu0 %v6793
      %6844 = vmatpush.msra.mxu0 %v6791
      %6845 = vmatmul.f32.gmra.mxu0 %v6806
      %v6846 = vpop.f32.mrf.mxu0
      %v6847 = vadd.f32 0.0, %v6846
      %6848 = vmatmul.f32.gmra.mxu0 %v6809
      %v6849 = vpop.f32.mrf.mxu0
      %v6850 = vadd.f32 0.0, %v6849
      %6851 = vmatmul.f32.gmra.mxu0 %v6812
      %v6852 = vpop.f32.mrf.mxu0
      %v6853 = vadd.f32 0.0, %v6852
      %6854 = vmatmul.f32.gmra.mxu0 %v6815
      %v6855 = vpop.f32.mrf.mxu0
      %v6856 = vadd.f32 0.0, %v6855
      %6857 = vmatmul.f32.gmra.mxu0 %v6818
      %v6858 = vpop.f32.mrf.mxu0
      %v6859 = vadd.f32 0.0, %v6858
      %6860 = vmatmul.f32.gmra.mxu0 %v6821
      %v6861 = vpop.f32.mrf.mxu0
      %v6862 = vadd.f32 0.0, %v6861
      %6863 = vmatmul.f32.gmra.mxu0 %v6824
      %v6864 = vpop.f32.mrf.mxu0
      %v6865 = vadd.f32 0.0, %v6864
      %6866 = vmatmul.f32.gmra.mxu0 %v6827
      %v6867 = vpop.f32.mrf.mxu0
      %v6868 = vadd.f32 0.0, %v6867
      %6869 = vdwg.mxu0
      %v6870 = vadd.f32 %v6758, %v6847
      %v6871 = vadd.f32 %v6761, %v6850
      %v6872 = vadd.f32 %v6764, %v6853
      %v6873 = vadd.f32 %v6767, %v6856
      %v6874 = vadd.f32 %v6770, %v6859
      %v6875 = vadd.f32 %v6773, %v6862
      %v6876 = vadd.f32 %v6776, %v6865
      %v6877 = vadd.f32 %v6779, %v6868
      %s6878 = scalar_lea.vmem %s7, 192
      %v6879 = vld [vmem:[%s6878] sm:$0xff]
      %v6880 = vld [vmem:[%s6878 + $0x8] sm:$0xff]
      %v6881 = vld [vmem:[%s6878 + $0x10] sm:$0xff]
      %v6882 = vld [vmem:[%s6878 + $0x18] sm:$0xff]
      %v6883 = vld [vmem:[%s6878 + $0x20] sm:$0xff]
      %v6884 = vld [vmem:[%s6878 + $0x28] sm:$0xff]
      %v6885 = vld [vmem:[%s6878 + $0x30] sm:$0xff]
      %v6886 = vld [vmem:[%s6878 + $0x38] sm:$0x3f]
      %6887 = vrot.lane.b32.xlu0 %v6608, 104
      %v6888 = vpop.permute.xlu0 %6887
      %6889 = vrot.lane.b32.xlu0 %v6609, 104
      %v6890 = vpop.permute.xlu0 %6889
      %6891 = vrot.lane.b32.xlu0 %v6610, 104
      %v6892 = vpop.permute.xlu0 %6891
      %6893 = vrot.lane.b32.xlu0 %v6611, 104
      %v6894 = vpop.permute.xlu0 %6893
      %6895 = vrot.lane.b32.xlu0 %v6612, 104
      %v6896 = vpop.permute.xlu0 %6895
      %v6903 = vsel %vm6650, %v6879, 0
      %v6906 = vsel %vm6650, %v6880, 0
      %v6909 = vsel %vm6650, %v6881, 0
      %v6912 = vsel %vm6650, %v6882, 0
      %v6915 = vsel %vm6650, %v6883, 0
      %v6918 = vsel %vm6650, %v6884, 0
      %v6921 = vsel %vm6650, %v6885, 0
      %v6924 = vsel %vm6650, %v6886, 0
      %6926 = vmatpush.msra.mxu0 0.0
      %6927 = vmatpush.msra.mxu0 0.0
      %6928 = vmatpush.msra.mxu0 0.0
      %6929 = vmatpush.msra.mxu0 0.0
      %6930 = vmatpush.msra.mxu0 0.0
      %6931 = vmatpush.msra.mxu0 0.0
      %6932 = vmatpush.msra.mxu0 0.0
      %6933 = vmatpush.msra.mxu0 0.0
      %6934 = vmatpush.msra.mxu0 0.0
      %6935 = vmatpush.msra.mxu0 0.0
      %6936 = vmatpush.msra.mxu0 0.0
      %6937 = vmatpush.msra.mxu0 %v6896
      %6938 = vmatpush.msra.mxu0 %v6894
      %6939 = vmatpush.msra.mxu0 %v6892
      %6940 = vmatpush.msra.mxu0 %v6890
      %6941 = vmatpush.msra.mxu0 %v6888
      %6942 = vmatmul.f32.gmra.mxu0 %v6903
      %v6943 = vpop.f32.mrf.mxu0
      %v6944 = vadd.f32 0.0, %v6943
      %6945 = vmatmul.f32.gmra.mxu0 %v6906
      %v6946 = vpop.f32.mrf.mxu0
      %v6947 = vadd.f32 0.0, %v6946
      %6948 = vmatmul.f32.gmra.mxu0 %v6909
      %v6949 = vpop.f32.mrf.mxu0
      %v6950 = vadd.f32 0.0, %v6949
      %6951 = vmatmul.f32.gmra.mxu0 %v6912
      %v6952 = vpop.f32.mrf.mxu0
      %v6953 = vadd.f32 0.0, %v6952
      %6954 = vmatmul.f32.gmra.mxu0 %v6915
      %v6955 = vpop.f32.mrf.mxu0
      %v6956 = vadd.f32 0.0, %v6955
      %6957 = vmatmul.f32.gmra.mxu0 %v6918
      %v6958 = vpop.f32.mrf.mxu0
      %v6959 = vadd.f32 0.0, %v6958
      %6960 = vmatmul.f32.gmra.mxu0 %v6921
      %v6961 = vpop.f32.mrf.mxu0
      %v6962 = vadd.f32 0.0, %v6961
      %6963 = vmatmul.f32.gmra.mxu0 %v6924
      %v6964 = vpop.f32.mrf.mxu0
      %v6965 = vadd.f32 0.0, %v6964
      %6966 = vdwg.mxu0
      %v6967 = vadd.f32 %v6870, %v6944
      %v6968 = vadd.f32 %v6871, %v6947
      %v6969 = vadd.f32 %v6872, %v6950
      %v6970 = vadd.f32 %v6873, %v6953
      %v6971 = vadd.f32 %v6874, %v6956
      %v6972 = vadd.f32 %v6875, %v6959
      %v6973 = vadd.f32 %v6876, %v6962
      %v6974 = vadd.f32 %v6877, %v6965
      %v6975 = vld [vmem:[%s8] sm:$0xff]
      %v6976 = vld [vmem:[%s8 + $0x8] sm:$0xff]
      %v6977 = vld [vmem:[%s8 + $0x10] sm:$0xff]
      %v6978 = vld [vmem:[%s8 + $0x18] sm:$0xff]
      %v6979 = vld [vmem:[%s8 + $0x20] sm:$0xff]
      %v6980 = vld [vmem:[%s8 + $0x28] sm:$0xff]
      %v6981 = vld [vmem:[%s8 + $0x30] sm:$0xff]
      %v6982 = vld [vmem:[%s8 + $0x38] sm:$0x3f]
      %6984 = vset.pattern.permute.xlu0 0
      %6985 = vperm.xlu0 %6984, %v6975
      %v6986 = vpop.permute.xlu0 %6985
      %6989 = vset.pattern.permute.xlu0 0
      %6990 = vperm.xlu0 %6989, %v6976
      %v6991 = vpop.permute.xlu0 %6990
      %6994 = vset.pattern.permute.xlu0 0
      %6995 = vperm.xlu0 %6994, %v6977
      %v6996 = vpop.permute.xlu0 %6995
      %6999 = vset.pattern.permute.xlu0 0
      %7000 = vperm.xlu0 %6999, %v6978
      %v7001 = vpop.permute.xlu0 %7000
      %7004 = vset.pattern.permute.xlu0 0
      %7005 = vperm.xlu0 %7004, %v6979
      %v7006 = vpop.permute.xlu0 %7005
      %7009 = vset.pattern.permute.xlu0 0
      %7010 = vperm.xlu0 %7009, %v6980
      %v7011 = vpop.permute.xlu0 %7010
      %7014 = vset.pattern.permute.xlu0 0
      %7015 = vperm.xlu0 %7014, %v6981
      %v7016 = vpop.permute.xlu0 %7015
      %7019 = vset.pattern.permute.xlu0 0
      %7020 = vperm.xlu0 %7019, %v6982
      %v7021 = vpop.permute.xlu0 %7020
      %v7023 = vadd.f32 %v6967, %v6986
      %v7024 = vadd.f32 %v6968, %v6991
      %v7025 = vadd.f32 %v6969, %v6996
      %v7026 = vadd.f32 %v6970, %v7001
      %v7027 = vadd.f32 %v6971, %v7006
      %v7028 = vadd.f32 %v6972, %v7011
      %v7029 = vadd.f32 %v6973, %v7016
      %v7030 = vadd.f32 %v6974, %v7021
      %vm7031 = vcmask 64512
      %7032 = vst.msk [vmem:[%s367] sm:$0xff] %vm7031, %v7023
      %7033 = vst.msk [vmem:[%s367 + $0x8] sm:$0xff] %vm7031, %v7024
      %7034 = vst.msk [vmem:[%s367 + $0x10] sm:$0xff] %vm7031, %v7025
      %7035 = vst.msk [vmem:[%s367 + $0x18] sm:$0xff] %vm7031, %v7026
      %7036 = vst.msk [vmem:[%s367 + $0x20] sm:$0xff] %vm7031, %v7027
      %7037 = vst.msk [vmem:[%s367 + $0x28] sm:$0xff] %vm7031, %v7028
      %7038 = vst.msk [vmem:[%s367 + $0x30] sm:$0xff] %vm7031, %v7029
      %vm7039 = vcmask 62464
      %7040 = vst.msk [vmem:[%s367 + $0x38] sm:$0x3f] %vm7039, %v7030
      %7041 = vst.msk [vmem:[%s372] sm:$0xff] %vm5538, %v6608
      %7042 = vst.msk [vmem:[%s372 + $0x8] sm:$0xff] %vm5538, %v6609
      %7043 = vst.msk [vmem:[%s372 + $0x10] sm:$0xff] %vm5538, %v6610
      %7044 = vst.msk [vmem:[%s372 + $0x18] sm:$0xff] %vm5538, %v6611
      %7045 = vst.msk [vmem:[%s372 + $0x20] sm:$0xff] %vm5538, %v6612
      %p7046 = scmp.lt.s32.totalorder %s22, 1
      %s7047 = scalar_select %p7046, %s22, 1
      %s7048 = smul.addr %s7047, 8
      %s7049 = smul.addr %s7048, 8
      %s7050 = scalar_lea.vmem %s9, %s7049
      %p7051 = scmp.lt.s32.totalorder %s22, 1
      %s7052 = scalar_select %p7051, %s22, 1
      %s7053 = smul.addr %s7052, 5
      %s7054 = smul.addr %s7053, 8
      %s7055 = scalar_lea.vmem %s10, %s7054
      // Predicated region
      $region57: #{tpu_custom_call.1} parent=55 // pred_check
        %p7056 = pneg %p234
      $region58: #{tpu_custom_call.1} parent=55 // pred_check_branch
        %7058 = sbr.rel (%p7056) target = $region60
      $region59: #{tpu_custom_call.1} parent=55 // pred_region
        _
      $region60: #{tpu_custom_call.1} parent=55 // pred_fallthru
        _
      // Predicated region
      $region61: #{tpu_custom_call.1} parent=55 // pred_check
        %p7059 = pneg %p260
      $region62: #{tpu_custom_call.1} parent=55 // pred_check_branch
        %7061 = sbr.rel (%p7059) target = $region64
      $region63: #{tpu_custom_call.1} parent=55 // pred_region
        _
      $region64: #{tpu_custom_call.1} parent=55 // pred_fallthru
        _
    $region56: #{tpu_custom_call.1} parent=5 // pred_fallthru
      _
    %p7062 = scmp.le.s32.totalorder 2, %s17
    // Predicated region
    $region65: #{tpu_custom_call.1} parent=5 // pred_check
      %p7063 = pneg %p7062
    $region66: #{tpu_custom_call.1} parent=5 // pred_check_branch
      %7065 = sbr.rel (%p7063) target = $region68
    $region67: #{tpu_custom_call.1} parent=5 // pred_region
      %s7066 = ssub.s32 %s17, 2
      // Predicated region
      $region69: #{tpu_custom_call.1} parent=67 // pred_check
        %p7067 = pneg %p240
      $region70: #{tpu_custom_call.1} parent=67 // pred_check_branch
        %7069 = sbr.rel (%p7067) target = $region72
      $region71: #{tpu_custom_call.1} parent=67 // pred_region
        %p7070 = scmp.lt.s32.totalorder %s23, 1
        %s7071 = scalar_select %p7070, %s23, 1
        %s7072 = smul.addr %s7071, 8
        %s7073 = smul.addr %s7072, 8
        %s7074 = scalar_lea.vmem %s9, %s7073
      $region72: #{tpu_custom_call.1} parent=67 // pred_fallthru
        _
      // Predicated region
      $region73: #{tpu_custom_call.1} parent=67 // pred_check
        %p7075 = pneg %p266
      $region74: #{tpu_custom_call.1} parent=67 // pred_check_branch
        %7077 = sbr.rel (%p7075) target = $region76
      $region75: #{tpu_custom_call.1} parent=67 // pred_region
        %p7078 = scmp.lt.s32.totalorder %s23, 1
        %s7079 = scalar_select %p7078, %s23, 1
        %s7080 = smul.addr %s7079, 5
        %s7081 = smul.addr %s7080, 8
        %s7082 = scalar_lea.vmem %s10, %s7081
      $region76: #{tpu_custom_call.1} parent=67 // pred_fallthru
        _
    $region68: #{tpu_custom_call.1} parent=5 // pred_fallthru
      _
  $region6: #{tpu_custom_call.1} parent=0 // loop_footer
    %s21 = sadd.s32 1, %s17
  $region7: #{tpu_custom_call.1} parent=0 // loop_footer_branch
    %16 = sbr.rel target = $region3
  $region8: #{tpu_custom_call.1} parent=0 // loop_exit
    _

</llo_original>
